<compile_context>
chip_gen: v5e
topology: v5e:2x2
jax: 0.10.0
libtpu: 0.0.40
codegen_flags: <defaults>
</compile_context>

<pallas_src>
import math

import jax
import jax.numpy as jnp
import numpy as np
from jax.experimental import pallas as pl
from jax.experimental.pallas import tpu as pltpu


# CompilerParams was renamed across jax versions; keep a graceful fallback.
_CompilerParams = getattr(pltpu, "CompilerParams", None) or getattr(pltpu, "TPUCompilerParams")
_HAS_BUFFERED = hasattr(pl, "Buffered")


def _round_up(v, m):
    return ((v + m - 1) // m) * m


def _silu(v):
    return v * jax.nn.sigmoid(v)


def _l_of_m(lmax):
    return jnp.concatenate(
        [jnp.full((2 * l + 1,), l, jnp.int32) for l in range(lmax + 1)])


def _block_spec(shape, index_map, *, single_buffer=False):
    """BlockSpec; grid-constant operands request single buffering when supported."""
    if single_buffer and _HAS_BUFFERED:
        try:
            return pl.BlockSpec(shape, index_map, pipeline_mode=pl.Buffered(1))
        except Exception:  # older jax: no pipeline_mode kwarg / Buffered(1)
            pass
    return pl.BlockSpec(shape, index_map)


# ---------------------------------------------------------------------------
# Kernel:  acc += SiLU(x @ W1[:, k_tile] + b1[k_tile]) @ W2[k_tile, :]
#          o    = acc + b2                     (on the last hidden tile)
# bf16 MXU operands, f32 accumulate / bias / activation.
# ---------------------------------------------------------------------------
def fused_mlp_kernel(x_ref, w1_ref, b1_ref, w2_ref, b2_ref, o_ref, acc_ref):
    @pl.when(pl.program_id(1) == 0)
    def _():
        acc_ref[...] = jnp.zeros_like(acc_ref)

    h = jnp.dot(x_ref[...], w1_ref[...], preferred_element_type=jnp.float32)
    h = h + b1_ref[...]
    # SiLU via tanh identity: silu(h) = h*sigmoid(h) = 0.5*h*(1 + tanh(0.5*h))
    # -> a single EUP op instead of exp + reciprocal (EUP is the likely binding slot).
    a = (0.5 * h) * (1.0 + jnp.tanh(0.5 * h))
    acc_ref[...] += jnp.dot(a.astype(jnp.bfloat16), w2_ref[...],
                            preferred_element_type=jnp.float32)

    @pl.when(pl.program_id(1) == pl.num_programs(1) - 1)
    def _():
        o_ref[...] = (acc_ref[...] + b2_ref[...]).astype(o_ref.dtype)


def fused_mlp(x2d, w1, b1, w2, b2, *, block_n=512, block_h=None,
              out_dtype=jnp.float32, vmem_limit_bytes=64 * 1024 * 1024):
    """Row/hidden tiled:  SiLU(x2d @ w1 + b1) @ w2 + b2.

    x2d: [N, K] bf16; w1: [K, Hf] bf16; b1: [1, Hf] f32; w2: [Hf, O] bf16; b2: [1, O] f32.
    O must be a multiple of 128 (lane-dense stores); Hf must be a multiple of block_h
    (the builder zero-pads the hidden dim so partial hidden tiles never occur).
    """
    n, kdim = x2d.shape
    hidden = w1.shape[1]
    odim = w2.shape[1]

    block_n = min(block_n, _round_up(max(n, 1), 8))
    if block_h is None:
        block_h = hidden if hidden <= 4096 else 2048
    assert hidden % block_h == 0, "hidden dim must be padded to a multiple of block_h"

    grid = (pl.cdiv(n, block_n), hidden // block_h)
    const_w = (grid[1] == 1)   # weight index maps constant over the whole grid

    def _call(use_single_buffer):
        sb_w = use_single_buffer and const_w
        in_specs = [
            pl.BlockSpec((block_n, kdim), lambda i, j: (i, 0)),                       # x rows
            _block_spec((kdim, block_h), lambda i, j: (0, j), single_buffer=sb_w),    # W1
            _block_spec((1, block_h), lambda i, j: (0, j), single_buffer=sb_w),       # b1
            _block_spec((block_h, odim), lambda i, j: (j, 0), single_buffer=sb_w),    # W2
            _block_spec((1, odim), lambda i, j: (0, 0), single_buffer=use_single_buffer),  # b2
        ]
        return pl.pallas_call(
            fused_mlp_kernel,
            out_shape=jax.ShapeDtypeStruct((n, odim), out_dtype),
            grid=grid,
            in_specs=in_specs,
            out_specs=pl.BlockSpec((block_n, odim), lambda i, j: (i, 0)),
            scratch_shapes=[pltpu.VMEM((block_n, odim), jnp.float32)],
            compiler_params=_CompilerParams(
                dimension_semantics=("parallel", "arbitrary"),
                vmem_limit_bytes=vmem_limit_bytes),
        )(x2d, w1, b1, w2, b2)

    if _HAS_BUFFERED:
        try:
            return _call(True)
        except Exception:
            pass   # Buffered(1) not supported by this jax/Mosaic: use default double-buffering
    return _call(False)


# ---------------------------------------------------------------------------
# Parameter construction (matches _init_weights: normal(0, 1/sqrt(in)), zero bias)
# ---------------------------------------------------------------------------
def make_ffn_head_params(key, C, H, O, lmax):
    k1, k2, k3 = jax.random.split(key, 3)
    return dict(
        w1=jax.random.normal(k1, (lmax + 1, H, C), jnp.float32) / math.sqrt(C),  # so3_linear_1.weight
        b1=jnp.zeros((H,), jnp.float32),                                         # so3_linear_1.bias (l=0 only)
        wg=jax.random.normal(k2, (H, C), jnp.float32) / math.sqrt(C),            # gating_linear.weight
        bg=jnp.zeros((H,), jnp.float32),
        w2=jax.random.normal(k3, (lmax + 1, O, H), jnp.float32) / math.sqrt(H),  # so3_linear_2.weight
        b2=jnp.zeros((O,), jnp.float32),                                         # so3_linear_2.bias (l=0 only)
    )


def build_fused_decoder_params(p_at, p_fc, p_pos, p_lat, to_grid, from_grid, lmax, C, H):
    """Fold grid transforms / head selection into block-structured weights (host-side, once)."""
    M = (lmax + 1) ** 2
    MC = M * C
    G = to_grid.shape[0]
    GH = G * H
    O_at = p_at['w2'].shape[1]
    O_fc = p_fc['w2'].shape[1]
    O_total = O_at + O_fc + 3
    o_pad = _round_up(O_total, 128)                    # lane-dense output stores

    # ---- first matmul columns = [atom_types gating | frac_coords gating | pos grid values]
    w_at = jnp.zeros((MC, H), jnp.float32).at[:C, :].set(p_at['wg'].T)
    w_fc = jnp.zeros((MC, H), jnp.float32).at[:C, :].set(p_fc['wg'].T)
    w1_exp = jnp.transpose(jnp.take(p_pos['w1'], _l_of_m(lmax), axis=0), (0, 2, 1))  # [M, C, H]
    w_pos = jnp.einsum('gm,mch->mcgh', to_grid, w1_exp).reshape(MC, GH)
    W1 = jnp.concatenate([w_at, w_fc, w_pos], axis=1)                                # [MC, 2H+GH]
    b1 = jnp.concatenate([p_at['bg'], p_fc['bg'],
                          (to_grid[:, 0:1] * p_pos['b1'][None, :]).reshape(GH)])

    # ---- second matmul: block-diagonal, padded to a 128-wide output
    K2 = 2 * H + GH
    W2 = jnp.zeros((K2, o_pad), jnp.float32)
    W2 = W2.at[:H, :O_at].set(p_at['w2'][0].T)
    W2 = W2.at[H:2 * H, O_at:O_at + O_fc].set(p_fc['w2'][0].T)
    w2_pos_l1 = p_pos['w2'][1, 0, :]                                                 # [H]  (O=1, l=1)
    w_out_pos = jnp.einsum('gj,h->ghj', from_grid[:, 1:4], w2_pos_l1).reshape(GH, 3)
    W2 = W2.at[2 * H:, O_at + O_fc:O_total].set(w_out_pos)
    # TODO(synk): W2 is ~97% structural zeros; at production H/lmax split the second matmul
    # (K=2H scalar block + low-rank pos contraction) if profiling shows MXU/VMEM binding.
    b2 = jnp.zeros((o_pad,), jnp.float32)
    b2 = b2.at[:O_at].set(p_at['b2']).at[O_at:O_at + O_fc].set(p_fc['b2'])
    # (pos output rows are l=1: no bias)

    # zero-pad the hidden dim so it can be tiled by an "arbitrary" grid axis
    hidden = K2
    hidden_pad = _round_up(hidden, 128)
    block_h = hidden_pad if hidden_pad <= 4096 else 2048
    hidden_pad = _round_up(hidden_pad, block_h)
    if hidden_pad != hidden:
        W1 = jnp.pad(W1, ((0, 0), (0, hidden_pad - hidden)))
        b1 = jnp.pad(b1, (0, hidden_pad - hidden))
        W2 = jnp.pad(W2, ((0, hidden_pad - hidden), (0, 0)))

    per_atom = dict(w1=W1.astype(jnp.bfloat16), b1=b1.reshape(1, -1),
                    w2=W2.astype(jnp.bfloat16), b2=b2.reshape(1, -1),
                    o_at=O_at, o_fc=O_fc, block_h=block_h)

    # ---- lattice head (l=0 only): tiny [B, C] MLP, kept in plain XLA (fuses with pooling)
    lattice = dict(wg=p_lat['wg'], bg=p_lat['bg'], w2=p_lat['w2'][0], b2=p_lat['b2'])

    return dict(per_atom=per_atom, lattice=lattice)


# ---------------------------------------------------------------------------
# Decoder forward
# ---------------------------------------------------------------------------
def feedforward_decoder(x, num_atoms, batch, fused_params, lmax, sphere_channels):
    """x: [N, M, C] (= torch x.view(-1, (lmax+1)**2, C)); num_atoms: [B]; batch: [N]."""
    M = (lmax + 1) ** 2
    C = sphere_channels
    N = x.shape[0]
    B = num_atoms.shape[0]

    # bf16 input: halves x HBM read bytes and the x VMEM tile (MXU operand is bf16 anyway).
    x_flat = x.reshape(N, M * C)
    if x_flat.dtype != jnp.bfloat16:
        x_flat = x_flat.astype(jnp.bfloat16)

    # fused per-atom heads: atom_types + frac_coords + pos (single pallas_call)
    pa = fused_params['per_atom']
    out_pa = fused_mlp(x_flat, pa['w1'], pa['b1'], pa['w2'], pa['b2'],
                       block_h=pa['block_h'])                              # [N, 128] f32
    o_at, o_fc = pa['o_at'], pa['o_fc']
    atom_types = out_pa[:, :o_at]
    frac_coords = out_pa[:, o_at:o_at + o_fc]
    pos = out_pa[:, o_at + o_fc:o_at + o_fc + 3]

    # scatter(reduce='mean') of l=0 coefficients + lattice MLP: tiny, stays in XLA (f32).
    x_l0 = x[:, 0, :].astype(jnp.float32)
    denom = jnp.maximum(num_atoms.astype(jnp.float32), 1.0)
    x_pool = jax.ops.segment_sum(x_l0, batch, num_segments=B) / denom[:, None]   # [B, C]
    lp = fused_params['lattice']
    lattices = _silu(x_pool @ lp['wg'].T + lp['bg']) @ lp['w2'].T + lp['b2']

    return {
        'atom_types': atom_types,
        'lattices': lattices,
        'lengths': lattices[:, :3],
        'angles': lattices[:, 3:],
        'frac_coords': frac_coords,
        'pos': pos,
    }


# ---------------------------------------------------------------------------
# Pure-JAX f32 reference (straight port of FeedForwardNetwork.forward) for checking
# ---------------------------------------------------------------------------
def _reference_head(x_nmc, p, to_grid, from_grid, lmax):
    lm = _l_of_m(lmax)
    g = _silu(x_nmc[:, 0, :] @ p['wg'].T + p['bg'])                         # gating (SiLU)
    w1e = jnp.take(p['w1'], lm, axis=0)                                     # [M, H, C]
    h = jnp.einsum('nmc,mhc->nmh', x_nmc, w1e)
    h = h.at[:, 0, :].add(p['b1'])                                          # bias on l=0 only
    xg = _silu(jnp.einsum('gm,nmh->ngh', to_grid, h))                       # S2 activation
    y = jnp.einsum('gm,ngh->nmh', from_grid, xg)
    y = y.at[:, 0, :].set(g)                                                # separable: replace m=0
    w2e = jnp.take(p['w2'], lm, axis=0)                                     # [M, O, H]
    out = jnp.einsum('nmh,moh->nmo', y, w2e)
    out = out.at[:, 0, :].add(p['b2'])
    return out


if __name__ == "__main__":
    # Small configuration consistent with the module (reduced hyperparameters).
    lmax = 2                      # lmax_list=[2]
    C = 32                        # sphere_channels
    H = 64                        # ffn_hidden_channels
    max_num_elements = 16
    M = (lmax + 1) ** 2           # 9 spherical coefficients
    N = 16                        # total atoms
    B = 2                         # graphs in batch
    num_atoms = jnp.array([8, 8], jnp.int32)
    batch = jnp.repeat(jnp.arange(B, dtype=jnp.int32), N // B)

    key = jax.random.PRNGKey(0)
    kx, kg, kh = jax.random.split(key, 3)

    x = jax.random.normal(kx, (N, M, C), jnp.float32)

    # SO3_Grid transform matrices (shapes from SO3_Grid: lat=2(l+1), long=2(l+1)+1).
    # TODO(synk): exact e3nn ToS2Grid/FromS2Grid spherical-harmonic + quadrature buffers
    # are not reproduced; deterministic surrogate matrices with the correct shapes are used.
    lat_res = 2 * (lmax + 1)
    long_res = 2 * (lmax + 1) + 1
    G = lat_res * long_res
    kg1, kg2 = jax.random.split(kg)
    to_grid = jax.random.normal(kg1, (G, M), jnp.float32) / math.sqrt(M)
    from_grid = jax.random.normal(kg2, (G, M), jnp.float32) / math.sqrt(G)

    keys = jax.random.split(kh, 4)
    p_at = make_ffn_head_params(keys[0], C, H, max_num_elements, lmax)
    p_pos = make_ffn_head_params(keys[1], C, H, 1, lmax)
    p_fc = make_ffn_head_params(keys[2], C, H, 3, lmax)
    p_lat = make_ffn_head_params(keys[3], C, H, 6, lmax)

    fused = build_fused_decoder_params(p_at, p_fc, p_pos, p_lat,
                                       to_grid, from_grid, lmax, C, H)

    out = jax.block_until_ready(
        feedforward_decoder(x, num_atoms, batch, fused, lmax, C))

    assert out['atom_types'].shape == (N, max_num_elements)
    assert out['lattices'].shape == (B, 6)
    assert out['lengths'].shape == (B, 3)
    assert out['angles'].shape == (B, 3)
    assert out['frac_coords'].shape == (N, 3)
    assert out['pos'].shape == (N, 3)

    # Correctness check against an unfused f32 pure-JAX port of the PyTorch module
    # (loose tolerance: kernel uses bf16 x / bf16 folded weights with f32 accumulation).
    at_ref = _reference_head(x, p_at, to_grid, from_grid, lmax)[:, 0, :]
    fc_ref = _reference_head(x, p_fc, to_grid, from_grid, lmax)[:, 0, :]
    pos_ref = _reference_head(x, p_pos, to_grid, from_grid, lmax)[:, 1:4, 0]
    x_global = (jax.ops.segment_sum(x, batch, num_segments=B)
                / jnp.maximum(num_atoms.astype(jnp.float32), 1.0)[:, None, None])
    lat_ref = _reference_head(x_global, p_lat, to_grid, from_grid, lmax)[:, 0, :]

    np.testing.assert_allclose(np.asarray(out['atom_types']), np.asarray(at_ref), rtol=5e-2, atol=1e-1)
    np.testing.assert_allclose(np.asarray(out['frac_coords']), np.asarray(fc_ref), rtol=5e-2, atol=1e-1)
    np.testing.assert_allclose(np.asarray(out['pos']), np.asarray(pos_ref), rtol=5e-2, atol=1e-1)
    np.testing.assert_allclose(np.asarray(out['lattices']), np.asarray(lat_ref), rtol=5e-2, atol=1e-1)

    print("KERNEL_OK")
</pallas_src>

<mosaic_0001>
module attributes {stable_mosaic.version = 11 : i64} {
  func.func @fused_mlp_kernel(%arg0: i32, %arg1: i32, %arg2: memref<16x288xbf16, #tpu.memory_space<vmem>>, %arg3: memref<288x2816xbf16, #tpu.memory_space<vmem>>, %arg4: memref<1x2816xf32, #tpu.memory_space<vmem>>, %arg5: memref<2816x128xbf16, #tpu.memory_space<vmem>>, %arg6: memref<1x128xf32, #tpu.memory_space<vmem>>, %arg7: memref<16x128xf32, #tpu.memory_space<vmem>>, %arg8: memref<16x128xf32, #tpu.memory_space<vmem>>) attributes {dimension_semantics = [#tpu.dimension_semantics<parallel>, #tpu.dimension_semantics<arbitrary>], iteration_bounds = array<i64: 1, 1>, scalar_prefetch = 0 : i64, scratch_operands = 1 : i64, tpu.core_type = #tpu.core_type<tc>, window_params = [{transform_indices = @transform_0, window_bounds = array<i64: 16, 288>}, {pipeline_mode = #tpu.pipeline_mode<synchronous>, transform_indices = @transform_1, window_bounds = array<i64: 288, 2816>}, {pipeline_mode = #tpu.pipeline_mode<synchronous>, transform_indices = @transform_2, window_bounds = array<i64: 1, 2816>}, {pipeline_mode = #tpu.pipeline_mode<synchronous>, transform_indices = @transform_3, window_bounds = array<i64: 2816, 128>}, {pipeline_mode = #tpu.pipeline_mode<synchronous>, transform_indices = @transform_4, window_bounds = array<i64: 1, 128>}, {transform_indices = @transform_5, window_bounds = array<i64: 16, 128>}]} {
    %c0_i32 = arith.constant 0 : i32
    %0 = arith.cmpi eq, %arg1, %c0_i32 : i32
    %1 = arith.extui %0 : i1 to i32
    %c0_i32_0 = arith.constant 0 : i32
    %2 = arith.cmpi ne, %1, %c0_i32_0 : i32
    scf.if %2 {
      %cst_18 = arith.constant 0.000000e+00 : f32
      %26 = vector.broadcast %cst_18 : f32 to vector<16x128xf32>
      %c0_19 = arith.constant 0 : index
      %c0_20 = arith.constant 0 : index
      %27 = vector.load %arg8[%c0_19, %c0_20] : memref<16x128xf32, #tpu.memory_space<vmem>>, vector<16x128xf32>
      tpu.vector_store %arg8[%c0_19, %c0_20], %26 {strides = array<i32>} : memref<16x128xf32, #tpu.memory_space<vmem>>, vector<16x128xf32>,
    } else {
    }
    %c0 = arith.constant 0 : index
    %c0_1 = arith.constant 0 : index
    %3 = vector.load %arg2[%c0, %c0_1] : memref<16x288xbf16, #tpu.memory_space<vmem>>, vector<16x288xbf16>
    %c0_2 = arith.constant 0 : index
    %c0_3 = arith.constant 0 : index
    %4 = vector.load %arg3[%c0_2, %c0_3] : memref<288x2816xbf16, #tpu.memory_space<vmem>>, vector<288x2816xbf16>
    %cst = arith.constant dense<0.000000e+00> : vector<16x2816xf32>
    %5 = tpu.matmul %3, %4, %cst {dimension_numbers = #tpu.dot_dimension_numbers<[1], [0], [0], [1], [0, 0, 1, 1], [], []>} : vector<16x288xbf16>, vector<288x2816xbf16>, vector<16x2816xf32> -> vector<16x2816xf32>
    %c0_4 = arith.constant 0 : index
    %c0_5 = arith.constant 0 : index
    %6 = vector.load %arg4[%c0_4, %c0_5] : memref<1x2816xf32, #tpu.memory_space<vmem>>, vector<1x2816xf32>
    %7 = vector.broadcast %6 : vector<1x2816xf32> to vector<16x2816xf32>
    %8 = arith.addf %5, %7 : vector<16x2816xf32>
    %cst_6 = arith.constant 5.000000e-01 : f32
    %9 = vector.broadcast %cst_6 : f32 to vector<16x2816xf32>
    %10 = arith.mulf %9, %8 : vector<16x2816xf32>
    %cst_7 = arith.constant 5.000000e-01 : f32
    %11 = vector.broadcast %cst_7 : f32 to vector<16x2816xf32>
    %12 = arith.mulf %11, %8 : vector<16x2816xf32>
    %13 = math.tanh %12 : vector<16x2816xf32>
    %cst_8 = arith.constant 1.000000e+00 : f32
    %14 = vector.broadcast %cst_8 : f32 to vector<16x2816xf32>
    %15 = arith.addf %14, %13 : vector<16x2816xf32>
    %16 = arith.mulf %10, %15 : vector<16x2816xf32>
    %c0_9 = arith.constant 0 : index
    %c0_10 = arith.constant 0 : index
    %17 = vector.load %arg8[%c0_9, %c0_10] : memref<16x128xf32, #tpu.memory_space<vmem>>, vector<16x128xf32>
    %18 = arith.truncf %16 : vector<16x2816xf32> to vector<16x2816xbf16>
    %c0_11 = arith.constant 0 : index
    %c0_12 = arith.constant 0 : index
    %19 = vector.load %arg5[%c0_11, %c0_12] : memref<2816x128xbf16, #tpu.memory_space<vmem>>, vector<2816x128xbf16>
    %cst_13 = arith.constant dense<0.000000e+00> : vector<16x128xf32>
    %20 = tpu.matmul %18, %19, %cst_13 {dimension_numbers = #tpu.dot_dimension_numbers<[1], [0], [0], [1], [0, 0, 1, 1], [], []>} : vector<16x2816xbf16>, vector<2816x128xbf16>, vector<16x128xf32> -> vector<16x128xf32>
    %21 = arith.addf %17, %20 : vector<16x128xf32>
    %c0_14 = arith.constant 0 : index
    %c0_15 = arith.constant 0 : index
    %22 = vector.load %arg8[%c0_14, %c0_15] : memref<16x128xf32, #tpu.memory_space<vmem>>, vector<16x128xf32>
    tpu.vector_store %arg8[%c0_14, %c0_15], %21 {strides = array<i32>} : memref<16x128xf32, #tpu.memory_space<vmem>>, vector<16x128xf32>,
    %c0_i32_16 = arith.constant 0 : i32
    %23 = arith.cmpi eq, %arg1, %c0_i32_16 : i32
    %24 = arith.extui %23 : i1 to i32
    %c0_i32_17 = arith.constant 0 : i32
    %25 = arith.cmpi ne, %24, %c0_i32_17 : i32
    scf.if %25 {
      %c0_18 = arith.constant 0 : index
      %c0_19 = arith.constant 0 : index
      %26 = vector.load %arg8[%c0_18, %c0_19] : memref<16x128xf32, #tpu.memory_space<vmem>>, vector<16x128xf32>
      %c0_20 = arith.constant 0 : index
      %c0_21 = arith.constant 0 : index
      %27 = vector.load %arg6[%c0_20, %c0_21] : memref<1x128xf32, #tpu.memory_space<vmem>>, vector<1x128xf32>
      %28 = vector.broadcast %27 : vector<1x128xf32> to vector<16x128xf32>
      %29 = arith.addf %26, %28 : vector<16x128xf32>
      %c0_22 = arith.constant 0 : index
      %c0_23 = arith.constant 0 : index
      %30 = vector.load %arg7[%c0_22, %c0_23] : memref<16x128xf32, #tpu.memory_space<vmem>>, vector<16x128xf32>
      tpu.vector_store %arg7[%c0_22, %c0_23], %29 {strides = array<i32>} : memref<16x128xf32, #tpu.memory_space<vmem>>, vector<16x128xf32>,
    } else {
    }
    return
  }
  func.func @transform_0(%arg0: i32, %arg1: i32) -> (i32, i32) {
    %c0_i32 = arith.constant 0 : i32
    %c0_i32_0 = arith.constant 0 : i32
    return %arg0, %c0_i32 : i32, i32
  }
  func.func @transform_1(%arg0: i32, %arg1: i32) -> (i32, i32) {
    %c0_i32 = arith.constant 0 : i32
    %c0_i32_0 = arith.constant 0 : i32
    return %c0_i32, %arg1 : i32, i32
  }
  func.func @transform_2(%arg0: i32, %arg1: i32) -> (i32, i32) {
    %c0_i32 = arith.constant 0 : i32
    %c0_i32_0 = arith.constant 0 : i32
    return %c0_i32, %arg1 : i32, i32
  }
  func.func @transform_3(%arg0: i32, %arg1: i32) -> (i32, i32) {
    %c0_i32 = arith.constant 0 : i32
    %c0_i32_0 = arith.constant 0 : i32
    return %arg1, %c0_i32 : i32, i32
  }
  func.func @transform_4(%arg0: i32, %arg1: i32) -> (i32, i32) {
    %c0_i32 = arith.constant 0 : i32
    %c0_i32_0 = arith.constant 0 : i32
    %c0_i32_1 = arith.constant 0 : i32
    return %c0_i32, %c0_i32_0 : i32, i32
  }
  func.func @transform_5(%arg0: i32, %arg1: i32) -> (i32, i32) {
    %c0_i32 = arith.constant 0 : i32
    %c0_i32_0 = arith.constant 0 : i32
    return %arg0, %c0_i32 : i32, i32
  }
}

module attributes {stable_mosaic.version = 11 : i64} {
  func.func @fused_mlp_kernel(%arg0: i32, %arg1: i32, %arg2: memref<16x288xbf16, #tpu.memory_space<vmem>>, %arg3: memref<288x2816xbf16, #tpu.memory_space<vmem>>, %arg4: memref<1x2816xf32, #tpu.memory_space<vmem>>, %arg5: memref<2816x128xbf16, #tpu.memory_space<vmem>>, %arg6: memref<1x128xf32, #tpu.memory_space<vmem>>, %arg7: memref<16x128xf32, #tpu.memory_space<vmem>>, %arg8: memref<16x128xf32, #tpu.memory_space<vmem>>) attributes {dimension_semantics = [#tpu.dimension_semantics<parallel>, #tpu.dimension_semantics<arbitrary>], iteration_bounds = array<i64: 1, 1>, scalar_prefetch = 0 : i64, scratch_operands = 1 : i64, tpu.core_type = #tpu.core_type<tc>, window_params = [{transform_indices = @transform_0, window_bounds = array<i64: 16, 288>}, {transform_indices = @transform_1, window_bounds = array<i64: 288, 2816>}, {transform_indices = @transform_2, window_bounds = array<i64: 1, 2816>}, {transform_indices = @transform_3, window_bounds = array<i64: 2816, 128>}, {pipeline_mode = #tpu.pipeline_mode<synchronous>, transform_indices = @transform_4, window_bounds = array<i64: 1, 128>}, {transform_indices = @transform_5, window_bounds = array<i64: 16, 128>}]} {
    %c0_i32 = arith.constant 0 : i32
    %0 = arith.cmpi eq, %arg1, %c0_i32 : i32
    %1 = arith.extui %0 : i1 to i32
    %c0_i32_0 = arith.constant 0 : i32
    %2 = arith.cmpi ne, %1, %c0_i32_0 : i32
    scf.if %2 {
      %cst_18 = arith.constant 0.000000e+00 : f32
      %26 = vector.broadcast %cst_18 : f32 to vector<16x128xf32>
      %c0_19 = arith.constant 0 : index
      %c0_20 = arith.constant 0 : index
      %27 = vector.load %arg8[%c0_19, %c0_20] : memref<16x128xf32, #tpu.memory_space<vmem>>, vector<16x128xf32>
      tpu.vector_store %arg8[%c0_19, %c0_20], %26 {strides = array<i32>} : memref<16x128xf32, #tpu.memory_space<vmem>>, vector<16x128xf32>,
    } else {
    }
    %c0 = arith.constant 0 : index
    %c0_1 = arith.constant 0 : index
    %3 = vector.load %arg2[%c0, %c0_1] : memref<16x288xbf16, #tpu.memory_space<vmem>>, vector<16x288xbf16>
    %c0_2 = arith.constant 0 : index
    %c0_3 = arith.constant 0 : index
    %4 = vector.load %arg3[%c0_2, %c0_3] : memref<288x2816xbf16, #tpu.memory_space<vmem>>, vector<288x2816xbf16>
    %cst = arith.constant dense<0.000000e+00> : vector<16x2816xf32>
    %5 = tpu.matmul %3, %4, %cst {dimension_numbers = #tpu.dot_dimension_numbers<[1], [0], [0], [1], [0, 0, 1, 1], [], []>} : vector<16x288xbf16>, vector<288x2816xbf16>, vector<16x2816xf32> -> vector<16x2816xf32>
    %c0_4 = arith.constant 0 : index
    %c0_5 = arith.constant 0 : index
    %6 = vector.load %arg4[%c0_4, %c0_5] : memref<1x2816xf32, #tpu.memory_space<vmem>>, vector<1x2816xf32>
    %7 = vector.broadcast %6 : vector<1x2816xf32> to vector<16x2816xf32>
    %8 = arith.addf %5, %7 : vector<16x2816xf32>
    %cst_6 = arith.constant 5.000000e-01 : f32
    %9 = vector.broadcast %cst_6 : f32 to vector<16x2816xf32>
    %10 = arith.mulf %9, %8 : vector<16x2816xf32>
    %cst_7 = arith.constant 5.000000e-01 : f32
    %11 = vector.broadcast %cst_7 : f32 to vector<16x2816xf32>
    %12 = arith.mulf %11, %8 : vector<16x2816xf32>
    %13 = math.tanh %12 : vector<16x2816xf32>
    %cst_8 = arith.constant 1.000000e+00 : f32
    %14 = vector.broadcast %cst_8 : f32 to vector<16x2816xf32>
    %15 = arith.addf %14, %13 : vector<16x2816xf32>
    %16 = arith.mulf %10, %15 : vector<16x2816xf32>
    %c0_9 = arith.constant 0 : index
    %c0_10 = arith.constant 0 : index
    %17 = vector.load %arg8[%c0_9, %c0_10] : memref<16x128xf32, #tpu.memory_space<vmem>>, vector<16x128xf32>
    %18 = arith.truncf %16 : vector<16x2816xf32> to vector<16x2816xbf16>
    %c0_11 = arith.constant 0 : index
    %c0_12 = arith.constant 0 : index
    %19 = vector.load %arg5[%c0_11, %c0_12] : memref<2816x128xbf16, #tpu.memory_space<vmem>>, vector<2816x128xbf16>
    %cst_13 = arith.constant dense<0.000000e+00> : vector<16x128xf32>
    %20 = tpu.matmul %18, %19, %cst_13 {dimension_numbers = #tpu.dot_dimension_numbers<[1], [0], [0], [1], [0, 0, 1, 1], [], []>} : vector<16x2816xbf16>, vector<2816x128xbf16>, vector<16x128xf32> -> vector<16x128xf32>
    %21 = arith.addf %17, %20 : vector<16x128xf32>
    %c0_14 = arith.constant 0 : index
    %c0_15 = arith.constant 0 : index
    %22 = vector.load %arg8[%c0_14, %c0_15] : memref<16x128xf32, #tpu.memory_space<vmem>>, vector<16x128xf32>
    tpu.vector_store %arg8[%c0_14, %c0_15], %21 {strides = array<i32>} : memref<16x128xf32, #tpu.memory_space<vmem>>, vector<16x128xf32>,
    %c0_i32_16 = arith.constant 0 : i32
    %23 = arith.cmpi eq, %arg1, %c0_i32_16 : i32
    %24 = arith.extui %23 : i1 to i32
    %c0_i32_17 = arith.constant 0 : i32
    %25 = arith.cmpi ne, %24, %c0_i32_17 : i32
    scf.if %25 {
      %c0_18 = arith.constant 0 : index
      %c0_19 = arith.constant 0 : index
      %26 = vector.load %arg8[%c0_18, %c0_19] : memref<16x128xf32, #tpu.memory_space<vmem>>, vector<16x128xf32>
      %c0_20 = arith.constant 0 : index
      %c0_21 = arith.constant 0 : index
      %27 = vector.load %arg6[%c0_20, %c0_21] : memref<1x128xf32, #tpu.memory_space<vmem>>, vector<1x128xf32>
      %28 = vector.broadcast %27 : vector<1x128xf32> to vector<16x128xf32>
      %29 = arith.addf %26, %28 : vector<16x128xf32>
      %c0_22 = arith.constant 0 : index
      %c0_23 = arith.constant 0 : index
      %30 = vector.load %arg7[%c0_22, %c0_23] : memref<16x128xf32, #tpu.memory_space<vmem>>, vector<16x128xf32>
      tpu.vector_store %arg7[%c0_22, %c0_23], %29 {strides = array<i32>} : memref<16x128xf32, #tpu.memory_space<vmem>>, vector<16x128xf32>,
    } else {
    }
    return
  }
  func.func @transform_0(%arg0: i32, %arg1: i32) -> (i32, i32) {
    %c0_i32 = arith.constant 0 : i32
    %c0_i32_0 = arith.constant 0 : i32
    return %arg0, %c0_i32 : i32, i32
  }
  func.func @transform_1(%arg0: i32, %arg1: i32) -> (i32, i32) {
    %c0_i32 = arith.constant 0 : i32
    %c0_i32_0 = arith.constant 0 : i32
    return %c0_i32, %arg1 : i32, i32
  }
  func.func @transform_2(%arg0: i32, %arg1: i32) -> (i32, i32) {
    %c0_i32 = arith.constant 0 : i32
    %c0_i32_0 = arith.constant 0 : i32
    return %c0_i32, %arg1 : i32, i32
  }
  func.func @transform_3(%arg0: i32, %arg1: i32) -> (i32, i32) {
    %c0_i32 = arith.constant 0 : i32
    %c0_i32_0 = arith.constant 0 : i32
    return %arg1, %c0_i32 : i32, i32
  }
  func.func @transform_4(%arg0: i32, %arg1: i32) -> (i32, i32) {
    %c0_i32 = arith.constant 0 : i32
    %c0_i32_0 = arith.constant 0 : i32
    %c0_i32_1 = arith.constant 0 : i32
    return %c0_i32, %c0_i32_0 : i32, i32
  }
  func.func @transform_5(%arg0: i32, %arg1: i32) -> (i32, i32) {
    %c0_i32 = arith.constant 0 : i32
    %c0_i32_0 = arith.constant 0 : i32
    return %arg0, %c0_i32 : i32, i32
  }
}

</mosaic_0001>

<llo_original>
// kernel: tpu_custom_call.1
$region0: #{tpu_custom_call.1}
  #allocation0 [shape = 'u32[]', space=smem, size = 0x4, offset = 0x4, fixed_abs, tag = 'smem constant byte address 0x4 - core index']
  #allocation1 [shape = 'u32[72,128]{1,0:T(1,128)}', space=vmem, size = 0x9000, scoped, tag = 'internal scratch']
  #allocation2 [shape = 'f32[16,128]{1,0:T(8,128)}', space=vmem, size = 0x2000, scoped, tag = 'scratch operand']
  %s0 = inlined_call_operand.hbm [shape: bf16[16,288], index: 0, kind: input, shape index: {}]
  %s1 = inlined_call_operand.hbm [shape: bf16[288,2816], index: 1, kind: input, shape index: {}]
  %s2 = inlined_call_operand.hbm [shape: f32[1,2816], index: 2, kind: input, shape index: {}]
  %s3 = inlined_call_operand.hbm [shape: bf16[2816,128], index: 3, kind: input, shape index: {}]
  %s4 = inlined_call_operand.hbm [shape: f32[1,128], index: 4, kind: input, shape index: {}]
  %s5 = inlined_call_operand.hbm [shape: f32[16,128], index: 5, kind: output, shape index: {}]
  %s6 = sld [smem:[#allocation0]]
  $region58: #{tpu_custom_call.1} parent=0
    _
  %s8 = ssub.s32 1, %s6
  %s9 = scalar_select 0, %s8, %s6
  $region1: #{tpu_custom_call.1} parent=0
    #allocation3 [shape = 'u8[12288]{0}', space=vmem, size = 0x3000, scoped, tag = 'input window, operand 0, single buffered']
    #allocation4 [shape = 's32[1]{0}', space=sflag, size = 0x4, scoped, tag = 'scoped memory for tpu_custom_call.1']
    #allocation5 [shape = 's32[1]{0}', space=sflag, size = 0x4, scoped, tag = 'scoped memory for tpu_custom_call.1']
    #allocation6 [shape = 'u8[1622016]{0}', space=vmem, size = 0x18c000, scoped, tag = 'input window, operand 1, single buffered']
    #allocation7 [shape = 's32[1]{0}', space=sflag, size = 0x4, scoped, tag = 'scoped memory for tpu_custom_call.1']
    #allocation8 [shape = 'u8[11264]{0}', space=vmem, size = 0x2c00, scoped, tag = 'input window, operand 2, single buffered']
    #allocation9 [shape = 'u8[720896]{0}', space=vmem, size = 0xb0000, scoped, tag = 'input window, operand 3, single buffered']
    #allocation10 [shape = 's32[1]{0}', space=sflag, size = 0x4, scoped, tag = 'scoped memory for tpu_custom_call.1']
    #allocation11 [shape = 'u8[512]{0}', space=vmem, size = 0x400, scoped, tag = 'input window, operand 4, single buffered']
    #allocation12 [shape = 'u8[8192]{0}', space=vmem, size = 0x2000, scoped, tag = 'output window, operand 0, single buffered']
    %10 = vsyncpa [#allocation4], 0
    %11 = vsyncpa [#allocation7], 0
    %12 = vsyncpa [#allocation10], 0
    %13 = vsyncpa [#allocation5], 0
    // Predicated region
    $region2: #{tpu_custom_call.1} parent=1 // pred_check
      _
    $region3: #{tpu_custom_call.1} parent=1 // pred_check_branch
      %15 = sbr.rel (0) target = $region5
    $region4: #{tpu_custom_call.1} parent=1 // pred_region
      %17 = vsyncadd [#allocation4], 0
      %s18 = sshll.u32 %s0, 4
      %s19 = int_to_ptr.hbm [resolvable:$true] %s18
      %s20 = sshll.u32 [#allocation3], 4
      %s21 = int_to_ptr.vmem [resolvable:$true] %s20
      %26 = dma.hbm_to_vmem [thread:$0]  %s19, 384, %s21, [#allocation4], 192, 192, 12
    $region5: #{tpu_custom_call.1} parent=1 // pred_fallthru
      _
    // Predicated region
    $region6: #{tpu_custom_call.1} parent=1 // pred_check
      _
    $region7: #{tpu_custom_call.1} parent=1 // pred_check_branch
      %28 = sbr.rel (0) target = $region9
    $region8: #{tpu_custom_call.1} parent=1 // pred_region
      %30 = vsyncadd [#allocation7], 0
      %s31 = sshll.u32 %s1, 4
      %s32 = int_to_ptr.hbm [resolvable:$true] %s31
      %s33 = sshll.u32 [#allocation6], 4
      %s34 = int_to_ptr.vmem [resolvable:$true] %s33
      %39 = dma.hbm_to_vmem [thread:$0]  %s32, 50688, %s34, [#allocation7], 1408, 1408, 88
    $region9: #{tpu_custom_call.1} parent=1 // pred_fallthru
      _
    // Predicated region
    $region10: #{tpu_custom_call.1} parent=1 // pred_check
      _
    $region11: #{tpu_custom_call.1} parent=1 // pred_check_branch
      %41 = sbr.rel (0) target = $region13
    $region12: #{tpu_custom_call.1} parent=1 // pred_region
      %43 = vsyncadd [#allocation7], 0
      %s45 = sshll.u32 %s2, 4
      %s46 = int_to_ptr.hbm [resolvable:$true] %s45
      %s47 = sshll.u32 [#allocation8], 4
      %s48 = int_to_ptr.vmem [resolvable:$true] %s47
      %50 = dma.hbm_to_vmem [thread:$0]  %s46, 352, %s48, [#allocation7]
    $region13: #{tpu_custom_call.1} parent=1 // pred_fallthru
      _
    // Predicated region
    $region14: #{tpu_custom_call.1} parent=1 // pred_check
      _
    $region15: #{tpu_custom_call.1} parent=1 // pred_check_branch
      %52 = sbr.rel (0) target = $region17
    $region16: #{tpu_custom_call.1} parent=1 // pred_region
      %54 = vsyncadd [#allocation10], 0
      %s55 = sshll.u32 %s3, 4
      %s56 = int_to_ptr.hbm [resolvable:$true] %s55
      %s57 = sshll.u32 [#allocation9], 4
      %s58 = int_to_ptr.vmem [resolvable:$true] %s57
      %63 = dma.hbm_to_vmem [thread:$0]  %s56, 22528, %s58, [#allocation10], 64, 64, 4
    $region17: #{tpu_custom_call.1} parent=1 // pred_fallthru
      _
    // Predicated region
    $region18: #{tpu_custom_call.1} parent=1 // pred_check
      _
    $region19: #{tpu_custom_call.1} parent=1 // pred_check_branch
      %65 = sbr.rel (0) target = $region21
    $region20: #{tpu_custom_call.1} parent=1 // pred_region
      %67 = vsyncadd [#allocation10], 0
      %s69 = sshll.u32 %s4, 4
      %s70 = int_to_ptr.hbm [resolvable:$true] %s69
      %s71 = sshll.u32 [#allocation11], 4
      %s72 = int_to_ptr.vmem [resolvable:$true] %s71
      %74 = dma.hbm_to_vmem [thread:$0]  %s70, 16, %s72, [#allocation10]
    $region21: #{tpu_custom_call.1} parent=1 // pred_fallthru
      _
    // Predicated region
    $region22: #{tpu_custom_call.1} parent=1 // pred_check
      _
    $region23: #{tpu_custom_call.1} parent=1 // pred_check_branch
      %76 = sbr.rel (0) target = $region25
    $region24: #{tpu_custom_call.1} parent=1 // pred_region
      %78 = dma.done [#allocation4], 384
    $region25: #{tpu_custom_call.1} parent=1 // pred_fallthru
      _
    // Predicated region
    $region26: #{tpu_custom_call.1} parent=1 // pred_check
      _
    $region27: #{tpu_custom_call.1} parent=1 // pred_check_branch
      %80 = sbr.rel (0) target = $region29
    $region28: #{tpu_custom_call.1} parent=1 // pred_region
      %82 = dma.done [#allocation7], 50688
    $region29: #{tpu_custom_call.1} parent=1 // pred_fallthru
      _
    // Predicated region
    $region30: #{tpu_custom_call.1} parent=1 // pred_check
      _
    $region31: #{tpu_custom_call.1} parent=1 // pred_check_branch
      %84 = sbr.rel (0) target = $region33
    $region32: #{tpu_custom_call.1} parent=1 // pred_region
      %86 = dma.done [#allocation7], 352
    $region33: #{tpu_custom_call.1} parent=1 // pred_fallthru
      _
    // Predicated region
    $region34: #{tpu_custom_call.1} parent=1 // pred_check
      _
    $region35: #{tpu_custom_call.1} parent=1 // pred_check_branch
      %88 = sbr.rel (0) target = $region37
    $region36: #{tpu_custom_call.1} parent=1 // pred_region
      %90 = dma.done [#allocation10], 22528
    $region37: #{tpu_custom_call.1} parent=1 // pred_fallthru
      _
    // Predicated region
    $region38: #{tpu_custom_call.1} parent=1 // pred_check
      _
    $region39: #{tpu_custom_call.1} parent=1 // pred_check_branch
      %92 = sbr.rel (0) target = $region41
    $region40: #{tpu_custom_call.1} parent=1 // pred_region
      %94 = dma.done [#allocation10], 16
    $region41: #{tpu_custom_call.1} parent=1 // pred_fallthru
      _
    %p96 = scmp.eq.s32.totalorder 0, 0
    // Predicated region
    $region42: #{tpu_custom_call.1} parent=1 // pred_check
      %p97 = pneg %p96
    $region43: #{tpu_custom_call.1} parent=1 // pred_check_branch
      %99 = sbr.rel (%p97) target = $region45
    $region44: #{tpu_custom_call.1} parent=1 // pred_region
      %100 = vst [vmem:[#allocation2] sm:$0xff] 0.0
      %101 = vst [vmem:[#allocation2 + $0x8] sm:$0xff] 0.0
    $region45: #{tpu_custom_call.1} parent=1 // pred_fallthru
      _
    %v102 = vld [vmem:[#allocation3] sm:$0xff]
    %v103 = vld [vmem:[#allocation3 + $0x8] sm:$0xf]
    %v104 = vld [vmem:[#allocation3 + $0xc] sm:$0xff]
    %v105 = vld [vmem:[#allocation3 + $0x14] sm:$0xf]
    %v106 = vld [vmem:[#allocation6] sm:$0xff]
    %v107 = vld [vmem:[#allocation6 + $0x8] sm:$0xff]
    %v108 = vld [vmem:[#allocation6 + $0x10] sm:$0xff]
    %v109 = vld [vmem:[#allocation6 + $0x18] sm:$0xff]
    %v110 = vld [vmem:[#allocation6 + $0x20] sm:$0xff]
    %v111 = vld [vmem:[#allocation6 + $0x28] sm:$0xff]
    %v112 = vld [vmem:[#allocation6 + $0x30] sm:$0xff]
    %v113 = vld [vmem:[#allocation6 + $0x38] sm:$0xff]
    %v114 = vld [vmem:[#allocation6 + $0x40] sm:$0xff]
    %v115 = vld [vmem:[#allocation6 + $0x48] sm:$0xff]
    %v116 = vld [vmem:[#allocation6 + $0x50] sm:$0xff]
    %v117 = vld [vmem:[#allocation6 + $0x58] sm:$0xff]
    %v118 = vld [vmem:[#allocation6 + $0x60] sm:$0xff]
    %v119 = vld [vmem:[#allocation6 + $0x68] sm:$0xff]
    %v120 = vld [vmem:[#allocation6 + $0x70] sm:$0xff]
    %v121 = vld [vmem:[#allocation6 + $0x78] sm:$0xff]
    %v122 = vld [vmem:[#allocation6 + $0x80] sm:$0xff]
    %v123 = vld [vmem:[#allocation6 + $0x88] sm:$0xff]
    %v124 = vld [vmem:[#allocation6 + $0x90] sm:$0xff]
    %v125 = vld [vmem:[#allocation6 + $0x98] sm:$0xff]
    %v126 = vld [vmem:[#allocation6 + $0xa0] sm:$0xff]
    %v127 = vld [vmem:[#allocation6 + $0xa8] sm:$0xff]
    %v128 = vld [vmem:[#allocation6 + $0xb0] sm:$0xff]
    %v129 = vld [vmem:[#allocation6 + $0xb8] sm:$0xff]
    %v130 = vld [vmem:[#allocation6 + $0xc0] sm:$0xff]
    %v131 = vld [vmem:[#allocation6 + $0xc8] sm:$0xff]
    %v132 = vld [vmem:[#allocation6 + $0xd0] sm:$0xff]
    %v133 = vld [vmem:[#allocation6 + $0xd8] sm:$0xff]
    %v134 = vld [vmem:[#allocation6 + $0xe0] sm:$0xff]
    %v135 = vld [vmem:[#allocation6 + $0xe8] sm:$0xff]
    %v136 = vld [vmem:[#allocation6 + $0xf0] sm:$0xff]
    %v137 = vld [vmem:[#allocation6 + $0xf8] sm:$0xff]
    %v138 = vld [vmem:[#allocation6 + $0x100] sm:$0xff]
    %v139 = vld [vmem:[#allocation6 + $0x108] sm:$0xff]
    %v140 = vld [vmem:[#allocation6 + $0x110] sm:$0xff]
    %v141 = vld [vmem:[#allocation6 + $0x118] sm:$0xff]
    %v142 = vld [vmem:[#allocation6 + $0x120] sm:$0xff]
    %v143 = vld [vmem:[#allocation6 + $0x128] sm:$0xff]
    %v144 = vld [vmem:[#allocation6 + $0x130] sm:$0xff]
    %v145 = vld [vmem:[#allocation6 + $0x138] sm:$0xff]
    %v146 = vld [vmem:[#allocation6 + $0x140] sm:$0xff]
    %v147 = vld [vmem:[#allocation6 + $0x148] sm:$0xff]
    %v148 = vld [vmem:[#allocation6 + $0x150] sm:$0xff]
    %v149 = vld [vmem:[#allocation6 + $0x158] sm:$0xff]
    %v150 = vld [vmem:[#allocation6 + $0x160] sm:$0xff]
    %v151 = vld [vmem:[#allocation6 + $0x168] sm:$0xff]
    %v152 = vld [vmem:[#allocation6 + $0x170] sm:$0xff]
    %v153 = vld [vmem:[#allocation6 + $0x178] sm:$0xff]
    %v154 = vld [vmem:[#allocation6 + $0x180] sm:$0xff]
    %v155 = vld [vmem:[#allocation6 + $0x188] sm:$0xff]
    %v156 = vld [vmem:[#allocation6 + $0x190] sm:$0xff]
    %v157 = vld [vmem:[#allocation6 + $0x198] sm:$0xff]
    %v158 = vld [vmem:[#allocation6 + $0x1a0] sm:$0xff]
    %v159 = vld [vmem:[#allocation6 + $0x1a8] sm:$0xff]
    %v160 = vld [vmem:[#allocation6 + $0x1b0] sm:$0xff]
    %v161 = vld [vmem:[#allocation6 + $0x1b8] sm:$0xff]
    %v162 = vld [vmem:[#allocation6 + $0x1c0] sm:$0xff]
    %v163 = vld [vmem:[#allocation6 + $0x1c8] sm:$0xff]
    %v164 = vld [vmem:[#allocation6 + $0x1d0] sm:$0xff]
    %v165 = vld [vmem:[#allocation6 + $0x1d8] sm:$0xff]
    %v166 = vld [vmem:[#allocation6 + $0x1e0] sm:$0xff]
    %v167 = vld [vmem:[#allocation6 + $0x1e8] sm:$0xff]
    %v168 = vld [vmem:[#allocation6 + $0x1f0] sm:$0xff]
    %v169 = vld [vmem:[#allocation6 + $0x1f8] sm:$0xff]
    %v170 = vld [vmem:[#allocation6 + $0x200] sm:$0xff]
    %v171 = vld [vmem:[#allocation6 + $0x208] sm:$0xff]
    %v172 = vld [vmem:[#allocation6 + $0x210] sm:$0xff]
    %v173 = vld [vmem:[#allocation6 + $0x218] sm:$0xff]
    %v174 = vld [vmem:[#allocation6 + $0x220] sm:$0xff]
    %v175 = vld [vmem:[#allocation6 + $0x228] sm:$0xff]
    %v176 = vld [vmem:[#allocation6 + $0x230] sm:$0xff]
    %v177 = vld [vmem:[#allocation6 + $0x238] sm:$0xff]
    %v178 = vld [vmem:[#allocation6 + $0x240] sm:$0xff]
    %v179 = vld [vmem:[#allocation6 + $0x248] sm:$0xff]
    %v180 = vld [vmem:[#allocation6 + $0x250] sm:$0xff]
    %v181 = vld [vmem:[#allocation6 + $0x258] sm:$0xff]
    %v182 = vld [vmem:[#allocation6 + $0x260] sm:$0xff]
    %v183 = vld [vmem:[#allocation6 + $0x268] sm:$0xff]
    %v184 = vld [vmem:[#allocation6 + $0x270] sm:$0xff]
    %v185 = vld [vmem:[#allocation6 + $0x278] sm:$0xff]
    %v186 = vld [vmem:[#allocation6 + $0x280] sm:$0xff]
    %v187 = vld [vmem:[#allocation6 + $0x288] sm:$0xff]
    %v188 = vld [vmem:[#allocation6 + $0x290] sm:$0xff]
    %v189 = vld [vmem:[#allocation6 + $0x298] sm:$0xff]
    %v190 = vld [vmem:[#allocation6 + $0x2a0] sm:$0xff]
    %v191 = vld [vmem:[#allocation6 + $0x2a8] sm:$0xff]
    %v192 = vld [vmem:[#allocation6 + $0x2b0] sm:$0xff]
    %v193 = vld [vmem:[#allocation6 + $0x2b8] sm:$0xff]
    %v194 = vld [vmem:[#allocation6 + $0x2c0] sm:$0xff]
    %v195 = vld [vmem:[#allocation6 + $0x2c8] sm:$0xff]
    %v196 = vld [vmem:[#allocation6 + $0x2d0] sm:$0xff]
    %v197 = vld [vmem:[#allocation6 + $0x2d8] sm:$0xff]
    %v198 = vld [vmem:[#allocation6 + $0x2e0] sm:$0xff]
    %v199 = vld [vmem:[#allocation6 + $0x2e8] sm:$0xff]
    %v200 = vld [vmem:[#allocation6 + $0x2f0] sm:$0xff]
    %v201 = vld [vmem:[#allocation6 + $0x2f8] sm:$0xff]
    %v202 = vld [vmem:[#allocation6 + $0x300] sm:$0xff]
    %v203 = vld [vmem:[#allocation6 + $0x308] sm:$0xff]
    %v204 = vld [vmem:[#allocation6 + $0x310] sm:$0xff]
    %v205 = vld [vmem:[#allocation6 + $0x318] sm:$0xff]
    %v206 = vld [vmem:[#allocation6 + $0x320] sm:$0xff]
    %v207 = vld [vmem:[#allocation6 + $0x328] sm:$0xff]
    %v208 = vld [vmem:[#allocation6 + $0x330] sm:$0xff]
    %v209 = vld [vmem:[#allocation6 + $0x338] sm:$0xff]
    %v210 = vld [vmem:[#allocation6 + $0x340] sm:$0xff]
    %v211 = vld [vmem:[#allocation6 + $0x348] sm:$0xff]
    %v212 = vld [vmem:[#allocation6 + $0x350] sm:$0xff]
    %v213 = vld [vmem:[#allocation6 + $0x358] sm:$0xff]
    %v214 = vld [vmem:[#allocation6 + $0x360] sm:$0xff]
    %v215 = vld [vmem:[#allocation6 + $0x368] sm:$0xff]
    %v216 = vld [vmem:[#allocation6 + $0x370] sm:$0xff]
    %v217 = vld [vmem:[#allocation6 + $0x378] sm:$0xff]
    %v218 = vld [vmem:[#allocation6 + $0x380] sm:$0xff]
    %v219 = vld [vmem:[#allocation6 + $0x388] sm:$0xff]
    %v220 = vld [vmem:[#allocation6 + $0x390] sm:$0xff]
    %v221 = vld [vmem:[#allocation6 + $0x398] sm:$0xff]
    %v222 = vld [vmem:[#allocation6 + $0x3a0] sm:$0xff]
    %v223 = vld [vmem:[#allocation6 + $0x3a8] sm:$0xff]
    %v224 = vld [vmem:[#allocation6 + $0x3b0] sm:$0xff]
    %v225 = vld [vmem:[#allocation6 + $0x3b8] sm:$0xff]
    %v226 = vld [vmem:[#allocation6 + $0x3c0] sm:$0xff]
    %v227 = vld [vmem:[#allocation6 + $0x3c8] sm:$0xff]
    %v228 = vld [vmem:[#allocation6 + $0x3d0] sm:$0xff]
    %v229 = vld [vmem:[#allocation6 + $0x3d8] sm:$0xff]
    %v230 = vld [vmem:[#allocation6 + $0x3e0] sm:$0xff]
    %v231 = vld [vmem:[#allocation6 + $0x3e8] sm:$0xff]
    %v232 = vld [vmem:[#allocation6 + $0x3f0] sm:$0xff]
    %v233 = vld [vmem:[#allocation6 + $0x3f8] sm:$0xff]
    %v234 = vld [vmem:[#allocation6 + $0x400] sm:$0xff]
    %v235 = vld [vmem:[#allocation6 + $0x408] sm:$0xff]
    %v236 = vld [vmem:[#allocation6 + $0x410] sm:$0xff]
    %v237 = vld [vmem:[#allocation6 + $0x418] sm:$0xff]
    %v238 = vld [vmem:[#allocation6 + $0x420] sm:$0xff]
    %v239 = vld [vmem:[#allocation6 + $0x428] sm:$0xff]
    %v240 = vld [vmem:[#allocation6 + $0x430] sm:$0xff]
    %v241 = vld [vmem:[#allocation6 + $0x438] sm:$0xff]
    %v242 = vld [vmem:[#allocation6 + $0x440] sm:$0xff]
    %v243 = vld [vmem:[#allocation6 + $0x448] sm:$0xff]
    %v244 = vld [vmem:[#allocation6 + $0x450] sm:$0xff]
    %v245 = vld [vmem:[#allocation6 + $0x458] sm:$0xff]
    %v246 = vld [vmem:[#allocation6 + $0x460] sm:$0xff]
    %v247 = vld [vmem:[#allocation6 + $0x468] sm:$0xff]
    %v248 = vld [vmem:[#allocation6 + $0x470] sm:$0xff]
    %v249 = vld [vmem:[#allocation6 + $0x478] sm:$0xff]
    %v250 = vld [vmem:[#allocation6 + $0x480] sm:$0xff]
    %v251 = vld [vmem:[#allocation6 + $0x488] sm:$0xff]
    %v252 = vld [vmem:[#allocation6 + $0x490] sm:$0xff]
    %v253 = vld [vmem:[#allocation6 + $0x498] sm:$0xff]
    %v254 = vld [vmem:[#allocation6 + $0x4a0] sm:$0xff]
    %v255 = vld [vmem:[#allocation6 + $0x4a8] sm:$0xff]
    %v256 = vld [vmem:[#allocation6 + $0x4b0] sm:$0xff]
    %v257 = vld [vmem:[#allocation6 + $0x4b8] sm:$0xff]
    %v258 = vld [vmem:[#allocation6 + $0x4c0] sm:$0xff]
    %v259 = vld [vmem:[#allocation6 + $0x4c8] sm:$0xff]
    %v260 = vld [vmem:[#allocation6 + $0x4d0] sm:$0xff]
    %v261 = vld [vmem:[#allocation6 + $0x4d8] sm:$0xff]
    %v262 = vld [vmem:[#allocation6 + $0x4e0] sm:$0xff]
    %v263 = vld [vmem:[#allocation6 + $0x4e8] sm:$0xff]
    %v264 = vld [vmem:[#allocation6 + $0x4f0] sm:$0xff]
    %v265 = vld [vmem:[#allocation6 + $0x4f8] sm:$0xff]
    %v266 = vld [vmem:[#allocation6 + $0x500] sm:$0xff]
    %v267 = vld [vmem:[#allocation6 + $0x508] sm:$0xff]
    %v268 = vld [vmem:[#allocation6 + $0x510] sm:$0xff]
    %v269 = vld [vmem:[#allocation6 + $0x518] sm:$0xff]
    %v270 = vld [vmem:[#allocation6 + $0x520] sm:$0xff]
    %v271 = vld [vmem:[#allocation6 + $0x528] sm:$0xff]
    %v272 = vld [vmem:[#allocation6 + $0x530] sm:$0xff]
    %v273 = vld [vmem:[#allocation6 + $0x538] sm:$0xff]
    %v274 = vld [vmem:[#allocation6 + $0x540] sm:$0xff]
    %v275 = vld [vmem:[#allocation6 + $0x548] sm:$0xff]
    %v276 = vld [vmem:[#allocation6 + $0x550] sm:$0xff]
    %v277 = vld [vmem:[#allocation6 + $0x558] sm:$0xff]
    %v278 = vld [vmem:[#allocation6 + $0x560] sm:$0xff]
    %v279 = vld [vmem:[#allocation6 + $0x568] sm:$0xff]
    %v280 = vld [vmem:[#allocation6 + $0x570] sm:$0xff]
    %v281 = vld [vmem:[#allocation6 + $0x578] sm:$0xff]
    %v282 = vld [vmem:[#allocation6 + $0x580] sm:$0xff]
    %v283 = vld [vmem:[#allocation6 + $0x588] sm:$0xff]
    %v284 = vld [vmem:[#allocation6 + $0x590] sm:$0xff]
    %v285 = vld [vmem:[#allocation6 + $0x598] sm:$0xff]
    %v286 = vld [vmem:[#allocation6 + $0x5a0] sm:$0xff]
    %v287 = vld [vmem:[#allocation6 + $0x5a8] sm:$0xff]
    %v288 = vld [vmem:[#allocation6 + $0x5b0] sm:$0xff]
    %v289 = vld [vmem:[#allocation6 + $0x5b8] sm:$0xff]
    %v290 = vld [vmem:[#allocation6 + $0x5c0] sm:$0xff]
    %v291 = vld [vmem:[#allocation6 + $0x5c8] sm:$0xff]
    %v292 = vld [vmem:[#allocation6 + $0x5d0] sm:$0xff]
    %v293 = vld [vmem:[#allocation6 + $0x5d8] sm:$0xff]
    %v294 = vld [vmem:[#allocation6 + $0x5e0] sm:$0xff]
    %v295 = vld [vmem:[#allocation6 + $0x5e8] sm:$0xff]
    %v296 = vld [vmem:[#allocation6 + $0x5f0] sm:$0xff]
    %v297 = vld [vmem:[#allocation6 + $0x5f8] sm:$0xff]
    %v298 = vld [vmem:[#allocation6 + $0x600] sm:$0xff]
    %v299 = vld [vmem:[#allocation6 + $0x608] sm:$0xff]
    %v300 = vld [vmem:[#allocation6 + $0x610] sm:$0xff]
    %v301 = vld [vmem:[#allocation6 + $0x618] sm:$0xff]
    %v302 = vld [vmem:[#allocation6 + $0x620] sm:$0xff]
    %v303 = vld [vmem:[#allocation6 + $0x628] sm:$0xff]
    %v304 = vld [vmem:[#allocation6 + $0x630] sm:$0xff]
    %v305 = vld [vmem:[#allocation6 + $0x638] sm:$0xff]
    %v306 = vld [vmem:[#allocation6 + $0x640] sm:$0xff]
    %v307 = vld [vmem:[#allocation6 + $0x648] sm:$0xff]
    %v308 = vld [vmem:[#allocation6 + $0x650] sm:$0xff]
    %v309 = vld [vmem:[#allocation6 + $0x658] sm:$0xff]
    %v310 = vld [vmem:[#allocation6 + $0x660] sm:$0xff]
    %v311 = vld [vmem:[#allocation6 + $0x668] sm:$0xff]
    %v312 = vld [vmem:[#allocation6 + $0x670] sm:$0xff]
    %v313 = vld [vmem:[#allocation6 + $0x678] sm:$0xff]
    %v314 = vld [vmem:[#allocation6 + $0x680] sm:$0xff]
    %v315 = vld [vmem:[#allocation6 + $0x688] sm:$0xff]
    %v316 = vld [vmem:[#allocation6 + $0x690] sm:$0xff]
    %v317 = vld [vmem:[#allocation6 + $0x698] sm:$0xff]
    %v318 = vld [vmem:[#allocation6 + $0x6a0] sm:$0xff]
    %v319 = vld [vmem:[#allocation6 + $0x6a8] sm:$0xff]
    %v320 = vld [vmem:[#allocation6 + $0x6b0] sm:$0xff]
    %v321 = vld [vmem:[#allocation6 + $0x6b8] sm:$0xff]
    %v322 = vld [vmem:[#allocation6 + $0x6c0] sm:$0xff]
    %v323 = vld [vmem:[#allocation6 + $0x6c8] sm:$0xff]
    %v324 = vld [vmem:[#allocation6 + $0x6d0] sm:$0xff]
    %v325 = vld [vmem:[#allocation6 + $0x6d8] sm:$0xff]
    %v326 = vld [vmem:[#allocation6 + $0x6e0] sm:$0xff]
    %v327 = vld [vmem:[#allocation6 + $0x6e8] sm:$0xff]
    %v328 = vld [vmem:[#allocation6 + $0x6f0] sm:$0xff]
    %v329 = vld [vmem:[#allocation6 + $0x6f8] sm:$0xff]
    %v330 = vld [vmem:[#allocation6 + $0x700] sm:$0xff]
    %v331 = vld [vmem:[#allocation6 + $0x708] sm:$0xff]
    %v332 = vld [vmem:[#allocation6 + $0x710] sm:$0xff]
    %v333 = vld [vmem:[#allocation6 + $0x718] sm:$0xff]
    %v334 = vld [vmem:[#allocation6 + $0x720] sm:$0xff]
    %v335 = vld [vmem:[#allocation6 + $0x728] sm:$0xff]
    %v336 = vld [vmem:[#allocation6 + $0x730] sm:$0xff]
    %v337 = vld [vmem:[#allocation6 + $0x738] sm:$0xff]
    %v338 = vld [vmem:[#allocation6 + $0x740] sm:$0xff]
    %v339 = vld [vmem:[#allocation6 + $0x748] sm:$0xff]
    %v340 = vld [vmem:[#allocation6 + $0x750] sm:$0xff]
    %v341 = vld [vmem:[#allocation6 + $0x758] sm:$0xff]
    %v342 = vld [vmem:[#allocation6 + $0x760] sm:$0xff]
    %v343 = vld [vmem:[#allocation6 + $0x768] sm:$0xff]
    %v344 = vld [vmem:[#allocation6 + $0x770] sm:$0xff]
    %v345 = vld [vmem:[#allocation6 + $0x778] sm:$0xff]
    %v346 = vld [vmem:[#allocation6 + $0x780] sm:$0xff]
    %v347 = vld [vmem:[#allocation6 + $0x788] sm:$0xff]
    %v348 = vld [vmem:[#allocation6 + $0x790] sm:$0xff]
    %v349 = vld [vmem:[#allocation6 + $0x798] sm:$0xff]
    %v350 = vld [vmem:[#allocation6 + $0x7a0] sm:$0xff]
    %v351 = vld [vmem:[#allocation6 + $0x7a8] sm:$0xff]
    %v352 = vld [vmem:[#allocation6 + $0x7b0] sm:$0xff]
    %v353 = vld [vmem:[#allocation6 + $0x7b8] sm:$0xff]
    %v354 = vld [vmem:[#allocation6 + $0x7c0] sm:$0xff]
    %v355 = vld [vmem:[#allocation6 + $0x7c8] sm:$0xff]
    %v356 = vld [vmem:[#allocation6 + $0x7d0] sm:$0xff]
    %v357 = vld [vmem:[#allocation6 + $0x7d8] sm:$0xff]
    %v358 = vld [vmem:[#allocation6 + $0x7e0] sm:$0xff]
    %v359 = vld [vmem:[#allocation6 + $0x7e8] sm:$0xff]
    %v360 = vld [vmem:[#allocation6 + $0x7f0] sm:$0xff]
    %v361 = vld [vmem:[#allocation6 + $0x7f8] sm:$0xff]
    %v362 = vld [vmem:[#allocation6 + $0x800] sm:$0xff]
    %v363 = vld [vmem:[#allocation6 + $0x808] sm:$0xff]
    %v364 = vld [vmem:[#allocation6 + $0x810] sm:$0xff]
    %v365 = vld [vmem:[#allocation6 + $0x818] sm:$0xff]
    %v366 = vld [vmem:[#allocation6 + $0x820] sm:$0xff]
    %v367 = vld [vmem:[#allocation6 + $0x828] sm:$0xff]
    %v368 = vld [vmem:[#allocation6 + $0x830] sm:$0xff]
    %v369 = vld [vmem:[#allocation6 + $0x838] sm:$0xff]
    %v370 = vld [vmem:[#allocation6 + $0x840] sm:$0xff]
    %v371 = vld [vmem:[#allocation6 + $0x848] sm:$0xff]
    %v372 = vld [vmem:[#allocation6 + $0x850] sm:$0xff]
    %v373 = vld [vmem:[#allocation6 + $0x858] sm:$0xff]
    %v374 = vld [vmem:[#allocation6 + $0x860] sm:$0xff]
    %v375 = vld [vmem:[#allocation6 + $0x868] sm:$0xff]
    %v376 = vld [vmem:[#allocation6 + $0x870] sm:$0xff]
    %v377 = vld [vmem:[#allocation6 + $0x878] sm:$0xff]
    %v378 = vld [vmem:[#allocation6 + $0x880] sm:$0xff]
    %v379 = vld [vmem:[#allocation6 + $0x888] sm:$0xff]
    %v380 = vld [vmem:[#allocation6 + $0x890] sm:$0xff]
    %v381 = vld [vmem:[#allocation6 + $0x898] sm:$0xff]
    %v382 = vld [vmem:[#allocation6 + $0x8a0] sm:$0xff]
    %v383 = vld [vmem:[#allocation6 + $0x8a8] sm:$0xff]
    %v384 = vld [vmem:[#allocation6 + $0x8b0] sm:$0xff]
    %v385 = vld [vmem:[#allocation6 + $0x8b8] sm:$0xff]
    %v386 = vld [vmem:[#allocation6 + $0x8c0] sm:$0xff]
    %v387 = vld [vmem:[#allocation6 + $0x8c8] sm:$0xff]
    %v388 = vld [vmem:[#allocation6 + $0x8d0] sm:$0xff]
    %v389 = vld [vmem:[#allocation6 + $0x8d8] sm:$0xff]
    %v390 = vld [vmem:[#allocation6 + $0x8e0] sm:$0xff]
    %v391 = vld [vmem:[#allocation6 + $0x8e8] sm:$0xff]
    %v392 = vld [vmem:[#allocation6 + $0x8f0] sm:$0xff]
    %v393 = vld [vmem:[#allocation6 + $0x8f8] sm:$0xff]
    %v394 = vld [vmem:[#allocation6 + $0x900] sm:$0xff]
    %v395 = vld [vmem:[#allocation6 + $0x908] sm:$0xff]
    %v396 = vld [vmem:[#allocation6 + $0x910] sm:$0xff]
    %v397 = vld [vmem:[#allocation6 + $0x918] sm:$0xff]
    %v398 = vld [vmem:[#allocation6 + $0x920] sm:$0xff]
    %v399 = vld [vmem:[#allocation6 + $0x928] sm:$0xff]
    %v400 = vld [vmem:[#allocation6 + $0x930] sm:$0xff]
    %v401 = vld [vmem:[#allocation6 + $0x938] sm:$0xff]
    %v402 = vld [vmem:[#allocation6 + $0x940] sm:$0xff]
    %v403 = vld [vmem:[#allocation6 + $0x948] sm:$0xff]
    %v404 = vld [vmem:[#allocation6 + $0x950] sm:$0xff]
    %v405 = vld [vmem:[#allocation6 + $0x958] sm:$0xff]
    %v406 = vld [vmem:[#allocation6 + $0x960] sm:$0xff]
    %v407 = vld [vmem:[#allocation6 + $0x968] sm:$0xff]
    %v408 = vld [vmem:[#allocation6 + $0x970] sm:$0xff]
    %v409 = vld [vmem:[#allocation6 + $0x978] sm:$0xff]
    %v410 = vld [vmem:[#allocation6 + $0x980] sm:$0xff]
    %v411 = vld [vmem:[#allocation6 + $0x988] sm:$0xff]
    %v412 = vld [vmem:[#allocation6 + $0x990] sm:$0xff]
    %v413 = vld [vmem:[#allocation6 + $0x998] sm:$0xff]
    %v414 = vld [vmem:[#allocation6 + $0x9a0] sm:$0xff]
    %v415 = vld [vmem:[#allocation6 + $0x9a8] sm:$0xff]
    %v416 = vld [vmem:[#allocation6 + $0x9b0] sm:$0xff]
    %v417 = vld [vmem:[#allocation6 + $0x9b8] sm:$0xff]
    %v418 = vld [vmem:[#allocation6 + $0x9c0] sm:$0xff]
    %v419 = vld [vmem:[#allocation6 + $0x9c8] sm:$0xff]
    %v420 = vld [vmem:[#allocation6 + $0x9d0] sm:$0xff]
    %v421 = vld [vmem:[#allocation6 + $0x9d8] sm:$0xff]
    %v422 = vld [vmem:[#allocation6 + $0x9e0] sm:$0xff]
    %v423 = vld [vmem:[#allocation6 + $0x9e8] sm:$0xff]
    %v424 = vld [vmem:[#allocation6 + $0x9f0] sm:$0xff]
    %v425 = vld [vmem:[#allocation6 + $0x9f8] sm:$0xff]
    %v426 = vld [vmem:[#allocation6 + $0xa00] sm:$0xff]
    %v427 = vld [vmem:[#allocation6 + $0xa08] sm:$0xff]
    %v428 = vld [vmem:[#allocation6 + $0xa10] sm:$0xff]
    %v429 = vld [vmem:[#allocation6 + $0xa18] sm:$0xff]
    %v430 = vld [vmem:[#allocation6 + $0xa20] sm:$0xff]
    %v431 = vld [vmem:[#allocation6 + $0xa28] sm:$0xff]
    %v432 = vld [vmem:[#allocation6 + $0xa30] sm:$0xff]
    %v433 = vld [vmem:[#allocation6 + $0xa38] sm:$0xff]
    %v434 = vld [vmem:[#allocation6 + $0xa40] sm:$0xff]
    %v435 = vld [vmem:[#allocation6 + $0xa48] sm:$0xff]
    %v436 = vld [vmem:[#allocation6 + $0xa50] sm:$0xff]
    %v437 = vld [vmem:[#allocation6 + $0xa58] sm:$0xff]
    %v438 = vld [vmem:[#allocation6 + $0xa60] sm:$0xff]
    %v439 = vld [vmem:[#allocation6 + $0xa68] sm:$0xff]
    %v440 = vld [vmem:[#allocation6 + $0xa70] sm:$0xff]
    %v441 = vld [vmem:[#allocation6 + $0xa78] sm:$0xff]
    %v442 = vld [vmem:[#allocation6 + $0xa80] sm:$0xff]
    %v443 = vld [vmem:[#allocation6 + $0xa88] sm:$0xff]
    %v444 = vld [vmem:[#allocation6 + $0xa90] sm:$0xff]
    %v445 = vld [vmem:[#allocation6 + $0xa98] sm:$0xff]
    %v446 = vld [vmem:[#allocation6 + $0xaa0] sm:$0xff]
    %v447 = vld [vmem:[#allocation6 + $0xaa8] sm:$0xff]
    %v448 = vld [vmem:[#allocation6 + $0xab0] sm:$0xff]
    %v449 = vld [vmem:[#allocation6 + $0xab8] sm:$0xff]
    %v450 = vld [vmem:[#allocation6 + $0xac0] sm:$0xff]
    %v451 = vld [vmem:[#allocation6 + $0xac8] sm:$0xff]
    %v452 = vld [vmem:[#allocation6 + $0xad0] sm:$0xff]
    %v453 = vld [vmem:[#allocation6 + $0xad8] sm:$0xff]
    %v454 = vld [vmem:[#allocation6 + $0xae0] sm:$0xff]
    %v455 = vld [vmem:[#allocation6 + $0xae8] sm:$0xff]
    %v456 = vld [vmem:[#allocation6 + $0xaf0] sm:$0xff]
    %v457 = vld [vmem:[#allocation6 + $0xaf8] sm:$0xff]
    %v458 = vld [vmem:[#allocation6 + $0xb00] sm:$0xff]
    %v459 = vld [vmem:[#allocation6 + $0xb08] sm:$0xff]
    %v460 = vld [vmem:[#allocation6 + $0xb10] sm:$0xff]
    %v461 = vld [vmem:[#allocation6 + $0xb18] sm:$0xff]
    %v462 = vld [vmem:[#allocation6 + $0xb20] sm:$0xff]
    %v463 = vld [vmem:[#allocation6 + $0xb28] sm:$0xff]
    %v464 = vld [vmem:[#allocation6 + $0xb30] sm:$0xff]
    %v465 = vld [vmem:[#allocation6 + $0xb38] sm:$0xff]
    %v466 = vld [vmem:[#allocation6 + $0xb40] sm:$0xff]
    %v467 = vld [vmem:[#allocation6 + $0xb48] sm:$0xff]
    %v468 = vld [vmem:[#allocation6 + $0xb50] sm:$0xff]
    %v469 = vld [vmem:[#allocation6 + $0xb58] sm:$0xff]
    %v470 = vld [vmem:[#allocation6 + $0xb60] sm:$0xff]
    %v471 = vld [vmem:[#allocation6 + $0xb68] sm:$0xff]
    %v472 = vld [vmem:[#allocation6 + $0xb70] sm:$0xff]
    %v473 = vld [vmem:[#allocation6 + $0xb78] sm:$0xff]
    %v474 = vld [vmem:[#allocation6 + $0xb80] sm:$0xff]
    %v475 = vld [vmem:[#allocation6 + $0xb88] sm:$0xff]
    %v476 = vld [vmem:[#allocation6 + $0xb90] sm:$0xff]
    %v477 = vld [vmem:[#allocation6 + $0xb98] sm:$0xff]
    %v478 = vld [vmem:[#allocation6 + $0xba0] sm:$0xff]
    %v479 = vld [vmem:[#allocation6 + $0xba8] sm:$0xff]
    %v480 = vld [vmem:[#allocation6 + $0xbb0] sm:$0xff]
    %v481 = vld [vmem:[#allocation6 + $0xbb8] sm:$0xff]
    %v482 = vld [vmem:[#allocation6 + $0xbc0] sm:$0xff]
    %v483 = vld [vmem:[#allocation6 + $0xbc8] sm:$0xff]
    %v484 = vld [vmem:[#allocation6 + $0xbd0] sm:$0xff]
    %v485 = vld [vmem:[#allocation6 + $0xbd8] sm:$0xff]
    %v486 = vld [vmem:[#allocation6 + $0xbe0] sm:$0xff]
    %v487 = vld [vmem:[#allocation6 + $0xbe8] sm:$0xff]
    %v488 = vld [vmem:[#allocation6 + $0xbf0] sm:$0xff]
    %v489 = vld [vmem:[#allocation6 + $0xbf8] sm:$0xff]
    %v490 = vld [vmem:[#allocation6 + $0xc00] sm:$0xff]
    %v491 = vld [vmem:[#allocation6 + $0xc08] sm:$0xff]
    %v492 = vld [vmem:[#allocation6 + $0xc10] sm:$0xff]
    %v493 = vld [vmem:[#allocation6 + $0xc18] sm:$0xff]
    %v494 = vld [vmem:[#allocation6 + $0xc20] sm:$0xff]
    %v495 = vld [vmem:[#allocation6 + $0xc28] sm:$0xff]
    %v496 = vld [vmem:[#allocation6 + $0xc30] sm:$0xff]
    %v497 = vld [vmem:[#allocation6 + $0xc38] sm:$0xff]
    %v498 = vld [vmem:[#allocation6 + $0xc40] sm:$0xff]
    %v499 = vld [vmem:[#allocation6 + $0xc48] sm:$0xff]
    %v500 = vld [vmem:[#allocation6 + $0xc50] sm:$0xff]
    %v501 = vld [vmem:[#allocation6 + $0xc58] sm:$0xff]
    %v502 = vld [vmem:[#allocation8] sm:$0xff]
    %v503 = vld [vmem:[#allocation8 + $0x8] sm:$0xff]
    %v504 = vld [vmem:[#allocation8 + $0x10] sm:$0x3f]
    %v508 = vperm.slane %v502, 0
    %v509 = vperm.slane %v502, 1
    %v510 = vperm.slane %v502, 2
    %v511 = vperm.slane %v502, 3
    %v512 = vperm.slane %v502, 4
    %v513 = vperm.slane %v502, 5
    %v514 = vperm.slane %v502, 6
    %v515 = vperm.slane %v502, 7
    %v516 = vperm.slane %v503, 0
    %v517 = vperm.slane %v503, 1
    %v518 = vperm.slane %v503, 2
    %v519 = vperm.slane %v503, 3
    %v520 = vperm.slane %v503, 4
    %v521 = vperm.slane %v503, 5
    %v522 = vperm.slane %v503, 6
    %v523 = vperm.slane %v503, 7
    %v524 = vperm.slane %v504, 0
    %v525 = vperm.slane %v504, 1
    %v526 = vperm.slane %v504, 2
    %v527 = vperm.slane %v504, 3
    %v528 = vperm.slane %v504, 4
    %v529 = vperm.slane %v504, 5
    %v556 = vunpack.c.l.b16 %v102
    %v557 = vunpack.c.h.b16 %v102
    %v558 = vunpack.c.l.b16 %v103
    %v559 = vunpack.c.l.b16 %v104
    %v560 = vunpack.c.h.b16 %v104
    %v561 = vunpack.c.l.b16 %v105
    %v562 = vpack.c.b16 %v559, %v556
    %v563 = vpack.c.b16 %v560, %v557
    %v564 = vpack.c.b16 %v561, %v558
    %v963 = vunpack.c.l.b16 %v106
    %v964 = vunpack.c.h.b16 %v106
    %v965 = vunpack.c.l.b16 %v107
    %v966 = vunpack.c.h.b16 %v107
    %v967 = vunpack.c.l.b16 %v108
    %v968 = vunpack.c.h.b16 %v108
    %v969 = vunpack.c.l.b16 %v109
    %v970 = vunpack.c.h.b16 %v109
    %v971 = vunpack.c.l.b16 %v110
    %v972 = vunpack.c.h.b16 %v110
    %v973 = vunpack.c.l.b16 %v111
    %v974 = vunpack.c.h.b16 %v111
    %v975 = vunpack.c.l.b16 %v112
    %v976 = vunpack.c.h.b16 %v112
    %v977 = vunpack.c.l.b16 %v113
    %v978 = vunpack.c.h.b16 %v113
    %v979 = vunpack.c.l.b16 %v114
    %v980 = vunpack.c.h.b16 %v114
    %v981 = vunpack.c.l.b16 %v115
    %v982 = vunpack.c.h.b16 %v115
    %v983 = vunpack.c.l.b16 %v116
    %v984 = vunpack.c.h.b16 %v116
    %v985 = vunpack.c.l.b16 %v117
    %v986 = vunpack.c.h.b16 %v117
    %v987 = vunpack.c.l.b16 %v118
    %v988 = vunpack.c.h.b16 %v118
    %v989 = vunpack.c.l.b16 %v119
    %v990 = vunpack.c.h.b16 %v119
    %v991 = vunpack.c.l.b16 %v120
    %v992 = vunpack.c.h.b16 %v120
    %v993 = vunpack.c.l.b16 %v121
    %v994 = vunpack.c.h.b16 %v121
    %v995 = vunpack.c.l.b16 %v122
    %v996 = vunpack.c.h.b16 %v122
    %v997 = vunpack.c.l.b16 %v123
    %v998 = vunpack.c.h.b16 %v123
    %v999 = vunpack.c.l.b16 %v124
    %v1000 = vunpack.c.h.b16 %v124
    %v1001 = vunpack.c.l.b16 %v125
    %v1002 = vunpack.c.h.b16 %v125
    %v1003 = vunpack.c.l.b16 %v126
    %v1004 = vunpack.c.h.b16 %v126
    %v1005 = vunpack.c.l.b16 %v127
    %v1006 = vunpack.c.h.b16 %v127
    %v1007 = vunpack.c.l.b16 %v128
    %v1008 = vunpack.c.h.b16 %v128
    %v1009 = vunpack.c.l.b16 %v129
    %v1010 = vunpack.c.h.b16 %v129
    %v1011 = vunpack.c.l.b16 %v130
    %v1012 = vunpack.c.h.b16 %v130
    %v1013 = vunpack.c.l.b16 %v131
    %v1014 = vunpack.c.h.b16 %v131
    %v1015 = vunpack.c.l.b16 %v132
    %v1016 = vunpack.c.h.b16 %v132
    %v1017 = vunpack.c.l.b16 %v133
    %v1018 = vunpack.c.h.b16 %v133
    %v1019 = vunpack.c.l.b16 %v134
    %v1020 = vunpack.c.h.b16 %v134
    %v1021 = vunpack.c.l.b16 %v135
    %v1022 = vunpack.c.h.b16 %v135
    %v1023 = vunpack.c.l.b16 %v136
    %v1024 = vunpack.c.h.b16 %v136
    %v1025 = vunpack.c.l.b16 %v137
    %v1026 = vunpack.c.h.b16 %v137
    %v1027 = vunpack.c.l.b16 %v138
    %v1028 = vunpack.c.h.b16 %v138
    %v1029 = vunpack.c.l.b16 %v139
    %v1030 = vunpack.c.h.b16 %v139
    %v1031 = vunpack.c.l.b16 %v140
    %v1032 = vunpack.c.h.b16 %v140
    %v1033 = vunpack.c.l.b16 %v141
    %v1034 = vunpack.c.h.b16 %v141
    %v1035 = vunpack.c.l.b16 %v142
    %v1036 = vunpack.c.h.b16 %v142
    %v1037 = vunpack.c.l.b16 %v143
    %v1038 = vunpack.c.h.b16 %v143
    %v1039 = vunpack.c.l.b16 %v144
    %v1040 = vunpack.c.h.b16 %v144
    %v1041 = vunpack.c.l.b16 %v145
    %v1042 = vunpack.c.h.b16 %v145
    %v1043 = vunpack.c.l.b16 %v146
    %v1044 = vunpack.c.h.b16 %v146
    %v1045 = vunpack.c.l.b16 %v147
    %v1046 = vunpack.c.h.b16 %v147
    %v1047 = vunpack.c.l.b16 %v148
    %v1048 = vunpack.c.h.b16 %v148
    %v1049 = vunpack.c.l.b16 %v149
    %v1050 = vunpack.c.h.b16 %v149
    %v1051 = vunpack.c.l.b16 %v150
    %v1052 = vunpack.c.h.b16 %v150
    %v1053 = vunpack.c.l.b16 %v151
    %v1054 = vunpack.c.h.b16 %v151
    %v1055 = vunpack.c.l.b16 %v152
    %v1056 = vunpack.c.h.b16 %v152
    %v1057 = vunpack.c.l.b16 %v153
    %v1058 = vunpack.c.h.b16 %v153
    %v1059 = vunpack.c.l.b16 %v154
    %v1060 = vunpack.c.h.b16 %v154
    %v1061 = vunpack.c.l.b16 %v155
    %v1062 = vunpack.c.h.b16 %v155
    %v1063 = vunpack.c.l.b16 %v156
    %v1064 = vunpack.c.h.b16 %v156
    %v1065 = vunpack.c.l.b16 %v157
    %v1066 = vunpack.c.h.b16 %v157
    %v1067 = vunpack.c.l.b16 %v158
    %v1068 = vunpack.c.h.b16 %v158
    %v1069 = vunpack.c.l.b16 %v159
    %v1070 = vunpack.c.h.b16 %v159
    %v1071 = vunpack.c.l.b16 %v160
    %v1072 = vunpack.c.h.b16 %v160
    %v1073 = vunpack.c.l.b16 %v161
    %v1074 = vunpack.c.h.b16 %v161
    %v1075 = vunpack.c.l.b16 %v162
    %v1076 = vunpack.c.h.b16 %v162
    %v1077 = vunpack.c.l.b16 %v163
    %v1078 = vunpack.c.h.b16 %v163
    %v1079 = vunpack.c.l.b16 %v164
    %v1080 = vunpack.c.h.b16 %v164
    %v1081 = vunpack.c.l.b16 %v165
    %v1082 = vunpack.c.h.b16 %v165
    %v1083 = vunpack.c.l.b16 %v166
    %v1084 = vunpack.c.h.b16 %v166
    %v1085 = vunpack.c.l.b16 %v167
    %v1086 = vunpack.c.h.b16 %v167
    %v1087 = vunpack.c.l.b16 %v168
    %v1088 = vunpack.c.h.b16 %v168
    %v1089 = vunpack.c.l.b16 %v169
    %v1090 = vunpack.c.h.b16 %v169
    %v1091 = vunpack.c.l.b16 %v170
    %v1092 = vunpack.c.h.b16 %v170
    %v1093 = vunpack.c.l.b16 %v171
    %v1094 = vunpack.c.h.b16 %v171
    %v1095 = vunpack.c.l.b16 %v172
    %v1096 = vunpack.c.h.b16 %v172
    %v1097 = vunpack.c.l.b16 %v173
    %v1098 = vunpack.c.h.b16 %v173
    %v1099 = vunpack.c.l.b16 %v174
    %v1100 = vunpack.c.h.b16 %v174
    %v1101 = vunpack.c.l.b16 %v175
    %v1102 = vunpack.c.h.b16 %v175
    %v1103 = vunpack.c.l.b16 %v176
    %v1104 = vunpack.c.h.b16 %v176
    %v1105 = vunpack.c.l.b16 %v177
    %v1106 = vunpack.c.h.b16 %v177
    %v1107 = vunpack.c.l.b16 %v178
    %v1108 = vunpack.c.h.b16 %v178
    %v1109 = vunpack.c.l.b16 %v179
    %v1110 = vunpack.c.h.b16 %v179
    %v1111 = vunpack.c.l.b16 %v180
    %v1112 = vunpack.c.h.b16 %v180
    %v1113 = vunpack.c.l.b16 %v181
    %v1114 = vunpack.c.h.b16 %v181
    %v1115 = vunpack.c.l.b16 %v182
    %v1116 = vunpack.c.h.b16 %v182
    %v1117 = vunpack.c.l.b16 %v183
    %v1118 = vunpack.c.h.b16 %v183
    %v1119 = vunpack.c.l.b16 %v184
    %v1120 = vunpack.c.h.b16 %v184
    %v1121 = vunpack.c.l.b16 %v185
    %v1122 = vunpack.c.h.b16 %v185
    %v1123 = vunpack.c.l.b16 %v186
    %v1124 = vunpack.c.h.b16 %v186
    %v1125 = vunpack.c.l.b16 %v187
    %v1126 = vunpack.c.h.b16 %v187
    %v1127 = vunpack.c.l.b16 %v188
    %v1128 = vunpack.c.h.b16 %v188
    %v1129 = vunpack.c.l.b16 %v189
    %v1130 = vunpack.c.h.b16 %v189
    %v1131 = vunpack.c.l.b16 %v190
    %v1132 = vunpack.c.h.b16 %v190
    %v1133 = vunpack.c.l.b16 %v191
    %v1134 = vunpack.c.h.b16 %v191
    %v1135 = vunpack.c.l.b16 %v192
    %v1136 = vunpack.c.h.b16 %v192
    %v1137 = vunpack.c.l.b16 %v193
    %v1138 = vunpack.c.h.b16 %v193
    %v1139 = vunpack.c.l.b16 %v194
    %v1140 = vunpack.c.h.b16 %v194
    %v1141 = vunpack.c.l.b16 %v195
    %v1142 = vunpack.c.h.b16 %v195
    %v1143 = vunpack.c.l.b16 %v196
    %v1144 = vunpack.c.h.b16 %v196
    %v1145 = vunpack.c.l.b16 %v197
    %v1146 = vunpack.c.h.b16 %v197
    %v1147 = vunpack.c.l.b16 %v198
    %v1148 = vunpack.c.h.b16 %v198
    %v1149 = vunpack.c.l.b16 %v199
    %v1150 = vunpack.c.h.b16 %v199
    %v1151 = vunpack.c.l.b16 %v200
    %v1152 = vunpack.c.h.b16 %v200
    %v1153 = vunpack.c.l.b16 %v201
    %v1154 = vunpack.c.h.b16 %v201
    %v1155 = vunpack.c.l.b16 %v202
    %v1156 = vunpack.c.h.b16 %v202
    %v1157 = vunpack.c.l.b16 %v203
    %v1158 = vunpack.c.h.b16 %v203
    %v1159 = vunpack.c.l.b16 %v204
    %v1160 = vunpack.c.h.b16 %v204
    %v1161 = vunpack.c.l.b16 %v205
    %v1162 = vunpack.c.h.b16 %v205
    %v1163 = vunpack.c.l.b16 %v206
    %v1164 = vunpack.c.h.b16 %v206
    %v1165 = vunpack.c.l.b16 %v207
    %v1166 = vunpack.c.h.b16 %v207
    %v1167 = vunpack.c.l.b16 %v208
    %v1168 = vunpack.c.h.b16 %v208
    %v1169 = vunpack.c.l.b16 %v209
    %v1170 = vunpack.c.h.b16 %v209
    %v1171 = vunpack.c.l.b16 %v210
    %v1172 = vunpack.c.h.b16 %v210
    %v1173 = vunpack.c.l.b16 %v211
    %v1174 = vunpack.c.h.b16 %v211
    %v1175 = vunpack.c.l.b16 %v212
    %v1176 = vunpack.c.h.b16 %v212
    %v1177 = vunpack.c.l.b16 %v213
    %v1178 = vunpack.c.h.b16 %v213
    %v1179 = vunpack.c.l.b16 %v214
    %v1180 = vunpack.c.h.b16 %v214
    %v1181 = vunpack.c.l.b16 %v215
    %v1182 = vunpack.c.h.b16 %v215
    %v1183 = vunpack.c.l.b16 %v216
    %v1184 = vunpack.c.h.b16 %v216
    %v1185 = vunpack.c.l.b16 %v217
    %v1186 = vunpack.c.h.b16 %v217
    %v1187 = vunpack.c.l.b16 %v218
    %v1188 = vunpack.c.h.b16 %v218
    %v1189 = vunpack.c.l.b16 %v219
    %v1190 = vunpack.c.h.b16 %v219
    %v1191 = vunpack.c.l.b16 %v220
    %v1192 = vunpack.c.h.b16 %v220
    %v1193 = vunpack.c.l.b16 %v221
    %v1194 = vunpack.c.h.b16 %v221
    %v1195 = vunpack.c.l.b16 %v222
    %v1196 = vunpack.c.h.b16 %v222
    %v1197 = vunpack.c.l.b16 %v223
    %v1198 = vunpack.c.h.b16 %v223
    %v1199 = vunpack.c.l.b16 %v224
    %v1200 = vunpack.c.h.b16 %v224
    %v1201 = vunpack.c.l.b16 %v225
    %v1202 = vunpack.c.h.b16 %v225
    %v1203 = vunpack.c.l.b16 %v226
    %v1204 = vunpack.c.h.b16 %v226
    %v1205 = vunpack.c.l.b16 %v227
    %v1206 = vunpack.c.h.b16 %v227
    %v1207 = vunpack.c.l.b16 %v228
    %v1208 = vunpack.c.h.b16 %v228
    %v1209 = vunpack.c.l.b16 %v229
    %v1210 = vunpack.c.h.b16 %v229
    %v1211 = vunpack.c.l.b16 %v230
    %v1212 = vunpack.c.h.b16 %v230
    %v1213 = vunpack.c.l.b16 %v231
    %v1214 = vunpack.c.h.b16 %v231
    %v1215 = vunpack.c.l.b16 %v232
    %v1216 = vunpack.c.h.b16 %v232
    %v1217 = vunpack.c.l.b16 %v233
    %v1218 = vunpack.c.h.b16 %v233
    %v1219 = vunpack.c.l.b16 %v234
    %v1220 = vunpack.c.h.b16 %v234
    %v1221 = vunpack.c.l.b16 %v235
    %v1222 = vunpack.c.h.b16 %v235
    %v1223 = vunpack.c.l.b16 %v236
    %v1224 = vunpack.c.h.b16 %v236
    %v1225 = vunpack.c.l.b16 %v237
    %v1226 = vunpack.c.h.b16 %v237
    %v1227 = vunpack.c.l.b16 %v238
    %v1228 = vunpack.c.h.b16 %v238
    %v1229 = vunpack.c.l.b16 %v239
    %v1230 = vunpack.c.h.b16 %v239
    %v1231 = vunpack.c.l.b16 %v240
    %v1232 = vunpack.c.h.b16 %v240
    %v1233 = vunpack.c.l.b16 %v241
    %v1234 = vunpack.c.h.b16 %v241
    %v1235 = vunpack.c.l.b16 %v242
    %v1236 = vunpack.c.h.b16 %v242
    %v1237 = vunpack.c.l.b16 %v243
    %v1238 = vunpack.c.h.b16 %v243
    %v1239 = vunpack.c.l.b16 %v244
    %v1240 = vunpack.c.h.b16 %v244
    %v1241 = vunpack.c.l.b16 %v245
    %v1242 = vunpack.c.h.b16 %v245
    %v1243 = vunpack.c.l.b16 %v246
    %v1244 = vunpack.c.h.b16 %v246
    %v1245 = vunpack.c.l.b16 %v247
    %v1246 = vunpack.c.h.b16 %v247
    %v1247 = vunpack.c.l.b16 %v248
    %v1248 = vunpack.c.h.b16 %v248
    %v1249 = vunpack.c.l.b16 %v249
    %v1250 = vunpack.c.h.b16 %v249
    %v1251 = vunpack.c.l.b16 %v250
    %v1252 = vunpack.c.h.b16 %v250
    %v1253 = vunpack.c.l.b16 %v251
    %v1254 = vunpack.c.h.b16 %v251
    %v1255 = vunpack.c.l.b16 %v252
    %v1256 = vunpack.c.h.b16 %v252
    %v1257 = vunpack.c.l.b16 %v253
    %v1258 = vunpack.c.h.b16 %v253
    %v1259 = vunpack.c.l.b16 %v254
    %v1260 = vunpack.c.h.b16 %v254
    %v1261 = vunpack.c.l.b16 %v255
    %v1262 = vunpack.c.h.b16 %v255
    %v1263 = vunpack.c.l.b16 %v256
    %v1264 = vunpack.c.h.b16 %v256
    %v1265 = vunpack.c.l.b16 %v257
    %v1266 = vunpack.c.h.b16 %v257
    %v1267 = vunpack.c.l.b16 %v258
    %v1268 = vunpack.c.h.b16 %v258
    %v1269 = vunpack.c.l.b16 %v259
    %v1270 = vunpack.c.h.b16 %v259
    %v1271 = vunpack.c.l.b16 %v260
    %v1272 = vunpack.c.h.b16 %v260
    %v1273 = vunpack.c.l.b16 %v261
    %v1274 = vunpack.c.h.b16 %v261
    %v1275 = vunpack.c.l.b16 %v262
    %v1276 = vunpack.c.h.b16 %v262
    %v1277 = vunpack.c.l.b16 %v263
    %v1278 = vunpack.c.h.b16 %v263
    %v1279 = vunpack.c.l.b16 %v264
    %v1280 = vunpack.c.h.b16 %v264
    %v1281 = vunpack.c.l.b16 %v265
    %v1282 = vunpack.c.h.b16 %v265
    %v1283 = vunpack.c.l.b16 %v266
    %v1284 = vunpack.c.h.b16 %v266
    %v1285 = vunpack.c.l.b16 %v267
    %v1286 = vunpack.c.h.b16 %v267
    %v1287 = vunpack.c.l.b16 %v268
    %v1288 = vunpack.c.h.b16 %v268
    %v1289 = vunpack.c.l.b16 %v269
    %v1290 = vunpack.c.h.b16 %v269
    %v1291 = vunpack.c.l.b16 %v270
    %v1292 = vunpack.c.h.b16 %v270
    %v1293 = vunpack.c.l.b16 %v271
    %v1294 = vunpack.c.h.b16 %v271
    %v1295 = vunpack.c.l.b16 %v272
    %v1296 = vunpack.c.h.b16 %v272
    %v1297 = vunpack.c.l.b16 %v273
    %v1298 = vunpack.c.h.b16 %v273
    %v1299 = vunpack.c.l.b16 %v274
    %v1300 = vunpack.c.h.b16 %v274
    %v1301 = vunpack.c.l.b16 %v275
    %v1302 = vunpack.c.h.b16 %v275
    %v1303 = vunpack.c.l.b16 %v276
    %v1304 = vunpack.c.h.b16 %v276
    %v1305 = vunpack.c.l.b16 %v277
    %v1306 = vunpack.c.h.b16 %v277
    %v1307 = vunpack.c.l.b16 %v278
    %v1308 = vunpack.c.h.b16 %v278
    %v1309 = vunpack.c.l.b16 %v279
    %v1310 = vunpack.c.h.b16 %v279
    %v1311 = vunpack.c.l.b16 %v280
    %v1312 = vunpack.c.h.b16 %v280
    %v1313 = vunpack.c.l.b16 %v281
    %v1314 = vunpack.c.h.b16 %v281
    %v1315 = vunpack.c.l.b16 %v282
    %v1316 = vunpack.c.h.b16 %v282
    %v1317 = vunpack.c.l.b16 %v283
    %v1318 = vunpack.c.h.b16 %v283
    %v1319 = vunpack.c.l.b16 %v284
    %v1320 = vunpack.c.h.b16 %v284
    %v1321 = vunpack.c.l.b16 %v285
    %v1322 = vunpack.c.h.b16 %v285
    %v1323 = vunpack.c.l.b16 %v286
    %v1324 = vunpack.c.h.b16 %v286
    %v1325 = vunpack.c.l.b16 %v287
    %v1326 = vunpack.c.h.b16 %v287
    %v1327 = vunpack.c.l.b16 %v288
    %v1328 = vunpack.c.h.b16 %v288
    %v1329 = vunpack.c.l.b16 %v289
    %v1330 = vunpack.c.h.b16 %v289
    %v1331 = vunpack.c.l.b16 %v290
    %v1332 = vunpack.c.h.b16 %v290
    %v1333 = vunpack.c.l.b16 %v291
    %v1334 = vunpack.c.h.b16 %v291
    %v1335 = vunpack.c.l.b16 %v292
    %v1336 = vunpack.c.h.b16 %v292
    %v1337 = vunpack.c.l.b16 %v293
    %v1338 = vunpack.c.h.b16 %v293
    %v1339 = vunpack.c.l.b16 %v294
    %v1340 = vunpack.c.h.b16 %v294
    %v1341 = vunpack.c.l.b16 %v295
    %v1342 = vunpack.c.h.b16 %v295
    %v1343 = vunpack.c.l.b16 %v296
    %v1344 = vunpack.c.h.b16 %v296
    %v1345 = vunpack.c.l.b16 %v297
    %v1346 = vunpack.c.h.b16 %v297
    %v1347 = vunpack.c.l.b16 %v298
    %v1348 = vunpack.c.h.b16 %v298
    %v1349 = vunpack.c.l.b16 %v299
    %v1350 = vunpack.c.h.b16 %v299
    %v1351 = vunpack.c.l.b16 %v300
    %v1352 = vunpack.c.h.b16 %v300
    %v1353 = vunpack.c.l.b16 %v301
    %v1354 = vunpack.c.h.b16 %v301
    %v1355 = vunpack.c.l.b16 %v302
    %v1356 = vunpack.c.h.b16 %v302
    %v1357 = vunpack.c.l.b16 %v303
    %v1358 = vunpack.c.h.b16 %v303
    %v1359 = vunpack.c.l.b16 %v304
    %v1360 = vunpack.c.h.b16 %v304
    %v1361 = vunpack.c.l.b16 %v305
    %v1362 = vunpack.c.h.b16 %v305
    %v1363 = vunpack.c.l.b16 %v306
    %v1364 = vunpack.c.h.b16 %v306
    %v1365 = vunpack.c.l.b16 %v307
    %v1366 = vunpack.c.h.b16 %v307
    %v1367 = vunpack.c.l.b16 %v308
    %v1368 = vunpack.c.h.b16 %v308
    %v1369 = vunpack.c.l.b16 %v309
    %v1370 = vunpack.c.h.b16 %v309
    %v1371 = vunpack.c.l.b16 %v310
    %v1372 = vunpack.c.h.b16 %v310
    %v1373 = vunpack.c.l.b16 %v311
    %v1374 = vunpack.c.h.b16 %v311
    %v1375 = vunpack.c.l.b16 %v312
    %v1376 = vunpack.c.h.b16 %v312
    %v1377 = vunpack.c.l.b16 %v313
    %v1378 = vunpack.c.h.b16 %v313
    %v1379 = vunpack.c.l.b16 %v314
    %v1380 = vunpack.c.h.b16 %v314
    %v1381 = vunpack.c.l.b16 %v315
    %v1382 = vunpack.c.h.b16 %v315
    %v1383 = vunpack.c.l.b16 %v316
    %v1384 = vunpack.c.h.b16 %v316
    %v1385 = vunpack.c.l.b16 %v317
    %v1386 = vunpack.c.h.b16 %v317
    %v1387 = vunpack.c.l.b16 %v318
    %v1388 = vunpack.c.h.b16 %v318
    %v1389 = vunpack.c.l.b16 %v319
    %v1390 = vunpack.c.h.b16 %v319
    %v1391 = vunpack.c.l.b16 %v320
    %v1392 = vunpack.c.h.b16 %v320
    %v1393 = vunpack.c.l.b16 %v321
    %v1394 = vunpack.c.h.b16 %v321
    %v1395 = vunpack.c.l.b16 %v322
    %v1396 = vunpack.c.h.b16 %v322
    %v1397 = vunpack.c.l.b16 %v323
    %v1398 = vunpack.c.h.b16 %v323
    %v1399 = vunpack.c.l.b16 %v324
    %v1400 = vunpack.c.h.b16 %v324
    %v1401 = vunpack.c.l.b16 %v325
    %v1402 = vunpack.c.h.b16 %v325
    %v1403 = vunpack.c.l.b16 %v326
    %v1404 = vunpack.c.h.b16 %v326
    %v1405 = vunpack.c.l.b16 %v327
    %v1406 = vunpack.c.h.b16 %v327
    %v1407 = vunpack.c.l.b16 %v328
    %v1408 = vunpack.c.h.b16 %v328
    %v1409 = vunpack.c.l.b16 %v329
    %v1410 = vunpack.c.h.b16 %v329
    %v1411 = vunpack.c.l.b16 %v330
    %v1412 = vunpack.c.h.b16 %v330
    %v1413 = vunpack.c.l.b16 %v331
    %v1414 = vunpack.c.h.b16 %v331
    %v1415 = vunpack.c.l.b16 %v332
    %v1416 = vunpack.c.h.b16 %v332
    %v1417 = vunpack.c.l.b16 %v333
    %v1418 = vunpack.c.h.b16 %v333
    %v1419 = vunpack.c.l.b16 %v334
    %v1420 = vunpack.c.h.b16 %v334
    %v1421 = vunpack.c.l.b16 %v335
    %v1422 = vunpack.c.h.b16 %v335
    %v1423 = vunpack.c.l.b16 %v336
    %v1424 = vunpack.c.h.b16 %v336
    %v1425 = vunpack.c.l.b16 %v337
    %v1426 = vunpack.c.h.b16 %v337
    %v1427 = vunpack.c.l.b16 %v338
    %v1428 = vunpack.c.h.b16 %v338
    %v1429 = vunpack.c.l.b16 %v339
    %v1430 = vunpack.c.h.b16 %v339
    %v1431 = vunpack.c.l.b16 %v340
    %v1432 = vunpack.c.h.b16 %v340
    %v1433 = vunpack.c.l.b16 %v341
    %v1434 = vunpack.c.h.b16 %v341
    %v1435 = vunpack.c.l.b16 %v342
    %v1436 = vunpack.c.h.b16 %v342
    %v1437 = vunpack.c.l.b16 %v343
    %v1438 = vunpack.c.h.b16 %v343
    %v1439 = vunpack.c.l.b16 %v344
    %v1440 = vunpack.c.h.b16 %v344
    %v1441 = vunpack.c.l.b16 %v345
    %v1442 = vunpack.c.h.b16 %v345
    %v1443 = vunpack.c.l.b16 %v346
    %v1444 = vunpack.c.h.b16 %v346
    %v1445 = vunpack.c.l.b16 %v347
    %v1446 = vunpack.c.h.b16 %v347
    %v1447 = vunpack.c.l.b16 %v348
    %v1448 = vunpack.c.h.b16 %v348
    %v1449 = vunpack.c.l.b16 %v349
    %v1450 = vunpack.c.h.b16 %v349
    %v1451 = vunpack.c.l.b16 %v350
    %v1452 = vunpack.c.h.b16 %v350
    %v1453 = vunpack.c.l.b16 %v351
    %v1454 = vunpack.c.h.b16 %v351
    %v1455 = vunpack.c.l.b16 %v352
    %v1456 = vunpack.c.h.b16 %v352
    %v1457 = vunpack.c.l.b16 %v353
    %v1458 = vunpack.c.h.b16 %v353
    %v1459 = vunpack.c.l.b16 %v354
    %v1460 = vunpack.c.h.b16 %v354
    %v1461 = vunpack.c.l.b16 %v355
    %v1462 = vunpack.c.h.b16 %v355
    %v1463 = vunpack.c.l.b16 %v356
    %v1464 = vunpack.c.h.b16 %v356
    %v1465 = vunpack.c.l.b16 %v357
    %v1466 = vunpack.c.h.b16 %v357
    %v1467 = vunpack.c.l.b16 %v358
    %v1468 = vunpack.c.h.b16 %v358
    %v1469 = vunpack.c.l.b16 %v359
    %v1470 = vunpack.c.h.b16 %v359
    %v1471 = vunpack.c.l.b16 %v360
    %v1472 = vunpack.c.h.b16 %v360
    %v1473 = vunpack.c.l.b16 %v361
    %v1474 = vunpack.c.h.b16 %v361
    %v1475 = vunpack.c.l.b16 %v362
    %v1476 = vunpack.c.h.b16 %v362
    %v1477 = vunpack.c.l.b16 %v363
    %v1478 = vunpack.c.h.b16 %v363
    %v1479 = vunpack.c.l.b16 %v364
    %v1480 = vunpack.c.h.b16 %v364
    %v1481 = vunpack.c.l.b16 %v365
    %v1482 = vunpack.c.h.b16 %v365
    %v1483 = vunpack.c.l.b16 %v366
    %v1484 = vunpack.c.h.b16 %v366
    %v1485 = vunpack.c.l.b16 %v367
    %v1486 = vunpack.c.h.b16 %v367
    %v1487 = vunpack.c.l.b16 %v368
    %v1488 = vunpack.c.h.b16 %v368
    %v1489 = vunpack.c.l.b16 %v369
    %v1490 = vunpack.c.h.b16 %v369
    %v1491 = vunpack.c.l.b16 %v370
    %v1492 = vunpack.c.h.b16 %v370
    %v1493 = vunpack.c.l.b16 %v371
    %v1494 = vunpack.c.h.b16 %v371
    %v1495 = vunpack.c.l.b16 %v372
    %v1496 = vunpack.c.h.b16 %v372
    %v1497 = vunpack.c.l.b16 %v373
    %v1498 = vunpack.c.h.b16 %v373
    %v1499 = vunpack.c.l.b16 %v374
    %v1500 = vunpack.c.h.b16 %v374
    %v1501 = vunpack.c.l.b16 %v375
    %v1502 = vunpack.c.h.b16 %v375
    %v1503 = vunpack.c.l.b16 %v376
    %v1504 = vunpack.c.h.b16 %v376
    %v1505 = vunpack.c.l.b16 %v377
    %v1506 = vunpack.c.h.b16 %v377
    %v1507 = vunpack.c.l.b16 %v378
    %v1508 = vunpack.c.h.b16 %v378
    %v1509 = vunpack.c.l.b16 %v379
    %v1510 = vunpack.c.h.b16 %v379
    %v1511 = vunpack.c.l.b16 %v380
    %v1512 = vunpack.c.h.b16 %v380
    %v1513 = vunpack.c.l.b16 %v381
    %v1514 = vunpack.c.h.b16 %v381
    %v1515 = vunpack.c.l.b16 %v382
    %v1516 = vunpack.c.h.b16 %v382
    %v1517 = vunpack.c.l.b16 %v383
    %v1518 = vunpack.c.h.b16 %v383
    %v1519 = vunpack.c.l.b16 %v384
    %v1520 = vunpack.c.h.b16 %v384
    %v1521 = vunpack.c.l.b16 %v385
    %v1522 = vunpack.c.h.b16 %v385
    %v1523 = vunpack.c.l.b16 %v386
    %v1524 = vunpack.c.h.b16 %v386
    %v1525 = vunpack.c.l.b16 %v387
    %v1526 = vunpack.c.h.b16 %v387
    %v1527 = vunpack.c.l.b16 %v388
    %v1528 = vunpack.c.h.b16 %v388
    %v1529 = vunpack.c.l.b16 %v389
    %v1530 = vunpack.c.h.b16 %v389
    %v1531 = vunpack.c.l.b16 %v390
    %v1532 = vunpack.c.h.b16 %v390
    %v1533 = vunpack.c.l.b16 %v391
    %v1534 = vunpack.c.h.b16 %v391
    %v1535 = vunpack.c.l.b16 %v392
    %v1536 = vunpack.c.h.b16 %v392
    %v1537 = vunpack.c.l.b16 %v393
    %v1538 = vunpack.c.h.b16 %v393
    %v1539 = vunpack.c.l.b16 %v394
    %v1540 = vunpack.c.h.b16 %v394
    %v1541 = vunpack.c.l.b16 %v395
    %v1542 = vunpack.c.h.b16 %v395
    %v1543 = vunpack.c.l.b16 %v396
    %v1544 = vunpack.c.h.b16 %v396
    %v1545 = vunpack.c.l.b16 %v397
    %v1546 = vunpack.c.h.b16 %v397
    %v1547 = vunpack.c.l.b16 %v398
    %v1548 = vunpack.c.h.b16 %v398
    %v1549 = vunpack.c.l.b16 %v399
    %v1550 = vunpack.c.h.b16 %v399
    %v1551 = vunpack.c.l.b16 %v400
    %v1552 = vunpack.c.h.b16 %v400
    %v1553 = vunpack.c.l.b16 %v401
    %v1554 = vunpack.c.h.b16 %v401
    %v1555 = vunpack.c.l.b16 %v402
    %v1556 = vunpack.c.h.b16 %v402
    %v1557 = vunpack.c.l.b16 %v403
    %v1558 = vunpack.c.h.b16 %v403
    %v1559 = vunpack.c.l.b16 %v404
    %v1560 = vunpack.c.h.b16 %v404
    %v1561 = vunpack.c.l.b16 %v405
    %v1562 = vunpack.c.h.b16 %v405
    %v1563 = vunpack.c.l.b16 %v406
    %v1564 = vunpack.c.h.b16 %v406
    %v1565 = vunpack.c.l.b16 %v407
    %v1566 = vunpack.c.h.b16 %v407
    %v1567 = vunpack.c.l.b16 %v408
    %v1568 = vunpack.c.h.b16 %v408
    %v1569 = vunpack.c.l.b16 %v409
    %v1570 = vunpack.c.h.b16 %v409
    %v1571 = vunpack.c.l.b16 %v410
    %v1572 = vunpack.c.h.b16 %v410
    %v1573 = vunpack.c.l.b16 %v411
    %v1574 = vunpack.c.h.b16 %v411
    %v1575 = vunpack.c.l.b16 %v412
    %v1576 = vunpack.c.h.b16 %v412
    %v1577 = vunpack.c.l.b16 %v413
    %v1578 = vunpack.c.h.b16 %v413
    %v1579 = vunpack.c.l.b16 %v414
    %v1580 = vunpack.c.h.b16 %v414
    %v1581 = vunpack.c.l.b16 %v415
    %v1582 = vunpack.c.h.b16 %v415
    %v1583 = vunpack.c.l.b16 %v416
    %v1584 = vunpack.c.h.b16 %v416
    %v1585 = vunpack.c.l.b16 %v417
    %v1586 = vunpack.c.h.b16 %v417
    %v1587 = vunpack.c.l.b16 %v418
    %v1588 = vunpack.c.h.b16 %v418
    %v1589 = vunpack.c.l.b16 %v419
    %v1590 = vunpack.c.h.b16 %v419
    %v1591 = vunpack.c.l.b16 %v420
    %v1592 = vunpack.c.h.b16 %v420
    %v1593 = vunpack.c.l.b16 %v421
    %v1594 = vunpack.c.h.b16 %v421
    %v1595 = vunpack.c.l.b16 %v422
    %v1596 = vunpack.c.h.b16 %v422
    %v1597 = vunpack.c.l.b16 %v423
    %v1598 = vunpack.c.h.b16 %v423
    %v1599 = vunpack.c.l.b16 %v424
    %v1600 = vunpack.c.h.b16 %v424
    %v1601 = vunpack.c.l.b16 %v425
    %v1602 = vunpack.c.h.b16 %v425
    %v1603 = vunpack.c.l.b16 %v426
    %v1604 = vunpack.c.h.b16 %v426
    %v1605 = vunpack.c.l.b16 %v427
    %v1606 = vunpack.c.h.b16 %v427
    %v1607 = vunpack.c.l.b16 %v428
    %v1608 = vunpack.c.h.b16 %v428
    %v1609 = vunpack.c.l.b16 %v429
    %v1610 = vunpack.c.h.b16 %v429
    %v1611 = vunpack.c.l.b16 %v430
    %v1612 = vunpack.c.h.b16 %v430
    %v1613 = vunpack.c.l.b16 %v431
    %v1614 = vunpack.c.h.b16 %v431
    %v1615 = vunpack.c.l.b16 %v432
    %v1616 = vunpack.c.h.b16 %v432
    %v1617 = vunpack.c.l.b16 %v433
    %v1618 = vunpack.c.h.b16 %v433
    %v1619 = vunpack.c.l.b16 %v434
    %v1620 = vunpack.c.h.b16 %v434
    %v1621 = vunpack.c.l.b16 %v435
    %v1622 = vunpack.c.h.b16 %v435
    %v1623 = vunpack.c.l.b16 %v436
    %v1624 = vunpack.c.h.b16 %v436
    %v1625 = vunpack.c.l.b16 %v437
    %v1626 = vunpack.c.h.b16 %v437
    %v1627 = vunpack.c.l.b16 %v438
    %v1628 = vunpack.c.h.b16 %v438
    %v1629 = vunpack.c.l.b16 %v439
    %v1630 = vunpack.c.h.b16 %v439
    %v1631 = vunpack.c.l.b16 %v440
    %v1632 = vunpack.c.h.b16 %v440
    %v1633 = vunpack.c.l.b16 %v441
    %v1634 = vunpack.c.h.b16 %v441
    %v1635 = vunpack.c.l.b16 %v442
    %v1636 = vunpack.c.h.b16 %v442
    %v1637 = vunpack.c.l.b16 %v443
    %v1638 = vunpack.c.h.b16 %v443
    %v1639 = vunpack.c.l.b16 %v444
    %v1640 = vunpack.c.h.b16 %v444
    %v1641 = vunpack.c.l.b16 %v445
    %v1642 = vunpack.c.h.b16 %v445
    %v1643 = vunpack.c.l.b16 %v446
    %v1644 = vunpack.c.h.b16 %v446
    %v1645 = vunpack.c.l.b16 %v447
    %v1646 = vunpack.c.h.b16 %v447
    %v1647 = vunpack.c.l.b16 %v448
    %v1648 = vunpack.c.h.b16 %v448
    %v1649 = vunpack.c.l.b16 %v449
    %v1650 = vunpack.c.h.b16 %v449
    %v1651 = vunpack.c.l.b16 %v450
    %v1652 = vunpack.c.h.b16 %v450
    %v1653 = vunpack.c.l.b16 %v451
    %v1654 = vunpack.c.h.b16 %v451
    %v1655 = vunpack.c.l.b16 %v452
    %v1656 = vunpack.c.h.b16 %v452
    %v1657 = vunpack.c.l.b16 %v453
    %v1658 = vunpack.c.h.b16 %v453
    %v1659 = vunpack.c.l.b16 %v454
    %v1660 = vunpack.c.h.b16 %v454
    %v1661 = vunpack.c.l.b16 %v455
    %v1662 = vunpack.c.h.b16 %v455
    %v1663 = vunpack.c.l.b16 %v456
    %v1664 = vunpack.c.h.b16 %v456
    %v1665 = vunpack.c.l.b16 %v457
    %v1666 = vunpack.c.h.b16 %v457
    %v1667 = vunpack.c.l.b16 %v458
    %v1668 = vunpack.c.h.b16 %v458
    %v1669 = vunpack.c.l.b16 %v459
    %v1670 = vunpack.c.h.b16 %v459
    %v1671 = vunpack.c.l.b16 %v460
    %v1672 = vunpack.c.h.b16 %v460
    %v1673 = vunpack.c.l.b16 %v461
    %v1674 = vunpack.c.h.b16 %v461
    %v1675 = vunpack.c.l.b16 %v462
    %v1676 = vunpack.c.h.b16 %v462
    %v1677 = vunpack.c.l.b16 %v463
    %v1678 = vunpack.c.h.b16 %v463
    %v1679 = vunpack.c.l.b16 %v464
    %v1680 = vunpack.c.h.b16 %v464
    %v1681 = vunpack.c.l.b16 %v465
    %v1682 = vunpack.c.h.b16 %v465
    %v1683 = vunpack.c.l.b16 %v466
    %v1684 = vunpack.c.h.b16 %v466
    %v1685 = vunpack.c.l.b16 %v467
    %v1686 = vunpack.c.h.b16 %v467
    %v1687 = vunpack.c.l.b16 %v468
    %v1688 = vunpack.c.h.b16 %v468
    %v1689 = vunpack.c.l.b16 %v469
    %v1690 = vunpack.c.h.b16 %v469
    %v1691 = vunpack.c.l.b16 %v470
    %v1692 = vunpack.c.h.b16 %v470
    %v1693 = vunpack.c.l.b16 %v471
    %v1694 = vunpack.c.h.b16 %v471
    %v1695 = vunpack.c.l.b16 %v472
    %v1696 = vunpack.c.h.b16 %v472
    %v1697 = vunpack.c.l.b16 %v473
    %v1698 = vunpack.c.h.b16 %v473
    %v1699 = vunpack.c.l.b16 %v474
    %v1700 = vunpack.c.h.b16 %v474
    %v1701 = vunpack.c.l.b16 %v475
    %v1702 = vunpack.c.h.b16 %v475
    %v1703 = vunpack.c.l.b16 %v476
    %v1704 = vunpack.c.h.b16 %v476
    %v1705 = vunpack.c.l.b16 %v477
    %v1706 = vunpack.c.h.b16 %v477
    %v1707 = vunpack.c.l.b16 %v478
    %v1708 = vunpack.c.h.b16 %v478
    %v1709 = vunpack.c.l.b16 %v479
    %v1710 = vunpack.c.h.b16 %v479
    %v1711 = vunpack.c.l.b16 %v480
    %v1712 = vunpack.c.h.b16 %v480
    %v1713 = vunpack.c.l.b16 %v481
    %v1714 = vunpack.c.h.b16 %v481
    %v1715 = vunpack.c.l.b16 %v482
    %v1716 = vunpack.c.h.b16 %v482
    %v1717 = vunpack.c.l.b16 %v483
    %v1718 = vunpack.c.h.b16 %v483
    %v1719 = vunpack.c.l.b16 %v484
    %v1720 = vunpack.c.h.b16 %v484
    %v1721 = vunpack.c.l.b16 %v485
    %v1722 = vunpack.c.h.b16 %v485
    %v1723 = vunpack.c.l.b16 %v486
    %v1724 = vunpack.c.h.b16 %v486
    %v1725 = vunpack.c.l.b16 %v487
    %v1726 = vunpack.c.h.b16 %v487
    %v1727 = vunpack.c.l.b16 %v488
    %v1728 = vunpack.c.h.b16 %v488
    %v1729 = vunpack.c.l.b16 %v489
    %v1730 = vunpack.c.h.b16 %v489
    %v1731 = vunpack.c.l.b16 %v490
    %v1732 = vunpack.c.h.b16 %v490
    %v1733 = vunpack.c.l.b16 %v491
    %v1734 = vunpack.c.h.b16 %v491
    %v1735 = vunpack.c.l.b16 %v492
    %v1736 = vunpack.c.h.b16 %v492
    %v1737 = vunpack.c.l.b16 %v493
    %v1738 = vunpack.c.h.b16 %v493
    %v1739 = vunpack.c.l.b16 %v494
    %v1740 = vunpack.c.h.b16 %v494
    %v1741 = vunpack.c.l.b16 %v495
    %v1742 = vunpack.c.h.b16 %v495
    %v1743 = vunpack.c.l.b16 %v496
    %v1744 = vunpack.c.h.b16 %v496
    %v1745 = vunpack.c.l.b16 %v497
    %v1746 = vunpack.c.h.b16 %v497
    %v1747 = vunpack.c.l.b16 %v498
    %v1748 = vunpack.c.h.b16 %v498
    %v1749 = vunpack.c.l.b16 %v499
    %v1750 = vunpack.c.h.b16 %v499
    %v1751 = vunpack.c.l.b16 %v500
    %v1752 = vunpack.c.h.b16 %v500
    %v1753 = vunpack.c.l.b16 %v501
    %v1754 = vunpack.c.h.b16 %v501
    %v1755 = vpack.c.b16 %v985, %v963
    %v1756 = vpack.c.b16 %v986, %v964
    %v1757 = vpack.c.b16 %v987, %v965
    %v1758 = vpack.c.b16 %v988, %v966
    %v1759 = vpack.c.b16 %v989, %v967
    %v1760 = vpack.c.b16 %v990, %v968
    %v1761 = vpack.c.b16 %v991, %v969
    %v1762 = vpack.c.b16 %v992, %v970
    %v1763 = vpack.c.b16 %v993, %v971
    %v1764 = vpack.c.b16 %v994, %v972
    %v1765 = vpack.c.b16 %v995, %v973
    %v1766 = vpack.c.b16 %v996, %v974
    %v1767 = vpack.c.b16 %v997, %v975
    %v1768 = vpack.c.b16 %v998, %v976
    %v1769 = vpack.c.b16 %v999, %v977
    %v1770 = vpack.c.b16 %v1000, %v978
    %v1771 = vpack.c.b16 %v1001, %v979
    %v1772 = vpack.c.b16 %v1002, %v980
    %v1773 = vpack.c.b16 %v1003, %v981
    %v1774 = vpack.c.b16 %v1004, %v982
    %v1775 = vpack.c.b16 %v1005, %v983
    %v1776 = vpack.c.b16 %v1006, %v984
    %v1777 = vpack.c.b16 %v1029, %v1007
    %v1778 = vpack.c.b16 %v1030, %v1008
    %v1779 = vpack.c.b16 %v1031, %v1009
    %v1780 = vpack.c.b16 %v1032, %v1010
    %v1781 = vpack.c.b16 %v1033, %v1011
    %v1782 = vpack.c.b16 %v1034, %v1012
    %v1783 = vpack.c.b16 %v1035, %v1013
    %v1784 = vpack.c.b16 %v1036, %v1014
    %v1785 = vpack.c.b16 %v1037, %v1015
    %v1786 = vpack.c.b16 %v1038, %v1016
    %v1787 = vpack.c.b16 %v1039, %v1017
    %v1788 = vpack.c.b16 %v1040, %v1018
    %v1789 = vpack.c.b16 %v1041, %v1019
    %v1790 = vpack.c.b16 %v1042, %v1020
    %v1791 = vpack.c.b16 %v1043, %v1021
    %v1792 = vpack.c.b16 %v1044, %v1022
    %v1793 = vpack.c.b16 %v1045, %v1023
    %v1794 = vpack.c.b16 %v1046, %v1024
    %v1795 = vpack.c.b16 %v1047, %v1025
    %v1796 = vpack.c.b16 %v1048, %v1026
    %v1797 = vpack.c.b16 %v1049, %v1027
    %v1798 = vpack.c.b16 %v1050, %v1028
    %v1799 = vpack.c.b16 %v1073, %v1051
    %v1800 = vpack.c.b16 %v1074, %v1052
    %v1801 = vpack.c.b16 %v1075, %v1053
    %v1802 = vpack.c.b16 %v1076, %v1054
    %v1803 = vpack.c.b16 %v1077, %v1055
    %v1804 = vpack.c.b16 %v1078, %v1056
    %v1805 = vpack.c.b16 %v1079, %v1057
    %v1806 = vpack.c.b16 %v1080, %v1058
    %v1807 = vpack.c.b16 %v1081, %v1059
    %v1808 = vpack.c.b16 %v1082, %v1060
    %v1809 = vpack.c.b16 %v1083, %v1061
    %v1810 = vpack.c.b16 %v1084, %v1062
    %v1811 = vpack.c.b16 %v1085, %v1063
    %v1812 = vpack.c.b16 %v1086, %v1064
    %v1813 = vpack.c.b16 %v1087, %v1065
    %v1814 = vpack.c.b16 %v1088, %v1066
    %v1815 = vpack.c.b16 %v1089, %v1067
    %v1816 = vpack.c.b16 %v1090, %v1068
    %v1817 = vpack.c.b16 %v1091, %v1069
    %v1818 = vpack.c.b16 %v1092, %v1070
    %v1819 = vpack.c.b16 %v1093, %v1071
    %v1820 = vpack.c.b16 %v1094, %v1072
    %v1821 = vpack.c.b16 %v1117, %v1095
    %v1822 = vpack.c.b16 %v1118, %v1096
    %v1823 = vpack.c.b16 %v1119, %v1097
    %v1824 = vpack.c.b16 %v1120, %v1098
    %v1825 = vpack.c.b16 %v1121, %v1099
    %v1826 = vpack.c.b16 %v1122, %v1100
    %v1827 = vpack.c.b16 %v1123, %v1101
    %v1828 = vpack.c.b16 %v1124, %v1102
    %v1829 = vpack.c.b16 %v1125, %v1103
    %v1830 = vpack.c.b16 %v1126, %v1104
    %v1831 = vpack.c.b16 %v1127, %v1105
    %v1832 = vpack.c.b16 %v1128, %v1106
    %v1833 = vpack.c.b16 %v1129, %v1107
    %v1834 = vpack.c.b16 %v1130, %v1108
    %v1835 = vpack.c.b16 %v1131, %v1109
    %v1836 = vpack.c.b16 %v1132, %v1110
    %v1837 = vpack.c.b16 %v1133, %v1111
    %v1838 = vpack.c.b16 %v1134, %v1112
    %v1839 = vpack.c.b16 %v1135, %v1113
    %v1840 = vpack.c.b16 %v1136, %v1114
    %v1841 = vpack.c.b16 %v1137, %v1115
    %v1842 = vpack.c.b16 %v1138, %v1116
    %v1843 = vpack.c.b16 %v1161, %v1139
    %v1844 = vpack.c.b16 %v1162, %v1140
    %v1845 = vpack.c.b16 %v1163, %v1141
    %v1846 = vpack.c.b16 %v1164, %v1142
    %v1847 = vpack.c.b16 %v1165, %v1143
    %v1848 = vpack.c.b16 %v1166, %v1144
    %v1849 = vpack.c.b16 %v1167, %v1145
    %v1850 = vpack.c.b16 %v1168, %v1146
    %v1851 = vpack.c.b16 %v1169, %v1147
    %v1852 = vpack.c.b16 %v1170, %v1148
    %v1853 = vpack.c.b16 %v1171, %v1149
    %v1854 = vpack.c.b16 %v1172, %v1150
    %v1855 = vpack.c.b16 %v1173, %v1151
    %v1856 = vpack.c.b16 %v1174, %v1152
    %v1857 = vpack.c.b16 %v1175, %v1153
    %v1858 = vpack.c.b16 %v1176, %v1154
    %v1859 = vpack.c.b16 %v1177, %v1155
    %v1860 = vpack.c.b16 %v1178, %v1156
    %v1861 = vpack.c.b16 %v1179, %v1157
    %v1862 = vpack.c.b16 %v1180, %v1158
    %v1863 = vpack.c.b16 %v1181, %v1159
    %v1864 = vpack.c.b16 %v1182, %v1160
    %v1865 = vpack.c.b16 %v1205, %v1183
    %v1866 = vpack.c.b16 %v1206, %v1184
    %v1867 = vpack.c.b16 %v1207, %v1185
    %v1868 = vpack.c.b16 %v1208, %v1186
    %v1869 = vpack.c.b16 %v1209, %v1187
    %v1870 = vpack.c.b16 %v1210, %v1188
    %v1871 = vpack.c.b16 %v1211, %v1189
    %v1872 = vpack.c.b16 %v1212, %v1190
    %v1873 = vpack.c.b16 %v1213, %v1191
    %v1874 = vpack.c.b16 %v1214, %v1192
    %v1875 = vpack.c.b16 %v1215, %v1193
    %v1876 = vpack.c.b16 %v1216, %v1194
    %v1877 = vpack.c.b16 %v1217, %v1195
    %v1878 = vpack.c.b16 %v1218, %v1196
    %v1879 = vpack.c.b16 %v1219, %v1197
    %v1880 = vpack.c.b16 %v1220, %v1198
    %v1881 = vpack.c.b16 %v1221, %v1199
    %v1882 = vpack.c.b16 %v1222, %v1200
    %v1883 = vpack.c.b16 %v1223, %v1201
    %v1884 = vpack.c.b16 %v1224, %v1202
    %v1885 = vpack.c.b16 %v1225, %v1203
    %v1886 = vpack.c.b16 %v1226, %v1204
    %v1887 = vpack.c.b16 %v1249, %v1227
    %v1888 = vpack.c.b16 %v1250, %v1228
    %v1889 = vpack.c.b16 %v1251, %v1229
    %v1890 = vpack.c.b16 %v1252, %v1230
    %v1891 = vpack.c.b16 %v1253, %v1231
    %v1892 = vpack.c.b16 %v1254, %v1232
    %v1893 = vpack.c.b16 %v1255, %v1233
    %v1894 = vpack.c.b16 %v1256, %v1234
    %v1895 = vpack.c.b16 %v1257, %v1235
    %v1896 = vpack.c.b16 %v1258, %v1236
    %v1897 = vpack.c.b16 %v1259, %v1237
    %v1898 = vpack.c.b16 %v1260, %v1238
    %v1899 = vpack.c.b16 %v1261, %v1239
    %v1900 = vpack.c.b16 %v1262, %v1240
    %v1901 = vpack.c.b16 %v1263, %v1241
    %v1902 = vpack.c.b16 %v1264, %v1242
    %v1903 = vpack.c.b16 %v1265, %v1243
    %v1904 = vpack.c.b16 %v1266, %v1244
    %v1905 = vpack.c.b16 %v1267, %v1245
    %v1906 = vpack.c.b16 %v1268, %v1246
    %v1907 = vpack.c.b16 %v1269, %v1247
    %v1908 = vpack.c.b16 %v1270, %v1248
    %v1909 = vpack.c.b16 %v1293, %v1271
    %v1910 = vpack.c.b16 %v1294, %v1272
    %v1911 = vpack.c.b16 %v1295, %v1273
    %v1912 = vpack.c.b16 %v1296, %v1274
    %v1913 = vpack.c.b16 %v1297, %v1275
    %v1914 = vpack.c.b16 %v1298, %v1276
    %v1915 = vpack.c.b16 %v1299, %v1277
    %v1916 = vpack.c.b16 %v1300, %v1278
    %v1917 = vpack.c.b16 %v1301, %v1279
    %v1918 = vpack.c.b16 %v1302, %v1280
    %v1919 = vpack.c.b16 %v1303, %v1281
    %v1920 = vpack.c.b16 %v1304, %v1282
    %v1921 = vpack.c.b16 %v1305, %v1283
    %v1922 = vpack.c.b16 %v1306, %v1284
    %v1923 = vpack.c.b16 %v1307, %v1285
    %v1924 = vpack.c.b16 %v1308, %v1286
    %v1925 = vpack.c.b16 %v1309, %v1287
    %v1926 = vpack.c.b16 %v1310, %v1288
    %v1927 = vpack.c.b16 %v1311, %v1289
    %v1928 = vpack.c.b16 %v1312, %v1290
    %v1929 = vpack.c.b16 %v1313, %v1291
    %v1930 = vpack.c.b16 %v1314, %v1292
    %v1931 = vpack.c.b16 %v1337, %v1315
    %v1932 = vpack.c.b16 %v1338, %v1316
    %v1933 = vpack.c.b16 %v1339, %v1317
    %v1934 = vpack.c.b16 %v1340, %v1318
    %v1935 = vpack.c.b16 %v1341, %v1319
    %v1936 = vpack.c.b16 %v1342, %v1320
    %v1937 = vpack.c.b16 %v1343, %v1321
    %v1938 = vpack.c.b16 %v1344, %v1322
    %v1939 = vpack.c.b16 %v1345, %v1323
    %v1940 = vpack.c.b16 %v1346, %v1324
    %v1941 = vpack.c.b16 %v1347, %v1325
    %v1942 = vpack.c.b16 %v1348, %v1326
    %v1943 = vpack.c.b16 %v1349, %v1327
    %v1944 = vpack.c.b16 %v1350, %v1328
    %v1945 = vpack.c.b16 %v1351, %v1329
    %v1946 = vpack.c.b16 %v1352, %v1330
    %v1947 = vpack.c.b16 %v1353, %v1331
    %v1948 = vpack.c.b16 %v1354, %v1332
    %v1949 = vpack.c.b16 %v1355, %v1333
    %v1950 = vpack.c.b16 %v1356, %v1334
    %v1951 = vpack.c.b16 %v1357, %v1335
    %v1952 = vpack.c.b16 %v1358, %v1336
    %v1953 = vpack.c.b16 %v1381, %v1359
    %v1954 = vpack.c.b16 %v1382, %v1360
    %v1955 = vpack.c.b16 %v1383, %v1361
    %v1956 = vpack.c.b16 %v1384, %v1362
    %v1957 = vpack.c.b16 %v1385, %v1363
    %v1958 = vpack.c.b16 %v1386, %v1364
    %v1959 = vpack.c.b16 %v1387, %v1365
    %v1960 = vpack.c.b16 %v1388, %v1366
    %v1961 = vpack.c.b16 %v1389, %v1367
    %v1962 = vpack.c.b16 %v1390, %v1368
    %v1963 = vpack.c.b16 %v1391, %v1369
    %v1964 = vpack.c.b16 %v1392, %v1370
    %v1965 = vpack.c.b16 %v1393, %v1371
    %v1966 = vpack.c.b16 %v1394, %v1372
    %v1967 = vpack.c.b16 %v1395, %v1373
    %v1968 = vpack.c.b16 %v1396, %v1374
    %v1969 = vpack.c.b16 %v1397, %v1375
    %v1970 = vpack.c.b16 %v1398, %v1376
    %v1971 = vpack.c.b16 %v1399, %v1377
    %v1972 = vpack.c.b16 %v1400, %v1378
    %v1973 = vpack.c.b16 %v1401, %v1379
    %v1974 = vpack.c.b16 %v1402, %v1380
    %v1975 = vpack.c.b16 %v1425, %v1403
    %v1976 = vpack.c.b16 %v1426, %v1404
    %v1977 = vpack.c.b16 %v1427, %v1405
    %v1978 = vpack.c.b16 %v1428, %v1406
    %v1979 = vpack.c.b16 %v1429, %v1407
    %v1980 = vpack.c.b16 %v1430, %v1408
    %v1981 = vpack.c.b16 %v1431, %v1409
    %v1982 = vpack.c.b16 %v1432, %v1410
    %v1983 = vpack.c.b16 %v1433, %v1411
    %v1984 = vpack.c.b16 %v1434, %v1412
    %v1985 = vpack.c.b16 %v1435, %v1413
    %v1986 = vpack.c.b16 %v1436, %v1414
    %v1987 = vpack.c.b16 %v1437, %v1415
    %v1988 = vpack.c.b16 %v1438, %v1416
    %v1989 = vpack.c.b16 %v1439, %v1417
    %v1990 = vpack.c.b16 %v1440, %v1418
    %v1991 = vpack.c.b16 %v1441, %v1419
    %v1992 = vpack.c.b16 %v1442, %v1420
    %v1993 = vpack.c.b16 %v1443, %v1421
    %v1994 = vpack.c.b16 %v1444, %v1422
    %v1995 = vpack.c.b16 %v1445, %v1423
    %v1996 = vpack.c.b16 %v1446, %v1424
    %v1997 = vpack.c.b16 %v1469, %v1447
    %v1998 = vpack.c.b16 %v1470, %v1448
    %v1999 = vpack.c.b16 %v1471, %v1449
    %v2000 = vpack.c.b16 %v1472, %v1450
    %v2001 = vpack.c.b16 %v1473, %v1451
    %v2002 = vpack.c.b16 %v1474, %v1452
    %v2003 = vpack.c.b16 %v1475, %v1453
    %v2004 = vpack.c.b16 %v1476, %v1454
    %v2005 = vpack.c.b16 %v1477, %v1455
    %v2006 = vpack.c.b16 %v1478, %v1456
    %v2007 = vpack.c.b16 %v1479, %v1457
    %v2008 = vpack.c.b16 %v1480, %v1458
    %v2009 = vpack.c.b16 %v1481, %v1459
    %v2010 = vpack.c.b16 %v1482, %v1460
    %v2011 = vpack.c.b16 %v1483, %v1461
    %v2012 = vpack.c.b16 %v1484, %v1462
    %v2013 = vpack.c.b16 %v1485, %v1463
    %v2014 = vpack.c.b16 %v1486, %v1464
    %v2015 = vpack.c.b16 %v1487, %v1465
    %v2016 = vpack.c.b16 %v1488, %v1466
    %v2017 = vpack.c.b16 %v1489, %v1467
    %v2018 = vpack.c.b16 %v1490, %v1468
    %v2019 = vpack.c.b16 %v1513, %v1491
    %v2020 = vpack.c.b16 %v1514, %v1492
    %v2021 = vpack.c.b16 %v1515, %v1493
    %v2022 = vpack.c.b16 %v1516, %v1494
    %v2023 = vpack.c.b16 %v1517, %v1495
    %v2024 = vpack.c.b16 %v1518, %v1496
    %v2025 = vpack.c.b16 %v1519, %v1497
    %v2026 = vpack.c.b16 %v1520, %v1498
    %v2027 = vpack.c.b16 %v1521, %v1499
    %v2028 = vpack.c.b16 %v1522, %v1500
    %v2029 = vpack.c.b16 %v1523, %v1501
    %v2030 = vpack.c.b16 %v1524, %v1502
    %v2031 = vpack.c.b16 %v1525, %v1503
    %v2032 = vpack.c.b16 %v1526, %v1504
    %v2033 = vpack.c.b16 %v1527, %v1505
    %v2034 = vpack.c.b16 %v1528, %v1506
    %v2035 = vpack.c.b16 %v1529, %v1507
    %v2036 = vpack.c.b16 %v1530, %v1508
    %v2037 = vpack.c.b16 %v1531, %v1509
    %v2038 = vpack.c.b16 %v1532, %v1510
    %v2039 = vpack.c.b16 %v1533, %v1511
    %v2040 = vpack.c.b16 %v1534, %v1512
    %v2041 = vpack.c.b16 %v1557, %v1535
    %v2042 = vpack.c.b16 %v1558, %v1536
    %v2043 = vpack.c.b16 %v1559, %v1537
    %v2044 = vpack.c.b16 %v1560, %v1538
    %v2045 = vpack.c.b16 %v1561, %v1539
    %v2046 = vpack.c.b16 %v1562, %v1540
    %v2047 = vpack.c.b16 %v1563, %v1541
    %v2048 = vpack.c.b16 %v1564, %v1542
    %v2049 = vpack.c.b16 %v1565, %v1543
    %v2050 = vpack.c.b16 %v1566, %v1544
    %v2051 = vpack.c.b16 %v1567, %v1545
    %v2052 = vpack.c.b16 %v1568, %v1546
    %v2053 = vpack.c.b16 %v1569, %v1547
    %v2054 = vpack.c.b16 %v1570, %v1548
    %v2055 = vpack.c.b16 %v1571, %v1549
    %v2056 = vpack.c.b16 %v1572, %v1550
    %v2057 = vpack.c.b16 %v1573, %v1551
    %v2058 = vpack.c.b16 %v1574, %v1552
    %v2059 = vpack.c.b16 %v1575, %v1553
    %v2060 = vpack.c.b16 %v1576, %v1554
    %v2061 = vpack.c.b16 %v1577, %v1555
    %v2062 = vpack.c.b16 %v1578, %v1556
    %v2063 = vpack.c.b16 %v1601, %v1579
    %v2064 = vpack.c.b16 %v1602, %v1580
    %v2065 = vpack.c.b16 %v1603, %v1581
    %v2066 = vpack.c.b16 %v1604, %v1582
    %v2067 = vpack.c.b16 %v1605, %v1583
    %v2068 = vpack.c.b16 %v1606, %v1584
    %v2069 = vpack.c.b16 %v1607, %v1585
    %v2070 = vpack.c.b16 %v1608, %v1586
    %v2071 = vpack.c.b16 %v1609, %v1587
    %v2072 = vpack.c.b16 %v1610, %v1588
    %v2073 = vpack.c.b16 %v1611, %v1589
    %v2074 = vpack.c.b16 %v1612, %v1590
    %v2075 = vpack.c.b16 %v1613, %v1591
    %v2076 = vpack.c.b16 %v1614, %v1592
    %v2077 = vpack.c.b16 %v1615, %v1593
    %v2078 = vpack.c.b16 %v1616, %v1594
    %v2079 = vpack.c.b16 %v1617, %v1595
    %v2080 = vpack.c.b16 %v1618, %v1596
    %v2081 = vpack.c.b16 %v1619, %v1597
    %v2082 = vpack.c.b16 %v1620, %v1598
    %v2083 = vpack.c.b16 %v1621, %v1599
    %v2084 = vpack.c.b16 %v1622, %v1600
    %v2085 = vpack.c.b16 %v1645, %v1623
    %v2086 = vpack.c.b16 %v1646, %v1624
    %v2087 = vpack.c.b16 %v1647, %v1625
    %v2088 = vpack.c.b16 %v1648, %v1626
    %v2089 = vpack.c.b16 %v1649, %v1627
    %v2090 = vpack.c.b16 %v1650, %v1628
    %v2091 = vpack.c.b16 %v1651, %v1629
    %v2092 = vpack.c.b16 %v1652, %v1630
    %v2093 = vpack.c.b16 %v1653, %v1631
    %v2094 = vpack.c.b16 %v1654, %v1632
    %v2095 = vpack.c.b16 %v1655, %v1633
    %v2096 = vpack.c.b16 %v1656, %v1634
    %v2097 = vpack.c.b16 %v1657, %v1635
    %v2098 = vpack.c.b16 %v1658, %v1636
    %v2099 = vpack.c.b16 %v1659, %v1637
    %v2100 = vpack.c.b16 %v1660, %v1638
    %v2101 = vpack.c.b16 %v1661, %v1639
    %v2102 = vpack.c.b16 %v1662, %v1640
    %v2103 = vpack.c.b16 %v1663, %v1641
    %v2104 = vpack.c.b16 %v1664, %v1642
    %v2105 = vpack.c.b16 %v1665, %v1643
    %v2106 = vpack.c.b16 %v1666, %v1644
    %v2107 = vpack.c.b16 %v1689, %v1667
    %v2108 = vpack.c.b16 %v1690, %v1668
    %v2109 = vpack.c.b16 %v1691, %v1669
    %v2110 = vpack.c.b16 %v1692, %v1670
    %v2111 = vpack.c.b16 %v1693, %v1671
    %v2112 = vpack.c.b16 %v1694, %v1672
    %v2113 = vpack.c.b16 %v1695, %v1673
    %v2114 = vpack.c.b16 %v1696, %v1674
    %v2115 = vpack.c.b16 %v1697, %v1675
    %v2116 = vpack.c.b16 %v1698, %v1676
    %v2117 = vpack.c.b16 %v1699, %v1677
    %v2118 = vpack.c.b16 %v1700, %v1678
    %v2119 = vpack.c.b16 %v1701, %v1679
    %v2120 = vpack.c.b16 %v1702, %v1680
    %v2121 = vpack.c.b16 %v1703, %v1681
    %v2122 = vpack.c.b16 %v1704, %v1682
    %v2123 = vpack.c.b16 %v1705, %v1683
    %v2124 = vpack.c.b16 %v1706, %v1684
    %v2125 = vpack.c.b16 %v1707, %v1685
    %v2126 = vpack.c.b16 %v1708, %v1686
    %v2127 = vpack.c.b16 %v1709, %v1687
    %v2128 = vpack.c.b16 %v1710, %v1688
    %v2129 = vpack.c.b16 %v1733, %v1711
    %v2130 = vpack.c.b16 %v1734, %v1712
    %v2131 = vpack.c.b16 %v1735, %v1713
    %v2132 = vpack.c.b16 %v1736, %v1714
    %v2133 = vpack.c.b16 %v1737, %v1715
    %v2134 = vpack.c.b16 %v1738, %v1716
    %v2135 = vpack.c.b16 %v1739, %v1717
    %v2136 = vpack.c.b16 %v1740, %v1718
    %v2137 = vpack.c.b16 %v1741, %v1719
    %v2138 = vpack.c.b16 %v1742, %v1720
    %v2139 = vpack.c.b16 %v1743, %v1721
    %v2140 = vpack.c.b16 %v1744, %v1722
    %v2141 = vpack.c.b16 %v1745, %v1723
    %v2142 = vpack.c.b16 %v1746, %v1724
    %v2143 = vpack.c.b16 %v1747, %v1725
    %v2144 = vpack.c.b16 %v1748, %v1726
    %v2145 = vpack.c.b16 %v1749, %v1727
    %v2146 = vpack.c.b16 %v1750, %v1728
    %v2147 = vpack.c.b16 %v1751, %v1729
    %v2148 = vpack.c.b16 %v1752, %v1730
    %v2149 = vpack.c.b16 %v1753, %v1731
    %v2150 = vpack.c.b16 %v1754, %v1732
    %vm2547 = vcmask 261120
    %v2549 = vsel %vm2547, %v564, 0
    %2551 = vmatpush.bf16.msra.mxu0 %v1909
    %2552 = vmatpush.bf16.msra.mxu0 %v1887
    %2553 = vmatpush.bf16.msra.mxu0 %v1865
    %2554 = vmatpush.bf16.msra.mxu0 %v1843
    %2555 = vmatpush.bf16.msra.mxu0 %v1821
    %2556 = vmatpush.bf16.msra.mxu0 %v1799
    %2557 = vmatpush.bf16.msra.mxu0 %v1777
    %2558 = vmatpush.bf16.msra.mxu0 %v1755
    %2559 = vmatmul.bf16.gmra.mxu0 %v562
    %v2560 = vpop.f32.mrf.mxu0
    %v2561 = vadd.f32 %v508, %v2560
    %v2562 = vpop.f32.mrf.mxu0
    %v2563 = vadd.f32 %v508, %v2562
    %2564 = vdwg.mxu0
    %2565 = vmatpush.bf16.msra.mxu0 %v2085
    %2566 = vmatpush.bf16.msra.mxu0 %v2063
    %2567 = vmatpush.bf16.msra.mxu0 %v2041
    %2568 = vmatpush.bf16.msra.mxu0 %v2019
    %2569 = vmatpush.bf16.msra.mxu0 %v1997
    %2570 = vmatpush.bf16.msra.mxu0 %v1975
    %2571 = vmatpush.bf16.msra.mxu0 %v1953
    %2572 = vmatpush.bf16.msra.mxu0 %v1931
    %2573 = vmatmul.bf16.gmra.mxu0 %v563
    %v2574 = vpop.f32.mrf.mxu0
    %v2575 = vadd.f32 %v2561, %v2574
    %v2576 = vpop.f32.mrf.mxu0
    %v2577 = vadd.f32 %v2563, %v2576
    %2578 = vdwg.mxu0
    %2579 = vmatpush.bf16.msra.mxu0 0
    %2580 = vmatpush.bf16.msra.mxu0 0
    %2581 = vmatpush.bf16.msra.mxu0 0
    %2582 = vmatpush.bf16.msra.mxu0 0
    %2583 = vmatpush.bf16.msra.mxu0 0
    %2584 = vmatpush.bf16.msra.mxu0 0
    %2585 = vmatpush.bf16.msra.mxu0 %v2129
    %2586 = vmatpush.bf16.msra.mxu0 %v2107
    %2587 = vmatmul.bf16.gmra.mxu0 %v2549
    %v2588 = vpop.f32.mrf.mxu0
    %v2589 = vadd.f32 %v2575, %v2588
    %v2590 = vpop.f32.mrf.mxu0
    %v2591 = vadd.f32 %v2577, %v2590
    %2592 = vdwg.mxu0
    %2593 = vmatpush.bf16.msra.mxu0 %v1910
    %2594 = vmatpush.bf16.msra.mxu0 %v1888
    %2595 = vmatpush.bf16.msra.mxu0 %v1866
    %2596 = vmatpush.bf16.msra.mxu0 %v1844
    %2597 = vmatpush.bf16.msra.mxu0 %v1822
    %2598 = vmatpush.bf16.msra.mxu0 %v1800
    %2599 = vmatpush.bf16.msra.mxu0 %v1778
    %2600 = vmatpush.bf16.msra.mxu0 %v1756
    %2601 = vmatmul.bf16.gmra.mxu0 %v562
    %v2602 = vpop.f32.mrf.mxu0
    %v2603 = vadd.f32 %v509, %v2602
    %v2604 = vpop.f32.mrf.mxu0
    %v2605 = vadd.f32 %v509, %v2604
    %2606 = vdwg.mxu0
    %2607 = vmatpush.bf16.msra.mxu0 %v2086
    %2608 = vmatpush.bf16.msra.mxu0 %v2064
    %2609 = vmatpush.bf16.msra.mxu0 %v2042
    %2610 = vmatpush.bf16.msra.mxu0 %v2020
    %2611 = vmatpush.bf16.msra.mxu0 %v1998
    %2612 = vmatpush.bf16.msra.mxu0 %v1976
    %2613 = vmatpush.bf16.msra.mxu0 %v1954
    %2614 = vmatpush.bf16.msra.mxu0 %v1932
    %2615 = vmatmul.bf16.gmra.mxu0 %v563
    %v2616 = vpop.f32.mrf.mxu0
    %v2617 = vadd.f32 %v2603, %v2616
    %v2618 = vpop.f32.mrf.mxu0
    %v2619 = vadd.f32 %v2605, %v2618
    %2620 = vdwg.mxu0
    %2621 = vmatpush.bf16.msra.mxu0 0
    %2622 = vmatpush.bf16.msra.mxu0 0
    %2623 = vmatpush.bf16.msra.mxu0 0
    %2624 = vmatpush.bf16.msra.mxu0 0
    %2625 = vmatpush.bf16.msra.mxu0 0
    %2626 = vmatpush.bf16.msra.mxu0 0
    %2627 = vmatpush.bf16.msra.mxu0 %v2130
    %2628 = vmatpush.bf16.msra.mxu0 %v2108
    %2629 = vmatmul.bf16.gmra.mxu0 %v2549
    %v2630 = vpop.f32.mrf.mxu0
    %v2631 = vadd.f32 %v2617, %v2630
    %v2632 = vpop.f32.mrf.mxu0
    %v2633 = vadd.f32 %v2619, %v2632
    %2634 = vdwg.mxu0
    %2635 = vmatpush.bf16.msra.mxu0 %v1911
    %2636 = vmatpush.bf16.msra.mxu0 %v1889
    %2637 = vmatpush.bf16.msra.mxu0 %v1867
    %2638 = vmatpush.bf16.msra.mxu0 %v1845
    %2639 = vmatpush.bf16.msra.mxu0 %v1823
    %2640 = vmatpush.bf16.msra.mxu0 %v1801
    %2641 = vmatpush.bf16.msra.mxu0 %v1779
    %2642 = vmatpush.bf16.msra.mxu0 %v1757
    %2643 = vmatmul.bf16.gmra.mxu0 %v562
    %v2644 = vpop.f32.mrf.mxu0
    %v2645 = vadd.f32 %v510, %v2644
    %v2646 = vpop.f32.mrf.mxu0
    %v2647 = vadd.f32 %v510, %v2646
    %2648 = vdwg.mxu0
    %2649 = vmatpush.bf16.msra.mxu0 %v2087
    %2650 = vmatpush.bf16.msra.mxu0 %v2065
    %2651 = vmatpush.bf16.msra.mxu0 %v2043
    %2652 = vmatpush.bf16.msra.mxu0 %v2021
    %2653 = vmatpush.bf16.msra.mxu0 %v1999
    %2654 = vmatpush.bf16.msra.mxu0 %v1977
    %2655 = vmatpush.bf16.msra.mxu0 %v1955
    %2656 = vmatpush.bf16.msra.mxu0 %v1933
    %2657 = vmatmul.bf16.gmra.mxu0 %v563
    %v2658 = vpop.f32.mrf.mxu0
    %v2659 = vadd.f32 %v2645, %v2658
    %v2660 = vpop.f32.mrf.mxu0
    %v2661 = vadd.f32 %v2647, %v2660
    %2662 = vdwg.mxu0
    %2663 = vmatpush.bf16.msra.mxu0 0
    %2664 = vmatpush.bf16.msra.mxu0 0
    %2665 = vmatpush.bf16.msra.mxu0 0
    %2666 = vmatpush.bf16.msra.mxu0 0
    %2667 = vmatpush.bf16.msra.mxu0 0
    %2668 = vmatpush.bf16.msra.mxu0 0
    %2669 = vmatpush.bf16.msra.mxu0 %v2131
    %2670 = vmatpush.bf16.msra.mxu0 %v2109
    %2671 = vmatmul.bf16.gmra.mxu0 %v2549
    %v2672 = vpop.f32.mrf.mxu0
    %v2673 = vadd.f32 %v2659, %v2672
    %v2674 = vpop.f32.mrf.mxu0
    %v2675 = vadd.f32 %v2661, %v2674
    %2676 = vdwg.mxu0
    %2677 = vmatpush.bf16.msra.mxu0 %v1912
    %2678 = vmatpush.bf16.msra.mxu0 %v1890
    %2679 = vmatpush.bf16.msra.mxu0 %v1868
    %2680 = vmatpush.bf16.msra.mxu0 %v1846
    %2681 = vmatpush.bf16.msra.mxu0 %v1824
    %2682 = vmatpush.bf16.msra.mxu0 %v1802
    %2683 = vmatpush.bf16.msra.mxu0 %v1780
    %2684 = vmatpush.bf16.msra.mxu0 %v1758
    %2685 = vmatmul.bf16.gmra.mxu0 %v562
    %v2686 = vpop.f32.mrf.mxu0
    %v2687 = vadd.f32 %v511, %v2686
    %v2688 = vpop.f32.mrf.mxu0
    %v2689 = vadd.f32 %v511, %v2688
    %2690 = vdwg.mxu0
    %2691 = vmatpush.bf16.msra.mxu0 %v2088
    %2692 = vmatpush.bf16.msra.mxu0 %v2066
    %2693 = vmatpush.bf16.msra.mxu0 %v2044
    %2694 = vmatpush.bf16.msra.mxu0 %v2022
    %2695 = vmatpush.bf16.msra.mxu0 %v2000
    %2696 = vmatpush.bf16.msra.mxu0 %v1978
    %2697 = vmatpush.bf16.msra.mxu0 %v1956
    %2698 = vmatpush.bf16.msra.mxu0 %v1934
    %2699 = vmatmul.bf16.gmra.mxu0 %v563
    %v2700 = vpop.f32.mrf.mxu0
    %v2701 = vadd.f32 %v2687, %v2700
    %v2702 = vpop.f32.mrf.mxu0
    %v2703 = vadd.f32 %v2689, %v2702
    %2704 = vdwg.mxu0
    %2705 = vmatpush.bf16.msra.mxu0 0
    %2706 = vmatpush.bf16.msra.mxu0 0
    %2707 = vmatpush.bf16.msra.mxu0 0
    %2708 = vmatpush.bf16.msra.mxu0 0
    %2709 = vmatpush.bf16.msra.mxu0 0
    %2710 = vmatpush.bf16.msra.mxu0 0
    %2711 = vmatpush.bf16.msra.mxu0 %v2132
    %2712 = vmatpush.bf16.msra.mxu0 %v2110
    %2713 = vmatmul.bf16.gmra.mxu0 %v2549
    %v2714 = vpop.f32.mrf.mxu0
    %v2715 = vadd.f32 %v2701, %v2714
    %v2716 = vpop.f32.mrf.mxu0
    %v2717 = vadd.f32 %v2703, %v2716
    %2718 = vdwg.mxu0
    %2719 = vmatpush.bf16.msra.mxu0 %v1913
    %2720 = vmatpush.bf16.msra.mxu0 %v1891
    %2721 = vmatpush.bf16.msra.mxu0 %v1869
    %2722 = vmatpush.bf16.msra.mxu0 %v1847
    %2723 = vmatpush.bf16.msra.mxu0 %v1825
    %2724 = vmatpush.bf16.msra.mxu0 %v1803
    %2725 = vmatpush.bf16.msra.mxu0 %v1781
    %2726 = vmatpush.bf16.msra.mxu0 %v1759
    %2727 = vmatmul.bf16.gmra.mxu0 %v562
    %v2728 = vpop.f32.mrf.mxu0
    %v2729 = vadd.f32 %v512, %v2728
    %v2730 = vpop.f32.mrf.mxu0
    %v2731 = vadd.f32 %v512, %v2730
    %2732 = vdwg.mxu0
    %2733 = vmatpush.bf16.msra.mxu0 %v2089
    %2734 = vmatpush.bf16.msra.mxu0 %v2067
    %2735 = vmatpush.bf16.msra.mxu0 %v2045
    %2736 = vmatpush.bf16.msra.mxu0 %v2023
    %2737 = vmatpush.bf16.msra.mxu0 %v2001
    %2738 = vmatpush.bf16.msra.mxu0 %v1979
    %2739 = vmatpush.bf16.msra.mxu0 %v1957
    %2740 = vmatpush.bf16.msra.mxu0 %v1935
    %2741 = vmatmul.bf16.gmra.mxu0 %v563
    %v2742 = vpop.f32.mrf.mxu0
    %v2743 = vadd.f32 %v2729, %v2742
    %v2744 = vpop.f32.mrf.mxu0
    %v2745 = vadd.f32 %v2731, %v2744
    %2746 = vdwg.mxu0
    %2747 = vmatpush.bf16.msra.mxu0 0
    %2748 = vmatpush.bf16.msra.mxu0 0
    %2749 = vmatpush.bf16.msra.mxu0 0
    %2750 = vmatpush.bf16.msra.mxu0 0
    %2751 = vmatpush.bf16.msra.mxu0 0
    %2752 = vmatpush.bf16.msra.mxu0 0
    %2753 = vmatpush.bf16.msra.mxu0 %v2133
    %2754 = vmatpush.bf16.msra.mxu0 %v2111
    %2755 = vmatmul.bf16.gmra.mxu0 %v2549
    %v2756 = vpop.f32.mrf.mxu0
    %v2757 = vadd.f32 %v2743, %v2756
    %v2758 = vpop.f32.mrf.mxu0
    %v2759 = vadd.f32 %v2745, %v2758
    %2760 = vdwg.mxu0
    %2761 = vmatpush.bf16.msra.mxu0 %v1914
    %2762 = vmatpush.bf16.msra.mxu0 %v1892
    %2763 = vmatpush.bf16.msra.mxu0 %v1870
    %2764 = vmatpush.bf16.msra.mxu0 %v1848
    %2765 = vmatpush.bf16.msra.mxu0 %v1826
    %2766 = vmatpush.bf16.msra.mxu0 %v1804
    %2767 = vmatpush.bf16.msra.mxu0 %v1782
    %2768 = vmatpush.bf16.msra.mxu0 %v1760
    %2769 = vmatmul.bf16.gmra.mxu0 %v562
    %v2770 = vpop.f32.mrf.mxu0
    %v2771 = vadd.f32 %v513, %v2770
    %v2772 = vpop.f32.mrf.mxu0
    %v2773 = vadd.f32 %v513, %v2772
    %2774 = vdwg.mxu0
    %2775 = vmatpush.bf16.msra.mxu0 %v2090
    %2776 = vmatpush.bf16.msra.mxu0 %v2068
    %2777 = vmatpush.bf16.msra.mxu0 %v2046
    %2778 = vmatpush.bf16.msra.mxu0 %v2024
    %2779 = vmatpush.bf16.msra.mxu0 %v2002
    %2780 = vmatpush.bf16.msra.mxu0 %v1980
    %2781 = vmatpush.bf16.msra.mxu0 %v1958
    %2782 = vmatpush.bf16.msra.mxu0 %v1936
    %2783 = vmatmul.bf16.gmra.mxu0 %v563
    %v2784 = vpop.f32.mrf.mxu0
    %v2785 = vadd.f32 %v2771, %v2784
    %v2786 = vpop.f32.mrf.mxu0
    %v2787 = vadd.f32 %v2773, %v2786
    %2788 = vdwg.mxu0
    %2789 = vmatpush.bf16.msra.mxu0 0
    %2790 = vmatpush.bf16.msra.mxu0 0
    %2791 = vmatpush.bf16.msra.mxu0 0
    %2792 = vmatpush.bf16.msra.mxu0 0
    %2793 = vmatpush.bf16.msra.mxu0 0
    %2794 = vmatpush.bf16.msra.mxu0 0
    %2795 = vmatpush.bf16.msra.mxu0 %v2134
    %2796 = vmatpush.bf16.msra.mxu0 %v2112
    %2797 = vmatmul.bf16.gmra.mxu0 %v2549
    %v2798 = vpop.f32.mrf.mxu0
    %v2799 = vadd.f32 %v2785, %v2798
    %v2800 = vpop.f32.mrf.mxu0
    %v2801 = vadd.f32 %v2787, %v2800
    %2802 = vdwg.mxu0
    %2803 = vmatpush.bf16.msra.mxu0 %v1915
    %2804 = vmatpush.bf16.msra.mxu0 %v1893
    %2805 = vmatpush.bf16.msra.mxu0 %v1871
    %2806 = vmatpush.bf16.msra.mxu0 %v1849
    %2807 = vmatpush.bf16.msra.mxu0 %v1827
    %2808 = vmatpush.bf16.msra.mxu0 %v1805
    %2809 = vmatpush.bf16.msra.mxu0 %v1783
    %2810 = vmatpush.bf16.msra.mxu0 %v1761
    %2811 = vmatmul.bf16.gmra.mxu0 %v562
    %v2812 = vpop.f32.mrf.mxu0
    %v2813 = vadd.f32 %v514, %v2812
    %v2814 = vpop.f32.mrf.mxu0
    %v2815 = vadd.f32 %v514, %v2814
    %2816 = vdwg.mxu0
    %2817 = vmatpush.bf16.msra.mxu0 %v2091
    %2818 = vmatpush.bf16.msra.mxu0 %v2069
    %2819 = vmatpush.bf16.msra.mxu0 %v2047
    %2820 = vmatpush.bf16.msra.mxu0 %v2025
    %2821 = vmatpush.bf16.msra.mxu0 %v2003
    %2822 = vmatpush.bf16.msra.mxu0 %v1981
    %2823 = vmatpush.bf16.msra.mxu0 %v1959
    %2824 = vmatpush.bf16.msra.mxu0 %v1937
    %2825 = vmatmul.bf16.gmra.mxu0 %v563
    %v2826 = vpop.f32.mrf.mxu0
    %v2827 = vadd.f32 %v2813, %v2826
    %v2828 = vpop.f32.mrf.mxu0
    %v2829 = vadd.f32 %v2815, %v2828
    %2830 = vdwg.mxu0
    %2831 = vmatpush.bf16.msra.mxu0 0
    %2832 = vmatpush.bf16.msra.mxu0 0
    %2833 = vmatpush.bf16.msra.mxu0 0
    %2834 = vmatpush.bf16.msra.mxu0 0
    %2835 = vmatpush.bf16.msra.mxu0 0
    %2836 = vmatpush.bf16.msra.mxu0 0
    %2837 = vmatpush.bf16.msra.mxu0 %v2135
    %2838 = vmatpush.bf16.msra.mxu0 %v2113
    %2839 = vmatmul.bf16.gmra.mxu0 %v2549
    %v2840 = vpop.f32.mrf.mxu0
    %v2841 = vadd.f32 %v2827, %v2840
    %v2842 = vpop.f32.mrf.mxu0
    %v2843 = vadd.f32 %v2829, %v2842
    %2844 = vdwg.mxu0
    %2845 = vmatpush.bf16.msra.mxu0 %v1916
    %2846 = vmatpush.bf16.msra.mxu0 %v1894
    %2847 = vmatpush.bf16.msra.mxu0 %v1872
    %2848 = vmatpush.bf16.msra.mxu0 %v1850
    %2849 = vmatpush.bf16.msra.mxu0 %v1828
    %2850 = vmatpush.bf16.msra.mxu0 %v1806
    %2851 = vmatpush.bf16.msra.mxu0 %v1784
    %2852 = vmatpush.bf16.msra.mxu0 %v1762
    %2853 = vmatmul.bf16.gmra.mxu0 %v562
    %v2854 = vpop.f32.mrf.mxu0
    %v2855 = vadd.f32 %v515, %v2854
    %v2856 = vpop.f32.mrf.mxu0
    %v2857 = vadd.f32 %v515, %v2856
    %2858 = vdwg.mxu0
    %2859 = vmatpush.bf16.msra.mxu0 %v2092
    %2860 = vmatpush.bf16.msra.mxu0 %v2070
    %2861 = vmatpush.bf16.msra.mxu0 %v2048
    %2862 = vmatpush.bf16.msra.mxu0 %v2026
    %2863 = vmatpush.bf16.msra.mxu0 %v2004
    %2864 = vmatpush.bf16.msra.mxu0 %v1982
    %2865 = vmatpush.bf16.msra.mxu0 %v1960
    %2866 = vmatpush.bf16.msra.mxu0 %v1938
    %2867 = vmatmul.bf16.gmra.mxu0 %v563
    %v2868 = vpop.f32.mrf.mxu0
    %v2869 = vadd.f32 %v2855, %v2868
    %v2870 = vpop.f32.mrf.mxu0
    %v2871 = vadd.f32 %v2857, %v2870
    %2872 = vdwg.mxu0
    %2873 = vmatpush.bf16.msra.mxu0 0
    %2874 = vmatpush.bf16.msra.mxu0 0
    %2875 = vmatpush.bf16.msra.mxu0 0
    %2876 = vmatpush.bf16.msra.mxu0 0
    %2877 = vmatpush.bf16.msra.mxu0 0
    %2878 = vmatpush.bf16.msra.mxu0 0
    %2879 = vmatpush.bf16.msra.mxu0 %v2136
    %2880 = vmatpush.bf16.msra.mxu0 %v2114
    %2881 = vmatmul.bf16.gmra.mxu0 %v2549
    %v2882 = vpop.f32.mrf.mxu0
    %v2883 = vadd.f32 %v2869, %v2882
    %v2884 = vpop.f32.mrf.mxu0
    %v2885 = vadd.f32 %v2871, %v2884
    %2886 = vdwg.mxu0
    %2887 = vmatpush.bf16.msra.mxu0 %v1917
    %2888 = vmatpush.bf16.msra.mxu0 %v1895
    %2889 = vmatpush.bf16.msra.mxu0 %v1873
    %2890 = vmatpush.bf16.msra.mxu0 %v1851
    %2891 = vmatpush.bf16.msra.mxu0 %v1829
    %2892 = vmatpush.bf16.msra.mxu0 %v1807
    %2893 = vmatpush.bf16.msra.mxu0 %v1785
    %2894 = vmatpush.bf16.msra.mxu0 %v1763
    %2895 = vmatmul.bf16.gmra.mxu0 %v562
    %v2896 = vpop.f32.mrf.mxu0
    %v2897 = vadd.f32 %v516, %v2896
    %v2898 = vpop.f32.mrf.mxu0
    %v2899 = vadd.f32 %v516, %v2898
    %2900 = vdwg.mxu0
    %2901 = vmatpush.bf16.msra.mxu0 %v2093
    %2902 = vmatpush.bf16.msra.mxu0 %v2071
    %2903 = vmatpush.bf16.msra.mxu0 %v2049
    %2904 = vmatpush.bf16.msra.mxu0 %v2027
    %2905 = vmatpush.bf16.msra.mxu0 %v2005
    %2906 = vmatpush.bf16.msra.mxu0 %v1983
    %2907 = vmatpush.bf16.msra.mxu0 %v1961
    %2908 = vmatpush.bf16.msra.mxu0 %v1939
    %2909 = vmatmul.bf16.gmra.mxu0 %v563
    %v2910 = vpop.f32.mrf.mxu0
    %v2911 = vadd.f32 %v2897, %v2910
    %v2912 = vpop.f32.mrf.mxu0
    %v2913 = vadd.f32 %v2899, %v2912
    %2914 = vdwg.mxu0
    %2915 = vmatpush.bf16.msra.mxu0 0
    %2916 = vmatpush.bf16.msra.mxu0 0
    %2917 = vmatpush.bf16.msra.mxu0 0
    %2918 = vmatpush.bf16.msra.mxu0 0
    %2919 = vmatpush.bf16.msra.mxu0 0
    %2920 = vmatpush.bf16.msra.mxu0 0
    %2921 = vmatpush.bf16.msra.mxu0 %v2137
    %2922 = vmatpush.bf16.msra.mxu0 %v2115
    %2923 = vmatmul.bf16.gmra.mxu0 %v2549
    %v2924 = vpop.f32.mrf.mxu0
    %v2925 = vadd.f32 %v2911, %v2924
    %v2926 = vpop.f32.mrf.mxu0
    %v2927 = vadd.f32 %v2913, %v2926
    %2928 = vdwg.mxu0
    %2929 = vmatpush.bf16.msra.mxu0 %v1918
    %2930 = vmatpush.bf16.msra.mxu0 %v1896
    %2931 = vmatpush.bf16.msra.mxu0 %v1874
    %2932 = vmatpush.bf16.msra.mxu0 %v1852
    %2933 = vmatpush.bf16.msra.mxu0 %v1830
    %2934 = vmatpush.bf16.msra.mxu0 %v1808
    %2935 = vmatpush.bf16.msra.mxu0 %v1786
    %2936 = vmatpush.bf16.msra.mxu0 %v1764
    %2937 = vmatmul.bf16.gmra.mxu0 %v562
    %v2938 = vpop.f32.mrf.mxu0
    %v2939 = vadd.f32 %v517, %v2938
    %v2940 = vpop.f32.mrf.mxu0
    %v2941 = vadd.f32 %v517, %v2940
    %2942 = vdwg.mxu0
    %2943 = vmatpush.bf16.msra.mxu0 %v2094
    %2944 = vmatpush.bf16.msra.mxu0 %v2072
    %2945 = vmatpush.bf16.msra.mxu0 %v2050
    %2946 = vmatpush.bf16.msra.mxu0 %v2028
    %2947 = vmatpush.bf16.msra.mxu0 %v2006
    %2948 = vmatpush.bf16.msra.mxu0 %v1984
    %2949 = vmatpush.bf16.msra.mxu0 %v1962
    %2950 = vmatpush.bf16.msra.mxu0 %v1940
    %2951 = vmatmul.bf16.gmra.mxu0 %v563
    %v2952 = vpop.f32.mrf.mxu0
    %v2953 = vadd.f32 %v2939, %v2952
    %v2954 = vpop.f32.mrf.mxu0
    %v2955 = vadd.f32 %v2941, %v2954
    %2956 = vdwg.mxu0
    %2957 = vmatpush.bf16.msra.mxu0 0
    %2958 = vmatpush.bf16.msra.mxu0 0
    %2959 = vmatpush.bf16.msra.mxu0 0
    %2960 = vmatpush.bf16.msra.mxu0 0
    %2961 = vmatpush.bf16.msra.mxu0 0
    %2962 = vmatpush.bf16.msra.mxu0 0
    %2963 = vmatpush.bf16.msra.mxu0 %v2138
    %2964 = vmatpush.bf16.msra.mxu0 %v2116
    %2965 = vmatmul.bf16.gmra.mxu0 %v2549
    %v2966 = vpop.f32.mrf.mxu0
    %v2967 = vadd.f32 %v2953, %v2966
    %v2968 = vpop.f32.mrf.mxu0
    %v2969 = vadd.f32 %v2955, %v2968
    %2970 = vdwg.mxu0
    %2971 = vmatpush.bf16.msra.mxu0 %v1919
    %2972 = vmatpush.bf16.msra.mxu0 %v1897
    %2973 = vmatpush.bf16.msra.mxu0 %v1875
    %2974 = vmatpush.bf16.msra.mxu0 %v1853
    %2975 = vmatpush.bf16.msra.mxu0 %v1831
    %2976 = vmatpush.bf16.msra.mxu0 %v1809
    %2977 = vmatpush.bf16.msra.mxu0 %v1787
    %2978 = vmatpush.bf16.msra.mxu0 %v1765
    %2979 = vmatmul.bf16.gmra.mxu0 %v562
    %v2980 = vpop.f32.mrf.mxu0
    %v2981 = vadd.f32 %v518, %v2980
    %v2982 = vpop.f32.mrf.mxu0
    %v2983 = vadd.f32 %v518, %v2982
    %2984 = vdwg.mxu0
    %2985 = vmatpush.bf16.msra.mxu0 %v2095
    %2986 = vmatpush.bf16.msra.mxu0 %v2073
    %2987 = vmatpush.bf16.msra.mxu0 %v2051
    %2988 = vmatpush.bf16.msra.mxu0 %v2029
    %2989 = vmatpush.bf16.msra.mxu0 %v2007
    %2990 = vmatpush.bf16.msra.mxu0 %v1985
    %2991 = vmatpush.bf16.msra.mxu0 %v1963
    %2992 = vmatpush.bf16.msra.mxu0 %v1941
    %2993 = vmatmul.bf16.gmra.mxu0 %v563
    %v2994 = vpop.f32.mrf.mxu0
    %v2995 = vadd.f32 %v2981, %v2994
    %v2996 = vpop.f32.mrf.mxu0
    %v2997 = vadd.f32 %v2983, %v2996
    %2998 = vdwg.mxu0
    %2999 = vmatpush.bf16.msra.mxu0 0
    %3000 = vmatpush.bf16.msra.mxu0 0
    %3001 = vmatpush.bf16.msra.mxu0 0
    %3002 = vmatpush.bf16.msra.mxu0 0
    %3003 = vmatpush.bf16.msra.mxu0 0
    %3004 = vmatpush.bf16.msra.mxu0 0
    %3005 = vmatpush.bf16.msra.mxu0 %v2139
    %3006 = vmatpush.bf16.msra.mxu0 %v2117
    %3007 = vmatmul.bf16.gmra.mxu0 %v2549
    %v3008 = vpop.f32.mrf.mxu0
    %v3009 = vadd.f32 %v2995, %v3008
    %v3010 = vpop.f32.mrf.mxu0
    %v3011 = vadd.f32 %v2997, %v3010
    %3012 = vdwg.mxu0
    %3013 = vmatpush.bf16.msra.mxu0 %v1920
    %3014 = vmatpush.bf16.msra.mxu0 %v1898
    %3015 = vmatpush.bf16.msra.mxu0 %v1876
    %3016 = vmatpush.bf16.msra.mxu0 %v1854
    %3017 = vmatpush.bf16.msra.mxu0 %v1832
    %3018 = vmatpush.bf16.msra.mxu0 %v1810
    %3019 = vmatpush.bf16.msra.mxu0 %v1788
    %3020 = vmatpush.bf16.msra.mxu0 %v1766
    %3021 = vmatmul.bf16.gmra.mxu0 %v562
    %v3022 = vpop.f32.mrf.mxu0
    %v3023 = vadd.f32 %v519, %v3022
    %v3024 = vpop.f32.mrf.mxu0
    %v3025 = vadd.f32 %v519, %v3024
    %3026 = vdwg.mxu0
    %3027 = vmatpush.bf16.msra.mxu0 %v2096
    %3028 = vmatpush.bf16.msra.mxu0 %v2074
    %3029 = vmatpush.bf16.msra.mxu0 %v2052
    %3030 = vmatpush.bf16.msra.mxu0 %v2030
    %3031 = vmatpush.bf16.msra.mxu0 %v2008
    %3032 = vmatpush.bf16.msra.mxu0 %v1986
    %3033 = vmatpush.bf16.msra.mxu0 %v1964
    %3034 = vmatpush.bf16.msra.mxu0 %v1942
    %3035 = vmatmul.bf16.gmra.mxu0 %v563
    %v3036 = vpop.f32.mrf.mxu0
    %v3037 = vadd.f32 %v3023, %v3036
    %v3038 = vpop.f32.mrf.mxu0
    %v3039 = vadd.f32 %v3025, %v3038
    %3040 = vdwg.mxu0
    %3041 = vmatpush.bf16.msra.mxu0 0
    %3042 = vmatpush.bf16.msra.mxu0 0
    %3043 = vmatpush.bf16.msra.mxu0 0
    %3044 = vmatpush.bf16.msra.mxu0 0
    %3045 = vmatpush.bf16.msra.mxu0 0
    %3046 = vmatpush.bf16.msra.mxu0 0
    %3047 = vmatpush.bf16.msra.mxu0 %v2140
    %3048 = vmatpush.bf16.msra.mxu0 %v2118
    %3049 = vmatmul.bf16.gmra.mxu0 %v2549
    %v3050 = vpop.f32.mrf.mxu0
    %v3051 = vadd.f32 %v3037, %v3050
    %v3052 = vpop.f32.mrf.mxu0
    %v3053 = vadd.f32 %v3039, %v3052
    %3054 = vdwg.mxu0
    %3055 = vmatpush.bf16.msra.mxu0 %v1921
    %3056 = vmatpush.bf16.msra.mxu0 %v1899
    %3057 = vmatpush.bf16.msra.mxu0 %v1877
    %3058 = vmatpush.bf16.msra.mxu0 %v1855
    %3059 = vmatpush.bf16.msra.mxu0 %v1833
    %3060 = vmatpush.bf16.msra.mxu0 %v1811
    %3061 = vmatpush.bf16.msra.mxu0 %v1789
    %3062 = vmatpush.bf16.msra.mxu0 %v1767
    %3063 = vmatmul.bf16.gmra.mxu0 %v562
    %v3064 = vpop.f32.mrf.mxu0
    %v3065 = vadd.f32 %v520, %v3064
    %v3066 = vpop.f32.mrf.mxu0
    %v3067 = vadd.f32 %v520, %v3066
    %3068 = vdwg.mxu0
    %3069 = vmatpush.bf16.msra.mxu0 %v2097
    %3070 = vmatpush.bf16.msra.mxu0 %v2075
    %3071 = vmatpush.bf16.msra.mxu0 %v2053
    %3072 = vmatpush.bf16.msra.mxu0 %v2031
    %3073 = vmatpush.bf16.msra.mxu0 %v2009
    %3074 = vmatpush.bf16.msra.mxu0 %v1987
    %3075 = vmatpush.bf16.msra.mxu0 %v1965
    %3076 = vmatpush.bf16.msra.mxu0 %v1943
    %3077 = vmatmul.bf16.gmra.mxu0 %v563
    %v3078 = vpop.f32.mrf.mxu0
    %v3079 = vadd.f32 %v3065, %v3078
    %v3080 = vpop.f32.mrf.mxu0
    %v3081 = vadd.f32 %v3067, %v3080
    %3082 = vdwg.mxu0
    %3083 = vmatpush.bf16.msra.mxu0 0
    %3084 = vmatpush.bf16.msra.mxu0 0
    %3085 = vmatpush.bf16.msra.mxu0 0
    %3086 = vmatpush.bf16.msra.mxu0 0
    %3087 = vmatpush.bf16.msra.mxu0 0
    %3088 = vmatpush.bf16.msra.mxu0 0
    %3089 = vmatpush.bf16.msra.mxu0 %v2141
    %3090 = vmatpush.bf16.msra.mxu0 %v2119
    %3091 = vmatmul.bf16.gmra.mxu0 %v2549
    %v3092 = vpop.f32.mrf.mxu0
    %v3093 = vadd.f32 %v3079, %v3092
    %v3094 = vpop.f32.mrf.mxu0
    %v3095 = vadd.f32 %v3081, %v3094
    %3096 = vdwg.mxu0
    %3097 = vmatpush.bf16.msra.mxu0 %v1922
    %3098 = vmatpush.bf16.msra.mxu0 %v1900
    %3099 = vmatpush.bf16.msra.mxu0 %v1878
    %3100 = vmatpush.bf16.msra.mxu0 %v1856
    %3101 = vmatpush.bf16.msra.mxu0 %v1834
    %3102 = vmatpush.bf16.msra.mxu0 %v1812
    %3103 = vmatpush.bf16.msra.mxu0 %v1790
    %3104 = vmatpush.bf16.msra.mxu0 %v1768
    %3105 = vmatmul.bf16.gmra.mxu0 %v562
    %v3106 = vpop.f32.mrf.mxu0
    %v3107 = vadd.f32 %v521, %v3106
    %v3108 = vpop.f32.mrf.mxu0
    %v3109 = vadd.f32 %v521, %v3108
    %3110 = vdwg.mxu0
    %3111 = vmatpush.bf16.msra.mxu0 %v2098
    %3112 = vmatpush.bf16.msra.mxu0 %v2076
    %3113 = vmatpush.bf16.msra.mxu0 %v2054
    %3114 = vmatpush.bf16.msra.mxu0 %v2032
    %3115 = vmatpush.bf16.msra.mxu0 %v2010
    %3116 = vmatpush.bf16.msra.mxu0 %v1988
    %3117 = vmatpush.bf16.msra.mxu0 %v1966
    %3118 = vmatpush.bf16.msra.mxu0 %v1944
    %3119 = vmatmul.bf16.gmra.mxu0 %v563
    %v3120 = vpop.f32.mrf.mxu0
    %v3121 = vadd.f32 %v3107, %v3120
    %v3122 = vpop.f32.mrf.mxu0
    %v3123 = vadd.f32 %v3109, %v3122
    %3124 = vdwg.mxu0
    %3125 = vmatpush.bf16.msra.mxu0 0
    %3126 = vmatpush.bf16.msra.mxu0 0
    %3127 = vmatpush.bf16.msra.mxu0 0
    %3128 = vmatpush.bf16.msra.mxu0 0
    %3129 = vmatpush.bf16.msra.mxu0 0
    %3130 = vmatpush.bf16.msra.mxu0 0
    %3131 = vmatpush.bf16.msra.mxu0 %v2142
    %3132 = vmatpush.bf16.msra.mxu0 %v2120
    %3133 = vmatmul.bf16.gmra.mxu0 %v2549
    %v3134 = vpop.f32.mrf.mxu0
    %v3135 = vadd.f32 %v3121, %v3134
    %v3136 = vpop.f32.mrf.mxu0
    %v3137 = vadd.f32 %v3123, %v3136
    %3138 = vdwg.mxu0
    %3139 = vmatpush.bf16.msra.mxu0 %v1923
    %3140 = vmatpush.bf16.msra.mxu0 %v1901
    %3141 = vmatpush.bf16.msra.mxu0 %v1879
    %3142 = vmatpush.bf16.msra.mxu0 %v1857
    %3143 = vmatpush.bf16.msra.mxu0 %v1835
    %3144 = vmatpush.bf16.msra.mxu0 %v1813
    %3145 = vmatpush.bf16.msra.mxu0 %v1791
    %3146 = vmatpush.bf16.msra.mxu0 %v1769
    %3147 = vmatmul.bf16.gmra.mxu0 %v562
    %v3148 = vpop.f32.mrf.mxu0
    %v3149 = vadd.f32 %v522, %v3148
    %v3150 = vpop.f32.mrf.mxu0
    %v3151 = vadd.f32 %v522, %v3150
    %3152 = vdwg.mxu0
    %3153 = vmatpush.bf16.msra.mxu0 %v2099
    %3154 = vmatpush.bf16.msra.mxu0 %v2077
    %3155 = vmatpush.bf16.msra.mxu0 %v2055
    %3156 = vmatpush.bf16.msra.mxu0 %v2033
    %3157 = vmatpush.bf16.msra.mxu0 %v2011
    %3158 = vmatpush.bf16.msra.mxu0 %v1989
    %3159 = vmatpush.bf16.msra.mxu0 %v1967
    %3160 = vmatpush.bf16.msra.mxu0 %v1945
    %3161 = vmatmul.bf16.gmra.mxu0 %v563
    %v3162 = vpop.f32.mrf.mxu0
    %v3163 = vadd.f32 %v3149, %v3162
    %v3164 = vpop.f32.mrf.mxu0
    %v3165 = vadd.f32 %v3151, %v3164
    %3166 = vdwg.mxu0
    %3167 = vmatpush.bf16.msra.mxu0 0
    %3168 = vmatpush.bf16.msra.mxu0 0
    %3169 = vmatpush.bf16.msra.mxu0 0
    %3170 = vmatpush.bf16.msra.mxu0 0
    %3171 = vmatpush.bf16.msra.mxu0 0
    %3172 = vmatpush.bf16.msra.mxu0 0
    %3173 = vmatpush.bf16.msra.mxu0 %v2143
    %3174 = vmatpush.bf16.msra.mxu0 %v2121
    %3175 = vmatmul.bf16.gmra.mxu0 %v2549
    %v3176 = vpop.f32.mrf.mxu0
    %v3177 = vadd.f32 %v3163, %v3176
    %v3178 = vpop.f32.mrf.mxu0
    %v3179 = vadd.f32 %v3165, %v3178
    %3180 = vdwg.mxu0
    %3181 = vmatpush.bf16.msra.mxu0 %v1924
    %3182 = vmatpush.bf16.msra.mxu0 %v1902
    %3183 = vmatpush.bf16.msra.mxu0 %v1880
    %3184 = vmatpush.bf16.msra.mxu0 %v1858
    %3185 = vmatpush.bf16.msra.mxu0 %v1836
    %3186 = vmatpush.bf16.msra.mxu0 %v1814
    %3187 = vmatpush.bf16.msra.mxu0 %v1792
    %3188 = vmatpush.bf16.msra.mxu0 %v1770
    %3189 = vmatmul.bf16.gmra.mxu0 %v562
    %v3190 = vpop.f32.mrf.mxu0
    %v3191 = vadd.f32 %v523, %v3190
    %v3192 = vpop.f32.mrf.mxu0
    %v3193 = vadd.f32 %v523, %v3192
    %3194 = vdwg.mxu0
    %3195 = vmatpush.bf16.msra.mxu0 %v2100
    %3196 = vmatpush.bf16.msra.mxu0 %v2078
    %3197 = vmatpush.bf16.msra.mxu0 %v2056
    %3198 = vmatpush.bf16.msra.mxu0 %v2034
    %3199 = vmatpush.bf16.msra.mxu0 %v2012
    %3200 = vmatpush.bf16.msra.mxu0 %v1990
    %3201 = vmatpush.bf16.msra.mxu0 %v1968
    %3202 = vmatpush.bf16.msra.mxu0 %v1946
    %3203 = vmatmul.bf16.gmra.mxu0 %v563
    %v3204 = vpop.f32.mrf.mxu0
    %v3205 = vadd.f32 %v3191, %v3204
    %v3206 = vpop.f32.mrf.mxu0
    %v3207 = vadd.f32 %v3193, %v3206
    %3208 = vdwg.mxu0
    %3209 = vmatpush.bf16.msra.mxu0 0
    %3210 = vmatpush.bf16.msra.mxu0 0
    %3211 = vmatpush.bf16.msra.mxu0 0
    %3212 = vmatpush.bf16.msra.mxu0 0
    %3213 = vmatpush.bf16.msra.mxu0 0
    %3214 = vmatpush.bf16.msra.mxu0 0
    %3215 = vmatpush.bf16.msra.mxu0 %v2144
    %3216 = vmatpush.bf16.msra.mxu0 %v2122
    %3217 = vmatmul.bf16.gmra.mxu0 %v2549
    %v3218 = vpop.f32.mrf.mxu0
    %v3219 = vadd.f32 %v3205, %v3218
    %v3220 = vpop.f32.mrf.mxu0
    %v3221 = vadd.f32 %v3207, %v3220
    %3222 = vdwg.mxu0
    %3223 = vmatpush.bf16.msra.mxu0 %v1925
    %3224 = vmatpush.bf16.msra.mxu0 %v1903
    %3225 = vmatpush.bf16.msra.mxu0 %v1881
    %3226 = vmatpush.bf16.msra.mxu0 %v1859
    %3227 = vmatpush.bf16.msra.mxu0 %v1837
    %3228 = vmatpush.bf16.msra.mxu0 %v1815
    %3229 = vmatpush.bf16.msra.mxu0 %v1793
    %3230 = vmatpush.bf16.msra.mxu0 %v1771
    %3231 = vmatmul.bf16.gmra.mxu0 %v562
    %v3232 = vpop.f32.mrf.mxu0
    %v3233 = vadd.f32 %v524, %v3232
    %v3234 = vpop.f32.mrf.mxu0
    %v3235 = vadd.f32 %v524, %v3234
    %3236 = vdwg.mxu0
    %3237 = vmatpush.bf16.msra.mxu0 %v2101
    %3238 = vmatpush.bf16.msra.mxu0 %v2079
    %3239 = vmatpush.bf16.msra.mxu0 %v2057
    %3240 = vmatpush.bf16.msra.mxu0 %v2035
    %3241 = vmatpush.bf16.msra.mxu0 %v2013
    %3242 = vmatpush.bf16.msra.mxu0 %v1991
    %3243 = vmatpush.bf16.msra.mxu0 %v1969
    %3244 = vmatpush.bf16.msra.mxu0 %v1947
    %3245 = vmatmul.bf16.gmra.mxu0 %v563
    %v3246 = vpop.f32.mrf.mxu0
    %v3247 = vadd.f32 %v3233, %v3246
    %v3248 = vpop.f32.mrf.mxu0
    %v3249 = vadd.f32 %v3235, %v3248
    %3250 = vdwg.mxu0
    %3251 = vmatpush.bf16.msra.mxu0 0
    %3252 = vmatpush.bf16.msra.mxu0 0
    %3253 = vmatpush.bf16.msra.mxu0 0
    %3254 = vmatpush.bf16.msra.mxu0 0
    %3255 = vmatpush.bf16.msra.mxu0 0
    %3256 = vmatpush.bf16.msra.mxu0 0
    %3257 = vmatpush.bf16.msra.mxu0 %v2145
    %3258 = vmatpush.bf16.msra.mxu0 %v2123
    %3259 = vmatmul.bf16.gmra.mxu0 %v2549
    %v3260 = vpop.f32.mrf.mxu0
    %v3261 = vadd.f32 %v3247, %v3260
    %v3262 = vpop.f32.mrf.mxu0
    %v3263 = vadd.f32 %v3249, %v3262
    %3264 = vdwg.mxu0
    %3265 = vmatpush.bf16.msra.mxu0 %v1926
    %3266 = vmatpush.bf16.msra.mxu0 %v1904
    %3267 = vmatpush.bf16.msra.mxu0 %v1882
    %3268 = vmatpush.bf16.msra.mxu0 %v1860
    %3269 = vmatpush.bf16.msra.mxu0 %v1838
    %3270 = vmatpush.bf16.msra.mxu0 %v1816
    %3271 = vmatpush.bf16.msra.mxu0 %v1794
    %3272 = vmatpush.bf16.msra.mxu0 %v1772
    %3273 = vmatmul.bf16.gmra.mxu0 %v562
    %v3274 = vpop.f32.mrf.mxu0
    %v3275 = vadd.f32 %v525, %v3274
    %v3276 = vpop.f32.mrf.mxu0
    %v3277 = vadd.f32 %v525, %v3276
    %3278 = vdwg.mxu0
    %3279 = vmatpush.bf16.msra.mxu0 %v2102
    %3280 = vmatpush.bf16.msra.mxu0 %v2080
    %3281 = vmatpush.bf16.msra.mxu0 %v2058
    %3282 = vmatpush.bf16.msra.mxu0 %v2036
    %3283 = vmatpush.bf16.msra.mxu0 %v2014
    %3284 = vmatpush.bf16.msra.mxu0 %v1992
    %3285 = vmatpush.bf16.msra.mxu0 %v1970
    %3286 = vmatpush.bf16.msra.mxu0 %v1948
    %3287 = vmatmul.bf16.gmra.mxu0 %v563
    %v3288 = vpop.f32.mrf.mxu0
    %v3289 = vadd.f32 %v3275, %v3288
    %v3290 = vpop.f32.mrf.mxu0
    %v3291 = vadd.f32 %v3277, %v3290
    %3292 = vdwg.mxu0
    %3293 = vmatpush.bf16.msra.mxu0 0
    %3294 = vmatpush.bf16.msra.mxu0 0
    %3295 = vmatpush.bf16.msra.mxu0 0
    %3296 = vmatpush.bf16.msra.mxu0 0
    %3297 = vmatpush.bf16.msra.mxu0 0
    %3298 = vmatpush.bf16.msra.mxu0 0
    %3299 = vmatpush.bf16.msra.mxu0 %v2146
    %3300 = vmatpush.bf16.msra.mxu0 %v2124
    %3301 = vmatmul.bf16.gmra.mxu0 %v2549
    %v3302 = vpop.f32.mrf.mxu0
    %v3303 = vadd.f32 %v3289, %v3302
    %v3304 = vpop.f32.mrf.mxu0
    %v3305 = vadd.f32 %v3291, %v3304
    %3306 = vdwg.mxu0
    %3307 = vmatpush.bf16.msra.mxu0 %v1927
    %3308 = vmatpush.bf16.msra.mxu0 %v1905
    %3309 = vmatpush.bf16.msra.mxu0 %v1883
    %3310 = vmatpush.bf16.msra.mxu0 %v1861
    %3311 = vmatpush.bf16.msra.mxu0 %v1839
    %3312 = vmatpush.bf16.msra.mxu0 %v1817
    %3313 = vmatpush.bf16.msra.mxu0 %v1795
    %3314 = vmatpush.bf16.msra.mxu0 %v1773
    %3315 = vmatmul.bf16.gmra.mxu0 %v562
    %v3316 = vpop.f32.mrf.mxu0
    %v3317 = vadd.f32 %v526, %v3316
    %v3318 = vpop.f32.mrf.mxu0
    %v3319 = vadd.f32 %v526, %v3318
    %3320 = vdwg.mxu0
    %3321 = vmatpush.bf16.msra.mxu0 %v2103
    %3322 = vmatpush.bf16.msra.mxu0 %v2081
    %3323 = vmatpush.bf16.msra.mxu0 %v2059
    %3324 = vmatpush.bf16.msra.mxu0 %v2037
    %3325 = vmatpush.bf16.msra.mxu0 %v2015
    %3326 = vmatpush.bf16.msra.mxu0 %v1993
    %3327 = vmatpush.bf16.msra.mxu0 %v1971
    %3328 = vmatpush.bf16.msra.mxu0 %v1949
    %3329 = vmatmul.bf16.gmra.mxu0 %v563
    %v3330 = vpop.f32.mrf.mxu0
    %v3331 = vadd.f32 %v3317, %v3330
    %v3332 = vpop.f32.mrf.mxu0
    %v3333 = vadd.f32 %v3319, %v3332
    %3334 = vdwg.mxu0
    %3335 = vmatpush.bf16.msra.mxu0 0
    %3336 = vmatpush.bf16.msra.mxu0 0
    %3337 = vmatpush.bf16.msra.mxu0 0
    %3338 = vmatpush.bf16.msra.mxu0 0
    %3339 = vmatpush.bf16.msra.mxu0 0
    %3340 = vmatpush.bf16.msra.mxu0 0
    %3341 = vmatpush.bf16.msra.mxu0 %v2147
    %3342 = vmatpush.bf16.msra.mxu0 %v2125
    %3343 = vmatmul.bf16.gmra.mxu0 %v2549
    %v3344 = vpop.f32.mrf.mxu0
    %v3345 = vadd.f32 %v3331, %v3344
    %v3346 = vpop.f32.mrf.mxu0
    %v3347 = vadd.f32 %v3333, %v3346
    %3348 = vdwg.mxu0
    %3349 = vmatpush.bf16.msra.mxu0 %v1928
    %3350 = vmatpush.bf16.msra.mxu0 %v1906
    %3351 = vmatpush.bf16.msra.mxu0 %v1884
    %3352 = vmatpush.bf16.msra.mxu0 %v1862
    %3353 = vmatpush.bf16.msra.mxu0 %v1840
    %3354 = vmatpush.bf16.msra.mxu0 %v1818
    %3355 = vmatpush.bf16.msra.mxu0 %v1796
    %3356 = vmatpush.bf16.msra.mxu0 %v1774
    %3357 = vmatmul.bf16.gmra.mxu0 %v562
    %v3358 = vpop.f32.mrf.mxu0
    %v3359 = vadd.f32 %v527, %v3358
    %v3360 = vpop.f32.mrf.mxu0
    %v3361 = vadd.f32 %v527, %v3360
    %3362 = vdwg.mxu0
    %3363 = vmatpush.bf16.msra.mxu0 %v2104
    %3364 = vmatpush.bf16.msra.mxu0 %v2082
    %3365 = vmatpush.bf16.msra.mxu0 %v2060
    %3366 = vmatpush.bf16.msra.mxu0 %v2038
    %3367 = vmatpush.bf16.msra.mxu0 %v2016
    %3368 = vmatpush.bf16.msra.mxu0 %v1994
    %3369 = vmatpush.bf16.msra.mxu0 %v1972
    %3370 = vmatpush.bf16.msra.mxu0 %v1950
    %3371 = vmatmul.bf16.gmra.mxu0 %v563
    %v3372 = vpop.f32.mrf.mxu0
    %v3373 = vadd.f32 %v3359, %v3372
    %v3374 = vpop.f32.mrf.mxu0
    %v3375 = vadd.f32 %v3361, %v3374
    %3376 = vdwg.mxu0
    %3377 = vmatpush.bf16.msra.mxu0 0
    %3378 = vmatpush.bf16.msra.mxu0 0
    %3379 = vmatpush.bf16.msra.mxu0 0
    %3380 = vmatpush.bf16.msra.mxu0 0
    %3381 = vmatpush.bf16.msra.mxu0 0
    %3382 = vmatpush.bf16.msra.mxu0 0
    %3383 = vmatpush.bf16.msra.mxu0 %v2148
    %3384 = vmatpush.bf16.msra.mxu0 %v2126
    %3385 = vmatmul.bf16.gmra.mxu0 %v2549
    %v3386 = vpop.f32.mrf.mxu0
    %v3387 = vadd.f32 %v3373, %v3386
    %v3388 = vpop.f32.mrf.mxu0
    %v3389 = vadd.f32 %v3375, %v3388
    %3390 = vdwg.mxu0
    %3391 = vmatpush.bf16.msra.mxu0 %v1929
    %3392 = vmatpush.bf16.msra.mxu0 %v1907
    %3393 = vmatpush.bf16.msra.mxu0 %v1885
    %3394 = vmatpush.bf16.msra.mxu0 %v1863
    %3395 = vmatpush.bf16.msra.mxu0 %v1841
    %3396 = vmatpush.bf16.msra.mxu0 %v1819
    %3397 = vmatpush.bf16.msra.mxu0 %v1797
    %3398 = vmatpush.bf16.msra.mxu0 %v1775
    %3399 = vmatmul.bf16.gmra.mxu0 %v562
    %v3400 = vpop.f32.mrf.mxu0
    %v3401 = vadd.f32 %v528, %v3400
    %v3402 = vpop.f32.mrf.mxu0
    %v3403 = vadd.f32 %v528, %v3402
    %3404 = vdwg.mxu0
    %3405 = vmatpush.bf16.msra.mxu0 %v2105
    %3406 = vmatpush.bf16.msra.mxu0 %v2083
    %3407 = vmatpush.bf16.msra.mxu0 %v2061
    %3408 = vmatpush.bf16.msra.mxu0 %v2039
    %3409 = vmatpush.bf16.msra.mxu0 %v2017
    %3410 = vmatpush.bf16.msra.mxu0 %v1995
    %3411 = vmatpush.bf16.msra.mxu0 %v1973
    %3412 = vmatpush.bf16.msra.mxu0 %v1951
    %3413 = vmatmul.bf16.gmra.mxu0 %v563
    %v3414 = vpop.f32.mrf.mxu0
    %v3415 = vadd.f32 %v3401, %v3414
    %v3416 = vpop.f32.mrf.mxu0
    %v3417 = vadd.f32 %v3403, %v3416
    %3418 = vdwg.mxu0
    %3419 = vmatpush.bf16.msra.mxu0 0
    %3420 = vmatpush.bf16.msra.mxu0 0
    %3421 = vmatpush.bf16.msra.mxu0 0
    %3422 = vmatpush.bf16.msra.mxu0 0
    %3423 = vmatpush.bf16.msra.mxu0 0
    %3424 = vmatpush.bf16.msra.mxu0 0
    %3425 = vmatpush.bf16.msra.mxu0 %v2149
    %3426 = vmatpush.bf16.msra.mxu0 %v2127
    %3427 = vmatmul.bf16.gmra.mxu0 %v2549
    %v3428 = vpop.f32.mrf.mxu0
    %v3429 = vadd.f32 %v3415, %v3428
    %v3430 = vpop.f32.mrf.mxu0
    %v3431 = vadd.f32 %v3417, %v3430
    %3432 = vdwg.mxu0
    %3433 = vmatpush.bf16.msra.mxu0 %v1930
    %3434 = vmatpush.bf16.msra.mxu0 %v1908
    %3435 = vmatpush.bf16.msra.mxu0 %v1886
    %3436 = vmatpush.bf16.msra.mxu0 %v1864
    %3437 = vmatpush.bf16.msra.mxu0 %v1842
    %3438 = vmatpush.bf16.msra.mxu0 %v1820
    %3439 = vmatpush.bf16.msra.mxu0 %v1798
    %3440 = vmatpush.bf16.msra.mxu0 %v1776
    %3441 = vmatmul.bf16.gmra.mxu0 %v562
    %v3442 = vpop.f32.mrf.mxu0
    %v3443 = vadd.f32 %v529, %v3442
    %v3444 = vpop.f32.mrf.mxu0
    %v3445 = vadd.f32 %v529, %v3444
    %3446 = vdwg.mxu0
    %3447 = vmatpush.bf16.msra.mxu0 %v2106
    %3448 = vmatpush.bf16.msra.mxu0 %v2084
    %3449 = vmatpush.bf16.msra.mxu0 %v2062
    %3450 = vmatpush.bf16.msra.mxu0 %v2040
    %3451 = vmatpush.bf16.msra.mxu0 %v2018
    %3452 = vmatpush.bf16.msra.mxu0 %v1996
    %3453 = vmatpush.bf16.msra.mxu0 %v1974
    %3454 = vmatpush.bf16.msra.mxu0 %v1952
    %3455 = vmatmul.bf16.gmra.mxu0 %v563
    %v3456 = vpop.f32.mrf.mxu0
    %v3457 = vadd.f32 %v3443, %v3456
    %v3458 = vpop.f32.mrf.mxu0
    %v3459 = vadd.f32 %v3445, %v3458
    %3460 = vdwg.mxu0
    %3461 = vmatpush.bf16.msra.mxu0 0
    %3462 = vmatpush.bf16.msra.mxu0 0
    %3463 = vmatpush.bf16.msra.mxu0 0
    %3464 = vmatpush.bf16.msra.mxu0 0
    %3465 = vmatpush.bf16.msra.mxu0 0
    %3466 = vmatpush.bf16.msra.mxu0 0
    %3467 = vmatpush.bf16.msra.mxu0 %v2150
    %3468 = vmatpush.bf16.msra.mxu0 %v2128
    %3469 = vmatmul.bf16.gmra.mxu0 %v2549
    %v3470 = vpop.f32.mrf.mxu0
    %v3471 = vadd.f32 %v3457, %v3470
    %v3472 = vpop.f32.mrf.mxu0
    %v3473 = vadd.f32 %v3459, %v3472
    %3474 = vdwg.mxu0
    %v3475 = vmul.f32 %v2589, 0.5
    %v3476 = vmul.f32 %v2631, 0.5
    %v3477 = vmul.f32 %v2673, 0.5
    %v3478 = vmul.f32 %v2715, 0.5
    %v3479 = vmul.f32 %v2757, 0.5
    %v3480 = vmul.f32 %v2799, 0.5
    %v3481 = vmul.f32 %v2841, 0.5
    %v3482 = vmul.f32 %v2883, 0.5
    %v3483 = vmul.f32 %v2925, 0.5
    %v3484 = vmul.f32 %v2967, 0.5
    %v3485 = vmul.f32 %v3009, 0.5
    %v3486 = vmul.f32 %v3051, 0.5
    %v3487 = vmul.f32 %v3093, 0.5
    %v3488 = vmul.f32 %v3135, 0.5
    %v3489 = vmul.f32 %v3177, 0.5
    %v3490 = vmul.f32 %v3219, 0.5
    %v3491 = vmul.f32 %v3261, 0.5
    %v3492 = vmul.f32 %v3303, 0.5
    %v3493 = vmul.f32 %v3345, 0.5
    %v3494 = vmul.f32 %v3387, 0.5
    %v3495 = vmul.f32 %v3429, 0.5
    %v3496 = vmul.f32 %v3471, 0.5
    %v3497 = vmul.f32 %v2591, 0.5
    %v3498 = vmul.f32 %v2633, 0.5
    %v3499 = vmul.f32 %v2675, 0.5
    %v3500 = vmul.f32 %v2717, 0.5
    %v3501 = vmul.f32 %v2759, 0.5
    %v3502 = vmul.f32 %v2801, 0.5
    %v3503 = vmul.f32 %v2843, 0.5
    %v3504 = vmul.f32 %v2885, 0.5
    %v3505 = vmul.f32 %v2927, 0.5
    %v3506 = vmul.f32 %v2969, 0.5
    %v3507 = vmul.f32 %v3011, 0.5
    %v3508 = vmul.f32 %v3053, 0.5
    %v3509 = vmul.f32 %v3095, 0.5
    %v3510 = vmul.f32 %v3137, 0.5
    %v3511 = vmul.f32 %v3179, 0.5
    %v3512 = vmul.f32 %v3221, 0.5
    %v3513 = vmul.f32 %v3263, 0.5
    %v3514 = vmul.f32 %v3305, 0.5
    %v3515 = vmul.f32 %v3347, 0.5
    %v3516 = vmul.f32 %v3389, 0.5
    %v3517 = vmul.f32 %v3431, 0.5
    %v3518 = vmul.f32 %v3473, 0.5
    %v3519 = vtanh.pop %v3475
    %v3520 = vtanh.pop %v3476
    %v3521 = vtanh.pop %v3477
    %v3522 = vtanh.pop %v3478
    %v3523 = vtanh.pop %v3479
    %v3524 = vtanh.pop %v3480
    %v3525 = vtanh.pop %v3481
    %v3526 = vtanh.pop %v3482
    %v3527 = vtanh.pop %v3483
    %v3528 = vtanh.pop %v3484
    %v3529 = vtanh.pop %v3485
    %v3530 = vtanh.pop %v3486
    %v3531 = vtanh.pop %v3487
    %v3532 = vtanh.pop %v3488
    %v3533 = vtanh.pop %v3489
    %v3534 = vtanh.pop %v3490
    %v3535 = vtanh.pop %v3491
    %v3536 = vtanh.pop %v3492
    %v3537 = vtanh.pop %v3493
    %v3538 = vtanh.pop %v3494
    %v3539 = vtanh.pop %v3495
    %v3540 = vtanh.pop %v3496
    %v3541 = vtanh.pop %v3497
    %v3542 = vtanh.pop %v3498
    %v3543 = vtanh.pop %v3499
    %v3544 = vtanh.pop %v3500
    %v3545 = vtanh.pop %v3501
    %v3546 = vtanh.pop %v3502
    %v3547 = vtanh.pop %v3503
    %v3548 = vtanh.pop %v3504
    %v3549 = vtanh.pop %v3505
    %v3550 = vtanh.pop %v3506
    %v3551 = vtanh.pop %v3507
    %v3552 = vtanh.pop %v3508
    %v3553 = vtanh.pop %v3509
    %v3554 = vtanh.pop %v3510
    %v3555 = vtanh.pop %v3511
    %v3556 = vtanh.pop %v3512
    %v3557 = vtanh.pop %v3513
    %v3558 = vtanh.pop %v3514
    %v3559 = vtanh.pop %v3515
    %v3560 = vtanh.pop %v3516
    %v3561 = vtanh.pop %v3517
    %v3562 = vtanh.pop %v3518
    %v3563 = vadd.f32 %v3519, 1.0
    %v3564 = vadd.f32 %v3520, 1.0
    %v3565 = vadd.f32 %v3521, 1.0
    %v3566 = vadd.f32 %v3522, 1.0
    %v3567 = vadd.f32 %v3523, 1.0
    %v3568 = vadd.f32 %v3524, 1.0
    %v3569 = vadd.f32 %v3525, 1.0
    %v3570 = vadd.f32 %v3526, 1.0
    %v3571 = vadd.f32 %v3527, 1.0
    %v3572 = vadd.f32 %v3528, 1.0
    %v3573 = vadd.f32 %v3529, 1.0
    %v3574 = vadd.f32 %v3530, 1.0
    %v3575 = vadd.f32 %v3531, 1.0
    %v3576 = vadd.f32 %v3532, 1.0
    %v3577 = vadd.f32 %v3533, 1.0
    %v3578 = vadd.f32 %v3534, 1.0
    %v3579 = vadd.f32 %v3535, 1.0
    %v3580 = vadd.f32 %v3536, 1.0
    %v3581 = vadd.f32 %v3537, 1.0
    %v3582 = vadd.f32 %v3538, 1.0
    %v3583 = vadd.f32 %v3539, 1.0
    %v3584 = vadd.f32 %v3540, 1.0
    %v3585 = vadd.f32 %v3541, 1.0
    %v3586 = vadd.f32 %v3542, 1.0
    %v3587 = vadd.f32 %v3543, 1.0
    %v3588 = vadd.f32 %v3544, 1.0
    %v3589 = vadd.f32 %v3545, 1.0
    %v3590 = vadd.f32 %v3546, 1.0
    %v3591 = vadd.f32 %v3547, 1.0
    %v3592 = vadd.f32 %v3548, 1.0
    %v3593 = vadd.f32 %v3549, 1.0
    %v3594 = vadd.f32 %v3550, 1.0
    %v3595 = vadd.f32 %v3551, 1.0
    %v3596 = vadd.f32 %v3552, 1.0
    %v3597 = vadd.f32 %v3553, 1.0
    %v3598 = vadd.f32 %v3554, 1.0
    %v3599 = vadd.f32 %v3555, 1.0
    %v3600 = vadd.f32 %v3556, 1.0
    %v3601 = vadd.f32 %v3557, 1.0
    %v3602 = vadd.f32 %v3558, 1.0
    %v3603 = vadd.f32 %v3559, 1.0
    %v3604 = vadd.f32 %v3560, 1.0
    %v3605 = vadd.f32 %v3561, 1.0
    %v3606 = vadd.f32 %v3562, 1.0
    %v3607 = vmul.f32 %v3475, %v3563
    %v3608 = vmul.f32 %v3476, %v3564
    %v3609 = vmul.f32 %v3477, %v3565
    %v3610 = vmul.f32 %v3478, %v3566
    %v3611 = vmul.f32 %v3479, %v3567
    %v3612 = vmul.f32 %v3480, %v3568
    %v3613 = vmul.f32 %v3481, %v3569
    %v3614 = vmul.f32 %v3482, %v3570
    %v3615 = vmul.f32 %v3483, %v3571
    %v3616 = vmul.f32 %v3484, %v3572
    %v3617 = vmul.f32 %v3485, %v3573
    %v3618 = vmul.f32 %v3486, %v3574
    %v3619 = vmul.f32 %v3487, %v3575
    %v3620 = vmul.f32 %v3488, %v3576
    %v3621 = vmul.f32 %v3489, %v3577
    %v3622 = vmul.f32 %v3490, %v3578
    %v3623 = vmul.f32 %v3491, %v3579
    %v3624 = vmul.f32 %v3492, %v3580
    %v3625 = vmul.f32 %v3493, %v3581
    %v3626 = vmul.f32 %v3494, %v3582
    %v3627 = vmul.f32 %v3495, %v3583
    %v3628 = vmul.f32 %v3496, %v3584
    %v3629 = vmul.f32 %v3497, %v3585
    %v3630 = vmul.f32 %v3498, %v3586
    %v3631 = vmul.f32 %v3499, %v3587
    %v3632 = vmul.f32 %v3500, %v3588
    %v3633 = vmul.f32 %v3501, %v3589
    %v3634 = vmul.f32 %v3502, %v3590
    %v3635 = vmul.f32 %v3503, %v3591
    %v3636 = vmul.f32 %v3504, %v3592
    %v3637 = vmul.f32 %v3505, %v3593
    %v3638 = vmul.f32 %v3506, %v3594
    %v3639 = vmul.f32 %v3507, %v3595
    %v3640 = vmul.f32 %v3508, %v3596
    %v3641 = vmul.f32 %v3509, %v3597
    %v3642 = vmul.f32 %v3510, %v3598
    %v3643 = vmul.f32 %v3511, %v3599
    %v3644 = vmul.f32 %v3512, %v3600
    %v3645 = vmul.f32 %v3513, %v3601
    %v3646 = vmul.f32 %v3514, %v3602
    %v3647 = vmul.f32 %v3515, %v3603
    %v3648 = vmul.f32 %v3516, %v3604
    %v3649 = vmul.f32 %v3517, %v3605
    %v3650 = vmul.f32 %v3518, %v3606
    %v3651 = vld [vmem:[#allocation2] sm:$0xff]
    %v3652 = vld [vmem:[#allocation2 + $0x8] sm:$0xff]
    %v3653 = vpack.c.bf16 %v3629, %v3607
    %v3654 = vpack.c.bf16 %v3630, %v3608
    %v3655 = vpack.c.bf16 %v3631, %v3609
    %v3656 = vpack.c.bf16 %v3632, %v3610
    %v3657 = vpack.c.bf16 %v3633, %v3611
    %v3658 = vpack.c.bf16 %v3634, %v3612
    %v3659 = vpack.c.bf16 %v3635, %v3613
    %v3660 = vpack.c.bf16 %v3636, %v3614
    %v3661 = vpack.c.bf16 %v3637, %v3615
    %v3662 = vpack.c.bf16 %v3638, %v3616
    %v3663 = vpack.c.bf16 %v3639, %v3617
    %v3664 = vpack.c.bf16 %v3640, %v3618
    %v3665 = vpack.c.bf16 %v3641, %v3619
    %v3666 = vpack.c.bf16 %v3642, %v3620
    %v3667 = vpack.c.bf16 %v3643, %v3621
    %v3668 = vpack.c.bf16 %v3644, %v3622
    %v3669 = vpack.c.bf16 %v3645, %v3623
    %v3670 = vpack.c.bf16 %v3646, %v3624
    %v3671 = vpack.c.bf16 %v3647, %v3625
    %v3672 = vpack.c.bf16 %v3648, %v3626
    %v3673 = vpack.c.bf16 %v3649, %v3627
    %v3674 = vpack.c.bf16 %v3650, %v3628
    %v3675 = vld [vmem:[#allocation9] sm:$0xf]
    %v3676 = vld [vmem:[#allocation9 + $0x4] sm:$0xf]
    %v3677 = vld [vmem:[#allocation9 + $0x8] sm:$0xf]
    %v3678 = vld [vmem:[#allocation9 + $0xc] sm:$0xf]
    %v3679 = vld [vmem:[#allocation9 + $0x10] sm:$0xf]
    %v3680 = vld [vmem:[#allocation9 + $0x14] sm:$0xf]
    %v3681 = vld [vmem:[#allocation9 + $0x18] sm:$0xf]
    %v3682 = vld [vmem:[#allocation9 + $0x1c] sm:$0xf]
    %v3683 = vld [vmem:[#allocation9 + $0x20] sm:$0xf]
    %v3684 = vld [vmem:[#allocation9 + $0x24] sm:$0xf]
    %v3685 = vld [vmem:[#allocation9 + $0x28] sm:$0xf]
    %v3686 = vld [vmem:[#allocation9 + $0x2c] sm:$0xf]
    %v3687 = vld [vmem:[#allocation9 + $0x30] sm:$0xf]
    %v3688 = vld [vmem:[#allocation9 + $0x34] sm:$0xf]
    %v3689 = vld [vmem:[#allocation9 + $0x38] sm:$0xf]
    %v3690 = vld [vmem:[#allocation9 + $0x3c] sm:$0xf]
    %v3691 = vld [vmem:[#allocation9 + $0x40] sm:$0xf]
    %v3692 = vld [vmem:[#allocation9 + $0x44] sm:$0xf]
    %v3693 = vld [vmem:[#allocation9 + $0x48] sm:$0xf]
    %v3694 = vld [vmem:[#allocation9 + $0x4c] sm:$0xf]
    %v3695 = vld [vmem:[#allocation9 + $0x50] sm:$0xf]
    %v3696 = vld [vmem:[#allocation9 + $0x54] sm:$0xf]
    %v3697 = vld [vmem:[#allocation9 + $0x58] sm:$0xf]
    %v3698 = vld [vmem:[#allocation9 + $0x5c] sm:$0xf]
    %v3699 = vld [vmem:[#allocation9 + $0x60] sm:$0xf]
    %v3700 = vld [vmem:[#allocation9 + $0x64] sm:$0xf]
    %v3701 = vld [vmem:[#allocation9 + $0x68] sm:$0xf]
    %v3702 = vld [vmem:[#allocation9 + $0x6c] sm:$0xf]
    %v3703 = vld [vmem:[#allocation9 + $0x70] sm:$0xf]
    %v3704 = vld [vmem:[#allocation9 + $0x74] sm:$0xf]
    %v3705 = vld [vmem:[#allocation9 + $0x78] sm:$0xf]
    %v3706 = vld [vmem:[#allocation9 + $0x7c] sm:$0xf]
    %v3707 = vld [vmem:[#allocation9 + $0x80] sm:$0xf]
    %v3708 = vld [vmem:[#allocation9 + $0x84] sm:$0xf]
    %v3709 = vld [vmem:[#allocation9 + $0x88] sm:$0xf]
    %v3710 = vld [vmem:[#allocation9 + $0x8c] sm:$0xf]
    %v3711 = vld [vmem:[#allocation9 + $0x90] sm:$0xf]
    %v3712 = vld [vmem:[#allocation9 + $0x94] sm:$0xf]
    %v3713 = vld [vmem:[#allocation9 + $0x98] sm:$0xf]
    %v3714 = vld [vmem:[#allocation9 + $0x9c] sm:$0xf]
    %v3715 = vld [vmem:[#allocation9 + $0xa0] sm:$0xf]
    %v3716 = vld [vmem:[#allocation9 + $0xa4] sm:$0xf]
    %v3717 = vld [vmem:[#allocation9 + $0xa8] sm:$0xf]
    %v3718 = vld [vmem:[#allocation9 + $0xac] sm:$0xf]
    %v3719 = vld [vmem:[#allocation9 + $0xb0] sm:$0xf]
    %v3720 = vld [vmem:[#allocation9 + $0xb4] sm:$0xf]
    %v3721 = vld [vmem:[#allocation9 + $0xb8] sm:$0xf]
    %v3722 = vld [vmem:[#allocation9 + $0xbc] sm:$0xf]
    %v3723 = vld [vmem:[#allocation9 + $0xc0] sm:$0xf]
    %v3724 = vld [vmem:[#allocation9 + $0xc4] sm:$0xf]
    %v3725 = vld [vmem:[#allocation9 + $0xc8] sm:$0xf]
    %v3726 = vld [vmem:[#allocation9 + $0xcc] sm:$0xf]
    %v3727 = vld [vmem:[#allocation9 + $0xd0] sm:$0xf]
    %v3728 = vld [vmem:[#allocation9 + $0xd4] sm:$0xf]
    %v3729 = vld [vmem:[#allocation9 + $0xd8] sm:$0xf]
    %v3730 = vld [vmem:[#allocation9 + $0xdc] sm:$0xf]
    %v3731 = vld [vmem:[#allocation9 + $0xe0] sm:$0xf]
    %v3732 = vld [vmem:[#allocation9 + $0xe4] sm:$0xf]
    %v3733 = vld [vmem:[#allocation9 + $0xe8] sm:$0xf]
    %v3734 = vld [vmem:[#allocation9 + $0xec] sm:$0xf]
    %v3735 = vld [vmem:[#allocation9 + $0xf0] sm:$0xf]
    %v3736 = vld [vmem:[#allocation9 + $0xf4] sm:$0xf]
    %v3737 = vld [vmem:[#allocation9 + $0xf8] sm:$0xf]
    %v3738 = vld [vmem:[#allocation9 + $0xfc] sm:$0xf]
    %v3739 = vld [vmem:[#allocation9 + $0x100] sm:$0xf]
    %v3740 = vld [vmem:[#allocation9 + $0x104] sm:$0xf]
    %v3741 = vld [vmem:[#allocation9 + $0x108] sm:$0xf]
    %v3742 = vld [vmem:[#allocation9 + $0x10c] sm:$0xf]
    %v3743 = vld [vmem:[#allocation9 + $0x110] sm:$0xf]
    %v3744 = vld [vmem:[#allocation9 + $0x114] sm:$0xf]
    %v3745 = vld [vmem:[#allocation9 + $0x118] sm:$0xf]
    %v3746 = vld [vmem:[#allocation9 + $0x11c] sm:$0xf]
    %v3747 = vld [vmem:[#allocation9 + $0x120] sm:$0xf]
    %v3748 = vld [vmem:[#allocation9 + $0x124] sm:$0xf]
    %v3749 = vld [vmem:[#allocation9 + $0x128] sm:$0xf]
    %v3750 = vld [vmem:[#allocation9 + $0x12c] sm:$0xf]
    %v3751 = vld [vmem:[#allocation9 + $0x130] sm:$0xf]
    %v3752 = vld [vmem:[#allocation9 + $0x134] sm:$0xf]
    %v3753 = vld [vmem:[#allocation9 + $0x138] sm:$0xf]
    %v3754 = vld [vmem:[#allocation9 + $0x13c] sm:$0xf]
    %v3755 = vld [vmem:[#allocation9 + $0x140] sm:$0xf]
    %v3756 = vld [vmem:[#allocation9 + $0x144] sm:$0xf]
    %v3757 = vld [vmem:[#allocation9 + $0x148] sm:$0xf]
    %v3758 = vld [vmem:[#allocation9 + $0x14c] sm:$0xf]
    %v3759 = vld [vmem:[#allocation9 + $0x150] sm:$0xf]
    %v3760 = vld [vmem:[#allocation9 + $0x154] sm:$0xf]
    %v3761 = vld [vmem:[#allocation9 + $0x158] sm:$0xf]
    %v3762 = vld [vmem:[#allocation9 + $0x15c] sm:$0xf]
    %v3763 = vld [vmem:[#allocation9 + $0x160] sm:$0xf]
    %v3764 = vld [vmem:[#allocation9 + $0x164] sm:$0xf]
    %v3765 = vld [vmem:[#allocation9 + $0x168] sm:$0xf]
    %v3766 = vld [vmem:[#allocation9 + $0x16c] sm:$0xf]
    %v3767 = vld [vmem:[#allocation9 + $0x170] sm:$0xf]
    %v3768 = vld [vmem:[#allocation9 + $0x174] sm:$0xf]
    %v3769 = vld [vmem:[#allocation9 + $0x178] sm:$0xf]
    %v3770 = vld [vmem:[#allocation9 + $0x17c] sm:$0xf]
    %v3771 = vld [vmem:[#allocation9 + $0x180] sm:$0xf]
    %v3772 = vld [vmem:[#allocation9 + $0x184] sm:$0xf]
    %v3773 = vld [vmem:[#allocation9 + $0x188] sm:$0xf]
    %v3774 = vld [vmem:[#allocation9 + $0x18c] sm:$0xf]
    %v3775 = vld [vmem:[#allocation9 + $0x190] sm:$0xf]
    %v3776 = vld [vmem:[#allocation9 + $0x194] sm:$0xf]
    %v3777 = vld [vmem:[#allocation9 + $0x198] sm:$0xf]
    %v3778 = vld [vmem:[#allocation9 + $0x19c] sm:$0xf]
    %v3779 = vld [vmem:[#allocation9 + $0x1a0] sm:$0xf]
    %v3780 = vld [vmem:[#allocation9 + $0x1a4] sm:$0xf]
    %v3781 = vld [vmem:[#allocation9 + $0x1a8] sm:$0xf]
    %v3782 = vld [vmem:[#allocation9 + $0x1ac] sm:$0xf]
    %v3783 = vld [vmem:[#allocation9 + $0x1b0] sm:$0xf]
    %v3784 = vld [vmem:[#allocation9 + $0x1b4] sm:$0xf]
    %v3785 = vld [vmem:[#allocation9 + $0x1b8] sm:$0xf]
    %v3786 = vld [vmem:[#allocation9 + $0x1bc] sm:$0xf]
    %v3787 = vld [vmem:[#allocation9 + $0x1c0] sm:$0xf]
    %v3788 = vld [vmem:[#allocation9 + $0x1c4] sm:$0xf]
    %v3789 = vld [vmem:[#allocation9 + $0x1c8] sm:$0xf]
    %v3790 = vld [vmem:[#allocation9 + $0x1cc] sm:$0xf]
    %v3791 = vld [vmem:[#allocation9 + $0x1d0] sm:$0xf]
    %v3792 = vld [vmem:[#allocation9 + $0x1d4] sm:$0xf]
    %v3793 = vld [vmem:[#allocation9 + $0x1d8] sm:$0xf]
    %v3794 = vld [vmem:[#allocation9 + $0x1dc] sm:$0xf]
    %v3795 = vld [vmem:[#allocation9 + $0x1e0] sm:$0xf]
    %v3796 = vld [vmem:[#allocation9 + $0x1e4] sm:$0xf]
    %v3797 = vld [vmem:[#allocation9 + $0x1e8] sm:$0xf]
    %v3798 = vld [vmem:[#allocation9 + $0x1ec] sm:$0xf]
    %v3799 = vld [vmem:[#allocation9 + $0x1f0] sm:$0xf]
    %v3800 = vld [vmem:[#allocation9 + $0x1f4] sm:$0xf]
    %v3801 = vld [vmem:[#allocation9 + $0x1f8] sm:$0xf]
    %v3802 = vld [vmem:[#allocation9 + $0x1fc] sm:$0xf]
    %v3803 = vld [vmem:[#allocation9 + $0x200] sm:$0xf]
    %v3804 = vld [vmem:[#allocation9 + $0x204] sm:$0xf]
    %v3805 = vld [vmem:[#allocation9 + $0x208] sm:$0xf]
    %v3806 = vld [vmem:[#allocation9 + $0x20c] sm:$0xf]
    %v3807 = vld [vmem:[#allocation9 + $0x210] sm:$0xf]
    %v3808 = vld [vmem:[#allocation9 + $0x214] sm:$0xf]
    %v3809 = vld [vmem:[#allocation9 + $0x218] sm:$0xf]
    %v3810 = vld [vmem:[#allocation9 + $0x21c] sm:$0xf]
    %v3811 = vld [vmem:[#allocation9 + $0x220] sm:$0xf]
    %v3812 = vld [vmem:[#allocation9 + $0x224] sm:$0xf]
    %v3813 = vld [vmem:[#allocation9 + $0x228] sm:$0xf]
    %v3814 = vld [vmem:[#allocation9 + $0x22c] sm:$0xf]
    %v3815 = vld [vmem:[#allocation9 + $0x230] sm:$0xf]
    %v3816 = vld [vmem:[#allocation9 + $0x234] sm:$0xf]
    %v3817 = vld [vmem:[#allocation9 + $0x238] sm:$0xf]
    %v3818 = vld [vmem:[#allocation9 + $0x23c] sm:$0xf]
    %v3819 = vld [vmem:[#allocation9 + $0x240] sm:$0xf]
    %v3820 = vld [vmem:[#allocation9 + $0x244] sm:$0xf]
    %v3821 = vld [vmem:[#allocation9 + $0x248] sm:$0xf]
    %v3822 = vld [vmem:[#allocation9 + $0x24c] sm:$0xf]
    %v3823 = vld [vmem:[#allocation9 + $0x250] sm:$0xf]
    %v3824 = vld [vmem:[#allocation9 + $0x254] sm:$0xf]
    %v3825 = vld [vmem:[#allocation9 + $0x258] sm:$0xf]
    %v3826 = vld [vmem:[#allocation9 + $0x25c] sm:$0xf]
    %v3827 = vld [vmem:[#allocation9 + $0x260] sm:$0xf]
    %v3828 = vld [vmem:[#allocation9 + $0x264] sm:$0xf]
    %v3829 = vld [vmem:[#allocation9 + $0x268] sm:$0xf]
    %v3830 = vld [vmem:[#allocation9 + $0x26c] sm:$0xf]
    %v3831 = vld [vmem:[#allocation9 + $0x270] sm:$0xf]
    %v3832 = vld [vmem:[#allocation9 + $0x274] sm:$0xf]
    %v3833 = vld [vmem:[#allocation9 + $0x278] sm:$0xf]
    %v3834 = vld [vmem:[#allocation9 + $0x27c] sm:$0xf]
    %v3835 = vld [vmem:[#allocation9 + $0x280] sm:$0xf]
    %v3836 = vld [vmem:[#allocation9 + $0x284] sm:$0xf]
    %v3837 = vld [vmem:[#allocation9 + $0x288] sm:$0xf]
    %v3838 = vld [vmem:[#allocation9 + $0x28c] sm:$0xf]
    %v3839 = vld [vmem:[#allocation9 + $0x290] sm:$0xf]
    %v3840 = vld [vmem:[#allocation9 + $0x294] sm:$0xf]
    %v3841 = vld [vmem:[#allocation9 + $0x298] sm:$0xf]
    %v3842 = vld [vmem:[#allocation9 + $0x29c] sm:$0xf]
    %v3843 = vld [vmem:[#allocation9 + $0x2a0] sm:$0xf]
    %v3844 = vld [vmem:[#allocation9 + $0x2a4] sm:$0xf]
    %v3845 = vld [vmem:[#allocation9 + $0x2a8] sm:$0xf]
    %v3846 = vld [vmem:[#allocation9 + $0x2ac] sm:$0xf]
    %v3847 = vld [vmem:[#allocation9 + $0x2b0] sm:$0xf]
    %v3848 = vld [vmem:[#allocation9 + $0x2b4] sm:$0xf]
    %v3849 = vld [vmem:[#allocation9 + $0x2b8] sm:$0xf]
    %v3850 = vld [vmem:[#allocation9 + $0x2bc] sm:$0xf]
    %v3851 = vld [vmem:[#allocation9 + $0x2c0] sm:$0xf]
    %v3852 = vld [vmem:[#allocation9 + $0x2c4] sm:$0xf]
    %v3853 = vld [vmem:[#allocation9 + $0x2c8] sm:$0xf]
    %v3854 = vld [vmem:[#allocation9 + $0x2cc] sm:$0xf]
    %v3855 = vld [vmem:[#allocation9 + $0x2d0] sm:$0xf]
    %v3856 = vld [vmem:[#allocation9 + $0x2d4] sm:$0xf]
    %v3857 = vld [vmem:[#allocation9 + $0x2d8] sm:$0xf]
    %v3858 = vld [vmem:[#allocation9 + $0x2dc] sm:$0xf]
    %v3859 = vld [vmem:[#allocation9 + $0x2e0] sm:$0xf]
    %v3860 = vld [vmem:[#allocation9 + $0x2e4] sm:$0xf]
    %v3861 = vld [vmem:[#allocation9 + $0x2e8] sm:$0xf]
    %v3862 = vld [vmem:[#allocation9 + $0x2ec] sm:$0xf]
    %v3863 = vld [vmem:[#allocation9 + $0x2f0] sm:$0xf]
    %v3864 = vld [vmem:[#allocation9 + $0x2f4] sm:$0xf]
    %v3865 = vld [vmem:[#allocation9 + $0x2f8] sm:$0xf]
    %v3866 = vld [vmem:[#allocation9 + $0x2fc] sm:$0xf]
    %v3867 = vld [vmem:[#allocation9 + $0x300] sm:$0xf]
    %v3868 = vld [vmem:[#allocation9 + $0x304] sm:$0xf]
    %v3869 = vld [vmem:[#allocation9 + $0x308] sm:$0xf]
    %v3870 = vld [vmem:[#allocation9 + $0x30c] sm:$0xf]
    %v3871 = vld [vmem:[#allocation9 + $0x310] sm:$0xf]
    %v3872 = vld [vmem:[#allocation9 + $0x314] sm:$0xf]
    %v3873 = vld [vmem:[#allocation9 + $0x318] sm:$0xf]
    %v3874 = vld [vmem:[#allocation9 + $0x31c] sm:$0xf]
    %v3875 = vld [vmem:[#allocation9 + $0x320] sm:$0xf]
    %v3876 = vld [vmem:[#allocation9 + $0x324] sm:$0xf]
    %v3877 = vld [vmem:[#allocation9 + $0x328] sm:$0xf]
    %v3878 = vld [vmem:[#allocation9 + $0x32c] sm:$0xf]
    %v3879 = vld [vmem:[#allocation9 + $0x330] sm:$0xf]
    %v3880 = vld [vmem:[#allocation9 + $0x334] sm:$0xf]
    %v3881 = vld [vmem:[#allocation9 + $0x338] sm:$0xf]
    %v3882 = vld [vmem:[#allocation9 + $0x33c] sm:$0xf]
    %v3883 = vld [vmem:[#allocation9 + $0x340] sm:$0xf]
    %v3884 = vld [vmem:[#allocation9 + $0x344] sm:$0xf]
    %v3885 = vld [vmem:[#allocation9 + $0x348] sm:$0xf]
    %v3886 = vld [vmem:[#allocation9 + $0x34c] sm:$0xf]
    %v3887 = vld [vmem:[#allocation9 + $0x350] sm:$0xf]
    %v3888 = vld [vmem:[#allocation9 + $0x354] sm:$0xf]
    %v3889 = vld [vmem:[#allocation9 + $0x358] sm:$0xf]
    %v3890 = vld [vmem:[#allocation9 + $0x35c] sm:$0xf]
    %v3891 = vld [vmem:[#allocation9 + $0x360] sm:$0xf]
    %v3892 = vld [vmem:[#allocation9 + $0x364] sm:$0xf]
    %v3893 = vld [vmem:[#allocation9 + $0x368] sm:$0xf]
    %v3894 = vld [vmem:[#allocation9 + $0x36c] sm:$0xf]
    %v3895 = vld [vmem:[#allocation9 + $0x370] sm:$0xf]
    %v3896 = vld [vmem:[#allocation9 + $0x374] sm:$0xf]
    %v3897 = vld [vmem:[#allocation9 + $0x378] sm:$0xf]
    %v3898 = vld [vmem:[#allocation9 + $0x37c] sm:$0xf]
    %v3899 = vld [vmem:[#allocation9 + $0x380] sm:$0xf]
    %v3900 = vld [vmem:[#allocation9 + $0x384] sm:$0xf]
    %v3901 = vld [vmem:[#allocation9 + $0x388] sm:$0xf]
    %v3902 = vld [vmem:[#allocation9 + $0x38c] sm:$0xf]
    %v3903 = vld [vmem:[#allocation9 + $0x390] sm:$0xf]
    %v3904 = vld [vmem:[#allocation9 + $0x394] sm:$0xf]
    %v3905 = vld [vmem:[#allocation9 + $0x398] sm:$0xf]
    %v3906 = vld [vmem:[#allocation9 + $0x39c] sm:$0xf]
    %v3907 = vld [vmem:[#allocation9 + $0x3a0] sm:$0xf]
    %v3908 = vld [vmem:[#allocation9 + $0x3a4] sm:$0xf]
    %v3909 = vld [vmem:[#allocation9 + $0x3a8] sm:$0xf]
    %v3910 = vld [vmem:[#allocation9 + $0x3ac] sm:$0xf]
    %v3911 = vld [vmem:[#allocation9 + $0x3b0] sm:$0xf]
    %v3912 = vld [vmem:[#allocation9 + $0x3b4] sm:$0xf]
    %v3913 = vld [vmem:[#allocation9 + $0x3b8] sm:$0xf]
    %v3914 = vld [vmem:[#allocation9 + $0x3bc] sm:$0xf]
    %v3915 = vld [vmem:[#allocation9 + $0x3c0] sm:$0xf]
    %v3916 = vld [vmem:[#allocation9 + $0x3c4] sm:$0xf]
    %v3917 = vld [vmem:[#allocation9 + $0x3c8] sm:$0xf]
    %v3918 = vld [vmem:[#allocation9 + $0x3cc] sm:$0xf]
    %v3919 = vld [vmem:[#allocation9 + $0x3d0] sm:$0xf]
    %v3920 = vld [vmem:[#allocation9 + $0x3d4] sm:$0xf]
    %v3921 = vld [vmem:[#allocation9 + $0x3d8] sm:$0xf]
    %v3922 = vld [vmem:[#allocation9 + $0x3dc] sm:$0xf]
    %v3923 = vld [vmem:[#allocation9 + $0x3e0] sm:$0xf]
    %v3924 = vld [vmem:[#allocation9 + $0x3e4] sm:$0xf]
    %v3925 = vld [vmem:[#allocation9 + $0x3e8] sm:$0xf]
    %v3926 = vld [vmem:[#allocation9 + $0x3ec] sm:$0xf]
    %v3927 = vld [vmem:[#allocation9 + $0x3f0] sm:$0xf]
    %v3928 = vld [vmem:[#allocation9 + $0x3f4] sm:$0xf]
    %v3929 = vld [vmem:[#allocation9 + $0x3f8] sm:$0xf]
    %v3930 = vld [vmem:[#allocation9 + $0x3fc] sm:$0xf]
    %v3931 = vld [vmem:[#allocation9 + $0x400] sm:$0xf]
    %v3932 = vld [vmem:[#allocation9 + $0x404] sm:$0xf]
    %v3933 = vld [vmem:[#allocation9 + $0x408] sm:$0xf]
    %v3934 = vld [vmem:[#allocation9 + $0x40c] sm:$0xf]
    %v3935 = vld [vmem:[#allocation9 + $0x410] sm:$0xf]
    %v3936 = vld [vmem:[#allocation9 + $0x414] sm:$0xf]
    %v3937 = vld [vmem:[#allocation9 + $0x418] sm:$0xf]
    %v3938 = vld [vmem:[#allocation9 + $0x41c] sm:$0xf]
    %v3939 = vld [vmem:[#allocation9 + $0x420] sm:$0xf]
    %v3940 = vld [vmem:[#allocation9 + $0x424] sm:$0xf]
    %v3941 = vld [vmem:[#allocation9 + $0x428] sm:$0xf]
    %v3942 = vld [vmem:[#allocation9 + $0x42c] sm:$0xf]
    %v3943 = vld [vmem:[#allocation9 + $0x430] sm:$0xf]
    %v3944 = vld [vmem:[#allocation9 + $0x434] sm:$0xf]
    %v3945 = vld [vmem:[#allocation9 + $0x438] sm:$0xf]
    %v3946 = vld [vmem:[#allocation9 + $0x43c] sm:$0xf]
    %v3947 = vld [vmem:[#allocation9 + $0x440] sm:$0xf]
    %v3948 = vld [vmem:[#allocation9 + $0x444] sm:$0xf]
    %v3949 = vld [vmem:[#allocation9 + $0x448] sm:$0xf]
    %v3950 = vld [vmem:[#allocation9 + $0x44c] sm:$0xf]
    %v3951 = vld [vmem:[#allocation9 + $0x450] sm:$0xf]
    %v3952 = vld [vmem:[#allocation9 + $0x454] sm:$0xf]
    %v3953 = vld [vmem:[#allocation9 + $0x458] sm:$0xf]
    %v3954 = vld [vmem:[#allocation9 + $0x45c] sm:$0xf]
    %v3955 = vld [vmem:[#allocation9 + $0x460] sm:$0xf]
    %v3956 = vld [vmem:[#allocation9 + $0x464] sm:$0xf]
    %v3957 = vld [vmem:[#allocation9 + $0x468] sm:$0xf]
    %v3958 = vld [vmem:[#allocation9 + $0x46c] sm:$0xf]
    %v3959 = vld [vmem:[#allocation9 + $0x470] sm:$0xf]
    %v3960 = vld [vmem:[#allocation9 + $0x474] sm:$0xf]
    %v3961 = vld [vmem:[#allocation9 + $0x478] sm:$0xf]
    %v3962 = vld [vmem:[#allocation9 + $0x47c] sm:$0xf]
    %v3963 = vld [vmem:[#allocation9 + $0x480] sm:$0xf]
    %v3964 = vld [vmem:[#allocation9 + $0x484] sm:$0xf]
    %v3965 = vld [vmem:[#allocation9 + $0x488] sm:$0xf]
    %v3966 = vld [vmem:[#allocation9 + $0x48c] sm:$0xf]
    %v3967 = vld [vmem:[#allocation9 + $0x490] sm:$0xf]
    %v3968 = vld [vmem:[#allocation9 + $0x494] sm:$0xf]
    %v3969 = vld [vmem:[#allocation9 + $0x498] sm:$0xf]
    %v3970 = vld [vmem:[#allocation9 + $0x49c] sm:$0xf]
    %v3971 = vld [vmem:[#allocation9 + $0x4a0] sm:$0xf]
    %v3972 = vld [vmem:[#allocation9 + $0x4a4] sm:$0xf]
    %v3973 = vld [vmem:[#allocation9 + $0x4a8] sm:$0xf]
    %v3974 = vld [vmem:[#allocation9 + $0x4ac] sm:$0xf]
    %v3975 = vld [vmem:[#allocation9 + $0x4b0] sm:$0xf]
    %v3976 = vld [vmem:[#allocation9 + $0x4b4] sm:$0xf]
    %v3977 = vld [vmem:[#allocation9 + $0x4b8] sm:$0xf]
    %v3978 = vld [vmem:[#allocation9 + $0x4bc] sm:$0xf]
    %v3979 = vld [vmem:[#allocation9 + $0x4c0] sm:$0xf]
    %v3980 = vld [vmem:[#allocation9 + $0x4c4] sm:$0xf]
    %v3981 = vld [vmem:[#allocation9 + $0x4c8] sm:$0xf]
    %v3982 = vld [vmem:[#allocation9 + $0x4cc] sm:$0xf]
    %v3983 = vld [vmem:[#allocation9 + $0x4d0] sm:$0xf]
    %v3984 = vld [vmem:[#allocation9 + $0x4d4] sm:$0xf]
    %v3985 = vld [vmem:[#allocation9 + $0x4d8] sm:$0xf]
    %v3986 = vld [vmem:[#allocation9 + $0x4dc] sm:$0xf]
    %v3987 = vld [vmem:[#allocation9 + $0x4e0] sm:$0xf]
    %v3988 = vld [vmem:[#allocation9 + $0x4e4] sm:$0xf]
    %v3989 = vld [vmem:[#allocation9 + $0x4e8] sm:$0xf]
    %v3990 = vld [vmem:[#allocation9 + $0x4ec] sm:$0xf]
    %v3991 = vld [vmem:[#allocation9 + $0x4f0] sm:$0xf]
    %v3992 = vld [vmem:[#allocation9 + $0x4f4] sm:$0xf]
    %v3993 = vld [vmem:[#allocation9 + $0x4f8] sm:$0xf]
    %v3994 = vld [vmem:[#allocation9 + $0x4fc] sm:$0xf]
    %v3995 = vld [vmem:[#allocation9 + $0x500] sm:$0xf]
    %v3996 = vld [vmem:[#allocation9 + $0x504] sm:$0xf]
    %v3997 = vld [vmem:[#allocation9 + $0x508] sm:$0xf]
    %v3998 = vld [vmem:[#allocation9 + $0x50c] sm:$0xf]
    %v3999 = vld [vmem:[#allocation9 + $0x510] sm:$0xf]
    %v4000 = vld [vmem:[#allocation9 + $0x514] sm:$0xf]
    %v4001 = vld [vmem:[#allocation9 + $0x518] sm:$0xf]
    %v4002 = vld [vmem:[#allocation9 + $0x51c] sm:$0xf]
    %v4003 = vld [vmem:[#allocation9 + $0x520] sm:$0xf]
    %v4004 = vld [vmem:[#allocation9 + $0x524] sm:$0xf]
    %v4005 = vld [vmem:[#allocation9 + $0x528] sm:$0xf]
    %v4006 = vld [vmem:[#allocation9 + $0x52c] sm:$0xf]
    %v4007 = vld [vmem:[#allocation9 + $0x530] sm:$0xf]
    %v4008 = vld [vmem:[#allocation9 + $0x534] sm:$0xf]
    %v4009 = vld [vmem:[#allocation9 + $0x538] sm:$0xf]
    %v4010 = vld [vmem:[#allocation9 + $0x53c] sm:$0xf]
    %v4011 = vld [vmem:[#allocation9 + $0x540] sm:$0xf]
    %v4012 = vld [vmem:[#allocation9 + $0x544] sm:$0xf]
    %v4013 = vld [vmem:[#allocation9 + $0x548] sm:$0xf]
    %v4014 = vld [vmem:[#allocation9 + $0x54c] sm:$0xf]
    %v4015 = vld [vmem:[#allocation9 + $0x550] sm:$0xf]
    %v4016 = vld [vmem:[#allocation9 + $0x554] sm:$0xf]
    %v4017 = vld [vmem:[#allocation9 + $0x558] sm:$0xf]
    %v4018 = vld [vmem:[#allocation9 + $0x55c] sm:$0xf]
    %v4019 = vld [vmem:[#allocation9 + $0x560] sm:$0xf]
    %v4020 = vld [vmem:[#allocation9 + $0x564] sm:$0xf]
    %v4021 = vld [vmem:[#allocation9 + $0x568] sm:$0xf]
    %v4022 = vld [vmem:[#allocation9 + $0x56c] sm:$0xf]
    %v4023 = vld [vmem:[#allocation9 + $0x570] sm:$0xf]
    %v4024 = vld [vmem:[#allocation9 + $0x574] sm:$0xf]
    %v4025 = vld [vmem:[#allocation9 + $0x578] sm:$0xf]
    %v4026 = vld [vmem:[#allocation9 + $0x57c] sm:$0xf]
    %v4379 = vunpack.c.l.b16 %v3675
    %v4380 = vunpack.c.l.b16 %v3676
    %v4381 = vunpack.c.l.b16 %v3677
    %v4382 = vunpack.c.l.b16 %v3678
    %v4383 = vunpack.c.l.b16 %v3679
    %v4384 = vunpack.c.l.b16 %v3680
    %v4385 = vunpack.c.l.b16 %v3681
    %v4386 = vunpack.c.l.b16 %v3682
    %v4387 = vunpack.c.l.b16 %v3683
    %v4388 = vunpack.c.l.b16 %v3684
    %v4389 = vunpack.c.l.b16 %v3685
    %v4390 = vunpack.c.l.b16 %v3686
    %v4391 = vunpack.c.l.b16 %v3687
    %v4392 = vunpack.c.l.b16 %v3688
    %v4393 = vunpack.c.l.b16 %v3689
    %v4394 = vunpack.c.l.b16 %v3690
    %v4395 = vunpack.c.l.b16 %v3691
    %v4396 = vunpack.c.l.b16 %v3692
    %v4397 = vunpack.c.l.b16 %v3693
    %v4398 = vunpack.c.l.b16 %v3694
    %v4399 = vunpack.c.l.b16 %v3695
    %v4400 = vunpack.c.l.b16 %v3696
    %v4401 = vunpack.c.l.b16 %v3697
    %v4402 = vunpack.c.l.b16 %v3698
    %v4403 = vunpack.c.l.b16 %v3699
    %v4404 = vunpack.c.l.b16 %v3700
    %v4405 = vunpack.c.l.b16 %v3701
    %v4406 = vunpack.c.l.b16 %v3702
    %v4407 = vunpack.c.l.b16 %v3703
    %v4408 = vunpack.c.l.b16 %v3704
    %v4409 = vunpack.c.l.b16 %v3705
    %v4410 = vunpack.c.l.b16 %v3706
    %v4411 = vunpack.c.l.b16 %v3707
    %v4412 = vunpack.c.l.b16 %v3708
    %v4413 = vunpack.c.l.b16 %v3709
    %v4414 = vunpack.c.l.b16 %v3710
    %v4415 = vunpack.c.l.b16 %v3711
    %v4416 = vunpack.c.l.b16 %v3712
    %v4417 = vunpack.c.l.b16 %v3713
    %v4418 = vunpack.c.l.b16 %v3714
    %v4419 = vunpack.c.l.b16 %v3715
    %v4420 = vunpack.c.l.b16 %v3716
    %v4421 = vunpack.c.l.b16 %v3717
    %v4422 = vunpack.c.l.b16 %v3718
    %v4423 = vunpack.c.l.b16 %v3719
    %v4424 = vunpack.c.l.b16 %v3720
    %v4425 = vunpack.c.l.b16 %v3721
    %v4426 = vunpack.c.l.b16 %v3722
    %v4427 = vunpack.c.l.b16 %v3723
    %v4428 = vunpack.c.l.b16 %v3724
    %v4429 = vunpack.c.l.b16 %v3725
    %v4430 = vunpack.c.l.b16 %v3726
    %v4431 = vunpack.c.l.b16 %v3727
    %v4432 = vunpack.c.l.b16 %v3728
    %v4433 = vunpack.c.l.b16 %v3729
    %v4434 = vunpack.c.l.b16 %v3730
    %v4435 = vunpack.c.l.b16 %v3731
    %v4436 = vunpack.c.l.b16 %v3732
    %v4437 = vunpack.c.l.b16 %v3733
    %v4438 = vunpack.c.l.b16 %v3734
    %v4439 = vunpack.c.l.b16 %v3735
    %v4440 = vunpack.c.l.b16 %v3736
    %v4441 = vunpack.c.l.b16 %v3737
    %v4442 = vunpack.c.l.b16 %v3738
    %v4443 = vunpack.c.l.b16 %v3739
    %v4444 = vunpack.c.l.b16 %v3740
    %v4445 = vunpack.c.l.b16 %v3741
    %v4446 = vunpack.c.l.b16 %v3742
    %v4447 = vunpack.c.l.b16 %v3743
    %v4448 = vunpack.c.l.b16 %v3744
    %v4449 = vunpack.c.l.b16 %v3745
    %v4450 = vunpack.c.l.b16 %v3746
    %v4451 = vunpack.c.l.b16 %v3747
    %v4452 = vunpack.c.l.b16 %v3748
    %v4453 = vunpack.c.l.b16 %v3749
    %v4454 = vunpack.c.l.b16 %v3750
    %v4455 = vunpack.c.l.b16 %v3751
    %v4456 = vunpack.c.l.b16 %v3752
    %v4457 = vunpack.c.l.b16 %v3753
    %v4458 = vunpack.c.l.b16 %v3754
    %v4459 = vunpack.c.l.b16 %v3755
    %v4460 = vunpack.c.l.b16 %v3756
    %v4461 = vunpack.c.l.b16 %v3757
    %v4462 = vunpack.c.l.b16 %v3758
    %v4463 = vunpack.c.l.b16 %v3759
    %v4464 = vunpack.c.l.b16 %v3760
    %v4465 = vunpack.c.l.b16 %v3761
    %v4466 = vunpack.c.l.b16 %v3762
    %v4467 = vunpack.c.l.b16 %v3763
    %v4468 = vunpack.c.l.b16 %v3764
    %v4469 = vunpack.c.l.b16 %v3765
    %v4470 = vunpack.c.l.b16 %v3766
    %v4471 = vunpack.c.l.b16 %v3767
    %v4472 = vunpack.c.l.b16 %v3768
    %v4473 = vunpack.c.l.b16 %v3769
    %v4474 = vunpack.c.l.b16 %v3770
    %v4475 = vunpack.c.l.b16 %v3771
    %v4476 = vunpack.c.l.b16 %v3772
    %v4477 = vunpack.c.l.b16 %v3773
    %v4478 = vunpack.c.l.b16 %v3774
    %v4479 = vunpack.c.l.b16 %v3775
    %v4480 = vunpack.c.l.b16 %v3776
    %v4481 = vunpack.c.l.b16 %v3777
    %v4482 = vunpack.c.l.b16 %v3778
    %v4483 = vunpack.c.l.b16 %v3779
    %v4484 = vunpack.c.l.b16 %v3780
    %v4485 = vunpack.c.l.b16 %v3781
    %v4486 = vunpack.c.l.b16 %v3782
    %v4487 = vunpack.c.l.b16 %v3783
    %v4488 = vunpack.c.l.b16 %v3784
    %v4489 = vunpack.c.l.b16 %v3785
    %v4490 = vunpack.c.l.b16 %v3786
    %v4491 = vunpack.c.l.b16 %v3787
    %v4492 = vunpack.c.l.b16 %v3788
    %v4493 = vunpack.c.l.b16 %v3789
    %v4494 = vunpack.c.l.b16 %v3790
    %v4495 = vunpack.c.l.b16 %v3791
    %v4496 = vunpack.c.l.b16 %v3792
    %v4497 = vunpack.c.l.b16 %v3793
    %v4498 = vunpack.c.l.b16 %v3794
    %v4499 = vunpack.c.l.b16 %v3795
    %v4500 = vunpack.c.l.b16 %v3796
    %v4501 = vunpack.c.l.b16 %v3797
    %v4502 = vunpack.c.l.b16 %v3798
    %v4503 = vunpack.c.l.b16 %v3799
    %v4504 = vunpack.c.l.b16 %v3800
    %v4505 = vunpack.c.l.b16 %v3801
    %v4506 = vunpack.c.l.b16 %v3802
    %v4507 = vunpack.c.l.b16 %v3803
    %v4508 = vunpack.c.l.b16 %v3804
    %v4509 = vunpack.c.l.b16 %v3805
    %v4510 = vunpack.c.l.b16 %v3806
    %v4511 = vunpack.c.l.b16 %v3807
    %v4512 = vunpack.c.l.b16 %v3808
    %v4513 = vunpack.c.l.b16 %v3809
    %v4514 = vunpack.c.l.b16 %v3810
    %v4515 = vunpack.c.l.b16 %v3811
    %v4516 = vunpack.c.l.b16 %v3812
    %v4517 = vunpack.c.l.b16 %v3813
    %v4518 = vunpack.c.l.b16 %v3814
    %v4519 = vunpack.c.l.b16 %v3815
    %v4520 = vunpack.c.l.b16 %v3816
    %v4521 = vunpack.c.l.b16 %v3817
    %v4522 = vunpack.c.l.b16 %v3818
    %v4523 = vunpack.c.l.b16 %v3819
    %v4524 = vunpack.c.l.b16 %v3820
    %v4525 = vunpack.c.l.b16 %v3821
    %v4526 = vunpack.c.l.b16 %v3822
    %v4527 = vunpack.c.l.b16 %v3823
    %v4528 = vunpack.c.l.b16 %v3824
    %v4529 = vunpack.c.l.b16 %v3825
    %v4530 = vunpack.c.l.b16 %v3826
    %v4531 = vunpack.c.l.b16 %v3827
    %v4532 = vunpack.c.l.b16 %v3828
    %v4533 = vunpack.c.l.b16 %v3829
    %v4534 = vunpack.c.l.b16 %v3830
    %v4535 = vunpack.c.l.b16 %v3831
    %v4536 = vunpack.c.l.b16 %v3832
    %v4537 = vunpack.c.l.b16 %v3833
    %v4538 = vunpack.c.l.b16 %v3834
    %v4539 = vunpack.c.l.b16 %v3835
    %v4540 = vunpack.c.l.b16 %v3836
    %v4541 = vunpack.c.l.b16 %v3837
    %v4542 = vunpack.c.l.b16 %v3838
    %v4543 = vunpack.c.l.b16 %v3839
    %v4544 = vunpack.c.l.b16 %v3840
    %v4545 = vunpack.c.l.b16 %v3841
    %v4546 = vunpack.c.l.b16 %v3842
    %v4547 = vunpack.c.l.b16 %v3843
    %v4548 = vunpack.c.l.b16 %v3844
    %v4549 = vunpack.c.l.b16 %v3845
    %v4550 = vunpack.c.l.b16 %v3846
    %v4551 = vunpack.c.l.b16 %v3847
    %v4552 = vunpack.c.l.b16 %v3848
    %v4553 = vunpack.c.l.b16 %v3849
    %v4554 = vunpack.c.l.b16 %v3850
    %v4555 = vunpack.c.l.b16 %v3851
    %v4556 = vunpack.c.l.b16 %v3852
    %v4557 = vunpack.c.l.b16 %v3853
    %v4558 = vunpack.c.l.b16 %v3854
    %v4559 = vunpack.c.l.b16 %v3855
    %v4560 = vunpack.c.l.b16 %v3856
    %v4561 = vunpack.c.l.b16 %v3857
    %v4562 = vunpack.c.l.b16 %v3858
    %v4563 = vunpack.c.l.b16 %v3859
    %v4564 = vunpack.c.l.b16 %v3860
    %v4565 = vunpack.c.l.b16 %v3861
    %v4566 = vunpack.c.l.b16 %v3862
    %v4567 = vunpack.c.l.b16 %v3863
    %v4568 = vunpack.c.l.b16 %v3864
    %v4569 = vunpack.c.l.b16 %v3865
    %v4570 = vunpack.c.l.b16 %v3866
    %v4571 = vunpack.c.l.b16 %v3867
    %v4572 = vunpack.c.l.b16 %v3868
    %v4573 = vunpack.c.l.b16 %v3869
    %v4574 = vunpack.c.l.b16 %v3870
    %v4575 = vunpack.c.l.b16 %v3871
    %v4576 = vunpack.c.l.b16 %v3872
    %v4577 = vunpack.c.l.b16 %v3873
    %v4578 = vunpack.c.l.b16 %v3874
    %v4579 = vunpack.c.l.b16 %v3875
    %v4580 = vunpack.c.l.b16 %v3876
    %v4581 = vunpack.c.l.b16 %v3877
    %v4582 = vunpack.c.l.b16 %v3878
    %v4583 = vunpack.c.l.b16 %v3879
    %v4584 = vunpack.c.l.b16 %v3880
    %v4585 = vunpack.c.l.b16 %v3881
    %v4586 = vunpack.c.l.b16 %v3882
    %v4587 = vunpack.c.l.b16 %v3883
    %v4588 = vunpack.c.l.b16 %v3884
    %v4589 = vunpack.c.l.b16 %v3885
    %v4590 = vunpack.c.l.b16 %v3886
    %v4591 = vunpack.c.l.b16 %v3887
    %v4592 = vunpack.c.l.b16 %v3888
    %v4593 = vunpack.c.l.b16 %v3889
    %v4594 = vunpack.c.l.b16 %v3890
    %v4595 = vunpack.c.l.b16 %v3891
    %v4596 = vunpack.c.l.b16 %v3892
    %v4597 = vunpack.c.l.b16 %v3893
    %v4598 = vunpack.c.l.b16 %v3894
    %v4599 = vunpack.c.l.b16 %v3895
    %v4600 = vunpack.c.l.b16 %v3896
    %v4601 = vunpack.c.l.b16 %v3897
    %v4602 = vunpack.c.l.b16 %v3898
    %v4603 = vunpack.c.l.b16 %v3899
    %v4604 = vunpack.c.l.b16 %v3900
    %v4605 = vunpack.c.l.b16 %v3901
    %v4606 = vunpack.c.l.b16 %v3902
    %v4607 = vunpack.c.l.b16 %v3903
    %v4608 = vunpack.c.l.b16 %v3904
    %v4609 = vunpack.c.l.b16 %v3905
    %v4610 = vunpack.c.l.b16 %v3906
    %v4611 = vunpack.c.l.b16 %v3907
    %v4612 = vunpack.c.l.b16 %v3908
    %v4613 = vunpack.c.l.b16 %v3909
    %v4614 = vunpack.c.l.b16 %v3910
    %v4615 = vunpack.c.l.b16 %v3911
    %v4616 = vunpack.c.l.b16 %v3912
    %v4617 = vunpack.c.l.b16 %v3913
    %v4618 = vunpack.c.l.b16 %v3914
    %v4619 = vunpack.c.l.b16 %v3915
    %v4620 = vunpack.c.l.b16 %v3916
    %v4621 = vunpack.c.l.b16 %v3917
    %v4622 = vunpack.c.l.b16 %v3918
    %v4623 = vunpack.c.l.b16 %v3919
    %v4624 = vunpack.c.l.b16 %v3920
    %v4625 = vunpack.c.l.b16 %v3921
    %v4626 = vunpack.c.l.b16 %v3922
    %v4627 = vunpack.c.l.b16 %v3923
    %v4628 = vunpack.c.l.b16 %v3924
    %v4629 = vunpack.c.l.b16 %v3925
    %v4630 = vunpack.c.l.b16 %v3926
    %v4631 = vunpack.c.l.b16 %v3927
    %v4632 = vunpack.c.l.b16 %v3928
    %v4633 = vunpack.c.l.b16 %v3929
    %v4634 = vunpack.c.l.b16 %v3930
    %v4635 = vunpack.c.l.b16 %v3931
    %v4636 = vunpack.c.l.b16 %v3932
    %v4637 = vunpack.c.l.b16 %v3933
    %v4638 = vunpack.c.l.b16 %v3934
    %v4639 = vunpack.c.l.b16 %v3935
    %v4640 = vunpack.c.l.b16 %v3936
    %v4641 = vunpack.c.l.b16 %v3937
    %v4642 = vunpack.c.l.b16 %v3938
    %v4643 = vunpack.c.l.b16 %v3939
    %v4644 = vunpack.c.l.b16 %v3940
    %v4645 = vunpack.c.l.b16 %v3941
    %v4646 = vunpack.c.l.b16 %v3942
    %v4647 = vunpack.c.l.b16 %v3943
    %v4648 = vunpack.c.l.b16 %v3944
    %v4649 = vunpack.c.l.b16 %v3945
    %v4650 = vunpack.c.l.b16 %v3946
    %v4651 = vunpack.c.l.b16 %v3947
    %v4652 = vunpack.c.l.b16 %v3948
    %v4653 = vunpack.c.l.b16 %v3949
    %v4654 = vunpack.c.l.b16 %v3950
    %v4655 = vunpack.c.l.b16 %v3951
    %v4656 = vunpack.c.l.b16 %v3952
    %v4657 = vunpack.c.l.b16 %v3953
    %v4658 = vunpack.c.l.b16 %v3954
    %v4659 = vunpack.c.l.b16 %v3955
    %v4660 = vunpack.c.l.b16 %v3956
    %v4661 = vunpack.c.l.b16 %v3957
    %v4662 = vunpack.c.l.b16 %v3958
    %v4663 = vunpack.c.l.b16 %v3959
    %v4664 = vunpack.c.l.b16 %v3960
    %v4665 = vunpack.c.l.b16 %v3961
    %v4666 = vunpack.c.l.b16 %v3962
    %v4667 = vunpack.c.l.b16 %v3963
    %v4668 = vunpack.c.l.b16 %v3964
    %v4669 = vunpack.c.l.b16 %v3965
    %v4670 = vunpack.c.l.b16 %v3966
    %v4671 = vunpack.c.l.b16 %v3967
    %v4672 = vunpack.c.l.b16 %v3968
    %v4673 = vunpack.c.l.b16 %v3969
    %v4674 = vunpack.c.l.b16 %v3970
    %v4675 = vunpack.c.l.b16 %v3971
    %v4676 = vunpack.c.l.b16 %v3972
    %v4677 = vunpack.c.l.b16 %v3973
    %v4678 = vunpack.c.l.b16 %v3974
    %v4679 = vunpack.c.l.b16 %v3975
    %v4680 = vunpack.c.l.b16 %v3976
    %v4681 = vunpack.c.l.b16 %v3977
    %v4682 = vunpack.c.l.b16 %v3978
    %v4683 = vunpack.c.l.b16 %v3979
    %v4684 = vunpack.c.l.b16 %v3980
    %v4685 = vunpack.c.l.b16 %v3981
    %v4686 = vunpack.c.l.b16 %v3982
    %v4687 = vunpack.c.l.b16 %v3983
    %v4688 = vunpack.c.l.b16 %v3984
    %v4689 = vunpack.c.l.b16 %v3985
    %v4690 = vunpack.c.l.b16 %v3986
    %v4691 = vunpack.c.l.b16 %v3987
    %v4692 = vunpack.c.l.b16 %v3988
    %v4693 = vunpack.c.l.b16 %v3989
    %v4694 = vunpack.c.l.b16 %v3990
    %v4695 = vunpack.c.l.b16 %v3991
    %v4696 = vunpack.c.l.b16 %v3992
    %v4697 = vunpack.c.l.b16 %v3993
    %v4698 = vunpack.c.l.b16 %v3994
    %v4699 = vunpack.c.l.b16 %v3995
    %v4700 = vunpack.c.l.b16 %v3996
    %v4701 = vunpack.c.l.b16 %v3997
    %v4702 = vunpack.c.l.b16 %v3998
    %v4703 = vunpack.c.l.b16 %v3999
    %v4704 = vunpack.c.l.b16 %v4000
    %v4705 = vunpack.c.l.b16 %v4001
    %v4706 = vunpack.c.l.b16 %v4002
    %v4707 = vunpack.c.l.b16 %v4003
    %v4708 = vunpack.c.l.b16 %v4004
    %v4709 = vunpack.c.l.b16 %v4005
    %v4710 = vunpack.c.l.b16 %v4006
    %v4711 = vunpack.c.l.b16 %v4007
    %v4712 = vunpack.c.l.b16 %v4008
    %v4713 = vunpack.c.l.b16 %v4009
    %v4714 = vunpack.c.l.b16 %v4010
    %v4715 = vunpack.c.l.b16 %v4011
    %v4716 = vunpack.c.l.b16 %v4012
    %v4717 = vunpack.c.l.b16 %v4013
    %v4718 = vunpack.c.l.b16 %v4014
    %v4719 = vunpack.c.l.b16 %v4015
    %v4720 = vunpack.c.l.b16 %v4016
    %v4721 = vunpack.c.l.b16 %v4017
    %v4722 = vunpack.c.l.b16 %v4018
    %v4723 = vunpack.c.l.b16 %v4019
    %v4724 = vunpack.c.l.b16 %v4020
    %v4725 = vunpack.c.l.b16 %v4021
    %v4726 = vunpack.c.l.b16 %v4022
    %v4727 = vunpack.c.l.b16 %v4023
    %v4728 = vunpack.c.l.b16 %v4024
    %v4729 = vunpack.c.l.b16 %v4025
    %v4730 = vunpack.c.l.b16 %v4026
    %v4731 = vpack.c.b16 %v4380, %v4379
    %v4732 = vpack.c.b16 %v4382, %v4381
    %v4733 = vpack.c.b16 %v4384, %v4383
    %v4734 = vpack.c.b16 %v4386, %v4385
    %v4735 = vpack.c.b16 %v4388, %v4387
    %v4736 = vpack.c.b16 %v4390, %v4389
    %v4737 = vpack.c.b16 %v4392, %v4391
    %v4738 = vpack.c.b16 %v4394, %v4393
    %v4739 = vpack.c.b16 %v4396, %v4395
    %v4740 = vpack.c.b16 %v4398, %v4397
    %v4741 = vpack.c.b16 %v4400, %v4399
    %v4742 = vpack.c.b16 %v4402, %v4401
    %v4743 = vpack.c.b16 %v4404, %v4403
    %v4744 = vpack.c.b16 %v4406, %v4405
    %v4745 = vpack.c.b16 %v4408, %v4407
    %v4746 = vpack.c.b16 %v4410, %v4409
    %v4747 = vpack.c.b16 %v4412, %v4411
    %v4748 = vpack.c.b16 %v4414, %v4413
    %v4749 = vpack.c.b16 %v4416, %v4415
    %v4750 = vpack.c.b16 %v4418, %v4417
    %v4751 = vpack.c.b16 %v4420, %v4419
    %v4752 = vpack.c.b16 %v4422, %v4421
    %v4753 = vpack.c.b16 %v4424, %v4423
    %v4754 = vpack.c.b16 %v4426, %v4425
    %v4755 = vpack.c.b16 %v4428, %v4427
    %v4756 = vpack.c.b16 %v4430, %v4429
    %v4757 = vpack.c.b16 %v4432, %v4431
    %v4758 = vpack.c.b16 %v4434, %v4433
    %v4759 = vpack.c.b16 %v4436, %v4435
    %v4760 = vpack.c.b16 %v4438, %v4437
    %v4761 = vpack.c.b16 %v4440, %v4439
    %v4762 = vpack.c.b16 %v4442, %v4441
    %v4763 = vpack.c.b16 %v4444, %v4443
    %v4764 = vpack.c.b16 %v4446, %v4445
    %v4765 = vpack.c.b16 %v4448, %v4447
    %v4766 = vpack.c.b16 %v4450, %v4449
    %v4767 = vpack.c.b16 %v4452, %v4451
    %v4768 = vpack.c.b16 %v4454, %v4453
    %v4769 = vpack.c.b16 %v4456, %v4455
    %v4770 = vpack.c.b16 %v4458, %v4457
    %v4771 = vpack.c.b16 %v4460, %v4459
    %v4772 = vpack.c.b16 %v4462, %v4461
    %v4773 = vpack.c.b16 %v4464, %v4463
    %v4774 = vpack.c.b16 %v4466, %v4465
    %v4775 = vpack.c.b16 %v4468, %v4467
    %v4776 = vpack.c.b16 %v4470, %v4469
    %v4777 = vpack.c.b16 %v4472, %v4471
    %v4778 = vpack.c.b16 %v4474, %v4473
    %v4779 = vpack.c.b16 %v4476, %v4475
    %v4780 = vpack.c.b16 %v4478, %v4477
    %v4781 = vpack.c.b16 %v4480, %v4479
    %v4782 = vpack.c.b16 %v4482, %v4481
    %v4783 = vpack.c.b16 %v4484, %v4483
    %v4784 = vpack.c.b16 %v4486, %v4485
    %v4785 = vpack.c.b16 %v4488, %v4487
    %v4786 = vpack.c.b16 %v4490, %v4489
    %v4787 = vpack.c.b16 %v4492, %v4491
    %v4788 = vpack.c.b16 %v4494, %v4493
    %v4789 = vpack.c.b16 %v4496, %v4495
    %v4790 = vpack.c.b16 %v4498, %v4497
    %v4791 = vpack.c.b16 %v4500, %v4499
    %v4792 = vpack.c.b16 %v4502, %v4501
    %v4793 = vpack.c.b16 %v4504, %v4503
    %v4794 = vpack.c.b16 %v4506, %v4505
    %v4795 = vpack.c.b16 %v4508, %v4507
    %v4796 = vpack.c.b16 %v4510, %v4509
    %v4797 = vpack.c.b16 %v4512, %v4511
    %v4798 = vpack.c.b16 %v4514, %v4513
    %v4799 = vpack.c.b16 %v4516, %v4515
    %v4800 = vpack.c.b16 %v4518, %v4517
    %v4801 = vpack.c.b16 %v4520, %v4519
    %v4802 = vpack.c.b16 %v4522, %v4521
    %v4803 = vpack.c.b16 %v4524, %v4523
    %v4804 = vpack.c.b16 %v4526, %v4525
    %v4805 = vpack.c.b16 %v4528, %v4527
    %v4806 = vpack.c.b16 %v4530, %v4529
    %v4807 = vpack.c.b16 %v4532, %v4531
    %v4808 = vpack.c.b16 %v4534, %v4533
    %v4809 = vpack.c.b16 %v4536, %v4535
    %v4810 = vpack.c.b16 %v4538, %v4537
    %v4811 = vpack.c.b16 %v4540, %v4539
    %v4812 = vpack.c.b16 %v4542, %v4541
    %v4813 = vpack.c.b16 %v4544, %v4543
    %v4814 = vpack.c.b16 %v4546, %v4545
    %v4815 = vpack.c.b16 %v4548, %v4547
    %v4816 = vpack.c.b16 %v4550, %v4549
    %v4817 = vpack.c.b16 %v4552, %v4551
    %v4818 = vpack.c.b16 %v4554, %v4553
    %v4819 = vpack.c.b16 %v4556, %v4555
    %v4820 = vpack.c.b16 %v4558, %v4557
    %v4821 = vpack.c.b16 %v4560, %v4559
    %v4822 = vpack.c.b16 %v4562, %v4561
    %v4823 = vpack.c.b16 %v4564, %v4563
    %v4824 = vpack.c.b16 %v4566, %v4565
    %v4825 = vpack.c.b16 %v4568, %v4567
    %v4826 = vpack.c.b16 %v4570, %v4569
    %v4827 = vpack.c.b16 %v4572, %v4571
    %v4828 = vpack.c.b16 %v4574, %v4573
    %v4829 = vpack.c.b16 %v4576, %v4575
    %v4830 = vpack.c.b16 %v4578, %v4577
    %v4831 = vpack.c.b16 %v4580, %v4579
    %v4832 = vpack.c.b16 %v4582, %v4581
    %v4833 = vpack.c.b16 %v4584, %v4583
    %v4834 = vpack.c.b16 %v4586, %v4585
    %v4835 = vpack.c.b16 %v4588, %v4587
    %v4836 = vpack.c.b16 %v4590, %v4589
    %v4837 = vpack.c.b16 %v4592, %v4591
    %v4838 = vpack.c.b16 %v4594, %v4593
    %v4839 = vpack.c.b16 %v4596, %v4595
    %v4840 = vpack.c.b16 %v4598, %v4597
    %v4841 = vpack.c.b16 %v4600, %v4599
    %v4842 = vpack.c.b16 %v4602, %v4601
    %v4843 = vpack.c.b16 %v4604, %v4603
    %v4844 = vpack.c.b16 %v4606, %v4605
    %v4845 = vpack.c.b16 %v4608, %v4607
    %v4846 = vpack.c.b16 %v4610, %v4609
    %v4847 = vpack.c.b16 %v4612, %v4611
    %v4848 = vpack.c.b16 %v4614, %v4613
    %v4849 = vpack.c.b16 %v4616, %v4615
    %v4850 = vpack.c.b16 %v4618, %v4617
    %v4851 = vpack.c.b16 %v4620, %v4619
    %v4852 = vpack.c.b16 %v4622, %v4621
    %v4853 = vpack.c.b16 %v4624, %v4623
    %v4854 = vpack.c.b16 %v4626, %v4625
    %v4855 = vpack.c.b16 %v4628, %v4627
    %v4856 = vpack.c.b16 %v4630, %v4629
    %v4857 = vpack.c.b16 %v4632, %v4631
    %v4858 = vpack.c.b16 %v4634, %v4633
    %v4859 = vpack.c.b16 %v4636, %v4635
    %v4860 = vpack.c.b16 %v4638, %v4637
    %v4861 = vpack.c.b16 %v4640, %v4639
    %v4862 = vpack.c.b16 %v4642, %v4641
    %v4863 = vpack.c.b16 %v4644, %v4643
    %v4864 = vpack.c.b16 %v4646, %v4645
    %v4865 = vpack.c.b16 %v4648, %v4647
    %v4866 = vpack.c.b16 %v4650, %v4649
    %v4867 = vpack.c.b16 %v4652, %v4651
    %v4868 = vpack.c.b16 %v4654, %v4653
    %v4869 = vpack.c.b16 %v4656, %v4655
    %v4870 = vpack.c.b16 %v4658, %v4657
    %v4871 = vpack.c.b16 %v4660, %v4659
    %v4872 = vpack.c.b16 %v4662, %v4661
    %v4873 = vpack.c.b16 %v4664, %v4663
    %v4874 = vpack.c.b16 %v4666, %v4665
    %v4875 = vpack.c.b16 %v4668, %v4667
    %v4876 = vpack.c.b16 %v4670, %v4669
    %v4877 = vpack.c.b16 %v4672, %v4671
    %v4878 = vpack.c.b16 %v4674, %v4673
    %v4879 = vpack.c.b16 %v4676, %v4675
    %v4880 = vpack.c.b16 %v4678, %v4677
    %v4881 = vpack.c.b16 %v4680, %v4679
    %v4882 = vpack.c.b16 %v4682, %v4681
    %v4883 = vpack.c.b16 %v4684, %v4683
    %v4884 = vpack.c.b16 %v4686, %v4685
    %v4885 = vpack.c.b16 %v4688, %v4687
    %v4886 = vpack.c.b16 %v4690, %v4689
    %v4887 = vpack.c.b16 %v4692, %v4691
    %v4888 = vpack.c.b16 %v4694, %v4693
    %v4889 = vpack.c.b16 %v4696, %v4695
    %v4890 = vpack.c.b16 %v4698, %v4697
    %v4891 = vpack.c.b16 %v4700, %v4699
    %v4892 = vpack.c.b16 %v4702, %v4701
    %v4893 = vpack.c.b16 %v4704, %v4703
    %v4894 = vpack.c.b16 %v4706, %v4705
    %v4895 = vpack.c.b16 %v4708, %v4707
    %v4896 = vpack.c.b16 %v4710, %v4709
    %v4897 = vpack.c.b16 %v4712, %v4711
    %v4898 = vpack.c.b16 %v4714, %v4713
    %v4899 = vpack.c.b16 %v4716, %v4715
    %v4900 = vpack.c.b16 %v4718, %v4717
    %v4901 = vpack.c.b16 %v4720, %v4719
    %v4902 = vpack.c.b16 %v4722, %v4721
    %v4903 = vpack.c.b16 %v4724, %v4723
    %v4904 = vpack.c.b16 %v4726, %v4725
    %v4905 = vpack.c.b16 %v4728, %v4727
    %v4906 = vpack.c.b16 %v4730, %v4729
    %5083 = vmatpush.bf16.msra.mxu0 %v4738
    %5084 = vmatpush.bf16.msra.mxu0 %v4737
    %5085 = vmatpush.bf16.msra.mxu0 %v4736
    %5086 = vmatpush.bf16.msra.mxu0 %v4735
    %5087 = vmatpush.bf16.msra.mxu0 %v4734
    %5088 = vmatpush.bf16.msra.mxu0 %v4733
    %5089 = vmatpush.bf16.msra.mxu0 %v4732
    %5090 = vmatpush.bf16.msra.mxu0 %v4731
    %5091 = vmatmul.bf16.gmra.mxu0 %v3653
    %v5092 = vpop.f32.mrf.mxu0
    %v5093 = vadd.f32 0.0, %v5092
    %v5094 = vpop.f32.mrf.mxu0
    %v5095 = vadd.f32 0.0, %v5094
    %5096 = vdwg.mxu0
    %5097 = vmatpush.bf16.msra.mxu0 %v4746
    %5098 = vmatpush.bf16.msra.mxu0 %v4745
    %5099 = vmatpush.bf16.msra.mxu0 %v4744
    %5100 = vmatpush.bf16.msra.mxu0 %v4743
    %5101 = vmatpush.bf16.msra.mxu0 %v4742
    %5102 = vmatpush.bf16.msra.mxu0 %v4741
    %5103 = vmatpush.bf16.msra.mxu0 %v4740
    %5104 = vmatpush.bf16.msra.mxu0 %v4739
    %5105 = vmatmul.bf16.gmra.mxu0 %v3654
    %v5106 = vpop.f32.mrf.mxu0
    %v5107 = vadd.f32 %v5093, %v5106
    %v5108 = vpop.f32.mrf.mxu0
    %v5109 = vadd.f32 %v5095, %v5108
    %5110 = vdwg.mxu0
    %5111 = vmatpush.bf16.msra.mxu0 %v4754
    %5112 = vmatpush.bf16.msra.mxu0 %v4753
    %5113 = vmatpush.bf16.msra.mxu0 %v4752
    %5114 = vmatpush.bf16.msra.mxu0 %v4751
    %5115 = vmatpush.bf16.msra.mxu0 %v4750
    %5116 = vmatpush.bf16.msra.mxu0 %v4749
    %5117 = vmatpush.bf16.msra.mxu0 %v4748
    %5118 = vmatpush.bf16.msra.mxu0 %v4747
    %5119 = vmatmul.bf16.gmra.mxu0 %v3655
    %v5120 = vpop.f32.mrf.mxu0
    %v5121 = vadd.f32 %v5107, %v5120
    %v5122 = vpop.f32.mrf.mxu0
    %v5123 = vadd.f32 %v5109, %v5122
    %5124 = vdwg.mxu0
    %5125 = vmatpush.bf16.msra.mxu0 %v4762
    %5126 = vmatpush.bf16.msra.mxu0 %v4761
    %5127 = vmatpush.bf16.msra.mxu0 %v4760
    %5128 = vmatpush.bf16.msra.mxu0 %v4759
    %5129 = vmatpush.bf16.msra.mxu0 %v4758
    %5130 = vmatpush.bf16.msra.mxu0 %v4757
    %5131 = vmatpush.bf16.msra.mxu0 %v4756
    %5132 = vmatpush.bf16.msra.mxu0 %v4755
    %5133 = vmatmul.bf16.gmra.mxu0 %v3656
    %v5134 = vpop.f32.mrf.mxu0
    %v5135 = vadd.f32 %v5121, %v5134
    %v5136 = vpop.f32.mrf.mxu0
    %v5137 = vadd.f32 %v5123, %v5136
    %5138 = vdwg.mxu0
    %5139 = vmatpush.bf16.msra.mxu0 %v4770
    %5140 = vmatpush.bf16.msra.mxu0 %v4769
    %5141 = vmatpush.bf16.msra.mxu0 %v4768
    %5142 = vmatpush.bf16.msra.mxu0 %v4767
    %5143 = vmatpush.bf16.msra.mxu0 %v4766
    %5144 = vmatpush.bf16.msra.mxu0 %v4765
    %5145 = vmatpush.bf16.msra.mxu0 %v4764
    %5146 = vmatpush.bf16.msra.mxu0 %v4763
    %5147 = vmatmul.bf16.gmra.mxu0 %v3657
    %v5148 = vpop.f32.mrf.mxu0
    %v5149 = vadd.f32 %v5135, %v5148
    %v5150 = vpop.f32.mrf.mxu0
    %v5151 = vadd.f32 %v5137, %v5150
    %5152 = vdwg.mxu0
    %5153 = vmatpush.bf16.msra.mxu0 %v4778
    %5154 = vmatpush.bf16.msra.mxu0 %v4777
    %5155 = vmatpush.bf16.msra.mxu0 %v4776
    %5156 = vmatpush.bf16.msra.mxu0 %v4775
    %5157 = vmatpush.bf16.msra.mxu0 %v4774
    %5158 = vmatpush.bf16.msra.mxu0 %v4773
    %5159 = vmatpush.bf16.msra.mxu0 %v4772
    %5160 = vmatpush.bf16.msra.mxu0 %v4771
    %5161 = vmatmul.bf16.gmra.mxu0 %v3658
    %v5162 = vpop.f32.mrf.mxu0
    %v5163 = vadd.f32 %v5149, %v5162
    %v5164 = vpop.f32.mrf.mxu0
    %v5165 = vadd.f32 %v5151, %v5164
    %5166 = vdwg.mxu0
    %5167 = vmatpush.bf16.msra.mxu0 %v4786
    %5168 = vmatpush.bf16.msra.mxu0 %v4785
    %5169 = vmatpush.bf16.msra.mxu0 %v4784
    %5170 = vmatpush.bf16.msra.mxu0 %v4783
    %5171 = vmatpush.bf16.msra.mxu0 %v4782
    %5172 = vmatpush.bf16.msra.mxu0 %v4781
    %5173 = vmatpush.bf16.msra.mxu0 %v4780
    %5174 = vmatpush.bf16.msra.mxu0 %v4779
    %5175 = vmatmul.bf16.gmra.mxu0 %v3659
    %v5176 = vpop.f32.mrf.mxu0
    %v5177 = vadd.f32 %v5163, %v5176
    %v5178 = vpop.f32.mrf.mxu0
    %v5179 = vadd.f32 %v5165, %v5178
    %5180 = vdwg.mxu0
    %5181 = vmatpush.bf16.msra.mxu0 %v4794
    %5182 = vmatpush.bf16.msra.mxu0 %v4793
    %5183 = vmatpush.bf16.msra.mxu0 %v4792
    %5184 = vmatpush.bf16.msra.mxu0 %v4791
    %5185 = vmatpush.bf16.msra.mxu0 %v4790
    %5186 = vmatpush.bf16.msra.mxu0 %v4789
    %5187 = vmatpush.bf16.msra.mxu0 %v4788
    %5188 = vmatpush.bf16.msra.mxu0 %v4787
    %5189 = vmatmul.bf16.gmra.mxu0 %v3660
    %v5190 = vpop.f32.mrf.mxu0
    %v5191 = vadd.f32 %v5177, %v5190
    %v5192 = vpop.f32.mrf.mxu0
    %v5193 = vadd.f32 %v5179, %v5192
    %5194 = vdwg.mxu0
    %5195 = vmatpush.bf16.msra.mxu0 %v4802
    %5196 = vmatpush.bf16.msra.mxu0 %v4801
    %5197 = vmatpush.bf16.msra.mxu0 %v4800
    %5198 = vmatpush.bf16.msra.mxu0 %v4799
    %5199 = vmatpush.bf16.msra.mxu0 %v4798
    %5200 = vmatpush.bf16.msra.mxu0 %v4797
    %5201 = vmatpush.bf16.msra.mxu0 %v4796
    %5202 = vmatpush.bf16.msra.mxu0 %v4795
    %5203 = vmatmul.bf16.gmra.mxu0 %v3661
    %v5204 = vpop.f32.mrf.mxu0
    %v5205 = vadd.f32 %v5191, %v5204
    %v5206 = vpop.f32.mrf.mxu0
    %v5207 = vadd.f32 %v5193, %v5206
    %5208 = vdwg.mxu0
    %5209 = vmatpush.bf16.msra.mxu0 %v4810
    %5210 = vmatpush.bf16.msra.mxu0 %v4809
    %5211 = vmatpush.bf16.msra.mxu0 %v4808
    %5212 = vmatpush.bf16.msra.mxu0 %v4807
    %5213 = vmatpush.bf16.msra.mxu0 %v4806
    %5214 = vmatpush.bf16.msra.mxu0 %v4805
    %5215 = vmatpush.bf16.msra.mxu0 %v4804
    %5216 = vmatpush.bf16.msra.mxu0 %v4803
    %5217 = vmatmul.bf16.gmra.mxu0 %v3662
    %v5218 = vpop.f32.mrf.mxu0
    %v5219 = vadd.f32 %v5205, %v5218
    %v5220 = vpop.f32.mrf.mxu0
    %v5221 = vadd.f32 %v5207, %v5220
    %5222 = vdwg.mxu0
    %5223 = vmatpush.bf16.msra.mxu0 %v4818
    %5224 = vmatpush.bf16.msra.mxu0 %v4817
    %5225 = vmatpush.bf16.msra.mxu0 %v4816
    %5226 = vmatpush.bf16.msra.mxu0 %v4815
    %5227 = vmatpush.bf16.msra.mxu0 %v4814
    %5228 = vmatpush.bf16.msra.mxu0 %v4813
    %5229 = vmatpush.bf16.msra.mxu0 %v4812
    %5230 = vmatpush.bf16.msra.mxu0 %v4811
    %5231 = vmatmul.bf16.gmra.mxu0 %v3663
    %v5232 = vpop.f32.mrf.mxu0
    %v5233 = vadd.f32 %v5219, %v5232
    %v5234 = vpop.f32.mrf.mxu0
    %v5235 = vadd.f32 %v5221, %v5234
    %5236 = vdwg.mxu0
    %5237 = vmatpush.bf16.msra.mxu0 %v4826
    %5238 = vmatpush.bf16.msra.mxu0 %v4825
    %5239 = vmatpush.bf16.msra.mxu0 %v4824
    %5240 = vmatpush.bf16.msra.mxu0 %v4823
    %5241 = vmatpush.bf16.msra.mxu0 %v4822
    %5242 = vmatpush.bf16.msra.mxu0 %v4821
    %5243 = vmatpush.bf16.msra.mxu0 %v4820
    %5244 = vmatpush.bf16.msra.mxu0 %v4819
    %5245 = vmatmul.bf16.gmra.mxu0 %v3664
    %v5246 = vpop.f32.mrf.mxu0
    %v5247 = vadd.f32 %v5233, %v5246
    %v5248 = vpop.f32.mrf.mxu0
    %v5249 = vadd.f32 %v5235, %v5248
    %5250 = vdwg.mxu0
    %5251 = vmatpush.bf16.msra.mxu0 %v4834
    %5252 = vmatpush.bf16.msra.mxu0 %v4833
    %5253 = vmatpush.bf16.msra.mxu0 %v4832
    %5254 = vmatpush.bf16.msra.mxu0 %v4831
    %5255 = vmatpush.bf16.msra.mxu0 %v4830
    %5256 = vmatpush.bf16.msra.mxu0 %v4829
    %5257 = vmatpush.bf16.msra.mxu0 %v4828
    %5258 = vmatpush.bf16.msra.mxu0 %v4827
    %5259 = vmatmul.bf16.gmra.mxu0 %v3665
    %v5260 = vpop.f32.mrf.mxu0
    %v5261 = vadd.f32 %v5247, %v5260
    %v5262 = vpop.f32.mrf.mxu0
    %v5263 = vadd.f32 %v5249, %v5262
    %5264 = vdwg.mxu0
    %5265 = vmatpush.bf16.msra.mxu0 %v4842
    %5266 = vmatpush.bf16.msra.mxu0 %v4841
    %5267 = vmatpush.bf16.msra.mxu0 %v4840
    %5268 = vmatpush.bf16.msra.mxu0 %v4839
    %5269 = vmatpush.bf16.msra.mxu0 %v4838
    %5270 = vmatpush.bf16.msra.mxu0 %v4837
    %5271 = vmatpush.bf16.msra.mxu0 %v4836
    %5272 = vmatpush.bf16.msra.mxu0 %v4835
    %5273 = vmatmul.bf16.gmra.mxu0 %v3666
    %v5274 = vpop.f32.mrf.mxu0
    %v5275 = vadd.f32 %v5261, %v5274
    %v5276 = vpop.f32.mrf.mxu0
    %v5277 = vadd.f32 %v5263, %v5276
    %5278 = vdwg.mxu0
    %5279 = vmatpush.bf16.msra.mxu0 %v4850
    %5280 = vmatpush.bf16.msra.mxu0 %v4849
    %5281 = vmatpush.bf16.msra.mxu0 %v4848
    %5282 = vmatpush.bf16.msra.mxu0 %v4847
    %5283 = vmatpush.bf16.msra.mxu0 %v4846
    %5284 = vmatpush.bf16.msra.mxu0 %v4845
    %5285 = vmatpush.bf16.msra.mxu0 %v4844
    %5286 = vmatpush.bf16.msra.mxu0 %v4843
    %5287 = vmatmul.bf16.gmra.mxu0 %v3667
    %v5288 = vpop.f32.mrf.mxu0
    %v5289 = vadd.f32 %v5275, %v5288
    %v5290 = vpop.f32.mrf.mxu0
    %v5291 = vadd.f32 %v5277, %v5290
    %5292 = vdwg.mxu0
    %5293 = vmatpush.bf16.msra.mxu0 %v4858
    %5294 = vmatpush.bf16.msra.mxu0 %v4857
    %5295 = vmatpush.bf16.msra.mxu0 %v4856
    %5296 = vmatpush.bf16.msra.mxu0 %v4855
    %5297 = vmatpush.bf16.msra.mxu0 %v4854
    %5298 = vmatpush.bf16.msra.mxu0 %v4853
    %5299 = vmatpush.bf16.msra.mxu0 %v4852
    %5300 = vmatpush.bf16.msra.mxu0 %v4851
    %5301 = vmatmul.bf16.gmra.mxu0 %v3668
    %v5302 = vpop.f32.mrf.mxu0
    %v5303 = vadd.f32 %v5289, %v5302
    %v5304 = vpop.f32.mrf.mxu0
    %v5305 = vadd.f32 %v5291, %v5304
    %5306 = vdwg.mxu0
    %5307 = vmatpush.bf16.msra.mxu0 %v4866
    %5308 = vmatpush.bf16.msra.mxu0 %v4865
    %5309 = vmatpush.bf16.msra.mxu0 %v4864
    %5310 = vmatpush.bf16.msra.mxu0 %v4863
    %5311 = vmatpush.bf16.msra.mxu0 %v4862
    %5312 = vmatpush.bf16.msra.mxu0 %v4861
    %5313 = vmatpush.bf16.msra.mxu0 %v4860
    %5314 = vmatpush.bf16.msra.mxu0 %v4859
    %5315 = vmatmul.bf16.gmra.mxu0 %v3669
    %v5316 = vpop.f32.mrf.mxu0
    %v5317 = vadd.f32 %v5303, %v5316
    %v5318 = vpop.f32.mrf.mxu0
    %v5319 = vadd.f32 %v5305, %v5318
    %5320 = vdwg.mxu0
    %5321 = vmatpush.bf16.msra.mxu0 %v4874
    %5322 = vmatpush.bf16.msra.mxu0 %v4873
    %5323 = vmatpush.bf16.msra.mxu0 %v4872
    %5324 = vmatpush.bf16.msra.mxu0 %v4871
    %5325 = vmatpush.bf16.msra.mxu0 %v4870
    %5326 = vmatpush.bf16.msra.mxu0 %v4869
    %5327 = vmatpush.bf16.msra.mxu0 %v4868
    %5328 = vmatpush.bf16.msra.mxu0 %v4867
    %5329 = vmatmul.bf16.gmra.mxu0 %v3670
    %v5330 = vpop.f32.mrf.mxu0
    %v5331 = vadd.f32 %v5317, %v5330
    %v5332 = vpop.f32.mrf.mxu0
    %v5333 = vadd.f32 %v5319, %v5332
    %5334 = vdwg.mxu0
    %5335 = vmatpush.bf16.msra.mxu0 %v4882
    %5336 = vmatpush.bf16.msra.mxu0 %v4881
    %5337 = vmatpush.bf16.msra.mxu0 %v4880
    %5338 = vmatpush.bf16.msra.mxu0 %v4879
    %5339 = vmatpush.bf16.msra.mxu0 %v4878
    %5340 = vmatpush.bf16.msra.mxu0 %v4877
    %5341 = vmatpush.bf16.msra.mxu0 %v4876
    %5342 = vmatpush.bf16.msra.mxu0 %v4875
    %5343 = vmatmul.bf16.gmra.mxu0 %v3671
    %v5344 = vpop.f32.mrf.mxu0
    %v5345 = vadd.f32 %v5331, %v5344
    %v5346 = vpop.f32.mrf.mxu0
    %v5347 = vadd.f32 %v5333, %v5346
    %5348 = vdwg.mxu0
    %5349 = vmatpush.bf16.msra.mxu0 %v4890
    %5350 = vmatpush.bf16.msra.mxu0 %v4889
    %5351 = vmatpush.bf16.msra.mxu0 %v4888
    %5352 = vmatpush.bf16.msra.mxu0 %v4887
    %5353 = vmatpush.bf16.msra.mxu0 %v4886
    %5354 = vmatpush.bf16.msra.mxu0 %v4885
    %5355 = vmatpush.bf16.msra.mxu0 %v4884
    %5356 = vmatpush.bf16.msra.mxu0 %v4883
    %5357 = vmatmul.bf16.gmra.mxu0 %v3672
    %v5358 = vpop.f32.mrf.mxu0
    %v5359 = vadd.f32 %v5345, %v5358
    %v5360 = vpop.f32.mrf.mxu0
    %v5361 = vadd.f32 %v5347, %v5360
    %5362 = vdwg.mxu0
    %5363 = vmatpush.bf16.msra.mxu0 %v4898
    %5364 = vmatpush.bf16.msra.mxu0 %v4897
    %5365 = vmatpush.bf16.msra.mxu0 %v4896
    %5366 = vmatpush.bf16.msra.mxu0 %v4895
    %5367 = vmatpush.bf16.msra.mxu0 %v4894
    %5368 = vmatpush.bf16.msra.mxu0 %v4893
    %5369 = vmatpush.bf16.msra.mxu0 %v4892
    %5370 = vmatpush.bf16.msra.mxu0 %v4891
    %5371 = vmatmul.bf16.gmra.mxu0 %v3673
    %v5372 = vpop.f32.mrf.mxu0
    %v5373 = vadd.f32 %v5359, %v5372
    %v5374 = vpop.f32.mrf.mxu0
    %v5375 = vadd.f32 %v5361, %v5374
    %5376 = vdwg.mxu0
    %5377 = vmatpush.bf16.msra.mxu0 %v4906
    %5378 = vmatpush.bf16.msra.mxu0 %v4905
    %5379 = vmatpush.bf16.msra.mxu0 %v4904
    %5380 = vmatpush.bf16.msra.mxu0 %v4903
    %5381 = vmatpush.bf16.msra.mxu0 %v4902
    %5382 = vmatpush.bf16.msra.mxu0 %v4901
    %5383 = vmatpush.bf16.msra.mxu0 %v4900
    %5384 = vmatpush.bf16.msra.mxu0 %v4899
    %5385 = vmatmul.bf16.gmra.mxu0 %v3674
    %v5386 = vpop.f32.mrf.mxu0
    %v5387 = vadd.f32 %v5373, %v5386
    %v5388 = vpop.f32.mrf.mxu0
    %v5389 = vadd.f32 %v5375, %v5388
    %5390 = vdwg.mxu0
    %v5391 = vadd.f32 %v3651, %v5387
    %v5392 = vadd.f32 %v3652, %v5389
    %5393 = vst [vmem:[#allocation2] sm:$0xff] %v5391
    %5394 = vst [vmem:[#allocation2 + $0x8] sm:$0xff] %v5392
    // Predicated region
    $region46: #{tpu_custom_call.1} parent=1 // pred_check
      %p5395 = pneg %p96
    $region47: #{tpu_custom_call.1} parent=1 // pred_check_branch
      %5397 = sbr.rel (%p5395) target = $region49
    $region48: #{tpu_custom_call.1} parent=1 // pred_region
      %v5398 = vld [vmem:[#allocation2] sm:$0xff]
      %v5399 = vld [vmem:[#allocation2 + $0x8] sm:$0xff]
      %v5400 = vld [vmem:[#allocation11] sm:$0x1]
      %v5402 = vperm.slane %v5400, 0
      %v5404 = vadd.f32 %v5398, %v5402
      %v5405 = vadd.f32 %v5399, %v5402
      %5406 = vst [vmem:[#allocation12] sm:$0xff] %v5404
      %5407 = vst [vmem:[#allocation12 + $0x8] sm:$0xff] %v5405
    $region49: #{tpu_custom_call.1} parent=1 // pred_fallthru
      _
    // Predicated region
    $region50: #{tpu_custom_call.1} parent=1 // pred_check
      _
    $region51: #{tpu_custom_call.1} parent=1 // pred_check_branch
      %5409 = sbr.rel (0) target = $region53
    $region52: #{tpu_custom_call.1} parent=1 // pred_region
      %5411 = vsyncadd [#allocation5], 0
      %s5412 = sshll.u32 [#allocation12], 4
      %s5413 = int_to_ptr.vmem [resolvable:$true] %s5412
      %s5414 = sshll.u32 %s5, 4
      %s5415 = int_to_ptr.hbm [resolvable:$true] %s5414
      %5420 = dma.vmem_to_hbm [thread:$0]  %s5413, 256, %s5415, [#allocation5], 128, 128, 8
    $region53: #{tpu_custom_call.1} parent=1 // pred_fallthru
      _
    // Predicated region
    $region54: #{tpu_custom_call.1} parent=1 // pred_check
      _
    $region55: #{tpu_custom_call.1} parent=1 // pred_check_branch
      %5422 = sbr.rel (0) target = $region57
    $region56: #{tpu_custom_call.1} parent=1 // pred_region
      %5424 = dma.done [#allocation5], 256
    $region57: #{tpu_custom_call.1} parent=1 // pred_fallthru
      _
    %5425 = vsyncpa [#allocation4], 1
    %5426 = vsyncpa [#allocation7], 1
    %5427 = vsyncpa [#allocation10], 1
    %5428 = vsyncpa [#allocation5], 1

// kernel: tpu_custom_call.1
$region0: #{tpu_custom_call.1}
  #allocation0 [shape = 'u32[]', space=smem, size = 0x4, offset = 0x4, fixed_abs, tag = 'smem constant byte address 0x4 - core index']
  #allocation1 [shape = 'u32[72,128]{1,0:T(1,128)}', space=vmem, size = 0x9000, scoped, tag = 'internal scratch']
  #allocation2 [shape = 'f32[16,128]{1,0:T(8,128)}', space=vmem, size = 0x2000, scoped, tag = 'scratch operand']
  %s0 = inlined_call_operand.hbm [shape: bf16[16,288], index: 0, kind: input, shape index: {}]
  %s1 = inlined_call_operand.hbm [shape: bf16[288,2816], index: 1, kind: input, shape index: {}]
  %s2 = inlined_call_operand.hbm [shape: f32[1,2816], index: 2, kind: input, shape index: {}]
  %s3 = inlined_call_operand.hbm [shape: bf16[2816,128], index: 3, kind: input, shape index: {}]
  %s4 = inlined_call_operand.hbm [shape: f32[1,128], index: 4, kind: input, shape index: {}]
  %s5 = inlined_call_operand.hbm [shape: f32[16,128], index: 5, kind: output, shape index: {}]
  %s6 = sld [smem:[#allocation0]]
  $region58: #{tpu_custom_call.1} parent=0
    _
  %s8 = ssub.s32 1, %s6
  %s9 = scalar_select 0, %s8, %s6
  $region1: #{tpu_custom_call.1} parent=0
    #allocation3 [shape = 'u8[12288]{0}', space=vmem, size = 0x3000, scoped, tag = 'input window, operand 0, single buffered']
    #allocation4 [shape = 's32[1]{0}', space=sflag, size = 0x4, scoped, tag = 'scoped memory for tpu_custom_call.1']
    #allocation5 [shape = 's32[1]{0}', space=sflag, size = 0x4, scoped, tag = 'scoped memory for tpu_custom_call.1']
    #allocation6 [shape = 'u8[1622016]{0}', space=vmem, size = 0x18c000, scoped, tag = 'input window, operand 1, single buffered']
    #allocation7 [shape = 's32[1]{0}', space=sflag, size = 0x4, scoped, tag = 'scoped memory for tpu_custom_call.1']
    #allocation8 [shape = 'u8[11264]{0}', space=vmem, size = 0x2c00, scoped, tag = 'input window, operand 2, single buffered']
    #allocation9 [shape = 'u8[720896]{0}', space=vmem, size = 0xb0000, scoped, tag = 'input window, operand 3, single buffered']
    #allocation10 [shape = 's32[1]{0}', space=sflag, size = 0x4, scoped, tag = 'scoped memory for tpu_custom_call.1']
    #allocation11 [shape = 'u8[512]{0}', space=vmem, size = 0x400, scoped, tag = 'input window, operand 4, single buffered']
    #allocation12 [shape = 'u8[8192]{0}', space=vmem, size = 0x2000, scoped, tag = 'output window, operand 0, single buffered']
    %10 = vsyncpa [#allocation4], 0
    %11 = vsyncpa [#allocation7], 0
    %12 = vsyncpa [#allocation10], 0
    %13 = vsyncpa [#allocation5], 0
    // Predicated region
    $region2: #{tpu_custom_call.1} parent=1 // pred_check
      _
    $region3: #{tpu_custom_call.1} parent=1 // pred_check_branch
      %15 = sbr.rel (0) target = $region5
    $region4: #{tpu_custom_call.1} parent=1 // pred_region
      %17 = vsyncadd [#allocation4], 0
      %s18 = sshll.u32 %s0, 4
      %s19 = int_to_ptr.hbm [resolvable:$true] %s18
      %s20 = sshll.u32 [#allocation3], 4
      %s21 = int_to_ptr.vmem [resolvable:$true] %s20
      %26 = dma.hbm_to_vmem [thread:$0]  %s19, 384, %s21, [#allocation4], 192, 192, 12
    $region5: #{tpu_custom_call.1} parent=1 // pred_fallthru
      _
    // Predicated region
    $region6: #{tpu_custom_call.1} parent=1 // pred_check
      _
    $region7: #{tpu_custom_call.1} parent=1 // pred_check_branch
      %28 = sbr.rel (0) target = $region9
    $region8: #{tpu_custom_call.1} parent=1 // pred_region
      %30 = vsyncadd [#allocation7], 0
      %s31 = sshll.u32 %s1, 4
      %s32 = int_to_ptr.hbm [resolvable:$true] %s31
      %s33 = sshll.u32 [#allocation6], 4
      %s34 = int_to_ptr.vmem [resolvable:$true] %s33
      %39 = dma.hbm_to_vmem [thread:$0]  %s32, 50688, %s34, [#allocation7], 1408, 1408, 88
    $region9: #{tpu_custom_call.1} parent=1 // pred_fallthru
      _
    // Predicated region
    $region10: #{tpu_custom_call.1} parent=1 // pred_check
      _
    $region11: #{tpu_custom_call.1} parent=1 // pred_check_branch
      %41 = sbr.rel (0) target = $region13
    $region12: #{tpu_custom_call.1} parent=1 // pred_region
      %43 = vsyncadd [#allocation7], 0
      %s45 = sshll.u32 %s2, 4
      %s46 = int_to_ptr.hbm [resolvable:$true] %s45
      %s47 = sshll.u32 [#allocation8], 4
      %s48 = int_to_ptr.vmem [resolvable:$true] %s47
      %50 = dma.hbm_to_vmem [thread:$0]  %s46, 352, %s48, [#allocation7]
    $region13: #{tpu_custom_call.1} parent=1 // pred_fallthru
      _
    // Predicated region
    $region14: #{tpu_custom_call.1} parent=1 // pred_check
      _
    $region15: #{tpu_custom_call.1} parent=1 // pred_check_branch
      %52 = sbr.rel (0) target = $region17
    $region16: #{tpu_custom_call.1} parent=1 // pred_region
      %54 = vsyncadd [#allocation10], 0
      %s55 = sshll.u32 %s3, 4
      %s56 = int_to_ptr.hbm [resolvable:$true] %s55
      %s57 = sshll.u32 [#allocation9], 4
      %s58 = int_to_ptr.vmem [resolvable:$true] %s57
      %63 = dma.hbm_to_vmem [thread:$0]  %s56, 22528, %s58, [#allocation10], 64, 64, 4
    $region17: #{tpu_custom_call.1} parent=1 // pred_fallthru
      _
    // Predicated region
    $region18: #{tpu_custom_call.1} parent=1 // pred_check
      _
    $region19: #{tpu_custom_call.1} parent=1 // pred_check_branch
      %65 = sbr.rel (0) target = $region21
    $region20: #{tpu_custom_call.1} parent=1 // pred_region
      %67 = vsyncadd [#allocation10], 0
      %s69 = sshll.u32 %s4, 4
      %s70 = int_to_ptr.hbm [resolvable:$true] %s69
      %s71 = sshll.u32 [#allocation11], 4
      %s72 = int_to_ptr.vmem [resolvable:$true] %s71
      %74 = dma.hbm_to_vmem [thread:$0]  %s70, 16, %s72, [#allocation10]
    $region21: #{tpu_custom_call.1} parent=1 // pred_fallthru
      _
    // Predicated region
    $region22: #{tpu_custom_call.1} parent=1 // pred_check
      _
    $region23: #{tpu_custom_call.1} parent=1 // pred_check_branch
      %76 = sbr.rel (0) target = $region25
    $region24: #{tpu_custom_call.1} parent=1 // pred_region
      %78 = dma.done [#allocation4], 384
    $region25: #{tpu_custom_call.1} parent=1 // pred_fallthru
      _
    // Predicated region
    $region26: #{tpu_custom_call.1} parent=1 // pred_check
      _
    $region27: #{tpu_custom_call.1} parent=1 // pred_check_branch
      %80 = sbr.rel (0) target = $region29
    $region28: #{tpu_custom_call.1} parent=1 // pred_region
      %82 = dma.done [#allocation7], 50688
    $region29: #{tpu_custom_call.1} parent=1 // pred_fallthru
      _
    // Predicated region
    $region30: #{tpu_custom_call.1} parent=1 // pred_check
      _
    $region31: #{tpu_custom_call.1} parent=1 // pred_check_branch
      %84 = sbr.rel (0) target = $region33
    $region32: #{tpu_custom_call.1} parent=1 // pred_region
      %86 = dma.done [#allocation7], 352
    $region33: #{tpu_custom_call.1} parent=1 // pred_fallthru
      _
    // Predicated region
    $region34: #{tpu_custom_call.1} parent=1 // pred_check
      _
    $region35: #{tpu_custom_call.1} parent=1 // pred_check_branch
      %88 = sbr.rel (0) target = $region37
    $region36: #{tpu_custom_call.1} parent=1 // pred_region
      %90 = dma.done [#allocation10], 22528
    $region37: #{tpu_custom_call.1} parent=1 // pred_fallthru
      _
    // Predicated region
    $region38: #{tpu_custom_call.1} parent=1 // pred_check
      _
    $region39: #{tpu_custom_call.1} parent=1 // pred_check_branch
      %92 = sbr.rel (0) target = $region41
    $region40: #{tpu_custom_call.1} parent=1 // pred_region
      %94 = dma.done [#allocation10], 16
    $region41: #{tpu_custom_call.1} parent=1 // pred_fallthru
      _
    %p96 = scmp.eq.s32.totalorder 0, 0
    // Predicated region
    $region42: #{tpu_custom_call.1} parent=1 // pred_check
      %p97 = pneg %p96
    $region43: #{tpu_custom_call.1} parent=1 // pred_check_branch
      %99 = sbr.rel (%p97) target = $region45
    $region44: #{tpu_custom_call.1} parent=1 // pred_region
      %100 = vst [vmem:[#allocation2] sm:$0xff] 0.0
      %101 = vst [vmem:[#allocation2 + $0x8] sm:$0xff] 0.0
    $region45: #{tpu_custom_call.1} parent=1 // pred_fallthru
      _
    %v102 = vld [vmem:[#allocation3] sm:$0xff]
    %v103 = vld [vmem:[#allocation3 + $0x8] sm:$0xf]
    %v104 = vld [vmem:[#allocation3 + $0xc] sm:$0xff]
    %v105 = vld [vmem:[#allocation3 + $0x14] sm:$0xf]
    %v106 = vld [vmem:[#allocation6] sm:$0xff]
    %v107 = vld [vmem:[#allocation6 + $0x8] sm:$0xff]
    %v108 = vld [vmem:[#allocation6 + $0x10] sm:$0xff]
    %v109 = vld [vmem:[#allocation6 + $0x18] sm:$0xff]
    %v110 = vld [vmem:[#allocation6 + $0x20] sm:$0xff]
    %v111 = vld [vmem:[#allocation6 + $0x28] sm:$0xff]
    %v112 = vld [vmem:[#allocation6 + $0x30] sm:$0xff]
    %v113 = vld [vmem:[#allocation6 + $0x38] sm:$0xff]
    %v114 = vld [vmem:[#allocation6 + $0x40] sm:$0xff]
    %v115 = vld [vmem:[#allocation6 + $0x48] sm:$0xff]
    %v116 = vld [vmem:[#allocation6 + $0x50] sm:$0xff]
    %v117 = vld [vmem:[#allocation6 + $0x58] sm:$0xff]
    %v118 = vld [vmem:[#allocation6 + $0x60] sm:$0xff]
    %v119 = vld [vmem:[#allocation6 + $0x68] sm:$0xff]
    %v120 = vld [vmem:[#allocation6 + $0x70] sm:$0xff]
    %v121 = vld [vmem:[#allocation6 + $0x78] sm:$0xff]
    %v122 = vld [vmem:[#allocation6 + $0x80] sm:$0xff]
    %v123 = vld [vmem:[#allocation6 + $0x88] sm:$0xff]
    %v124 = vld [vmem:[#allocation6 + $0x90] sm:$0xff]
    %v125 = vld [vmem:[#allocation6 + $0x98] sm:$0xff]
    %v126 = vld [vmem:[#allocation6 + $0xa0] sm:$0xff]
    %v127 = vld [vmem:[#allocation6 + $0xa8] sm:$0xff]
    %v128 = vld [vmem:[#allocation6 + $0xb0] sm:$0xff]
    %v129 = vld [vmem:[#allocation6 + $0xb8] sm:$0xff]
    %v130 = vld [vmem:[#allocation6 + $0xc0] sm:$0xff]
    %v131 = vld [vmem:[#allocation6 + $0xc8] sm:$0xff]
    %v132 = vld [vmem:[#allocation6 + $0xd0] sm:$0xff]
    %v133 = vld [vmem:[#allocation6 + $0xd8] sm:$0xff]
    %v134 = vld [vmem:[#allocation6 + $0xe0] sm:$0xff]
    %v135 = vld [vmem:[#allocation6 + $0xe8] sm:$0xff]
    %v136 = vld [vmem:[#allocation6 + $0xf0] sm:$0xff]
    %v137 = vld [vmem:[#allocation6 + $0xf8] sm:$0xff]
    %v138 = vld [vmem:[#allocation6 + $0x100] sm:$0xff]
    %v139 = vld [vmem:[#allocation6 + $0x108] sm:$0xff]
    %v140 = vld [vmem:[#allocation6 + $0x110] sm:$0xff]
    %v141 = vld [vmem:[#allocation6 + $0x118] sm:$0xff]
    %v142 = vld [vmem:[#allocation6 + $0x120] sm:$0xff]
    %v143 = vld [vmem:[#allocation6 + $0x128] sm:$0xff]
    %v144 = vld [vmem:[#allocation6 + $0x130] sm:$0xff]
    %v145 = vld [vmem:[#allocation6 + $0x138] sm:$0xff]
    %v146 = vld [vmem:[#allocation6 + $0x140] sm:$0xff]
    %v147 = vld [vmem:[#allocation6 + $0x148] sm:$0xff]
    %v148 = vld [vmem:[#allocation6 + $0x150] sm:$0xff]
    %v149 = vld [vmem:[#allocation6 + $0x158] sm:$0xff]
    %v150 = vld [vmem:[#allocation6 + $0x160] sm:$0xff]
    %v151 = vld [vmem:[#allocation6 + $0x168] sm:$0xff]
    %v152 = vld [vmem:[#allocation6 + $0x170] sm:$0xff]
    %v153 = vld [vmem:[#allocation6 + $0x178] sm:$0xff]
    %v154 = vld [vmem:[#allocation6 + $0x180] sm:$0xff]
    %v155 = vld [vmem:[#allocation6 + $0x188] sm:$0xff]
    %v156 = vld [vmem:[#allocation6 + $0x190] sm:$0xff]
    %v157 = vld [vmem:[#allocation6 + $0x198] sm:$0xff]
    %v158 = vld [vmem:[#allocation6 + $0x1a0] sm:$0xff]
    %v159 = vld [vmem:[#allocation6 + $0x1a8] sm:$0xff]
    %v160 = vld [vmem:[#allocation6 + $0x1b0] sm:$0xff]
    %v161 = vld [vmem:[#allocation6 + $0x1b8] sm:$0xff]
    %v162 = vld [vmem:[#allocation6 + $0x1c0] sm:$0xff]
    %v163 = vld [vmem:[#allocation6 + $0x1c8] sm:$0xff]
    %v164 = vld [vmem:[#allocation6 + $0x1d0] sm:$0xff]
    %v165 = vld [vmem:[#allocation6 + $0x1d8] sm:$0xff]
    %v166 = vld [vmem:[#allocation6 + $0x1e0] sm:$0xff]
    %v167 = vld [vmem:[#allocation6 + $0x1e8] sm:$0xff]
    %v168 = vld [vmem:[#allocation6 + $0x1f0] sm:$0xff]
    %v169 = vld [vmem:[#allocation6 + $0x1f8] sm:$0xff]
    %v170 = vld [vmem:[#allocation6 + $0x200] sm:$0xff]
    %v171 = vld [vmem:[#allocation6 + $0x208] sm:$0xff]
    %v172 = vld [vmem:[#allocation6 + $0x210] sm:$0xff]
    %v173 = vld [vmem:[#allocation6 + $0x218] sm:$0xff]
    %v174 = vld [vmem:[#allocation6 + $0x220] sm:$0xff]
    %v175 = vld [vmem:[#allocation6 + $0x228] sm:$0xff]
    %v176 = vld [vmem:[#allocation6 + $0x230] sm:$0xff]
    %v177 = vld [vmem:[#allocation6 + $0x238] sm:$0xff]
    %v178 = vld [vmem:[#allocation6 + $0x240] sm:$0xff]
    %v179 = vld [vmem:[#allocation6 + $0x248] sm:$0xff]
    %v180 = vld [vmem:[#allocation6 + $0x250] sm:$0xff]
    %v181 = vld [vmem:[#allocation6 + $0x258] sm:$0xff]
    %v182 = vld [vmem:[#allocation6 + $0x260] sm:$0xff]
    %v183 = vld [vmem:[#allocation6 + $0x268] sm:$0xff]
    %v184 = vld [vmem:[#allocation6 + $0x270] sm:$0xff]
    %v185 = vld [vmem:[#allocation6 + $0x278] sm:$0xff]
    %v186 = vld [vmem:[#allocation6 + $0x280] sm:$0xff]
    %v187 = vld [vmem:[#allocation6 + $0x288] sm:$0xff]
    %v188 = vld [vmem:[#allocation6 + $0x290] sm:$0xff]
    %v189 = vld [vmem:[#allocation6 + $0x298] sm:$0xff]
    %v190 = vld [vmem:[#allocation6 + $0x2a0] sm:$0xff]
    %v191 = vld [vmem:[#allocation6 + $0x2a8] sm:$0xff]
    %v192 = vld [vmem:[#allocation6 + $0x2b0] sm:$0xff]
    %v193 = vld [vmem:[#allocation6 + $0x2b8] sm:$0xff]
    %v194 = vld [vmem:[#allocation6 + $0x2c0] sm:$0xff]
    %v195 = vld [vmem:[#allocation6 + $0x2c8] sm:$0xff]
    %v196 = vld [vmem:[#allocation6 + $0x2d0] sm:$0xff]
    %v197 = vld [vmem:[#allocation6 + $0x2d8] sm:$0xff]
    %v198 = vld [vmem:[#allocation6 + $0x2e0] sm:$0xff]
    %v199 = vld [vmem:[#allocation6 + $0x2e8] sm:$0xff]
    %v200 = vld [vmem:[#allocation6 + $0x2f0] sm:$0xff]
    %v201 = vld [vmem:[#allocation6 + $0x2f8] sm:$0xff]
    %v202 = vld [vmem:[#allocation6 + $0x300] sm:$0xff]
    %v203 = vld [vmem:[#allocation6 + $0x308] sm:$0xff]
    %v204 = vld [vmem:[#allocation6 + $0x310] sm:$0xff]
    %v205 = vld [vmem:[#allocation6 + $0x318] sm:$0xff]
    %v206 = vld [vmem:[#allocation6 + $0x320] sm:$0xff]
    %v207 = vld [vmem:[#allocation6 + $0x328] sm:$0xff]
    %v208 = vld [vmem:[#allocation6 + $0x330] sm:$0xff]
    %v209 = vld [vmem:[#allocation6 + $0x338] sm:$0xff]
    %v210 = vld [vmem:[#allocation6 + $0x340] sm:$0xff]
    %v211 = vld [vmem:[#allocation6 + $0x348] sm:$0xff]
    %v212 = vld [vmem:[#allocation6 + $0x350] sm:$0xff]
    %v213 = vld [vmem:[#allocation6 + $0x358] sm:$0xff]
    %v214 = vld [vmem:[#allocation6 + $0x360] sm:$0xff]
    %v215 = vld [vmem:[#allocation6 + $0x368] sm:$0xff]
    %v216 = vld [vmem:[#allocation6 + $0x370] sm:$0xff]
    %v217 = vld [vmem:[#allocation6 + $0x378] sm:$0xff]
    %v218 = vld [vmem:[#allocation6 + $0x380] sm:$0xff]
    %v219 = vld [vmem:[#allocation6 + $0x388] sm:$0xff]
    %v220 = vld [vmem:[#allocation6 + $0x390] sm:$0xff]
    %v221 = vld [vmem:[#allocation6 + $0x398] sm:$0xff]
    %v222 = vld [vmem:[#allocation6 + $0x3a0] sm:$0xff]
    %v223 = vld [vmem:[#allocation6 + $0x3a8] sm:$0xff]
    %v224 = vld [vmem:[#allocation6 + $0x3b0] sm:$0xff]
    %v225 = vld [vmem:[#allocation6 + $0x3b8] sm:$0xff]
    %v226 = vld [vmem:[#allocation6 + $0x3c0] sm:$0xff]
    %v227 = vld [vmem:[#allocation6 + $0x3c8] sm:$0xff]
    %v228 = vld [vmem:[#allocation6 + $0x3d0] sm:$0xff]
    %v229 = vld [vmem:[#allocation6 + $0x3d8] sm:$0xff]
    %v230 = vld [vmem:[#allocation6 + $0x3e0] sm:$0xff]
    %v231 = vld [vmem:[#allocation6 + $0x3e8] sm:$0xff]
    %v232 = vld [vmem:[#allocation6 + $0x3f0] sm:$0xff]
    %v233 = vld [vmem:[#allocation6 + $0x3f8] sm:$0xff]
    %v234 = vld [vmem:[#allocation6 + $0x400] sm:$0xff]
    %v235 = vld [vmem:[#allocation6 + $0x408] sm:$0xff]
    %v236 = vld [vmem:[#allocation6 + $0x410] sm:$0xff]
    %v237 = vld [vmem:[#allocation6 + $0x418] sm:$0xff]
    %v238 = vld [vmem:[#allocation6 + $0x420] sm:$0xff]
    %v239 = vld [vmem:[#allocation6 + $0x428] sm:$0xff]
    %v240 = vld [vmem:[#allocation6 + $0x430] sm:$0xff]
    %v241 = vld [vmem:[#allocation6 + $0x438] sm:$0xff]
    %v242 = vld [vmem:[#allocation6 + $0x440] sm:$0xff]
    %v243 = vld [vmem:[#allocation6 + $0x448] sm:$0xff]
    %v244 = vld [vmem:[#allocation6 + $0x450] sm:$0xff]
    %v245 = vld [vmem:[#allocation6 + $0x458] sm:$0xff]
    %v246 = vld [vmem:[#allocation6 + $0x460] sm:$0xff]
    %v247 = vld [vmem:[#allocation6 + $0x468] sm:$0xff]
    %v248 = vld [vmem:[#allocation6 + $0x470] sm:$0xff]
    %v249 = vld [vmem:[#allocation6 + $0x478] sm:$0xff]
    %v250 = vld [vmem:[#allocation6 + $0x480] sm:$0xff]
    %v251 = vld [vmem:[#allocation6 + $0x488] sm:$0xff]
    %v252 = vld [vmem:[#allocation6 + $0x490] sm:$0xff]
    %v253 = vld [vmem:[#allocation6 + $0x498] sm:$0xff]
    %v254 = vld [vmem:[#allocation6 + $0x4a0] sm:$0xff]
    %v255 = vld [vmem:[#allocation6 + $0x4a8] sm:$0xff]
    %v256 = vld [vmem:[#allocation6 + $0x4b0] sm:$0xff]
    %v257 = vld [vmem:[#allocation6 + $0x4b8] sm:$0xff]
    %v258 = vld [vmem:[#allocation6 + $0x4c0] sm:$0xff]
    %v259 = vld [vmem:[#allocation6 + $0x4c8] sm:$0xff]
    %v260 = vld [vmem:[#allocation6 + $0x4d0] sm:$0xff]
    %v261 = vld [vmem:[#allocation6 + $0x4d8] sm:$0xff]
    %v262 = vld [vmem:[#allocation6 + $0x4e0] sm:$0xff]
    %v263 = vld [vmem:[#allocation6 + $0x4e8] sm:$0xff]
    %v264 = vld [vmem:[#allocation6 + $0x4f0] sm:$0xff]
    %v265 = vld [vmem:[#allocation6 + $0x4f8] sm:$0xff]
    %v266 = vld [vmem:[#allocation6 + $0x500] sm:$0xff]
    %v267 = vld [vmem:[#allocation6 + $0x508] sm:$0xff]
    %v268 = vld [vmem:[#allocation6 + $0x510] sm:$0xff]
    %v269 = vld [vmem:[#allocation6 + $0x518] sm:$0xff]
    %v270 = vld [vmem:[#allocation6 + $0x520] sm:$0xff]
    %v271 = vld [vmem:[#allocation6 + $0x528] sm:$0xff]
    %v272 = vld [vmem:[#allocation6 + $0x530] sm:$0xff]
    %v273 = vld [vmem:[#allocation6 + $0x538] sm:$0xff]
    %v274 = vld [vmem:[#allocation6 + $0x540] sm:$0xff]
    %v275 = vld [vmem:[#allocation6 + $0x548] sm:$0xff]
    %v276 = vld [vmem:[#allocation6 + $0x550] sm:$0xff]
    %v277 = vld [vmem:[#allocation6 + $0x558] sm:$0xff]
    %v278 = vld [vmem:[#allocation6 + $0x560] sm:$0xff]
    %v279 = vld [vmem:[#allocation6 + $0x568] sm:$0xff]
    %v280 = vld [vmem:[#allocation6 + $0x570] sm:$0xff]
    %v281 = vld [vmem:[#allocation6 + $0x578] sm:$0xff]
    %v282 = vld [vmem:[#allocation6 + $0x580] sm:$0xff]
    %v283 = vld [vmem:[#allocation6 + $0x588] sm:$0xff]
    %v284 = vld [vmem:[#allocation6 + $0x590] sm:$0xff]
    %v285 = vld [vmem:[#allocation6 + $0x598] sm:$0xff]
    %v286 = vld [vmem:[#allocation6 + $0x5a0] sm:$0xff]
    %v287 = vld [vmem:[#allocation6 + $0x5a8] sm:$0xff]
    %v288 = vld [vmem:[#allocation6 + $0x5b0] sm:$0xff]
    %v289 = vld [vmem:[#allocation6 + $0x5b8] sm:$0xff]
    %v290 = vld [vmem:[#allocation6 + $0x5c0] sm:$0xff]
    %v291 = vld [vmem:[#allocation6 + $0x5c8] sm:$0xff]
    %v292 = vld [vmem:[#allocation6 + $0x5d0] sm:$0xff]
    %v293 = vld [vmem:[#allocation6 + $0x5d8] sm:$0xff]
    %v294 = vld [vmem:[#allocation6 + $0x5e0] sm:$0xff]
    %v295 = vld [vmem:[#allocation6 + $0x5e8] sm:$0xff]
    %v296 = vld [vmem:[#allocation6 + $0x5f0] sm:$0xff]
    %v297 = vld [vmem:[#allocation6 + $0x5f8] sm:$0xff]
    %v298 = vld [vmem:[#allocation6 + $0x600] sm:$0xff]
    %v299 = vld [vmem:[#allocation6 + $0x608] sm:$0xff]
    %v300 = vld [vmem:[#allocation6 + $0x610] sm:$0xff]
    %v301 = vld [vmem:[#allocation6 + $0x618] sm:$0xff]
    %v302 = vld [vmem:[#allocation6 + $0x620] sm:$0xff]
    %v303 = vld [vmem:[#allocation6 + $0x628] sm:$0xff]
    %v304 = vld [vmem:[#allocation6 + $0x630] sm:$0xff]
    %v305 = vld [vmem:[#allocation6 + $0x638] sm:$0xff]
    %v306 = vld [vmem:[#allocation6 + $0x640] sm:$0xff]
    %v307 = vld [vmem:[#allocation6 + $0x648] sm:$0xff]
    %v308 = vld [vmem:[#allocation6 + $0x650] sm:$0xff]
    %v309 = vld [vmem:[#allocation6 + $0x658] sm:$0xff]
    %v310 = vld [vmem:[#allocation6 + $0x660] sm:$0xff]
    %v311 = vld [vmem:[#allocation6 + $0x668] sm:$0xff]
    %v312 = vld [vmem:[#allocation6 + $0x670] sm:$0xff]
    %v313 = vld [vmem:[#allocation6 + $0x678] sm:$0xff]
    %v314 = vld [vmem:[#allocation6 + $0x680] sm:$0xff]
    %v315 = vld [vmem:[#allocation6 + $0x688] sm:$0xff]
    %v316 = vld [vmem:[#allocation6 + $0x690] sm:$0xff]
    %v317 = vld [vmem:[#allocation6 + $0x698] sm:$0xff]
    %v318 = vld [vmem:[#allocation6 + $0x6a0] sm:$0xff]
    %v319 = vld [vmem:[#allocation6 + $0x6a8] sm:$0xff]
    %v320 = vld [vmem:[#allocation6 + $0x6b0] sm:$0xff]
    %v321 = vld [vmem:[#allocation6 + $0x6b8] sm:$0xff]
    %v322 = vld [vmem:[#allocation6 + $0x6c0] sm:$0xff]
    %v323 = vld [vmem:[#allocation6 + $0x6c8] sm:$0xff]
    %v324 = vld [vmem:[#allocation6 + $0x6d0] sm:$0xff]
    %v325 = vld [vmem:[#allocation6 + $0x6d8] sm:$0xff]
    %v326 = vld [vmem:[#allocation6 + $0x6e0] sm:$0xff]
    %v327 = vld [vmem:[#allocation6 + $0x6e8] sm:$0xff]
    %v328 = vld [vmem:[#allocation6 + $0x6f0] sm:$0xff]
    %v329 = vld [vmem:[#allocation6 + $0x6f8] sm:$0xff]
    %v330 = vld [vmem:[#allocation6 + $0x700] sm:$0xff]
    %v331 = vld [vmem:[#allocation6 + $0x708] sm:$0xff]
    %v332 = vld [vmem:[#allocation6 + $0x710] sm:$0xff]
    %v333 = vld [vmem:[#allocation6 + $0x718] sm:$0xff]
    %v334 = vld [vmem:[#allocation6 + $0x720] sm:$0xff]
    %v335 = vld [vmem:[#allocation6 + $0x728] sm:$0xff]
    %v336 = vld [vmem:[#allocation6 + $0x730] sm:$0xff]
    %v337 = vld [vmem:[#allocation6 + $0x738] sm:$0xff]
    %v338 = vld [vmem:[#allocation6 + $0x740] sm:$0xff]
    %v339 = vld [vmem:[#allocation6 + $0x748] sm:$0xff]
    %v340 = vld [vmem:[#allocation6 + $0x750] sm:$0xff]
    %v341 = vld [vmem:[#allocation6 + $0x758] sm:$0xff]
    %v342 = vld [vmem:[#allocation6 + $0x760] sm:$0xff]
    %v343 = vld [vmem:[#allocation6 + $0x768] sm:$0xff]
    %v344 = vld [vmem:[#allocation6 + $0x770] sm:$0xff]
    %v345 = vld [vmem:[#allocation6 + $0x778] sm:$0xff]
    %v346 = vld [vmem:[#allocation6 + $0x780] sm:$0xff]
    %v347 = vld [vmem:[#allocation6 + $0x788] sm:$0xff]
    %v348 = vld [vmem:[#allocation6 + $0x790] sm:$0xff]
    %v349 = vld [vmem:[#allocation6 + $0x798] sm:$0xff]
    %v350 = vld [vmem:[#allocation6 + $0x7a0] sm:$0xff]
    %v351 = vld [vmem:[#allocation6 + $0x7a8] sm:$0xff]
    %v352 = vld [vmem:[#allocation6 + $0x7b0] sm:$0xff]
    %v353 = vld [vmem:[#allocation6 + $0x7b8] sm:$0xff]
    %v354 = vld [vmem:[#allocation6 + $0x7c0] sm:$0xff]
    %v355 = vld [vmem:[#allocation6 + $0x7c8] sm:$0xff]
    %v356 = vld [vmem:[#allocation6 + $0x7d0] sm:$0xff]
    %v357 = vld [vmem:[#allocation6 + $0x7d8] sm:$0xff]
    %v358 = vld [vmem:[#allocation6 + $0x7e0] sm:$0xff]
    %v359 = vld [vmem:[#allocation6 + $0x7e8] sm:$0xff]
    %v360 = vld [vmem:[#allocation6 + $0x7f0] sm:$0xff]
    %v361 = vld [vmem:[#allocation6 + $0x7f8] sm:$0xff]
    %v362 = vld [vmem:[#allocation6 + $0x800] sm:$0xff]
    %v363 = vld [vmem:[#allocation6 + $0x808] sm:$0xff]
    %v364 = vld [vmem:[#allocation6 + $0x810] sm:$0xff]
    %v365 = vld [vmem:[#allocation6 + $0x818] sm:$0xff]
    %v366 = vld [vmem:[#allocation6 + $0x820] sm:$0xff]
    %v367 = vld [vmem:[#allocation6 + $0x828] sm:$0xff]
    %v368 = vld [vmem:[#allocation6 + $0x830] sm:$0xff]
    %v369 = vld [vmem:[#allocation6 + $0x838] sm:$0xff]
    %v370 = vld [vmem:[#allocation6 + $0x840] sm:$0xff]
    %v371 = vld [vmem:[#allocation6 + $0x848] sm:$0xff]
    %v372 = vld [vmem:[#allocation6 + $0x850] sm:$0xff]
    %v373 = vld [vmem:[#allocation6 + $0x858] sm:$0xff]
    %v374 = vld [vmem:[#allocation6 + $0x860] sm:$0xff]
    %v375 = vld [vmem:[#allocation6 + $0x868] sm:$0xff]
    %v376 = vld [vmem:[#allocation6 + $0x870] sm:$0xff]
    %v377 = vld [vmem:[#allocation6 + $0x878] sm:$0xff]
    %v378 = vld [vmem:[#allocation6 + $0x880] sm:$0xff]
    %v379 = vld [vmem:[#allocation6 + $0x888] sm:$0xff]
    %v380 = vld [vmem:[#allocation6 + $0x890] sm:$0xff]
    %v381 = vld [vmem:[#allocation6 + $0x898] sm:$0xff]
    %v382 = vld [vmem:[#allocation6 + $0x8a0] sm:$0xff]
    %v383 = vld [vmem:[#allocation6 + $0x8a8] sm:$0xff]
    %v384 = vld [vmem:[#allocation6 + $0x8b0] sm:$0xff]
    %v385 = vld [vmem:[#allocation6 + $0x8b8] sm:$0xff]
    %v386 = vld [vmem:[#allocation6 + $0x8c0] sm:$0xff]
    %v387 = vld [vmem:[#allocation6 + $0x8c8] sm:$0xff]
    %v388 = vld [vmem:[#allocation6 + $0x8d0] sm:$0xff]
    %v389 = vld [vmem:[#allocation6 + $0x8d8] sm:$0xff]
    %v390 = vld [vmem:[#allocation6 + $0x8e0] sm:$0xff]
    %v391 = vld [vmem:[#allocation6 + $0x8e8] sm:$0xff]
    %v392 = vld [vmem:[#allocation6 + $0x8f0] sm:$0xff]
    %v393 = vld [vmem:[#allocation6 + $0x8f8] sm:$0xff]
    %v394 = vld [vmem:[#allocation6 + $0x900] sm:$0xff]
    %v395 = vld [vmem:[#allocation6 + $0x908] sm:$0xff]
    %v396 = vld [vmem:[#allocation6 + $0x910] sm:$0xff]
    %v397 = vld [vmem:[#allocation6 + $0x918] sm:$0xff]
    %v398 = vld [vmem:[#allocation6 + $0x920] sm:$0xff]
    %v399 = vld [vmem:[#allocation6 + $0x928] sm:$0xff]
    %v400 = vld [vmem:[#allocation6 + $0x930] sm:$0xff]
    %v401 = vld [vmem:[#allocation6 + $0x938] sm:$0xff]
    %v402 = vld [vmem:[#allocation6 + $0x940] sm:$0xff]
    %v403 = vld [vmem:[#allocation6 + $0x948] sm:$0xff]
    %v404 = vld [vmem:[#allocation6 + $0x950] sm:$0xff]
    %v405 = vld [vmem:[#allocation6 + $0x958] sm:$0xff]
    %v406 = vld [vmem:[#allocation6 + $0x960] sm:$0xff]
    %v407 = vld [vmem:[#allocation6 + $0x968] sm:$0xff]
    %v408 = vld [vmem:[#allocation6 + $0x970] sm:$0xff]
    %v409 = vld [vmem:[#allocation6 + $0x978] sm:$0xff]
    %v410 = vld [vmem:[#allocation6 + $0x980] sm:$0xff]
    %v411 = vld [vmem:[#allocation6 + $0x988] sm:$0xff]
    %v412 = vld [vmem:[#allocation6 + $0x990] sm:$0xff]
    %v413 = vld [vmem:[#allocation6 + $0x998] sm:$0xff]
    %v414 = vld [vmem:[#allocation6 + $0x9a0] sm:$0xff]
    %v415 = vld [vmem:[#allocation6 + $0x9a8] sm:$0xff]
    %v416 = vld [vmem:[#allocation6 + $0x9b0] sm:$0xff]
    %v417 = vld [vmem:[#allocation6 + $0x9b8] sm:$0xff]
    %v418 = vld [vmem:[#allocation6 + $0x9c0] sm:$0xff]
    %v419 = vld [vmem:[#allocation6 + $0x9c8] sm:$0xff]
    %v420 = vld [vmem:[#allocation6 + $0x9d0] sm:$0xff]
    %v421 = vld [vmem:[#allocation6 + $0x9d8] sm:$0xff]
    %v422 = vld [vmem:[#allocation6 + $0x9e0] sm:$0xff]
    %v423 = vld [vmem:[#allocation6 + $0x9e8] sm:$0xff]
    %v424 = vld [vmem:[#allocation6 + $0x9f0] sm:$0xff]
    %v425 = vld [vmem:[#allocation6 + $0x9f8] sm:$0xff]
    %v426 = vld [vmem:[#allocation6 + $0xa00] sm:$0xff]
    %v427 = vld [vmem:[#allocation6 + $0xa08] sm:$0xff]
    %v428 = vld [vmem:[#allocation6 + $0xa10] sm:$0xff]
    %v429 = vld [vmem:[#allocation6 + $0xa18] sm:$0xff]
    %v430 = vld [vmem:[#allocation6 + $0xa20] sm:$0xff]
    %v431 = vld [vmem:[#allocation6 + $0xa28] sm:$0xff]
    %v432 = vld [vmem:[#allocation6 + $0xa30] sm:$0xff]
    %v433 = vld [vmem:[#allocation6 + $0xa38] sm:$0xff]
    %v434 = vld [vmem:[#allocation6 + $0xa40] sm:$0xff]
    %v435 = vld [vmem:[#allocation6 + $0xa48] sm:$0xff]
    %v436 = vld [vmem:[#allocation6 + $0xa50] sm:$0xff]
    %v437 = vld [vmem:[#allocation6 + $0xa58] sm:$0xff]
    %v438 = vld [vmem:[#allocation6 + $0xa60] sm:$0xff]
    %v439 = vld [vmem:[#allocation6 + $0xa68] sm:$0xff]
    %v440 = vld [vmem:[#allocation6 + $0xa70] sm:$0xff]
    %v441 = vld [vmem:[#allocation6 + $0xa78] sm:$0xff]
    %v442 = vld [vmem:[#allocation6 + $0xa80] sm:$0xff]
    %v443 = vld [vmem:[#allocation6 + $0xa88] sm:$0xff]
    %v444 = vld [vmem:[#allocation6 + $0xa90] sm:$0xff]
    %v445 = vld [vmem:[#allocation6 + $0xa98] sm:$0xff]
    %v446 = vld [vmem:[#allocation6 + $0xaa0] sm:$0xff]
    %v447 = vld [vmem:[#allocation6 + $0xaa8] sm:$0xff]
    %v448 = vld [vmem:[#allocation6 + $0xab0] sm:$0xff]
    %v449 = vld [vmem:[#allocation6 + $0xab8] sm:$0xff]
    %v450 = vld [vmem:[#allocation6 + $0xac0] sm:$0xff]
    %v451 = vld [vmem:[#allocation6 + $0xac8] sm:$0xff]
    %v452 = vld [vmem:[#allocation6 + $0xad0] sm:$0xff]
    %v453 = vld [vmem:[#allocation6 + $0xad8] sm:$0xff]
    %v454 = vld [vmem:[#allocation6 + $0xae0] sm:$0xff]
    %v455 = vld [vmem:[#allocation6 + $0xae8] sm:$0xff]
    %v456 = vld [vmem:[#allocation6 + $0xaf0] sm:$0xff]
    %v457 = vld [vmem:[#allocation6 + $0xaf8] sm:$0xff]
    %v458 = vld [vmem:[#allocation6 + $0xb00] sm:$0xff]
    %v459 = vld [vmem:[#allocation6 + $0xb08] sm:$0xff]
    %v460 = vld [vmem:[#allocation6 + $0xb10] sm:$0xff]
    %v461 = vld [vmem:[#allocation6 + $0xb18] sm:$0xff]
    %v462 = vld [vmem:[#allocation6 + $0xb20] sm:$0xff]
    %v463 = vld [vmem:[#allocation6 + $0xb28] sm:$0xff]
    %v464 = vld [vmem:[#allocation6 + $0xb30] sm:$0xff]
    %v465 = vld [vmem:[#allocation6 + $0xb38] sm:$0xff]
    %v466 = vld [vmem:[#allocation6 + $0xb40] sm:$0xff]
    %v467 = vld [vmem:[#allocation6 + $0xb48] sm:$0xff]
    %v468 = vld [vmem:[#allocation6 + $0xb50] sm:$0xff]
    %v469 = vld [vmem:[#allocation6 + $0xb58] sm:$0xff]
    %v470 = vld [vmem:[#allocation6 + $0xb60] sm:$0xff]
    %v471 = vld [vmem:[#allocation6 + $0xb68] sm:$0xff]
    %v472 = vld [vmem:[#allocation6 + $0xb70] sm:$0xff]
    %v473 = vld [vmem:[#allocation6 + $0xb78] sm:$0xff]
    %v474 = vld [vmem:[#allocation6 + $0xb80] sm:$0xff]
    %v475 = vld [vmem:[#allocation6 + $0xb88] sm:$0xff]
    %v476 = vld [vmem:[#allocation6 + $0xb90] sm:$0xff]
    %v477 = vld [vmem:[#allocation6 + $0xb98] sm:$0xff]
    %v478 = vld [vmem:[#allocation6 + $0xba0] sm:$0xff]
    %v479 = vld [vmem:[#allocation6 + $0xba8] sm:$0xff]
    %v480 = vld [vmem:[#allocation6 + $0xbb0] sm:$0xff]
    %v481 = vld [vmem:[#allocation6 + $0xbb8] sm:$0xff]
    %v482 = vld [vmem:[#allocation6 + $0xbc0] sm:$0xff]
    %v483 = vld [vmem:[#allocation6 + $0xbc8] sm:$0xff]
    %v484 = vld [vmem:[#allocation6 + $0xbd0] sm:$0xff]
    %v485 = vld [vmem:[#allocation6 + $0xbd8] sm:$0xff]
    %v486 = vld [vmem:[#allocation6 + $0xbe0] sm:$0xff]
    %v487 = vld [vmem:[#allocation6 + $0xbe8] sm:$0xff]
    %v488 = vld [vmem:[#allocation6 + $0xbf0] sm:$0xff]
    %v489 = vld [vmem:[#allocation6 + $0xbf8] sm:$0xff]
    %v490 = vld [vmem:[#allocation6 + $0xc00] sm:$0xff]
    %v491 = vld [vmem:[#allocation6 + $0xc08] sm:$0xff]
    %v492 = vld [vmem:[#allocation6 + $0xc10] sm:$0xff]
    %v493 = vld [vmem:[#allocation6 + $0xc18] sm:$0xff]
    %v494 = vld [vmem:[#allocation6 + $0xc20] sm:$0xff]
    %v495 = vld [vmem:[#allocation6 + $0xc28] sm:$0xff]
    %v496 = vld [vmem:[#allocation6 + $0xc30] sm:$0xff]
    %v497 = vld [vmem:[#allocation6 + $0xc38] sm:$0xff]
    %v498 = vld [vmem:[#allocation6 + $0xc40] sm:$0xff]
    %v499 = vld [vmem:[#allocation6 + $0xc48] sm:$0xff]
    %v500 = vld [vmem:[#allocation6 + $0xc50] sm:$0xff]
    %v501 = vld [vmem:[#allocation6 + $0xc58] sm:$0xff]
    %v502 = vld [vmem:[#allocation8] sm:$0xff]
    %v503 = vld [vmem:[#allocation8 + $0x8] sm:$0xff]
    %v504 = vld [vmem:[#allocation8 + $0x10] sm:$0x3f]
    %v508 = vperm.slane %v502, 0
    %v509 = vperm.slane %v502, 1
    %v510 = vperm.slane %v502, 2
    %v511 = vperm.slane %v502, 3
    %v512 = vperm.slane %v502, 4
    %v513 = vperm.slane %v502, 5
    %v514 = vperm.slane %v502, 6
    %v515 = vperm.slane %v502, 7
    %v516 = vperm.slane %v503, 0
    %v517 = vperm.slane %v503, 1
    %v518 = vperm.slane %v503, 2
    %v519 = vperm.slane %v503, 3
    %v520 = vperm.slane %v503, 4
    %v521 = vperm.slane %v503, 5
    %v522 = vperm.slane %v503, 6
    %v523 = vperm.slane %v503, 7
    %v524 = vperm.slane %v504, 0
    %v525 = vperm.slane %v504, 1
    %v526 = vperm.slane %v504, 2
    %v527 = vperm.slane %v504, 3
    %v528 = vperm.slane %v504, 4
    %v529 = vperm.slane %v504, 5
    %v556 = vunpack.c.l.b16 %v102
    %v557 = vunpack.c.h.b16 %v102
    %v558 = vunpack.c.l.b16 %v103
    %v559 = vunpack.c.l.b16 %v104
    %v560 = vunpack.c.h.b16 %v104
    %v561 = vunpack.c.l.b16 %v105
    %v562 = vpack.c.b16 %v559, %v556
    %v563 = vpack.c.b16 %v560, %v557
    %v564 = vpack.c.b16 %v561, %v558
    %v963 = vunpack.c.l.b16 %v106
    %v964 = vunpack.c.h.b16 %v106
    %v965 = vunpack.c.l.b16 %v107
    %v966 = vunpack.c.h.b16 %v107
    %v967 = vunpack.c.l.b16 %v108
    %v968 = vunpack.c.h.b16 %v108
    %v969 = vunpack.c.l.b16 %v109
    %v970 = vunpack.c.h.b16 %v109
    %v971 = vunpack.c.l.b16 %v110
    %v972 = vunpack.c.h.b16 %v110
    %v973 = vunpack.c.l.b16 %v111
    %v974 = vunpack.c.h.b16 %v111
    %v975 = vunpack.c.l.b16 %v112
    %v976 = vunpack.c.h.b16 %v112
    %v977 = vunpack.c.l.b16 %v113
    %v978 = vunpack.c.h.b16 %v113
    %v979 = vunpack.c.l.b16 %v114
    %v980 = vunpack.c.h.b16 %v114
    %v981 = vunpack.c.l.b16 %v115
    %v982 = vunpack.c.h.b16 %v115
    %v983 = vunpack.c.l.b16 %v116
    %v984 = vunpack.c.h.b16 %v116
    %v985 = vunpack.c.l.b16 %v117
    %v986 = vunpack.c.h.b16 %v117
    %v987 = vunpack.c.l.b16 %v118
    %v988 = vunpack.c.h.b16 %v118
    %v989 = vunpack.c.l.b16 %v119
    %v990 = vunpack.c.h.b16 %v119
    %v991 = vunpack.c.l.b16 %v120
    %v992 = vunpack.c.h.b16 %v120
    %v993 = vunpack.c.l.b16 %v121
    %v994 = vunpack.c.h.b16 %v121
    %v995 = vunpack.c.l.b16 %v122
    %v996 = vunpack.c.h.b16 %v122
    %v997 = vunpack.c.l.b16 %v123
    %v998 = vunpack.c.h.b16 %v123
    %v999 = vunpack.c.l.b16 %v124
    %v1000 = vunpack.c.h.b16 %v124
    %v1001 = vunpack.c.l.b16 %v125
    %v1002 = vunpack.c.h.b16 %v125
    %v1003 = vunpack.c.l.b16 %v126
    %v1004 = vunpack.c.h.b16 %v126
    %v1005 = vunpack.c.l.b16 %v127
    %v1006 = vunpack.c.h.b16 %v127
    %v1007 = vunpack.c.l.b16 %v128
    %v1008 = vunpack.c.h.b16 %v128
    %v1009 = vunpack.c.l.b16 %v129
    %v1010 = vunpack.c.h.b16 %v129
    %v1011 = vunpack.c.l.b16 %v130
    %v1012 = vunpack.c.h.b16 %v130
    %v1013 = vunpack.c.l.b16 %v131
    %v1014 = vunpack.c.h.b16 %v131
    %v1015 = vunpack.c.l.b16 %v132
    %v1016 = vunpack.c.h.b16 %v132
    %v1017 = vunpack.c.l.b16 %v133
    %v1018 = vunpack.c.h.b16 %v133
    %v1019 = vunpack.c.l.b16 %v134
    %v1020 = vunpack.c.h.b16 %v134
    %v1021 = vunpack.c.l.b16 %v135
    %v1022 = vunpack.c.h.b16 %v135
    %v1023 = vunpack.c.l.b16 %v136
    %v1024 = vunpack.c.h.b16 %v136
    %v1025 = vunpack.c.l.b16 %v137
    %v1026 = vunpack.c.h.b16 %v137
    %v1027 = vunpack.c.l.b16 %v138
    %v1028 = vunpack.c.h.b16 %v138
    %v1029 = vunpack.c.l.b16 %v139
    %v1030 = vunpack.c.h.b16 %v139
    %v1031 = vunpack.c.l.b16 %v140
    %v1032 = vunpack.c.h.b16 %v140
    %v1033 = vunpack.c.l.b16 %v141
    %v1034 = vunpack.c.h.b16 %v141
    %v1035 = vunpack.c.l.b16 %v142
    %v1036 = vunpack.c.h.b16 %v142
    %v1037 = vunpack.c.l.b16 %v143
    %v1038 = vunpack.c.h.b16 %v143
    %v1039 = vunpack.c.l.b16 %v144
    %v1040 = vunpack.c.h.b16 %v144
    %v1041 = vunpack.c.l.b16 %v145
    %v1042 = vunpack.c.h.b16 %v145
    %v1043 = vunpack.c.l.b16 %v146
    %v1044 = vunpack.c.h.b16 %v146
    %v1045 = vunpack.c.l.b16 %v147
    %v1046 = vunpack.c.h.b16 %v147
    %v1047 = vunpack.c.l.b16 %v148
    %v1048 = vunpack.c.h.b16 %v148
    %v1049 = vunpack.c.l.b16 %v149
    %v1050 = vunpack.c.h.b16 %v149
    %v1051 = vunpack.c.l.b16 %v150
    %v1052 = vunpack.c.h.b16 %v150
    %v1053 = vunpack.c.l.b16 %v151
    %v1054 = vunpack.c.h.b16 %v151
    %v1055 = vunpack.c.l.b16 %v152
    %v1056 = vunpack.c.h.b16 %v152
    %v1057 = vunpack.c.l.b16 %v153
    %v1058 = vunpack.c.h.b16 %v153
    %v1059 = vunpack.c.l.b16 %v154
    %v1060 = vunpack.c.h.b16 %v154
    %v1061 = vunpack.c.l.b16 %v155
    %v1062 = vunpack.c.h.b16 %v155
    %v1063 = vunpack.c.l.b16 %v156
    %v1064 = vunpack.c.h.b16 %v156
    %v1065 = vunpack.c.l.b16 %v157
    %v1066 = vunpack.c.h.b16 %v157
    %v1067 = vunpack.c.l.b16 %v158
    %v1068 = vunpack.c.h.b16 %v158
    %v1069 = vunpack.c.l.b16 %v159
    %v1070 = vunpack.c.h.b16 %v159
    %v1071 = vunpack.c.l.b16 %v160
    %v1072 = vunpack.c.h.b16 %v160
    %v1073 = vunpack.c.l.b16 %v161
    %v1074 = vunpack.c.h.b16 %v161
    %v1075 = vunpack.c.l.b16 %v162
    %v1076 = vunpack.c.h.b16 %v162
    %v1077 = vunpack.c.l.b16 %v163
    %v1078 = vunpack.c.h.b16 %v163
    %v1079 = vunpack.c.l.b16 %v164
    %v1080 = vunpack.c.h.b16 %v164
    %v1081 = vunpack.c.l.b16 %v165
    %v1082 = vunpack.c.h.b16 %v165
    %v1083 = vunpack.c.l.b16 %v166
    %v1084 = vunpack.c.h.b16 %v166
    %v1085 = vunpack.c.l.b16 %v167
    %v1086 = vunpack.c.h.b16 %v167
    %v1087 = vunpack.c.l.b16 %v168
    %v1088 = vunpack.c.h.b16 %v168
    %v1089 = vunpack.c.l.b16 %v169
    %v1090 = vunpack.c.h.b16 %v169
    %v1091 = vunpack.c.l.b16 %v170
    %v1092 = vunpack.c.h.b16 %v170
    %v1093 = vunpack.c.l.b16 %v171
    %v1094 = vunpack.c.h.b16 %v171
    %v1095 = vunpack.c.l.b16 %v172
    %v1096 = vunpack.c.h.b16 %v172
    %v1097 = vunpack.c.l.b16 %v173
    %v1098 = vunpack.c.h.b16 %v173
    %v1099 = vunpack.c.l.b16 %v174
    %v1100 = vunpack.c.h.b16 %v174
    %v1101 = vunpack.c.l.b16 %v175
    %v1102 = vunpack.c.h.b16 %v175
    %v1103 = vunpack.c.l.b16 %v176
    %v1104 = vunpack.c.h.b16 %v176
    %v1105 = vunpack.c.l.b16 %v177
    %v1106 = vunpack.c.h.b16 %v177
    %v1107 = vunpack.c.l.b16 %v178
    %v1108 = vunpack.c.h.b16 %v178
    %v1109 = vunpack.c.l.b16 %v179
    %v1110 = vunpack.c.h.b16 %v179
    %v1111 = vunpack.c.l.b16 %v180
    %v1112 = vunpack.c.h.b16 %v180
    %v1113 = vunpack.c.l.b16 %v181
    %v1114 = vunpack.c.h.b16 %v181
    %v1115 = vunpack.c.l.b16 %v182
    %v1116 = vunpack.c.h.b16 %v182
    %v1117 = vunpack.c.l.b16 %v183
    %v1118 = vunpack.c.h.b16 %v183
    %v1119 = vunpack.c.l.b16 %v184
    %v1120 = vunpack.c.h.b16 %v184
    %v1121 = vunpack.c.l.b16 %v185
    %v1122 = vunpack.c.h.b16 %v185
    %v1123 = vunpack.c.l.b16 %v186
    %v1124 = vunpack.c.h.b16 %v186
    %v1125 = vunpack.c.l.b16 %v187
    %v1126 = vunpack.c.h.b16 %v187
    %v1127 = vunpack.c.l.b16 %v188
    %v1128 = vunpack.c.h.b16 %v188
    %v1129 = vunpack.c.l.b16 %v189
    %v1130 = vunpack.c.h.b16 %v189
    %v1131 = vunpack.c.l.b16 %v190
    %v1132 = vunpack.c.h.b16 %v190
    %v1133 = vunpack.c.l.b16 %v191
    %v1134 = vunpack.c.h.b16 %v191
    %v1135 = vunpack.c.l.b16 %v192
    %v1136 = vunpack.c.h.b16 %v192
    %v1137 = vunpack.c.l.b16 %v193
    %v1138 = vunpack.c.h.b16 %v193
    %v1139 = vunpack.c.l.b16 %v194
    %v1140 = vunpack.c.h.b16 %v194
    %v1141 = vunpack.c.l.b16 %v195
    %v1142 = vunpack.c.h.b16 %v195
    %v1143 = vunpack.c.l.b16 %v196
    %v1144 = vunpack.c.h.b16 %v196
    %v1145 = vunpack.c.l.b16 %v197
    %v1146 = vunpack.c.h.b16 %v197
    %v1147 = vunpack.c.l.b16 %v198
    %v1148 = vunpack.c.h.b16 %v198
    %v1149 = vunpack.c.l.b16 %v199
    %v1150 = vunpack.c.h.b16 %v199
    %v1151 = vunpack.c.l.b16 %v200
    %v1152 = vunpack.c.h.b16 %v200
    %v1153 = vunpack.c.l.b16 %v201
    %v1154 = vunpack.c.h.b16 %v201
    %v1155 = vunpack.c.l.b16 %v202
    %v1156 = vunpack.c.h.b16 %v202
    %v1157 = vunpack.c.l.b16 %v203
    %v1158 = vunpack.c.h.b16 %v203
    %v1159 = vunpack.c.l.b16 %v204
    %v1160 = vunpack.c.h.b16 %v204
    %v1161 = vunpack.c.l.b16 %v205
    %v1162 = vunpack.c.h.b16 %v205
    %v1163 = vunpack.c.l.b16 %v206
    %v1164 = vunpack.c.h.b16 %v206
    %v1165 = vunpack.c.l.b16 %v207
    %v1166 = vunpack.c.h.b16 %v207
    %v1167 = vunpack.c.l.b16 %v208
    %v1168 = vunpack.c.h.b16 %v208
    %v1169 = vunpack.c.l.b16 %v209
    %v1170 = vunpack.c.h.b16 %v209
    %v1171 = vunpack.c.l.b16 %v210
    %v1172 = vunpack.c.h.b16 %v210
    %v1173 = vunpack.c.l.b16 %v211
    %v1174 = vunpack.c.h.b16 %v211
    %v1175 = vunpack.c.l.b16 %v212
    %v1176 = vunpack.c.h.b16 %v212
    %v1177 = vunpack.c.l.b16 %v213
    %v1178 = vunpack.c.h.b16 %v213
    %v1179 = vunpack.c.l.b16 %v214
    %v1180 = vunpack.c.h.b16 %v214
    %v1181 = vunpack.c.l.b16 %v215
    %v1182 = vunpack.c.h.b16 %v215
    %v1183 = vunpack.c.l.b16 %v216
    %v1184 = vunpack.c.h.b16 %v216
    %v1185 = vunpack.c.l.b16 %v217
    %v1186 = vunpack.c.h.b16 %v217
    %v1187 = vunpack.c.l.b16 %v218
    %v1188 = vunpack.c.h.b16 %v218
    %v1189 = vunpack.c.l.b16 %v219
    %v1190 = vunpack.c.h.b16 %v219
    %v1191 = vunpack.c.l.b16 %v220
    %v1192 = vunpack.c.h.b16 %v220
    %v1193 = vunpack.c.l.b16 %v221
    %v1194 = vunpack.c.h.b16 %v221
    %v1195 = vunpack.c.l.b16 %v222
    %v1196 = vunpack.c.h.b16 %v222
    %v1197 = vunpack.c.l.b16 %v223
    %v1198 = vunpack.c.h.b16 %v223
    %v1199 = vunpack.c.l.b16 %v224
    %v1200 = vunpack.c.h.b16 %v224
    %v1201 = vunpack.c.l.b16 %v225
    %v1202 = vunpack.c.h.b16 %v225
    %v1203 = vunpack.c.l.b16 %v226
    %v1204 = vunpack.c.h.b16 %v226
    %v1205 = vunpack.c.l.b16 %v227
    %v1206 = vunpack.c.h.b16 %v227
    %v1207 = vunpack.c.l.b16 %v228
    %v1208 = vunpack.c.h.b16 %v228
    %v1209 = vunpack.c.l.b16 %v229
    %v1210 = vunpack.c.h.b16 %v229
    %v1211 = vunpack.c.l.b16 %v230
    %v1212 = vunpack.c.h.b16 %v230
    %v1213 = vunpack.c.l.b16 %v231
    %v1214 = vunpack.c.h.b16 %v231
    %v1215 = vunpack.c.l.b16 %v232
    %v1216 = vunpack.c.h.b16 %v232
    %v1217 = vunpack.c.l.b16 %v233
    %v1218 = vunpack.c.h.b16 %v233
    %v1219 = vunpack.c.l.b16 %v234
    %v1220 = vunpack.c.h.b16 %v234
    %v1221 = vunpack.c.l.b16 %v235
    %v1222 = vunpack.c.h.b16 %v235
    %v1223 = vunpack.c.l.b16 %v236
    %v1224 = vunpack.c.h.b16 %v236
    %v1225 = vunpack.c.l.b16 %v237
    %v1226 = vunpack.c.h.b16 %v237
    %v1227 = vunpack.c.l.b16 %v238
    %v1228 = vunpack.c.h.b16 %v238
    %v1229 = vunpack.c.l.b16 %v239
    %v1230 = vunpack.c.h.b16 %v239
    %v1231 = vunpack.c.l.b16 %v240
    %v1232 = vunpack.c.h.b16 %v240
    %v1233 = vunpack.c.l.b16 %v241
    %v1234 = vunpack.c.h.b16 %v241
    %v1235 = vunpack.c.l.b16 %v242
    %v1236 = vunpack.c.h.b16 %v242
    %v1237 = vunpack.c.l.b16 %v243
    %v1238 = vunpack.c.h.b16 %v243
    %v1239 = vunpack.c.l.b16 %v244
    %v1240 = vunpack.c.h.b16 %v244
    %v1241 = vunpack.c.l.b16 %v245
    %v1242 = vunpack.c.h.b16 %v245
    %v1243 = vunpack.c.l.b16 %v246
    %v1244 = vunpack.c.h.b16 %v246
    %v1245 = vunpack.c.l.b16 %v247
    %v1246 = vunpack.c.h.b16 %v247
    %v1247 = vunpack.c.l.b16 %v248
    %v1248 = vunpack.c.h.b16 %v248
    %v1249 = vunpack.c.l.b16 %v249
    %v1250 = vunpack.c.h.b16 %v249
    %v1251 = vunpack.c.l.b16 %v250
    %v1252 = vunpack.c.h.b16 %v250
    %v1253 = vunpack.c.l.b16 %v251
    %v1254 = vunpack.c.h.b16 %v251
    %v1255 = vunpack.c.l.b16 %v252
    %v1256 = vunpack.c.h.b16 %v252
    %v1257 = vunpack.c.l.b16 %v253
    %v1258 = vunpack.c.h.b16 %v253
    %v1259 = vunpack.c.l.b16 %v254
    %v1260 = vunpack.c.h.b16 %v254
    %v1261 = vunpack.c.l.b16 %v255
    %v1262 = vunpack.c.h.b16 %v255
    %v1263 = vunpack.c.l.b16 %v256
    %v1264 = vunpack.c.h.b16 %v256
    %v1265 = vunpack.c.l.b16 %v257
    %v1266 = vunpack.c.h.b16 %v257
    %v1267 = vunpack.c.l.b16 %v258
    %v1268 = vunpack.c.h.b16 %v258
    %v1269 = vunpack.c.l.b16 %v259
    %v1270 = vunpack.c.h.b16 %v259
    %v1271 = vunpack.c.l.b16 %v260
    %v1272 = vunpack.c.h.b16 %v260
    %v1273 = vunpack.c.l.b16 %v261
    %v1274 = vunpack.c.h.b16 %v261
    %v1275 = vunpack.c.l.b16 %v262
    %v1276 = vunpack.c.h.b16 %v262
    %v1277 = vunpack.c.l.b16 %v263
    %v1278 = vunpack.c.h.b16 %v263
    %v1279 = vunpack.c.l.b16 %v264
    %v1280 = vunpack.c.h.b16 %v264
    %v1281 = vunpack.c.l.b16 %v265
    %v1282 = vunpack.c.h.b16 %v265
    %v1283 = vunpack.c.l.b16 %v266
    %v1284 = vunpack.c.h.b16 %v266
    %v1285 = vunpack.c.l.b16 %v267
    %v1286 = vunpack.c.h.b16 %v267
    %v1287 = vunpack.c.l.b16 %v268
    %v1288 = vunpack.c.h.b16 %v268
    %v1289 = vunpack.c.l.b16 %v269
    %v1290 = vunpack.c.h.b16 %v269
    %v1291 = vunpack.c.l.b16 %v270
    %v1292 = vunpack.c.h.b16 %v270
    %v1293 = vunpack.c.l.b16 %v271
    %v1294 = vunpack.c.h.b16 %v271
    %v1295 = vunpack.c.l.b16 %v272
    %v1296 = vunpack.c.h.b16 %v272
    %v1297 = vunpack.c.l.b16 %v273
    %v1298 = vunpack.c.h.b16 %v273
    %v1299 = vunpack.c.l.b16 %v274
    %v1300 = vunpack.c.h.b16 %v274
    %v1301 = vunpack.c.l.b16 %v275
    %v1302 = vunpack.c.h.b16 %v275
    %v1303 = vunpack.c.l.b16 %v276
    %v1304 = vunpack.c.h.b16 %v276
    %v1305 = vunpack.c.l.b16 %v277
    %v1306 = vunpack.c.h.b16 %v277
    %v1307 = vunpack.c.l.b16 %v278
    %v1308 = vunpack.c.h.b16 %v278
    %v1309 = vunpack.c.l.b16 %v279
    %v1310 = vunpack.c.h.b16 %v279
    %v1311 = vunpack.c.l.b16 %v280
    %v1312 = vunpack.c.h.b16 %v280
    %v1313 = vunpack.c.l.b16 %v281
    %v1314 = vunpack.c.h.b16 %v281
    %v1315 = vunpack.c.l.b16 %v282
    %v1316 = vunpack.c.h.b16 %v282
    %v1317 = vunpack.c.l.b16 %v283
    %v1318 = vunpack.c.h.b16 %v283
    %v1319 = vunpack.c.l.b16 %v284
    %v1320 = vunpack.c.h.b16 %v284
    %v1321 = vunpack.c.l.b16 %v285
    %v1322 = vunpack.c.h.b16 %v285
    %v1323 = vunpack.c.l.b16 %v286
    %v1324 = vunpack.c.h.b16 %v286
    %v1325 = vunpack.c.l.b16 %v287
    %v1326 = vunpack.c.h.b16 %v287
    %v1327 = vunpack.c.l.b16 %v288
    %v1328 = vunpack.c.h.b16 %v288
    %v1329 = vunpack.c.l.b16 %v289
    %v1330 = vunpack.c.h.b16 %v289
    %v1331 = vunpack.c.l.b16 %v290
    %v1332 = vunpack.c.h.b16 %v290
    %v1333 = vunpack.c.l.b16 %v291
    %v1334 = vunpack.c.h.b16 %v291
    %v1335 = vunpack.c.l.b16 %v292
    %v1336 = vunpack.c.h.b16 %v292
    %v1337 = vunpack.c.l.b16 %v293
    %v1338 = vunpack.c.h.b16 %v293
    %v1339 = vunpack.c.l.b16 %v294
    %v1340 = vunpack.c.h.b16 %v294
    %v1341 = vunpack.c.l.b16 %v295
    %v1342 = vunpack.c.h.b16 %v295
    %v1343 = vunpack.c.l.b16 %v296
    %v1344 = vunpack.c.h.b16 %v296
    %v1345 = vunpack.c.l.b16 %v297
    %v1346 = vunpack.c.h.b16 %v297
    %v1347 = vunpack.c.l.b16 %v298
    %v1348 = vunpack.c.h.b16 %v298
    %v1349 = vunpack.c.l.b16 %v299
    %v1350 = vunpack.c.h.b16 %v299
    %v1351 = vunpack.c.l.b16 %v300
    %v1352 = vunpack.c.h.b16 %v300
    %v1353 = vunpack.c.l.b16 %v301
    %v1354 = vunpack.c.h.b16 %v301
    %v1355 = vunpack.c.l.b16 %v302
    %v1356 = vunpack.c.h.b16 %v302
    %v1357 = vunpack.c.l.b16 %v303
    %v1358 = vunpack.c.h.b16 %v303
    %v1359 = vunpack.c.l.b16 %v304
    %v1360 = vunpack.c.h.b16 %v304
    %v1361 = vunpack.c.l.b16 %v305
    %v1362 = vunpack.c.h.b16 %v305
    %v1363 = vunpack.c.l.b16 %v306
    %v1364 = vunpack.c.h.b16 %v306
    %v1365 = vunpack.c.l.b16 %v307
    %v1366 = vunpack.c.h.b16 %v307
    %v1367 = vunpack.c.l.b16 %v308
    %v1368 = vunpack.c.h.b16 %v308
    %v1369 = vunpack.c.l.b16 %v309
    %v1370 = vunpack.c.h.b16 %v309
    %v1371 = vunpack.c.l.b16 %v310
    %v1372 = vunpack.c.h.b16 %v310
    %v1373 = vunpack.c.l.b16 %v311
    %v1374 = vunpack.c.h.b16 %v311
    %v1375 = vunpack.c.l.b16 %v312
    %v1376 = vunpack.c.h.b16 %v312
    %v1377 = vunpack.c.l.b16 %v313
    %v1378 = vunpack.c.h.b16 %v313
    %v1379 = vunpack.c.l.b16 %v314
    %v1380 = vunpack.c.h.b16 %v314
    %v1381 = vunpack.c.l.b16 %v315
    %v1382 = vunpack.c.h.b16 %v315
    %v1383 = vunpack.c.l.b16 %v316
    %v1384 = vunpack.c.h.b16 %v316
    %v1385 = vunpack.c.l.b16 %v317
    %v1386 = vunpack.c.h.b16 %v317
    %v1387 = vunpack.c.l.b16 %v318
    %v1388 = vunpack.c.h.b16 %v318
    %v1389 = vunpack.c.l.b16 %v319
    %v1390 = vunpack.c.h.b16 %v319
    %v1391 = vunpack.c.l.b16 %v320
    %v1392 = vunpack.c.h.b16 %v320
    %v1393 = vunpack.c.l.b16 %v321
    %v1394 = vunpack.c.h.b16 %v321
    %v1395 = vunpack.c.l.b16 %v322
    %v1396 = vunpack.c.h.b16 %v322
    %v1397 = vunpack.c.l.b16 %v323
    %v1398 = vunpack.c.h.b16 %v323
    %v1399 = vunpack.c.l.b16 %v324
    %v1400 = vunpack.c.h.b16 %v324
    %v1401 = vunpack.c.l.b16 %v325
    %v1402 = vunpack.c.h.b16 %v325
    %v1403 = vunpack.c.l.b16 %v326
    %v1404 = vunpack.c.h.b16 %v326
    %v1405 = vunpack.c.l.b16 %v327
    %v1406 = vunpack.c.h.b16 %v327
    %v1407 = vunpack.c.l.b16 %v328
    %v1408 = vunpack.c.h.b16 %v328
    %v1409 = vunpack.c.l.b16 %v329
    %v1410 = vunpack.c.h.b16 %v329
    %v1411 = vunpack.c.l.b16 %v330
    %v1412 = vunpack.c.h.b16 %v330
    %v1413 = vunpack.c.l.b16 %v331
    %v1414 = vunpack.c.h.b16 %v331
    %v1415 = vunpack.c.l.b16 %v332
    %v1416 = vunpack.c.h.b16 %v332
    %v1417 = vunpack.c.l.b16 %v333
    %v1418 = vunpack.c.h.b16 %v333
    %v1419 = vunpack.c.l.b16 %v334
    %v1420 = vunpack.c.h.b16 %v334
    %v1421 = vunpack.c.l.b16 %v335
    %v1422 = vunpack.c.h.b16 %v335
    %v1423 = vunpack.c.l.b16 %v336
    %v1424 = vunpack.c.h.b16 %v336
    %v1425 = vunpack.c.l.b16 %v337
    %v1426 = vunpack.c.h.b16 %v337
    %v1427 = vunpack.c.l.b16 %v338
    %v1428 = vunpack.c.h.b16 %v338
    %v1429 = vunpack.c.l.b16 %v339
    %v1430 = vunpack.c.h.b16 %v339
    %v1431 = vunpack.c.l.b16 %v340
    %v1432 = vunpack.c.h.b16 %v340
    %v1433 = vunpack.c.l.b16 %v341
    %v1434 = vunpack.c.h.b16 %v341
    %v1435 = vunpack.c.l.b16 %v342
    %v1436 = vunpack.c.h.b16 %v342
    %v1437 = vunpack.c.l.b16 %v343
    %v1438 = vunpack.c.h.b16 %v343
    %v1439 = vunpack.c.l.b16 %v344
    %v1440 = vunpack.c.h.b16 %v344
    %v1441 = vunpack.c.l.b16 %v345
    %v1442 = vunpack.c.h.b16 %v345
    %v1443 = vunpack.c.l.b16 %v346
    %v1444 = vunpack.c.h.b16 %v346
    %v1445 = vunpack.c.l.b16 %v347
    %v1446 = vunpack.c.h.b16 %v347
    %v1447 = vunpack.c.l.b16 %v348
    %v1448 = vunpack.c.h.b16 %v348
    %v1449 = vunpack.c.l.b16 %v349
    %v1450 = vunpack.c.h.b16 %v349
    %v1451 = vunpack.c.l.b16 %v350
    %v1452 = vunpack.c.h.b16 %v350
    %v1453 = vunpack.c.l.b16 %v351
    %v1454 = vunpack.c.h.b16 %v351
    %v1455 = vunpack.c.l.b16 %v352
    %v1456 = vunpack.c.h.b16 %v352
    %v1457 = vunpack.c.l.b16 %v353
    %v1458 = vunpack.c.h.b16 %v353
    %v1459 = vunpack.c.l.b16 %v354
    %v1460 = vunpack.c.h.b16 %v354
    %v1461 = vunpack.c.l.b16 %v355
    %v1462 = vunpack.c.h.b16 %v355
    %v1463 = vunpack.c.l.b16 %v356
    %v1464 = vunpack.c.h.b16 %v356
    %v1465 = vunpack.c.l.b16 %v357
    %v1466 = vunpack.c.h.b16 %v357
    %v1467 = vunpack.c.l.b16 %v358
    %v1468 = vunpack.c.h.b16 %v358
    %v1469 = vunpack.c.l.b16 %v359
    %v1470 = vunpack.c.h.b16 %v359
    %v1471 = vunpack.c.l.b16 %v360
    %v1472 = vunpack.c.h.b16 %v360
    %v1473 = vunpack.c.l.b16 %v361
    %v1474 = vunpack.c.h.b16 %v361
    %v1475 = vunpack.c.l.b16 %v362
    %v1476 = vunpack.c.h.b16 %v362
    %v1477 = vunpack.c.l.b16 %v363
    %v1478 = vunpack.c.h.b16 %v363
    %v1479 = vunpack.c.l.b16 %v364
    %v1480 = vunpack.c.h.b16 %v364
    %v1481 = vunpack.c.l.b16 %v365
    %v1482 = vunpack.c.h.b16 %v365
    %v1483 = vunpack.c.l.b16 %v366
    %v1484 = vunpack.c.h.b16 %v366
    %v1485 = vunpack.c.l.b16 %v367
    %v1486 = vunpack.c.h.b16 %v367
    %v1487 = vunpack.c.l.b16 %v368
    %v1488 = vunpack.c.h.b16 %v368
    %v1489 = vunpack.c.l.b16 %v369
    %v1490 = vunpack.c.h.b16 %v369
    %v1491 = vunpack.c.l.b16 %v370
    %v1492 = vunpack.c.h.b16 %v370
    %v1493 = vunpack.c.l.b16 %v371
    %v1494 = vunpack.c.h.b16 %v371
    %v1495 = vunpack.c.l.b16 %v372
    %v1496 = vunpack.c.h.b16 %v372
    %v1497 = vunpack.c.l.b16 %v373
    %v1498 = vunpack.c.h.b16 %v373
    %v1499 = vunpack.c.l.b16 %v374
    %v1500 = vunpack.c.h.b16 %v374
    %v1501 = vunpack.c.l.b16 %v375
    %v1502 = vunpack.c.h.b16 %v375
    %v1503 = vunpack.c.l.b16 %v376
    %v1504 = vunpack.c.h.b16 %v376
    %v1505 = vunpack.c.l.b16 %v377
    %v1506 = vunpack.c.h.b16 %v377
    %v1507 = vunpack.c.l.b16 %v378
    %v1508 = vunpack.c.h.b16 %v378
    %v1509 = vunpack.c.l.b16 %v379
    %v1510 = vunpack.c.h.b16 %v379
    %v1511 = vunpack.c.l.b16 %v380
    %v1512 = vunpack.c.h.b16 %v380
    %v1513 = vunpack.c.l.b16 %v381
    %v1514 = vunpack.c.h.b16 %v381
    %v1515 = vunpack.c.l.b16 %v382
    %v1516 = vunpack.c.h.b16 %v382
    %v1517 = vunpack.c.l.b16 %v383
    %v1518 = vunpack.c.h.b16 %v383
    %v1519 = vunpack.c.l.b16 %v384
    %v1520 = vunpack.c.h.b16 %v384
    %v1521 = vunpack.c.l.b16 %v385
    %v1522 = vunpack.c.h.b16 %v385
    %v1523 = vunpack.c.l.b16 %v386
    %v1524 = vunpack.c.h.b16 %v386
    %v1525 = vunpack.c.l.b16 %v387
    %v1526 = vunpack.c.h.b16 %v387
    %v1527 = vunpack.c.l.b16 %v388
    %v1528 = vunpack.c.h.b16 %v388
    %v1529 = vunpack.c.l.b16 %v389
    %v1530 = vunpack.c.h.b16 %v389
    %v1531 = vunpack.c.l.b16 %v390
    %v1532 = vunpack.c.h.b16 %v390
    %v1533 = vunpack.c.l.b16 %v391
    %v1534 = vunpack.c.h.b16 %v391
    %v1535 = vunpack.c.l.b16 %v392
    %v1536 = vunpack.c.h.b16 %v392
    %v1537 = vunpack.c.l.b16 %v393
    %v1538 = vunpack.c.h.b16 %v393
    %v1539 = vunpack.c.l.b16 %v394
    %v1540 = vunpack.c.h.b16 %v394
    %v1541 = vunpack.c.l.b16 %v395
    %v1542 = vunpack.c.h.b16 %v395
    %v1543 = vunpack.c.l.b16 %v396
    %v1544 = vunpack.c.h.b16 %v396
    %v1545 = vunpack.c.l.b16 %v397
    %v1546 = vunpack.c.h.b16 %v397
    %v1547 = vunpack.c.l.b16 %v398
    %v1548 = vunpack.c.h.b16 %v398
    %v1549 = vunpack.c.l.b16 %v399
    %v1550 = vunpack.c.h.b16 %v399
    %v1551 = vunpack.c.l.b16 %v400
    %v1552 = vunpack.c.h.b16 %v400
    %v1553 = vunpack.c.l.b16 %v401
    %v1554 = vunpack.c.h.b16 %v401
    %v1555 = vunpack.c.l.b16 %v402
    %v1556 = vunpack.c.h.b16 %v402
    %v1557 = vunpack.c.l.b16 %v403
    %v1558 = vunpack.c.h.b16 %v403
    %v1559 = vunpack.c.l.b16 %v404
    %v1560 = vunpack.c.h.b16 %v404
    %v1561 = vunpack.c.l.b16 %v405
    %v1562 = vunpack.c.h.b16 %v405
    %v1563 = vunpack.c.l.b16 %v406
    %v1564 = vunpack.c.h.b16 %v406
    %v1565 = vunpack.c.l.b16 %v407
    %v1566 = vunpack.c.h.b16 %v407
    %v1567 = vunpack.c.l.b16 %v408
    %v1568 = vunpack.c.h.b16 %v408
    %v1569 = vunpack.c.l.b16 %v409
    %v1570 = vunpack.c.h.b16 %v409
    %v1571 = vunpack.c.l.b16 %v410
    %v1572 = vunpack.c.h.b16 %v410
    %v1573 = vunpack.c.l.b16 %v411
    %v1574 = vunpack.c.h.b16 %v411
    %v1575 = vunpack.c.l.b16 %v412
    %v1576 = vunpack.c.h.b16 %v412
    %v1577 = vunpack.c.l.b16 %v413
    %v1578 = vunpack.c.h.b16 %v413
    %v1579 = vunpack.c.l.b16 %v414
    %v1580 = vunpack.c.h.b16 %v414
    %v1581 = vunpack.c.l.b16 %v415
    %v1582 = vunpack.c.h.b16 %v415
    %v1583 = vunpack.c.l.b16 %v416
    %v1584 = vunpack.c.h.b16 %v416
    %v1585 = vunpack.c.l.b16 %v417
    %v1586 = vunpack.c.h.b16 %v417
    %v1587 = vunpack.c.l.b16 %v418
    %v1588 = vunpack.c.h.b16 %v418
    %v1589 = vunpack.c.l.b16 %v419
    %v1590 = vunpack.c.h.b16 %v419
    %v1591 = vunpack.c.l.b16 %v420
    %v1592 = vunpack.c.h.b16 %v420
    %v1593 = vunpack.c.l.b16 %v421
    %v1594 = vunpack.c.h.b16 %v421
    %v1595 = vunpack.c.l.b16 %v422
    %v1596 = vunpack.c.h.b16 %v422
    %v1597 = vunpack.c.l.b16 %v423
    %v1598 = vunpack.c.h.b16 %v423
    %v1599 = vunpack.c.l.b16 %v424
    %v1600 = vunpack.c.h.b16 %v424
    %v1601 = vunpack.c.l.b16 %v425
    %v1602 = vunpack.c.h.b16 %v425
    %v1603 = vunpack.c.l.b16 %v426
    %v1604 = vunpack.c.h.b16 %v426
    %v1605 = vunpack.c.l.b16 %v427
    %v1606 = vunpack.c.h.b16 %v427
    %v1607 = vunpack.c.l.b16 %v428
    %v1608 = vunpack.c.h.b16 %v428
    %v1609 = vunpack.c.l.b16 %v429
    %v1610 = vunpack.c.h.b16 %v429
    %v1611 = vunpack.c.l.b16 %v430
    %v1612 = vunpack.c.h.b16 %v430
    %v1613 = vunpack.c.l.b16 %v431
    %v1614 = vunpack.c.h.b16 %v431
    %v1615 = vunpack.c.l.b16 %v432
    %v1616 = vunpack.c.h.b16 %v432
    %v1617 = vunpack.c.l.b16 %v433
    %v1618 = vunpack.c.h.b16 %v433
    %v1619 = vunpack.c.l.b16 %v434
    %v1620 = vunpack.c.h.b16 %v434
    %v1621 = vunpack.c.l.b16 %v435
    %v1622 = vunpack.c.h.b16 %v435
    %v1623 = vunpack.c.l.b16 %v436
    %v1624 = vunpack.c.h.b16 %v436
    %v1625 = vunpack.c.l.b16 %v437
    %v1626 = vunpack.c.h.b16 %v437
    %v1627 = vunpack.c.l.b16 %v438
    %v1628 = vunpack.c.h.b16 %v438
    %v1629 = vunpack.c.l.b16 %v439
    %v1630 = vunpack.c.h.b16 %v439
    %v1631 = vunpack.c.l.b16 %v440
    %v1632 = vunpack.c.h.b16 %v440
    %v1633 = vunpack.c.l.b16 %v441
    %v1634 = vunpack.c.h.b16 %v441
    %v1635 = vunpack.c.l.b16 %v442
    %v1636 = vunpack.c.h.b16 %v442
    %v1637 = vunpack.c.l.b16 %v443
    %v1638 = vunpack.c.h.b16 %v443
    %v1639 = vunpack.c.l.b16 %v444
    %v1640 = vunpack.c.h.b16 %v444
    %v1641 = vunpack.c.l.b16 %v445
    %v1642 = vunpack.c.h.b16 %v445
    %v1643 = vunpack.c.l.b16 %v446
    %v1644 = vunpack.c.h.b16 %v446
    %v1645 = vunpack.c.l.b16 %v447
    %v1646 = vunpack.c.h.b16 %v447
    %v1647 = vunpack.c.l.b16 %v448
    %v1648 = vunpack.c.h.b16 %v448
    %v1649 = vunpack.c.l.b16 %v449
    %v1650 = vunpack.c.h.b16 %v449
    %v1651 = vunpack.c.l.b16 %v450
    %v1652 = vunpack.c.h.b16 %v450
    %v1653 = vunpack.c.l.b16 %v451
    %v1654 = vunpack.c.h.b16 %v451
    %v1655 = vunpack.c.l.b16 %v452
    %v1656 = vunpack.c.h.b16 %v452
    %v1657 = vunpack.c.l.b16 %v453
    %v1658 = vunpack.c.h.b16 %v453
    %v1659 = vunpack.c.l.b16 %v454
    %v1660 = vunpack.c.h.b16 %v454
    %v1661 = vunpack.c.l.b16 %v455
    %v1662 = vunpack.c.h.b16 %v455
    %v1663 = vunpack.c.l.b16 %v456
    %v1664 = vunpack.c.h.b16 %v456
    %v1665 = vunpack.c.l.b16 %v457
    %v1666 = vunpack.c.h.b16 %v457
    %v1667 = vunpack.c.l.b16 %v458
    %v1668 = vunpack.c.h.b16 %v458
    %v1669 = vunpack.c.l.b16 %v459
    %v1670 = vunpack.c.h.b16 %v459
    %v1671 = vunpack.c.l.b16 %v460
    %v1672 = vunpack.c.h.b16 %v460
    %v1673 = vunpack.c.l.b16 %v461
    %v1674 = vunpack.c.h.b16 %v461
    %v1675 = vunpack.c.l.b16 %v462
    %v1676 = vunpack.c.h.b16 %v462
    %v1677 = vunpack.c.l.b16 %v463
    %v1678 = vunpack.c.h.b16 %v463
    %v1679 = vunpack.c.l.b16 %v464
    %v1680 = vunpack.c.h.b16 %v464
    %v1681 = vunpack.c.l.b16 %v465
    %v1682 = vunpack.c.h.b16 %v465
    %v1683 = vunpack.c.l.b16 %v466
    %v1684 = vunpack.c.h.b16 %v466
    %v1685 = vunpack.c.l.b16 %v467
    %v1686 = vunpack.c.h.b16 %v467
    %v1687 = vunpack.c.l.b16 %v468
    %v1688 = vunpack.c.h.b16 %v468
    %v1689 = vunpack.c.l.b16 %v469
    %v1690 = vunpack.c.h.b16 %v469
    %v1691 = vunpack.c.l.b16 %v470
    %v1692 = vunpack.c.h.b16 %v470
    %v1693 = vunpack.c.l.b16 %v471
    %v1694 = vunpack.c.h.b16 %v471
    %v1695 = vunpack.c.l.b16 %v472
    %v1696 = vunpack.c.h.b16 %v472
    %v1697 = vunpack.c.l.b16 %v473
    %v1698 = vunpack.c.h.b16 %v473
    %v1699 = vunpack.c.l.b16 %v474
    %v1700 = vunpack.c.h.b16 %v474
    %v1701 = vunpack.c.l.b16 %v475
    %v1702 = vunpack.c.h.b16 %v475
    %v1703 = vunpack.c.l.b16 %v476
    %v1704 = vunpack.c.h.b16 %v476
    %v1705 = vunpack.c.l.b16 %v477
    %v1706 = vunpack.c.h.b16 %v477
    %v1707 = vunpack.c.l.b16 %v478
    %v1708 = vunpack.c.h.b16 %v478
    %v1709 = vunpack.c.l.b16 %v479
    %v1710 = vunpack.c.h.b16 %v479
    %v1711 = vunpack.c.l.b16 %v480
    %v1712 = vunpack.c.h.b16 %v480
    %v1713 = vunpack.c.l.b16 %v481
    %v1714 = vunpack.c.h.b16 %v481
    %v1715 = vunpack.c.l.b16 %v482
    %v1716 = vunpack.c.h.b16 %v482
    %v1717 = vunpack.c.l.b16 %v483
    %v1718 = vunpack.c.h.b16 %v483
    %v1719 = vunpack.c.l.b16 %v484
    %v1720 = vunpack.c.h.b16 %v484
    %v1721 = vunpack.c.l.b16 %v485
    %v1722 = vunpack.c.h.b16 %v485
    %v1723 = vunpack.c.l.b16 %v486
    %v1724 = vunpack.c.h.b16 %v486
    %v1725 = vunpack.c.l.b16 %v487
    %v1726 = vunpack.c.h.b16 %v487
    %v1727 = vunpack.c.l.b16 %v488
    %v1728 = vunpack.c.h.b16 %v488
    %v1729 = vunpack.c.l.b16 %v489
    %v1730 = vunpack.c.h.b16 %v489
    %v1731 = vunpack.c.l.b16 %v490
    %v1732 = vunpack.c.h.b16 %v490
    %v1733 = vunpack.c.l.b16 %v491
    %v1734 = vunpack.c.h.b16 %v491
    %v1735 = vunpack.c.l.b16 %v492
    %v1736 = vunpack.c.h.b16 %v492
    %v1737 = vunpack.c.l.b16 %v493
    %v1738 = vunpack.c.h.b16 %v493
    %v1739 = vunpack.c.l.b16 %v494
    %v1740 = vunpack.c.h.b16 %v494
    %v1741 = vunpack.c.l.b16 %v495
    %v1742 = vunpack.c.h.b16 %v495
    %v1743 = vunpack.c.l.b16 %v496
    %v1744 = vunpack.c.h.b16 %v496
    %v1745 = vunpack.c.l.b16 %v497
    %v1746 = vunpack.c.h.b16 %v497
    %v1747 = vunpack.c.l.b16 %v498
    %v1748 = vunpack.c.h.b16 %v498
    %v1749 = vunpack.c.l.b16 %v499
    %v1750 = vunpack.c.h.b16 %v499
    %v1751 = vunpack.c.l.b16 %v500
    %v1752 = vunpack.c.h.b16 %v500
    %v1753 = vunpack.c.l.b16 %v501
    %v1754 = vunpack.c.h.b16 %v501
    %v1755 = vpack.c.b16 %v985, %v963
    %v1756 = vpack.c.b16 %v986, %v964
    %v1757 = vpack.c.b16 %v987, %v965
    %v1758 = vpack.c.b16 %v988, %v966
    %v1759 = vpack.c.b16 %v989, %v967
    %v1760 = vpack.c.b16 %v990, %v968
    %v1761 = vpack.c.b16 %v991, %v969
    %v1762 = vpack.c.b16 %v992, %v970
    %v1763 = vpack.c.b16 %v993, %v971
    %v1764 = vpack.c.b16 %v994, %v972
    %v1765 = vpack.c.b16 %v995, %v973
    %v1766 = vpack.c.b16 %v996, %v974
    %v1767 = vpack.c.b16 %v997, %v975
    %v1768 = vpack.c.b16 %v998, %v976
    %v1769 = vpack.c.b16 %v999, %v977
    %v1770 = vpack.c.b16 %v1000, %v978
    %v1771 = vpack.c.b16 %v1001, %v979
    %v1772 = vpack.c.b16 %v1002, %v980
    %v1773 = vpack.c.b16 %v1003, %v981
    %v1774 = vpack.c.b16 %v1004, %v982
    %v1775 = vpack.c.b16 %v1005, %v983
    %v1776 = vpack.c.b16 %v1006, %v984
    %v1777 = vpack.c.b16 %v1029, %v1007
    %v1778 = vpack.c.b16 %v1030, %v1008
    %v1779 = vpack.c.b16 %v1031, %v1009
    %v1780 = vpack.c.b16 %v1032, %v1010
    %v1781 = vpack.c.b16 %v1033, %v1011
    %v1782 = vpack.c.b16 %v1034, %v1012
    %v1783 = vpack.c.b16 %v1035, %v1013
    %v1784 = vpack.c.b16 %v1036, %v1014
    %v1785 = vpack.c.b16 %v1037, %v1015
    %v1786 = vpack.c.b16 %v1038, %v1016
    %v1787 = vpack.c.b16 %v1039, %v1017
    %v1788 = vpack.c.b16 %v1040, %v1018
    %v1789 = vpack.c.b16 %v1041, %v1019
    %v1790 = vpack.c.b16 %v1042, %v1020
    %v1791 = vpack.c.b16 %v1043, %v1021
    %v1792 = vpack.c.b16 %v1044, %v1022
    %v1793 = vpack.c.b16 %v1045, %v1023
    %v1794 = vpack.c.b16 %v1046, %v1024
    %v1795 = vpack.c.b16 %v1047, %v1025
    %v1796 = vpack.c.b16 %v1048, %v1026
    %v1797 = vpack.c.b16 %v1049, %v1027
    %v1798 = vpack.c.b16 %v1050, %v1028
    %v1799 = vpack.c.b16 %v1073, %v1051
    %v1800 = vpack.c.b16 %v1074, %v1052
    %v1801 = vpack.c.b16 %v1075, %v1053
    %v1802 = vpack.c.b16 %v1076, %v1054
    %v1803 = vpack.c.b16 %v1077, %v1055
    %v1804 = vpack.c.b16 %v1078, %v1056
    %v1805 = vpack.c.b16 %v1079, %v1057
    %v1806 = vpack.c.b16 %v1080, %v1058
    %v1807 = vpack.c.b16 %v1081, %v1059
    %v1808 = vpack.c.b16 %v1082, %v1060
    %v1809 = vpack.c.b16 %v1083, %v1061
    %v1810 = vpack.c.b16 %v1084, %v1062
    %v1811 = vpack.c.b16 %v1085, %v1063
    %v1812 = vpack.c.b16 %v1086, %v1064
    %v1813 = vpack.c.b16 %v1087, %v1065
    %v1814 = vpack.c.b16 %v1088, %v1066
    %v1815 = vpack.c.b16 %v1089, %v1067
    %v1816 = vpack.c.b16 %v1090, %v1068
    %v1817 = vpack.c.b16 %v1091, %v1069
    %v1818 = vpack.c.b16 %v1092, %v1070
    %v1819 = vpack.c.b16 %v1093, %v1071
    %v1820 = vpack.c.b16 %v1094, %v1072
    %v1821 = vpack.c.b16 %v1117, %v1095
    %v1822 = vpack.c.b16 %v1118, %v1096
    %v1823 = vpack.c.b16 %v1119, %v1097
    %v1824 = vpack.c.b16 %v1120, %v1098
    %v1825 = vpack.c.b16 %v1121, %v1099
    %v1826 = vpack.c.b16 %v1122, %v1100
    %v1827 = vpack.c.b16 %v1123, %v1101
    %v1828 = vpack.c.b16 %v1124, %v1102
    %v1829 = vpack.c.b16 %v1125, %v1103
    %v1830 = vpack.c.b16 %v1126, %v1104
    %v1831 = vpack.c.b16 %v1127, %v1105
    %v1832 = vpack.c.b16 %v1128, %v1106
    %v1833 = vpack.c.b16 %v1129, %v1107
    %v1834 = vpack.c.b16 %v1130, %v1108
    %v1835 = vpack.c.b16 %v1131, %v1109
    %v1836 = vpack.c.b16 %v1132, %v1110
    %v1837 = vpack.c.b16 %v1133, %v1111
    %v1838 = vpack.c.b16 %v1134, %v1112
    %v1839 = vpack.c.b16 %v1135, %v1113
    %v1840 = vpack.c.b16 %v1136, %v1114
    %v1841 = vpack.c.b16 %v1137, %v1115
    %v1842 = vpack.c.b16 %v1138, %v1116
    %v1843 = vpack.c.b16 %v1161, %v1139
    %v1844 = vpack.c.b16 %v1162, %v1140
    %v1845 = vpack.c.b16 %v1163, %v1141
    %v1846 = vpack.c.b16 %v1164, %v1142
    %v1847 = vpack.c.b16 %v1165, %v1143
    %v1848 = vpack.c.b16 %v1166, %v1144
    %v1849 = vpack.c.b16 %v1167, %v1145
    %v1850 = vpack.c.b16 %v1168, %v1146
    %v1851 = vpack.c.b16 %v1169, %v1147
    %v1852 = vpack.c.b16 %v1170, %v1148
    %v1853 = vpack.c.b16 %v1171, %v1149
    %v1854 = vpack.c.b16 %v1172, %v1150
    %v1855 = vpack.c.b16 %v1173, %v1151
    %v1856 = vpack.c.b16 %v1174, %v1152
    %v1857 = vpack.c.b16 %v1175, %v1153
    %v1858 = vpack.c.b16 %v1176, %v1154
    %v1859 = vpack.c.b16 %v1177, %v1155
    %v1860 = vpack.c.b16 %v1178, %v1156
    %v1861 = vpack.c.b16 %v1179, %v1157
    %v1862 = vpack.c.b16 %v1180, %v1158
    %v1863 = vpack.c.b16 %v1181, %v1159
    %v1864 = vpack.c.b16 %v1182, %v1160
    %v1865 = vpack.c.b16 %v1205, %v1183
    %v1866 = vpack.c.b16 %v1206, %v1184
    %v1867 = vpack.c.b16 %v1207, %v1185
    %v1868 = vpack.c.b16 %v1208, %v1186
    %v1869 = vpack.c.b16 %v1209, %v1187
    %v1870 = vpack.c.b16 %v1210, %v1188
    %v1871 = vpack.c.b16 %v1211, %v1189
    %v1872 = vpack.c.b16 %v1212, %v1190
    %v1873 = vpack.c.b16 %v1213, %v1191
    %v1874 = vpack.c.b16 %v1214, %v1192
    %v1875 = vpack.c.b16 %v1215, %v1193
    %v1876 = vpack.c.b16 %v1216, %v1194
    %v1877 = vpack.c.b16 %v1217, %v1195
    %v1878 = vpack.c.b16 %v1218, %v1196
    %v1879 = vpack.c.b16 %v1219, %v1197
    %v1880 = vpack.c.b16 %v1220, %v1198
    %v1881 = vpack.c.b16 %v1221, %v1199
    %v1882 = vpack.c.b16 %v1222, %v1200
    %v1883 = vpack.c.b16 %v1223, %v1201
    %v1884 = vpack.c.b16 %v1224, %v1202
    %v1885 = vpack.c.b16 %v1225, %v1203
    %v1886 = vpack.c.b16 %v1226, %v1204
    %v1887 = vpack.c.b16 %v1249, %v1227
    %v1888 = vpack.c.b16 %v1250, %v1228
    %v1889 = vpack.c.b16 %v1251, %v1229
    %v1890 = vpack.c.b16 %v1252, %v1230
    %v1891 = vpack.c.b16 %v1253, %v1231
    %v1892 = vpack.c.b16 %v1254, %v1232
    %v1893 = vpack.c.b16 %v1255, %v1233
    %v1894 = vpack.c.b16 %v1256, %v1234
    %v1895 = vpack.c.b16 %v1257, %v1235
    %v1896 = vpack.c.b16 %v1258, %v1236
    %v1897 = vpack.c.b16 %v1259, %v1237
    %v1898 = vpack.c.b16 %v1260, %v1238
    %v1899 = vpack.c.b16 %v1261, %v1239
    %v1900 = vpack.c.b16 %v1262, %v1240
    %v1901 = vpack.c.b16 %v1263, %v1241
    %v1902 = vpack.c.b16 %v1264, %v1242
    %v1903 = vpack.c.b16 %v1265, %v1243
    %v1904 = vpack.c.b16 %v1266, %v1244
    %v1905 = vpack.c.b16 %v1267, %v1245
    %v1906 = vpack.c.b16 %v1268, %v1246
    %v1907 = vpack.c.b16 %v1269, %v1247
    %v1908 = vpack.c.b16 %v1270, %v1248
    %v1909 = vpack.c.b16 %v1293, %v1271
    %v1910 = vpack.c.b16 %v1294, %v1272
    %v1911 = vpack.c.b16 %v1295, %v1273
    %v1912 = vpack.c.b16 %v1296, %v1274
    %v1913 = vpack.c.b16 %v1297, %v1275
    %v1914 = vpack.c.b16 %v1298, %v1276
    %v1915 = vpack.c.b16 %v1299, %v1277
    %v1916 = vpack.c.b16 %v1300, %v1278
    %v1917 = vpack.c.b16 %v1301, %v1279
    %v1918 = vpack.c.b16 %v1302, %v1280
    %v1919 = vpack.c.b16 %v1303, %v1281
    %v1920 = vpack.c.b16 %v1304, %v1282
    %v1921 = vpack.c.b16 %v1305, %v1283
    %v1922 = vpack.c.b16 %v1306, %v1284
    %v1923 = vpack.c.b16 %v1307, %v1285
    %v1924 = vpack.c.b16 %v1308, %v1286
    %v1925 = vpack.c.b16 %v1309, %v1287
    %v1926 = vpack.c.b16 %v1310, %v1288
    %v1927 = vpack.c.b16 %v1311, %v1289
    %v1928 = vpack.c.b16 %v1312, %v1290
    %v1929 = vpack.c.b16 %v1313, %v1291
    %v1930 = vpack.c.b16 %v1314, %v1292
    %v1931 = vpack.c.b16 %v1337, %v1315
    %v1932 = vpack.c.b16 %v1338, %v1316
    %v1933 = vpack.c.b16 %v1339, %v1317
    %v1934 = vpack.c.b16 %v1340, %v1318
    %v1935 = vpack.c.b16 %v1341, %v1319
    %v1936 = vpack.c.b16 %v1342, %v1320
    %v1937 = vpack.c.b16 %v1343, %v1321
    %v1938 = vpack.c.b16 %v1344, %v1322
    %v1939 = vpack.c.b16 %v1345, %v1323
    %v1940 = vpack.c.b16 %v1346, %v1324
    %v1941 = vpack.c.b16 %v1347, %v1325
    %v1942 = vpack.c.b16 %v1348, %v1326
    %v1943 = vpack.c.b16 %v1349, %v1327
    %v1944 = vpack.c.b16 %v1350, %v1328
    %v1945 = vpack.c.b16 %v1351, %v1329
    %v1946 = vpack.c.b16 %v1352, %v1330
    %v1947 = vpack.c.b16 %v1353, %v1331
    %v1948 = vpack.c.b16 %v1354, %v1332
    %v1949 = vpack.c.b16 %v1355, %v1333
    %v1950 = vpack.c.b16 %v1356, %v1334
    %v1951 = vpack.c.b16 %v1357, %v1335
    %v1952 = vpack.c.b16 %v1358, %v1336
    %v1953 = vpack.c.b16 %v1381, %v1359
    %v1954 = vpack.c.b16 %v1382, %v1360
    %v1955 = vpack.c.b16 %v1383, %v1361
    %v1956 = vpack.c.b16 %v1384, %v1362
    %v1957 = vpack.c.b16 %v1385, %v1363
    %v1958 = vpack.c.b16 %v1386, %v1364
    %v1959 = vpack.c.b16 %v1387, %v1365
    %v1960 = vpack.c.b16 %v1388, %v1366
    %v1961 = vpack.c.b16 %v1389, %v1367
    %v1962 = vpack.c.b16 %v1390, %v1368
    %v1963 = vpack.c.b16 %v1391, %v1369
    %v1964 = vpack.c.b16 %v1392, %v1370
    %v1965 = vpack.c.b16 %v1393, %v1371
    %v1966 = vpack.c.b16 %v1394, %v1372
    %v1967 = vpack.c.b16 %v1395, %v1373
    %v1968 = vpack.c.b16 %v1396, %v1374
    %v1969 = vpack.c.b16 %v1397, %v1375
    %v1970 = vpack.c.b16 %v1398, %v1376
    %v1971 = vpack.c.b16 %v1399, %v1377
    %v1972 = vpack.c.b16 %v1400, %v1378
    %v1973 = vpack.c.b16 %v1401, %v1379
    %v1974 = vpack.c.b16 %v1402, %v1380
    %v1975 = vpack.c.b16 %v1425, %v1403
    %v1976 = vpack.c.b16 %v1426, %v1404
    %v1977 = vpack.c.b16 %v1427, %v1405
    %v1978 = vpack.c.b16 %v1428, %v1406
    %v1979 = vpack.c.b16 %v1429, %v1407
    %v1980 = vpack.c.b16 %v1430, %v1408
    %v1981 = vpack.c.b16 %v1431, %v1409
    %v1982 = vpack.c.b16 %v1432, %v1410
    %v1983 = vpack.c.b16 %v1433, %v1411
    %v1984 = vpack.c.b16 %v1434, %v1412
    %v1985 = vpack.c.b16 %v1435, %v1413
    %v1986 = vpack.c.b16 %v1436, %v1414
    %v1987 = vpack.c.b16 %v1437, %v1415
    %v1988 = vpack.c.b16 %v1438, %v1416
    %v1989 = vpack.c.b16 %v1439, %v1417
    %v1990 = vpack.c.b16 %v1440, %v1418
    %v1991 = vpack.c.b16 %v1441, %v1419
    %v1992 = vpack.c.b16 %v1442, %v1420
    %v1993 = vpack.c.b16 %v1443, %v1421
    %v1994 = vpack.c.b16 %v1444, %v1422
    %v1995 = vpack.c.b16 %v1445, %v1423
    %v1996 = vpack.c.b16 %v1446, %v1424
    %v1997 = vpack.c.b16 %v1469, %v1447
    %v1998 = vpack.c.b16 %v1470, %v1448
    %v1999 = vpack.c.b16 %v1471, %v1449
    %v2000 = vpack.c.b16 %v1472, %v1450
    %v2001 = vpack.c.b16 %v1473, %v1451
    %v2002 = vpack.c.b16 %v1474, %v1452
    %v2003 = vpack.c.b16 %v1475, %v1453
    %v2004 = vpack.c.b16 %v1476, %v1454
    %v2005 = vpack.c.b16 %v1477, %v1455
    %v2006 = vpack.c.b16 %v1478, %v1456
    %v2007 = vpack.c.b16 %v1479, %v1457
    %v2008 = vpack.c.b16 %v1480, %v1458
    %v2009 = vpack.c.b16 %v1481, %v1459
    %v2010 = vpack.c.b16 %v1482, %v1460
    %v2011 = vpack.c.b16 %v1483, %v1461
    %v2012 = vpack.c.b16 %v1484, %v1462
    %v2013 = vpack.c.b16 %v1485, %v1463
    %v2014 = vpack.c.b16 %v1486, %v1464
    %v2015 = vpack.c.b16 %v1487, %v1465
    %v2016 = vpack.c.b16 %v1488, %v1466
    %v2017 = vpack.c.b16 %v1489, %v1467
    %v2018 = vpack.c.b16 %v1490, %v1468
    %v2019 = vpack.c.b16 %v1513, %v1491
    %v2020 = vpack.c.b16 %v1514, %v1492
    %v2021 = vpack.c.b16 %v1515, %v1493
    %v2022 = vpack.c.b16 %v1516, %v1494
    %v2023 = vpack.c.b16 %v1517, %v1495
    %v2024 = vpack.c.b16 %v1518, %v1496
    %v2025 = vpack.c.b16 %v1519, %v1497
    %v2026 = vpack.c.b16 %v1520, %v1498
    %v2027 = vpack.c.b16 %v1521, %v1499
    %v2028 = vpack.c.b16 %v1522, %v1500
    %v2029 = vpack.c.b16 %v1523, %v1501
    %v2030 = vpack.c.b16 %v1524, %v1502
    %v2031 = vpack.c.b16 %v1525, %v1503
    %v2032 = vpack.c.b16 %v1526, %v1504
    %v2033 = vpack.c.b16 %v1527, %v1505
    %v2034 = vpack.c.b16 %v1528, %v1506
    %v2035 = vpack.c.b16 %v1529, %v1507
    %v2036 = vpack.c.b16 %v1530, %v1508
    %v2037 = vpack.c.b16 %v1531, %v1509
    %v2038 = vpack.c.b16 %v1532, %v1510
    %v2039 = vpack.c.b16 %v1533, %v1511
    %v2040 = vpack.c.b16 %v1534, %v1512
    %v2041 = vpack.c.b16 %v1557, %v1535
    %v2042 = vpack.c.b16 %v1558, %v1536
    %v2043 = vpack.c.b16 %v1559, %v1537
    %v2044 = vpack.c.b16 %v1560, %v1538
    %v2045 = vpack.c.b16 %v1561, %v1539
    %v2046 = vpack.c.b16 %v1562, %v1540
    %v2047 = vpack.c.b16 %v1563, %v1541
    %v2048 = vpack.c.b16 %v1564, %v1542
    %v2049 = vpack.c.b16 %v1565, %v1543
    %v2050 = vpack.c.b16 %v1566, %v1544
    %v2051 = vpack.c.b16 %v1567, %v1545
    %v2052 = vpack.c.b16 %v1568, %v1546
    %v2053 = vpack.c.b16 %v1569, %v1547
    %v2054 = vpack.c.b16 %v1570, %v1548
    %v2055 = vpack.c.b16 %v1571, %v1549
    %v2056 = vpack.c.b16 %v1572, %v1550
    %v2057 = vpack.c.b16 %v1573, %v1551
    %v2058 = vpack.c.b16 %v1574, %v1552
    %v2059 = vpack.c.b16 %v1575, %v1553
    %v2060 = vpack.c.b16 %v1576, %v1554
    %v2061 = vpack.c.b16 %v1577, %v1555
    %v2062 = vpack.c.b16 %v1578, %v1556
    %v2063 = vpack.c.b16 %v1601, %v1579
    %v2064 = vpack.c.b16 %v1602, %v1580
    %v2065 = vpack.c.b16 %v1603, %v1581
    %v2066 = vpack.c.b16 %v1604, %v1582
    %v2067 = vpack.c.b16 %v1605, %v1583
    %v2068 = vpack.c.b16 %v1606, %v1584
    %v2069 = vpack.c.b16 %v1607, %v1585
    %v2070 = vpack.c.b16 %v1608, %v1586
    %v2071 = vpack.c.b16 %v1609, %v1587
    %v2072 = vpack.c.b16 %v1610, %v1588
    %v2073 = vpack.c.b16 %v1611, %v1589
    %v2074 = vpack.c.b16 %v1612, %v1590
    %v2075 = vpack.c.b16 %v1613, %v1591
    %v2076 = vpack.c.b16 %v1614, %v1592
    %v2077 = vpack.c.b16 %v1615, %v1593
    %v2078 = vpack.c.b16 %v1616, %v1594
    %v2079 = vpack.c.b16 %v1617, %v1595
    %v2080 = vpack.c.b16 %v1618, %v1596
    %v2081 = vpack.c.b16 %v1619, %v1597
    %v2082 = vpack.c.b16 %v1620, %v1598
    %v2083 = vpack.c.b16 %v1621, %v1599
    %v2084 = vpack.c.b16 %v1622, %v1600
    %v2085 = vpack.c.b16 %v1645, %v1623
    %v2086 = vpack.c.b16 %v1646, %v1624
    %v2087 = vpack.c.b16 %v1647, %v1625
    %v2088 = vpack.c.b16 %v1648, %v1626
    %v2089 = vpack.c.b16 %v1649, %v1627
    %v2090 = vpack.c.b16 %v1650, %v1628
    %v2091 = vpack.c.b16 %v1651, %v1629
    %v2092 = vpack.c.b16 %v1652, %v1630
    %v2093 = vpack.c.b16 %v1653, %v1631
    %v2094 = vpack.c.b16 %v1654, %v1632
    %v2095 = vpack.c.b16 %v1655, %v1633
    %v2096 = vpack.c.b16 %v1656, %v1634
    %v2097 = vpack.c.b16 %v1657, %v1635
    %v2098 = vpack.c.b16 %v1658, %v1636
    %v2099 = vpack.c.b16 %v1659, %v1637
    %v2100 = vpack.c.b16 %v1660, %v1638
    %v2101 = vpack.c.b16 %v1661, %v1639
    %v2102 = vpack.c.b16 %v1662, %v1640
    %v2103 = vpack.c.b16 %v1663, %v1641
    %v2104 = vpack.c.b16 %v1664, %v1642
    %v2105 = vpack.c.b16 %v1665, %v1643
    %v2106 = vpack.c.b16 %v1666, %v1644
    %v2107 = vpack.c.b16 %v1689, %v1667
    %v2108 = vpack.c.b16 %v1690, %v1668
    %v2109 = vpack.c.b16 %v1691, %v1669
    %v2110 = vpack.c.b16 %v1692, %v1670
    %v2111 = vpack.c.b16 %v1693, %v1671
    %v2112 = vpack.c.b16 %v1694, %v1672
    %v2113 = vpack.c.b16 %v1695, %v1673
    %v2114 = vpack.c.b16 %v1696, %v1674
    %v2115 = vpack.c.b16 %v1697, %v1675
    %v2116 = vpack.c.b16 %v1698, %v1676
    %v2117 = vpack.c.b16 %v1699, %v1677
    %v2118 = vpack.c.b16 %v1700, %v1678
    %v2119 = vpack.c.b16 %v1701, %v1679
    %v2120 = vpack.c.b16 %v1702, %v1680
    %v2121 = vpack.c.b16 %v1703, %v1681
    %v2122 = vpack.c.b16 %v1704, %v1682
    %v2123 = vpack.c.b16 %v1705, %v1683
    %v2124 = vpack.c.b16 %v1706, %v1684
    %v2125 = vpack.c.b16 %v1707, %v1685
    %v2126 = vpack.c.b16 %v1708, %v1686
    %v2127 = vpack.c.b16 %v1709, %v1687
    %v2128 = vpack.c.b16 %v1710, %v1688
    %v2129 = vpack.c.b16 %v1733, %v1711
    %v2130 = vpack.c.b16 %v1734, %v1712
    %v2131 = vpack.c.b16 %v1735, %v1713
    %v2132 = vpack.c.b16 %v1736, %v1714
    %v2133 = vpack.c.b16 %v1737, %v1715
    %v2134 = vpack.c.b16 %v1738, %v1716
    %v2135 = vpack.c.b16 %v1739, %v1717
    %v2136 = vpack.c.b16 %v1740, %v1718
    %v2137 = vpack.c.b16 %v1741, %v1719
    %v2138 = vpack.c.b16 %v1742, %v1720
    %v2139 = vpack.c.b16 %v1743, %v1721
    %v2140 = vpack.c.b16 %v1744, %v1722
    %v2141 = vpack.c.b16 %v1745, %v1723
    %v2142 = vpack.c.b16 %v1746, %v1724
    %v2143 = vpack.c.b16 %v1747, %v1725
    %v2144 = vpack.c.b16 %v1748, %v1726
    %v2145 = vpack.c.b16 %v1749, %v1727
    %v2146 = vpack.c.b16 %v1750, %v1728
    %v2147 = vpack.c.b16 %v1751, %v1729
    %v2148 = vpack.c.b16 %v1752, %v1730
    %v2149 = vpack.c.b16 %v1753, %v1731
    %v2150 = vpack.c.b16 %v1754, %v1732
    %vm2547 = vcmask 261120
    %v2549 = vsel %vm2547, %v564, 0
    %2551 = vmatpush.bf16.msra.mxu0 %v1909
    %2552 = vmatpush.bf16.msra.mxu0 %v1887
    %2553 = vmatpush.bf16.msra.mxu0 %v1865
    %2554 = vmatpush.bf16.msra.mxu0 %v1843
    %2555 = vmatpush.bf16.msra.mxu0 %v1821
    %2556 = vmatpush.bf16.msra.mxu0 %v1799
    %2557 = vmatpush.bf16.msra.mxu0 %v1777
    %2558 = vmatpush.bf16.msra.mxu0 %v1755
    %2559 = vmatmul.bf16.gmra.mxu0 %v562
    %v2560 = vpop.f32.mrf.mxu0
    %v2561 = vadd.f32 %v508, %v2560
    %v2562 = vpop.f32.mrf.mxu0
    %v2563 = vadd.f32 %v508, %v2562
    %2564 = vdwg.mxu0
    %2565 = vmatpush.bf16.msra.mxu0 %v2085
    %2566 = vmatpush.bf16.msra.mxu0 %v2063
    %2567 = vmatpush.bf16.msra.mxu0 %v2041
    %2568 = vmatpush.bf16.msra.mxu0 %v2019
    %2569 = vmatpush.bf16.msra.mxu0 %v1997
    %2570 = vmatpush.bf16.msra.mxu0 %v1975
    %2571 = vmatpush.bf16.msra.mxu0 %v1953
    %2572 = vmatpush.bf16.msra.mxu0 %v1931
    %2573 = vmatmul.bf16.gmra.mxu0 %v563
    %v2574 = vpop.f32.mrf.mxu0
    %v2575 = vadd.f32 %v2561, %v2574
    %v2576 = vpop.f32.mrf.mxu0
    %v2577 = vadd.f32 %v2563, %v2576
    %2578 = vdwg.mxu0
    %2579 = vmatpush.bf16.msra.mxu0 0
    %2580 = vmatpush.bf16.msra.mxu0 0
    %2581 = vmatpush.bf16.msra.mxu0 0
    %2582 = vmatpush.bf16.msra.mxu0 0
    %2583 = vmatpush.bf16.msra.mxu0 0
    %2584 = vmatpush.bf16.msra.mxu0 0
    %2585 = vmatpush.bf16.msra.mxu0 %v2129
    %2586 = vmatpush.bf16.msra.mxu0 %v2107
    %2587 = vmatmul.bf16.gmra.mxu0 %v2549
    %v2588 = vpop.f32.mrf.mxu0
    %v2589 = vadd.f32 %v2575, %v2588
    %v2590 = vpop.f32.mrf.mxu0
    %v2591 = vadd.f32 %v2577, %v2590
    %2592 = vdwg.mxu0
    %2593 = vmatpush.bf16.msra.mxu0 %v1910
    %2594 = vmatpush.bf16.msra.mxu0 %v1888
    %2595 = vmatpush.bf16.msra.mxu0 %v1866
    %2596 = vmatpush.bf16.msra.mxu0 %v1844
    %2597 = vmatpush.bf16.msra.mxu0 %v1822
    %2598 = vmatpush.bf16.msra.mxu0 %v1800
    %2599 = vmatpush.bf16.msra.mxu0 %v1778
    %2600 = vmatpush.bf16.msra.mxu0 %v1756
    %2601 = vmatmul.bf16.gmra.mxu0 %v562
    %v2602 = vpop.f32.mrf.mxu0
    %v2603 = vadd.f32 %v509, %v2602
    %v2604 = vpop.f32.mrf.mxu0
    %v2605 = vadd.f32 %v509, %v2604
    %2606 = vdwg.mxu0
    %2607 = vmatpush.bf16.msra.mxu0 %v2086
    %2608 = vmatpush.bf16.msra.mxu0 %v2064
    %2609 = vmatpush.bf16.msra.mxu0 %v2042
    %2610 = vmatpush.bf16.msra.mxu0 %v2020
    %2611 = vmatpush.bf16.msra.mxu0 %v1998
    %2612 = vmatpush.bf16.msra.mxu0 %v1976
    %2613 = vmatpush.bf16.msra.mxu0 %v1954
    %2614 = vmatpush.bf16.msra.mxu0 %v1932
    %2615 = vmatmul.bf16.gmra.mxu0 %v563
    %v2616 = vpop.f32.mrf.mxu0
    %v2617 = vadd.f32 %v2603, %v2616
    %v2618 = vpop.f32.mrf.mxu0
    %v2619 = vadd.f32 %v2605, %v2618
    %2620 = vdwg.mxu0
    %2621 = vmatpush.bf16.msra.mxu0 0
    %2622 = vmatpush.bf16.msra.mxu0 0
    %2623 = vmatpush.bf16.msra.mxu0 0
    %2624 = vmatpush.bf16.msra.mxu0 0
    %2625 = vmatpush.bf16.msra.mxu0 0
    %2626 = vmatpush.bf16.msra.mxu0 0
    %2627 = vmatpush.bf16.msra.mxu0 %v2130
    %2628 = vmatpush.bf16.msra.mxu0 %v2108
    %2629 = vmatmul.bf16.gmra.mxu0 %v2549
    %v2630 = vpop.f32.mrf.mxu0
    %v2631 = vadd.f32 %v2617, %v2630
    %v2632 = vpop.f32.mrf.mxu0
    %v2633 = vadd.f32 %v2619, %v2632
    %2634 = vdwg.mxu0
    %2635 = vmatpush.bf16.msra.mxu0 %v1911
    %2636 = vmatpush.bf16.msra.mxu0 %v1889
    %2637 = vmatpush.bf16.msra.mxu0 %v1867
    %2638 = vmatpush.bf16.msra.mxu0 %v1845
    %2639 = vmatpush.bf16.msra.mxu0 %v1823
    %2640 = vmatpush.bf16.msra.mxu0 %v1801
    %2641 = vmatpush.bf16.msra.mxu0 %v1779
    %2642 = vmatpush.bf16.msra.mxu0 %v1757
    %2643 = vmatmul.bf16.gmra.mxu0 %v562
    %v2644 = vpop.f32.mrf.mxu0
    %v2645 = vadd.f32 %v510, %v2644
    %v2646 = vpop.f32.mrf.mxu0
    %v2647 = vadd.f32 %v510, %v2646
    %2648 = vdwg.mxu0
    %2649 = vmatpush.bf16.msra.mxu0 %v2087
    %2650 = vmatpush.bf16.msra.mxu0 %v2065
    %2651 = vmatpush.bf16.msra.mxu0 %v2043
    %2652 = vmatpush.bf16.msra.mxu0 %v2021
    %2653 = vmatpush.bf16.msra.mxu0 %v1999
    %2654 = vmatpush.bf16.msra.mxu0 %v1977
    %2655 = vmatpush.bf16.msra.mxu0 %v1955
    %2656 = vmatpush.bf16.msra.mxu0 %v1933
    %2657 = vmatmul.bf16.gmra.mxu0 %v563
    %v2658 = vpop.f32.mrf.mxu0
    %v2659 = vadd.f32 %v2645, %v2658
    %v2660 = vpop.f32.mrf.mxu0
    %v2661 = vadd.f32 %v2647, %v2660
    %2662 = vdwg.mxu0
    %2663 = vmatpush.bf16.msra.mxu0 0
    %2664 = vmatpush.bf16.msra.mxu0 0
    %2665 = vmatpush.bf16.msra.mxu0 0
    %2666 = vmatpush.bf16.msra.mxu0 0
    %2667 = vmatpush.bf16.msra.mxu0 0
    %2668 = vmatpush.bf16.msra.mxu0 0
    %2669 = vmatpush.bf16.msra.mxu0 %v2131
    %2670 = vmatpush.bf16.msra.mxu0 %v2109
    %2671 = vmatmul.bf16.gmra.mxu0 %v2549
    %v2672 = vpop.f32.mrf.mxu0
    %v2673 = vadd.f32 %v2659, %v2672
    %v2674 = vpop.f32.mrf.mxu0
    %v2675 = vadd.f32 %v2661, %v2674
    %2676 = vdwg.mxu0
    %2677 = vmatpush.bf16.msra.mxu0 %v1912
    %2678 = vmatpush.bf16.msra.mxu0 %v1890
    %2679 = vmatpush.bf16.msra.mxu0 %v1868
    %2680 = vmatpush.bf16.msra.mxu0 %v1846
    %2681 = vmatpush.bf16.msra.mxu0 %v1824
    %2682 = vmatpush.bf16.msra.mxu0 %v1802
    %2683 = vmatpush.bf16.msra.mxu0 %v1780
    %2684 = vmatpush.bf16.msra.mxu0 %v1758
    %2685 = vmatmul.bf16.gmra.mxu0 %v562
    %v2686 = vpop.f32.mrf.mxu0
    %v2687 = vadd.f32 %v511, %v2686
    %v2688 = vpop.f32.mrf.mxu0
    %v2689 = vadd.f32 %v511, %v2688
    %2690 = vdwg.mxu0
    %2691 = vmatpush.bf16.msra.mxu0 %v2088
    %2692 = vmatpush.bf16.msra.mxu0 %v2066
    %2693 = vmatpush.bf16.msra.mxu0 %v2044
    %2694 = vmatpush.bf16.msra.mxu0 %v2022
    %2695 = vmatpush.bf16.msra.mxu0 %v2000
    %2696 = vmatpush.bf16.msra.mxu0 %v1978
    %2697 = vmatpush.bf16.msra.mxu0 %v1956
    %2698 = vmatpush.bf16.msra.mxu0 %v1934
    %2699 = vmatmul.bf16.gmra.mxu0 %v563
    %v2700 = vpop.f32.mrf.mxu0
    %v2701 = vadd.f32 %v2687, %v2700
    %v2702 = vpop.f32.mrf.mxu0
    %v2703 = vadd.f32 %v2689, %v2702
    %2704 = vdwg.mxu0
    %2705 = vmatpush.bf16.msra.mxu0 0
    %2706 = vmatpush.bf16.msra.mxu0 0
    %2707 = vmatpush.bf16.msra.mxu0 0
    %2708 = vmatpush.bf16.msra.mxu0 0
    %2709 = vmatpush.bf16.msra.mxu0 0
    %2710 = vmatpush.bf16.msra.mxu0 0
    %2711 = vmatpush.bf16.msra.mxu0 %v2132
    %2712 = vmatpush.bf16.msra.mxu0 %v2110
    %2713 = vmatmul.bf16.gmra.mxu0 %v2549
    %v2714 = vpop.f32.mrf.mxu0
    %v2715 = vadd.f32 %v2701, %v2714
    %v2716 = vpop.f32.mrf.mxu0
    %v2717 = vadd.f32 %v2703, %v2716
    %2718 = vdwg.mxu0
    %2719 = vmatpush.bf16.msra.mxu0 %v1913
    %2720 = vmatpush.bf16.msra.mxu0 %v1891
    %2721 = vmatpush.bf16.msra.mxu0 %v1869
    %2722 = vmatpush.bf16.msra.mxu0 %v1847
    %2723 = vmatpush.bf16.msra.mxu0 %v1825
    %2724 = vmatpush.bf16.msra.mxu0 %v1803
    %2725 = vmatpush.bf16.msra.mxu0 %v1781
    %2726 = vmatpush.bf16.msra.mxu0 %v1759
    %2727 = vmatmul.bf16.gmra.mxu0 %v562
    %v2728 = vpop.f32.mrf.mxu0
    %v2729 = vadd.f32 %v512, %v2728
    %v2730 = vpop.f32.mrf.mxu0
    %v2731 = vadd.f32 %v512, %v2730
    %2732 = vdwg.mxu0
    %2733 = vmatpush.bf16.msra.mxu0 %v2089
    %2734 = vmatpush.bf16.msra.mxu0 %v2067
    %2735 = vmatpush.bf16.msra.mxu0 %v2045
    %2736 = vmatpush.bf16.msra.mxu0 %v2023
    %2737 = vmatpush.bf16.msra.mxu0 %v2001
    %2738 = vmatpush.bf16.msra.mxu0 %v1979
    %2739 = vmatpush.bf16.msra.mxu0 %v1957
    %2740 = vmatpush.bf16.msra.mxu0 %v1935
    %2741 = vmatmul.bf16.gmra.mxu0 %v563
    %v2742 = vpop.f32.mrf.mxu0
    %v2743 = vadd.f32 %v2729, %v2742
    %v2744 = vpop.f32.mrf.mxu0
    %v2745 = vadd.f32 %v2731, %v2744
    %2746 = vdwg.mxu0
    %2747 = vmatpush.bf16.msra.mxu0 0
    %2748 = vmatpush.bf16.msra.mxu0 0
    %2749 = vmatpush.bf16.msra.mxu0 0
    %2750 = vmatpush.bf16.msra.mxu0 0
    %2751 = vmatpush.bf16.msra.mxu0 0
    %2752 = vmatpush.bf16.msra.mxu0 0
    %2753 = vmatpush.bf16.msra.mxu0 %v2133
    %2754 = vmatpush.bf16.msra.mxu0 %v2111
    %2755 = vmatmul.bf16.gmra.mxu0 %v2549
    %v2756 = vpop.f32.mrf.mxu0
    %v2757 = vadd.f32 %v2743, %v2756
    %v2758 = vpop.f32.mrf.mxu0
    %v2759 = vadd.f32 %v2745, %v2758
    %2760 = vdwg.mxu0
    %2761 = vmatpush.bf16.msra.mxu0 %v1914
    %2762 = vmatpush.bf16.msra.mxu0 %v1892
    %2763 = vmatpush.bf16.msra.mxu0 %v1870
    %2764 = vmatpush.bf16.msra.mxu0 %v1848
    %2765 = vmatpush.bf16.msra.mxu0 %v1826
    %2766 = vmatpush.bf16.msra.mxu0 %v1804
    %2767 = vmatpush.bf16.msra.mxu0 %v1782
    %2768 = vmatpush.bf16.msra.mxu0 %v1760
    %2769 = vmatmul.bf16.gmra.mxu0 %v562
    %v2770 = vpop.f32.mrf.mxu0
    %v2771 = vadd.f32 %v513, %v2770
    %v2772 = vpop.f32.mrf.mxu0
    %v2773 = vadd.f32 %v513, %v2772
    %2774 = vdwg.mxu0
    %2775 = vmatpush.bf16.msra.mxu0 %v2090
    %2776 = vmatpush.bf16.msra.mxu0 %v2068
    %2777 = vmatpush.bf16.msra.mxu0 %v2046
    %2778 = vmatpush.bf16.msra.mxu0 %v2024
    %2779 = vmatpush.bf16.msra.mxu0 %v2002
    %2780 = vmatpush.bf16.msra.mxu0 %v1980
    %2781 = vmatpush.bf16.msra.mxu0 %v1958
    %2782 = vmatpush.bf16.msra.mxu0 %v1936
    %2783 = vmatmul.bf16.gmra.mxu0 %v563
    %v2784 = vpop.f32.mrf.mxu0
    %v2785 = vadd.f32 %v2771, %v2784
    %v2786 = vpop.f32.mrf.mxu0
    %v2787 = vadd.f32 %v2773, %v2786
    %2788 = vdwg.mxu0
    %2789 = vmatpush.bf16.msra.mxu0 0
    %2790 = vmatpush.bf16.msra.mxu0 0
    %2791 = vmatpush.bf16.msra.mxu0 0
    %2792 = vmatpush.bf16.msra.mxu0 0
    %2793 = vmatpush.bf16.msra.mxu0 0
    %2794 = vmatpush.bf16.msra.mxu0 0
    %2795 = vmatpush.bf16.msra.mxu0 %v2134
    %2796 = vmatpush.bf16.msra.mxu0 %v2112
    %2797 = vmatmul.bf16.gmra.mxu0 %v2549
    %v2798 = vpop.f32.mrf.mxu0
    %v2799 = vadd.f32 %v2785, %v2798
    %v2800 = vpop.f32.mrf.mxu0
    %v2801 = vadd.f32 %v2787, %v2800
    %2802 = vdwg.mxu0
    %2803 = vmatpush.bf16.msra.mxu0 %v1915
    %2804 = vmatpush.bf16.msra.mxu0 %v1893
    %2805 = vmatpush.bf16.msra.mxu0 %v1871
    %2806 = vmatpush.bf16.msra.mxu0 %v1849
    %2807 = vmatpush.bf16.msra.mxu0 %v1827
    %2808 = vmatpush.bf16.msra.mxu0 %v1805
    %2809 = vmatpush.bf16.msra.mxu0 %v1783
    %2810 = vmatpush.bf16.msra.mxu0 %v1761
    %2811 = vmatmul.bf16.gmra.mxu0 %v562
    %v2812 = vpop.f32.mrf.mxu0
    %v2813 = vadd.f32 %v514, %v2812
    %v2814 = vpop.f32.mrf.mxu0
    %v2815 = vadd.f32 %v514, %v2814
    %2816 = vdwg.mxu0
    %2817 = vmatpush.bf16.msra.mxu0 %v2091
    %2818 = vmatpush.bf16.msra.mxu0 %v2069
    %2819 = vmatpush.bf16.msra.mxu0 %v2047
    %2820 = vmatpush.bf16.msra.mxu0 %v2025
    %2821 = vmatpush.bf16.msra.mxu0 %v2003
    %2822 = vmatpush.bf16.msra.mxu0 %v1981
    %2823 = vmatpush.bf16.msra.mxu0 %v1959
    %2824 = vmatpush.bf16.msra.mxu0 %v1937
    %2825 = vmatmul.bf16.gmra.mxu0 %v563
    %v2826 = vpop.f32.mrf.mxu0
    %v2827 = vadd.f32 %v2813, %v2826
    %v2828 = vpop.f32.mrf.mxu0
    %v2829 = vadd.f32 %v2815, %v2828
    %2830 = vdwg.mxu0
    %2831 = vmatpush.bf16.msra.mxu0 0
    %2832 = vmatpush.bf16.msra.mxu0 0
    %2833 = vmatpush.bf16.msra.mxu0 0
    %2834 = vmatpush.bf16.msra.mxu0 0
    %2835 = vmatpush.bf16.msra.mxu0 0
    %2836 = vmatpush.bf16.msra.mxu0 0
    %2837 = vmatpush.bf16.msra.mxu0 %v2135
    %2838 = vmatpush.bf16.msra.mxu0 %v2113
    %2839 = vmatmul.bf16.gmra.mxu0 %v2549
    %v2840 = vpop.f32.mrf.mxu0
    %v2841 = vadd.f32 %v2827, %v2840
    %v2842 = vpop.f32.mrf.mxu0
    %v2843 = vadd.f32 %v2829, %v2842
    %2844 = vdwg.mxu0
    %2845 = vmatpush.bf16.msra.mxu0 %v1916
    %2846 = vmatpush.bf16.msra.mxu0 %v1894
    %2847 = vmatpush.bf16.msra.mxu0 %v1872
    %2848 = vmatpush.bf16.msra.mxu0 %v1850
    %2849 = vmatpush.bf16.msra.mxu0 %v1828
    %2850 = vmatpush.bf16.msra.mxu0 %v1806
    %2851 = vmatpush.bf16.msra.mxu0 %v1784
    %2852 = vmatpush.bf16.msra.mxu0 %v1762
    %2853 = vmatmul.bf16.gmra.mxu0 %v562
    %v2854 = vpop.f32.mrf.mxu0
    %v2855 = vadd.f32 %v515, %v2854
    %v2856 = vpop.f32.mrf.mxu0
    %v2857 = vadd.f32 %v515, %v2856
    %2858 = vdwg.mxu0
    %2859 = vmatpush.bf16.msra.mxu0 %v2092
    %2860 = vmatpush.bf16.msra.mxu0 %v2070
    %2861 = vmatpush.bf16.msra.mxu0 %v2048
    %2862 = vmatpush.bf16.msra.mxu0 %v2026
    %2863 = vmatpush.bf16.msra.mxu0 %v2004
    %2864 = vmatpush.bf16.msra.mxu0 %v1982
    %2865 = vmatpush.bf16.msra.mxu0 %v1960
    %2866 = vmatpush.bf16.msra.mxu0 %v1938
    %2867 = vmatmul.bf16.gmra.mxu0 %v563
    %v2868 = vpop.f32.mrf.mxu0
    %v2869 = vadd.f32 %v2855, %v2868
    %v2870 = vpop.f32.mrf.mxu0
    %v2871 = vadd.f32 %v2857, %v2870
    %2872 = vdwg.mxu0
    %2873 = vmatpush.bf16.msra.mxu0 0
    %2874 = vmatpush.bf16.msra.mxu0 0
    %2875 = vmatpush.bf16.msra.mxu0 0
    %2876 = vmatpush.bf16.msra.mxu0 0
    %2877 = vmatpush.bf16.msra.mxu0 0
    %2878 = vmatpush.bf16.msra.mxu0 0
    %2879 = vmatpush.bf16.msra.mxu0 %v2136
    %2880 = vmatpush.bf16.msra.mxu0 %v2114
    %2881 = vmatmul.bf16.gmra.mxu0 %v2549
    %v2882 = vpop.f32.mrf.mxu0
    %v2883 = vadd.f32 %v2869, %v2882
    %v2884 = vpop.f32.mrf.mxu0
    %v2885 = vadd.f32 %v2871, %v2884
    %2886 = vdwg.mxu0
    %2887 = vmatpush.bf16.msra.mxu0 %v1917
    %2888 = vmatpush.bf16.msra.mxu0 %v1895
    %2889 = vmatpush.bf16.msra.mxu0 %v1873
    %2890 = vmatpush.bf16.msra.mxu0 %v1851
    %2891 = vmatpush.bf16.msra.mxu0 %v1829
    %2892 = vmatpush.bf16.msra.mxu0 %v1807
    %2893 = vmatpush.bf16.msra.mxu0 %v1785
    %2894 = vmatpush.bf16.msra.mxu0 %v1763
    %2895 = vmatmul.bf16.gmra.mxu0 %v562
    %v2896 = vpop.f32.mrf.mxu0
    %v2897 = vadd.f32 %v516, %v2896
    %v2898 = vpop.f32.mrf.mxu0
    %v2899 = vadd.f32 %v516, %v2898
    %2900 = vdwg.mxu0
    %2901 = vmatpush.bf16.msra.mxu0 %v2093
    %2902 = vmatpush.bf16.msra.mxu0 %v2071
    %2903 = vmatpush.bf16.msra.mxu0 %v2049
    %2904 = vmatpush.bf16.msra.mxu0 %v2027
    %2905 = vmatpush.bf16.msra.mxu0 %v2005
    %2906 = vmatpush.bf16.msra.mxu0 %v1983
    %2907 = vmatpush.bf16.msra.mxu0 %v1961
    %2908 = vmatpush.bf16.msra.mxu0 %v1939
    %2909 = vmatmul.bf16.gmra.mxu0 %v563
    %v2910 = vpop.f32.mrf.mxu0
    %v2911 = vadd.f32 %v2897, %v2910
    %v2912 = vpop.f32.mrf.mxu0
    %v2913 = vadd.f32 %v2899, %v2912
    %2914 = vdwg.mxu0
    %2915 = vmatpush.bf16.msra.mxu0 0
    %2916 = vmatpush.bf16.msra.mxu0 0
    %2917 = vmatpush.bf16.msra.mxu0 0
    %2918 = vmatpush.bf16.msra.mxu0 0
    %2919 = vmatpush.bf16.msra.mxu0 0
    %2920 = vmatpush.bf16.msra.mxu0 0
    %2921 = vmatpush.bf16.msra.mxu0 %v2137
    %2922 = vmatpush.bf16.msra.mxu0 %v2115
    %2923 = vmatmul.bf16.gmra.mxu0 %v2549
    %v2924 = vpop.f32.mrf.mxu0
    %v2925 = vadd.f32 %v2911, %v2924
    %v2926 = vpop.f32.mrf.mxu0
    %v2927 = vadd.f32 %v2913, %v2926
    %2928 = vdwg.mxu0
    %2929 = vmatpush.bf16.msra.mxu0 %v1918
    %2930 = vmatpush.bf16.msra.mxu0 %v1896
    %2931 = vmatpush.bf16.msra.mxu0 %v1874
    %2932 = vmatpush.bf16.msra.mxu0 %v1852
    %2933 = vmatpush.bf16.msra.mxu0 %v1830
    %2934 = vmatpush.bf16.msra.mxu0 %v1808
    %2935 = vmatpush.bf16.msra.mxu0 %v1786
    %2936 = vmatpush.bf16.msra.mxu0 %v1764
    %2937 = vmatmul.bf16.gmra.mxu0 %v562
    %v2938 = vpop.f32.mrf.mxu0
    %v2939 = vadd.f32 %v517, %v2938
    %v2940 = vpop.f32.mrf.mxu0
    %v2941 = vadd.f32 %v517, %v2940
    %2942 = vdwg.mxu0
    %2943 = vmatpush.bf16.msra.mxu0 %v2094
    %2944 = vmatpush.bf16.msra.mxu0 %v2072
    %2945 = vmatpush.bf16.msra.mxu0 %v2050
    %2946 = vmatpush.bf16.msra.mxu0 %v2028
    %2947 = vmatpush.bf16.msra.mxu0 %v2006
    %2948 = vmatpush.bf16.msra.mxu0 %v1984
    %2949 = vmatpush.bf16.msra.mxu0 %v1962
    %2950 = vmatpush.bf16.msra.mxu0 %v1940
    %2951 = vmatmul.bf16.gmra.mxu0 %v563
    %v2952 = vpop.f32.mrf.mxu0
    %v2953 = vadd.f32 %v2939, %v2952
    %v2954 = vpop.f32.mrf.mxu0
    %v2955 = vadd.f32 %v2941, %v2954
    %2956 = vdwg.mxu0
    %2957 = vmatpush.bf16.msra.mxu0 0
    %2958 = vmatpush.bf16.msra.mxu0 0
    %2959 = vmatpush.bf16.msra.mxu0 0
    %2960 = vmatpush.bf16.msra.mxu0 0
    %2961 = vmatpush.bf16.msra.mxu0 0
    %2962 = vmatpush.bf16.msra.mxu0 0
    %2963 = vmatpush.bf16.msra.mxu0 %v2138
    %2964 = vmatpush.bf16.msra.mxu0 %v2116
    %2965 = vmatmul.bf16.gmra.mxu0 %v2549
    %v2966 = vpop.f32.mrf.mxu0
    %v2967 = vadd.f32 %v2953, %v2966
    %v2968 = vpop.f32.mrf.mxu0
    %v2969 = vadd.f32 %v2955, %v2968
    %2970 = vdwg.mxu0
    %2971 = vmatpush.bf16.msra.mxu0 %v1919
    %2972 = vmatpush.bf16.msra.mxu0 %v1897
    %2973 = vmatpush.bf16.msra.mxu0 %v1875
    %2974 = vmatpush.bf16.msra.mxu0 %v1853
    %2975 = vmatpush.bf16.msra.mxu0 %v1831
    %2976 = vmatpush.bf16.msra.mxu0 %v1809
    %2977 = vmatpush.bf16.msra.mxu0 %v1787
    %2978 = vmatpush.bf16.msra.mxu0 %v1765
    %2979 = vmatmul.bf16.gmra.mxu0 %v562
    %v2980 = vpop.f32.mrf.mxu0
    %v2981 = vadd.f32 %v518, %v2980
    %v2982 = vpop.f32.mrf.mxu0
    %v2983 = vadd.f32 %v518, %v2982
    %2984 = vdwg.mxu0
    %2985 = vmatpush.bf16.msra.mxu0 %v2095
    %2986 = vmatpush.bf16.msra.mxu0 %v2073
    %2987 = vmatpush.bf16.msra.mxu0 %v2051
    %2988 = vmatpush.bf16.msra.mxu0 %v2029
    %2989 = vmatpush.bf16.msra.mxu0 %v2007
    %2990 = vmatpush.bf16.msra.mxu0 %v1985
    %2991 = vmatpush.bf16.msra.mxu0 %v1963
    %2992 = vmatpush.bf16.msra.mxu0 %v1941
    %2993 = vmatmul.bf16.gmra.mxu0 %v563
    %v2994 = vpop.f32.mrf.mxu0
    %v2995 = vadd.f32 %v2981, %v2994
    %v2996 = vpop.f32.mrf.mxu0
    %v2997 = vadd.f32 %v2983, %v2996
    %2998 = vdwg.mxu0
    %2999 = vmatpush.bf16.msra.mxu0 0
    %3000 = vmatpush.bf16.msra.mxu0 0
    %3001 = vmatpush.bf16.msra.mxu0 0
    %3002 = vmatpush.bf16.msra.mxu0 0
    %3003 = vmatpush.bf16.msra.mxu0 0
    %3004 = vmatpush.bf16.msra.mxu0 0
    %3005 = vmatpush.bf16.msra.mxu0 %v2139
    %3006 = vmatpush.bf16.msra.mxu0 %v2117
    %3007 = vmatmul.bf16.gmra.mxu0 %v2549
    %v3008 = vpop.f32.mrf.mxu0
    %v3009 = vadd.f32 %v2995, %v3008
    %v3010 = vpop.f32.mrf.mxu0
    %v3011 = vadd.f32 %v2997, %v3010
    %3012 = vdwg.mxu0
    %3013 = vmatpush.bf16.msra.mxu0 %v1920
    %3014 = vmatpush.bf16.msra.mxu0 %v1898
    %3015 = vmatpush.bf16.msra.mxu0 %v1876
    %3016 = vmatpush.bf16.msra.mxu0 %v1854
    %3017 = vmatpush.bf16.msra.mxu0 %v1832
    %3018 = vmatpush.bf16.msra.mxu0 %v1810
    %3019 = vmatpush.bf16.msra.mxu0 %v1788
    %3020 = vmatpush.bf16.msra.mxu0 %v1766
    %3021 = vmatmul.bf16.gmra.mxu0 %v562
    %v3022 = vpop.f32.mrf.mxu0
    %v3023 = vadd.f32 %v519, %v3022
    %v3024 = vpop.f32.mrf.mxu0
    %v3025 = vadd.f32 %v519, %v3024
    %3026 = vdwg.mxu0
    %3027 = vmatpush.bf16.msra.mxu0 %v2096
    %3028 = vmatpush.bf16.msra.mxu0 %v2074
    %3029 = vmatpush.bf16.msra.mxu0 %v2052
    %3030 = vmatpush.bf16.msra.mxu0 %v2030
    %3031 = vmatpush.bf16.msra.mxu0 %v2008
    %3032 = vmatpush.bf16.msra.mxu0 %v1986
    %3033 = vmatpush.bf16.msra.mxu0 %v1964
    %3034 = vmatpush.bf16.msra.mxu0 %v1942
    %3035 = vmatmul.bf16.gmra.mxu0 %v563
    %v3036 = vpop.f32.mrf.mxu0
    %v3037 = vadd.f32 %v3023, %v3036
    %v3038 = vpop.f32.mrf.mxu0
    %v3039 = vadd.f32 %v3025, %v3038
    %3040 = vdwg.mxu0
    %3041 = vmatpush.bf16.msra.mxu0 0
    %3042 = vmatpush.bf16.msra.mxu0 0
    %3043 = vmatpush.bf16.msra.mxu0 0
    %3044 = vmatpush.bf16.msra.mxu0 0
    %3045 = vmatpush.bf16.msra.mxu0 0
    %3046 = vmatpush.bf16.msra.mxu0 0
    %3047 = vmatpush.bf16.msra.mxu0 %v2140
    %3048 = vmatpush.bf16.msra.mxu0 %v2118
    %3049 = vmatmul.bf16.gmra.mxu0 %v2549
    %v3050 = vpop.f32.mrf.mxu0
    %v3051 = vadd.f32 %v3037, %v3050
    %v3052 = vpop.f32.mrf.mxu0
    %v3053 = vadd.f32 %v3039, %v3052
    %3054 = vdwg.mxu0
    %3055 = vmatpush.bf16.msra.mxu0 %v1921
    %3056 = vmatpush.bf16.msra.mxu0 %v1899
    %3057 = vmatpush.bf16.msra.mxu0 %v1877
    %3058 = vmatpush.bf16.msra.mxu0 %v1855
    %3059 = vmatpush.bf16.msra.mxu0 %v1833
    %3060 = vmatpush.bf16.msra.mxu0 %v1811
    %3061 = vmatpush.bf16.msra.mxu0 %v1789
    %3062 = vmatpush.bf16.msra.mxu0 %v1767
    %3063 = vmatmul.bf16.gmra.mxu0 %v562
    %v3064 = vpop.f32.mrf.mxu0
    %v3065 = vadd.f32 %v520, %v3064
    %v3066 = vpop.f32.mrf.mxu0
    %v3067 = vadd.f32 %v520, %v3066
    %3068 = vdwg.mxu0
    %3069 = vmatpush.bf16.msra.mxu0 %v2097
    %3070 = vmatpush.bf16.msra.mxu0 %v2075
    %3071 = vmatpush.bf16.msra.mxu0 %v2053
    %3072 = vmatpush.bf16.msra.mxu0 %v2031
    %3073 = vmatpush.bf16.msra.mxu0 %v2009
    %3074 = vmatpush.bf16.msra.mxu0 %v1987
    %3075 = vmatpush.bf16.msra.mxu0 %v1965
    %3076 = vmatpush.bf16.msra.mxu0 %v1943
    %3077 = vmatmul.bf16.gmra.mxu0 %v563
    %v3078 = vpop.f32.mrf.mxu0
    %v3079 = vadd.f32 %v3065, %v3078
    %v3080 = vpop.f32.mrf.mxu0
    %v3081 = vadd.f32 %v3067, %v3080
    %3082 = vdwg.mxu0
    %3083 = vmatpush.bf16.msra.mxu0 0
    %3084 = vmatpush.bf16.msra.mxu0 0
    %3085 = vmatpush.bf16.msra.mxu0 0
    %3086 = vmatpush.bf16.msra.mxu0 0
    %3087 = vmatpush.bf16.msra.mxu0 0
    %3088 = vmatpush.bf16.msra.mxu0 0
    %3089 = vmatpush.bf16.msra.mxu0 %v2141
    %3090 = vmatpush.bf16.msra.mxu0 %v2119
    %3091 = vmatmul.bf16.gmra.mxu0 %v2549
    %v3092 = vpop.f32.mrf.mxu0
    %v3093 = vadd.f32 %v3079, %v3092
    %v3094 = vpop.f32.mrf.mxu0
    %v3095 = vadd.f32 %v3081, %v3094
    %3096 = vdwg.mxu0
    %3097 = vmatpush.bf16.msra.mxu0 %v1922
    %3098 = vmatpush.bf16.msra.mxu0 %v1900
    %3099 = vmatpush.bf16.msra.mxu0 %v1878
    %3100 = vmatpush.bf16.msra.mxu0 %v1856
    %3101 = vmatpush.bf16.msra.mxu0 %v1834
    %3102 = vmatpush.bf16.msra.mxu0 %v1812
    %3103 = vmatpush.bf16.msra.mxu0 %v1790
    %3104 = vmatpush.bf16.msra.mxu0 %v1768
    %3105 = vmatmul.bf16.gmra.mxu0 %v562
    %v3106 = vpop.f32.mrf.mxu0
    %v3107 = vadd.f32 %v521, %v3106
    %v3108 = vpop.f32.mrf.mxu0
    %v3109 = vadd.f32 %v521, %v3108
    %3110 = vdwg.mxu0
    %3111 = vmatpush.bf16.msra.mxu0 %v2098
    %3112 = vmatpush.bf16.msra.mxu0 %v2076
    %3113 = vmatpush.bf16.msra.mxu0 %v2054
    %3114 = vmatpush.bf16.msra.mxu0 %v2032
    %3115 = vmatpush.bf16.msra.mxu0 %v2010
    %3116 = vmatpush.bf16.msra.mxu0 %v1988
    %3117 = vmatpush.bf16.msra.mxu0 %v1966
    %3118 = vmatpush.bf16.msra.mxu0 %v1944
    %3119 = vmatmul.bf16.gmra.mxu0 %v563
    %v3120 = vpop.f32.mrf.mxu0
    %v3121 = vadd.f32 %v3107, %v3120
    %v3122 = vpop.f32.mrf.mxu0
    %v3123 = vadd.f32 %v3109, %v3122
    %3124 = vdwg.mxu0
    %3125 = vmatpush.bf16.msra.mxu0 0
    %3126 = vmatpush.bf16.msra.mxu0 0
    %3127 = vmatpush.bf16.msra.mxu0 0
    %3128 = vmatpush.bf16.msra.mxu0 0
    %3129 = vmatpush.bf16.msra.mxu0 0
    %3130 = vmatpush.bf16.msra.mxu0 0
    %3131 = vmatpush.bf16.msra.mxu0 %v2142
    %3132 = vmatpush.bf16.msra.mxu0 %v2120
    %3133 = vmatmul.bf16.gmra.mxu0 %v2549
    %v3134 = vpop.f32.mrf.mxu0
    %v3135 = vadd.f32 %v3121, %v3134
    %v3136 = vpop.f32.mrf.mxu0
    %v3137 = vadd.f32 %v3123, %v3136
    %3138 = vdwg.mxu0
    %3139 = vmatpush.bf16.msra.mxu0 %v1923
    %3140 = vmatpush.bf16.msra.mxu0 %v1901
    %3141 = vmatpush.bf16.msra.mxu0 %v1879
    %3142 = vmatpush.bf16.msra.mxu0 %v1857
    %3143 = vmatpush.bf16.msra.mxu0 %v1835
    %3144 = vmatpush.bf16.msra.mxu0 %v1813
    %3145 = vmatpush.bf16.msra.mxu0 %v1791
    %3146 = vmatpush.bf16.msra.mxu0 %v1769
    %3147 = vmatmul.bf16.gmra.mxu0 %v562
    %v3148 = vpop.f32.mrf.mxu0
    %v3149 = vadd.f32 %v522, %v3148
    %v3150 = vpop.f32.mrf.mxu0
    %v3151 = vadd.f32 %v522, %v3150
    %3152 = vdwg.mxu0
    %3153 = vmatpush.bf16.msra.mxu0 %v2099
    %3154 = vmatpush.bf16.msra.mxu0 %v2077
    %3155 = vmatpush.bf16.msra.mxu0 %v2055
    %3156 = vmatpush.bf16.msra.mxu0 %v2033
    %3157 = vmatpush.bf16.msra.mxu0 %v2011
    %3158 = vmatpush.bf16.msra.mxu0 %v1989
    %3159 = vmatpush.bf16.msra.mxu0 %v1967
    %3160 = vmatpush.bf16.msra.mxu0 %v1945
    %3161 = vmatmul.bf16.gmra.mxu0 %v563
    %v3162 = vpop.f32.mrf.mxu0
    %v3163 = vadd.f32 %v3149, %v3162
    %v3164 = vpop.f32.mrf.mxu0
    %v3165 = vadd.f32 %v3151, %v3164
    %3166 = vdwg.mxu0
    %3167 = vmatpush.bf16.msra.mxu0 0
    %3168 = vmatpush.bf16.msra.mxu0 0
    %3169 = vmatpush.bf16.msra.mxu0 0
    %3170 = vmatpush.bf16.msra.mxu0 0
    %3171 = vmatpush.bf16.msra.mxu0 0
    %3172 = vmatpush.bf16.msra.mxu0 0
    %3173 = vmatpush.bf16.msra.mxu0 %v2143
    %3174 = vmatpush.bf16.msra.mxu0 %v2121
    %3175 = vmatmul.bf16.gmra.mxu0 %v2549
    %v3176 = vpop.f32.mrf.mxu0
    %v3177 = vadd.f32 %v3163, %v3176
    %v3178 = vpop.f32.mrf.mxu0
    %v3179 = vadd.f32 %v3165, %v3178
    %3180 = vdwg.mxu0
    %3181 = vmatpush.bf16.msra.mxu0 %v1924
    %3182 = vmatpush.bf16.msra.mxu0 %v1902
    %3183 = vmatpush.bf16.msra.mxu0 %v1880
    %3184 = vmatpush.bf16.msra.mxu0 %v1858
    %3185 = vmatpush.bf16.msra.mxu0 %v1836
    %3186 = vmatpush.bf16.msra.mxu0 %v1814
    %3187 = vmatpush.bf16.msra.mxu0 %v1792
    %3188 = vmatpush.bf16.msra.mxu0 %v1770
    %3189 = vmatmul.bf16.gmra.mxu0 %v562
    %v3190 = vpop.f32.mrf.mxu0
    %v3191 = vadd.f32 %v523, %v3190
    %v3192 = vpop.f32.mrf.mxu0
    %v3193 = vadd.f32 %v523, %v3192
    %3194 = vdwg.mxu0
    %3195 = vmatpush.bf16.msra.mxu0 %v2100
    %3196 = vmatpush.bf16.msra.mxu0 %v2078
    %3197 = vmatpush.bf16.msra.mxu0 %v2056
    %3198 = vmatpush.bf16.msra.mxu0 %v2034
    %3199 = vmatpush.bf16.msra.mxu0 %v2012
    %3200 = vmatpush.bf16.msra.mxu0 %v1990
    %3201 = vmatpush.bf16.msra.mxu0 %v1968
    %3202 = vmatpush.bf16.msra.mxu0 %v1946
    %3203 = vmatmul.bf16.gmra.mxu0 %v563
    %v3204 = vpop.f32.mrf.mxu0
    %v3205 = vadd.f32 %v3191, %v3204
    %v3206 = vpop.f32.mrf.mxu0
    %v3207 = vadd.f32 %v3193, %v3206
    %3208 = vdwg.mxu0
    %3209 = vmatpush.bf16.msra.mxu0 0
    %3210 = vmatpush.bf16.msra.mxu0 0
    %3211 = vmatpush.bf16.msra.mxu0 0
    %3212 = vmatpush.bf16.msra.mxu0 0
    %3213 = vmatpush.bf16.msra.mxu0 0
    %3214 = vmatpush.bf16.msra.mxu0 0
    %3215 = vmatpush.bf16.msra.mxu0 %v2144
    %3216 = vmatpush.bf16.msra.mxu0 %v2122
    %3217 = vmatmul.bf16.gmra.mxu0 %v2549
    %v3218 = vpop.f32.mrf.mxu0
    %v3219 = vadd.f32 %v3205, %v3218
    %v3220 = vpop.f32.mrf.mxu0
    %v3221 = vadd.f32 %v3207, %v3220
    %3222 = vdwg.mxu0
    %3223 = vmatpush.bf16.msra.mxu0 %v1925
    %3224 = vmatpush.bf16.msra.mxu0 %v1903
    %3225 = vmatpush.bf16.msra.mxu0 %v1881
    %3226 = vmatpush.bf16.msra.mxu0 %v1859
    %3227 = vmatpush.bf16.msra.mxu0 %v1837
    %3228 = vmatpush.bf16.msra.mxu0 %v1815
    %3229 = vmatpush.bf16.msra.mxu0 %v1793
    %3230 = vmatpush.bf16.msra.mxu0 %v1771
    %3231 = vmatmul.bf16.gmra.mxu0 %v562
    %v3232 = vpop.f32.mrf.mxu0
    %v3233 = vadd.f32 %v524, %v3232
    %v3234 = vpop.f32.mrf.mxu0
    %v3235 = vadd.f32 %v524, %v3234
    %3236 = vdwg.mxu0
    %3237 = vmatpush.bf16.msra.mxu0 %v2101
    %3238 = vmatpush.bf16.msra.mxu0 %v2079
    %3239 = vmatpush.bf16.msra.mxu0 %v2057
    %3240 = vmatpush.bf16.msra.mxu0 %v2035
    %3241 = vmatpush.bf16.msra.mxu0 %v2013
    %3242 = vmatpush.bf16.msra.mxu0 %v1991
    %3243 = vmatpush.bf16.msra.mxu0 %v1969
    %3244 = vmatpush.bf16.msra.mxu0 %v1947
    %3245 = vmatmul.bf16.gmra.mxu0 %v563
    %v3246 = vpop.f32.mrf.mxu0
    %v3247 = vadd.f32 %v3233, %v3246
    %v3248 = vpop.f32.mrf.mxu0
    %v3249 = vadd.f32 %v3235, %v3248
    %3250 = vdwg.mxu0
    %3251 = vmatpush.bf16.msra.mxu0 0
    %3252 = vmatpush.bf16.msra.mxu0 0
    %3253 = vmatpush.bf16.msra.mxu0 0
    %3254 = vmatpush.bf16.msra.mxu0 0
    %3255 = vmatpush.bf16.msra.mxu0 0
    %3256 = vmatpush.bf16.msra.mxu0 0
    %3257 = vmatpush.bf16.msra.mxu0 %v2145
    %3258 = vmatpush.bf16.msra.mxu0 %v2123
    %3259 = vmatmul.bf16.gmra.mxu0 %v2549
    %v3260 = vpop.f32.mrf.mxu0
    %v3261 = vadd.f32 %v3247, %v3260
    %v3262 = vpop.f32.mrf.mxu0
    %v3263 = vadd.f32 %v3249, %v3262
    %3264 = vdwg.mxu0
    %3265 = vmatpush.bf16.msra.mxu0 %v1926
    %3266 = vmatpush.bf16.msra.mxu0 %v1904
    %3267 = vmatpush.bf16.msra.mxu0 %v1882
    %3268 = vmatpush.bf16.msra.mxu0 %v1860
    %3269 = vmatpush.bf16.msra.mxu0 %v1838
    %3270 = vmatpush.bf16.msra.mxu0 %v1816
    %3271 = vmatpush.bf16.msra.mxu0 %v1794
    %3272 = vmatpush.bf16.msra.mxu0 %v1772
    %3273 = vmatmul.bf16.gmra.mxu0 %v562
    %v3274 = vpop.f32.mrf.mxu0
    %v3275 = vadd.f32 %v525, %v3274
    %v3276 = vpop.f32.mrf.mxu0
    %v3277 = vadd.f32 %v525, %v3276
    %3278 = vdwg.mxu0
    %3279 = vmatpush.bf16.msra.mxu0 %v2102
    %3280 = vmatpush.bf16.msra.mxu0 %v2080
    %3281 = vmatpush.bf16.msra.mxu0 %v2058
    %3282 = vmatpush.bf16.msra.mxu0 %v2036
    %3283 = vmatpush.bf16.msra.mxu0 %v2014
    %3284 = vmatpush.bf16.msra.mxu0 %v1992
    %3285 = vmatpush.bf16.msra.mxu0 %v1970
    %3286 = vmatpush.bf16.msra.mxu0 %v1948
    %3287 = vmatmul.bf16.gmra.mxu0 %v563
    %v3288 = vpop.f32.mrf.mxu0
    %v3289 = vadd.f32 %v3275, %v3288
    %v3290 = vpop.f32.mrf.mxu0
    %v3291 = vadd.f32 %v3277, %v3290
    %3292 = vdwg.mxu0
    %3293 = vmatpush.bf16.msra.mxu0 0
    %3294 = vmatpush.bf16.msra.mxu0 0
    %3295 = vmatpush.bf16.msra.mxu0 0
    %3296 = vmatpush.bf16.msra.mxu0 0
    %3297 = vmatpush.bf16.msra.mxu0 0
    %3298 = vmatpush.bf16.msra.mxu0 0
    %3299 = vmatpush.bf16.msra.mxu0 %v2146
    %3300 = vmatpush.bf16.msra.mxu0 %v2124
    %3301 = vmatmul.bf16.gmra.mxu0 %v2549
    %v3302 = vpop.f32.mrf.mxu0
    %v3303 = vadd.f32 %v3289, %v3302
    %v3304 = vpop.f32.mrf.mxu0
    %v3305 = vadd.f32 %v3291, %v3304
    %3306 = vdwg.mxu0
    %3307 = vmatpush.bf16.msra.mxu0 %v1927
    %3308 = vmatpush.bf16.msra.mxu0 %v1905
    %3309 = vmatpush.bf16.msra.mxu0 %v1883
    %3310 = vmatpush.bf16.msra.mxu0 %v1861
    %3311 = vmatpush.bf16.msra.mxu0 %v1839
    %3312 = vmatpush.bf16.msra.mxu0 %v1817
    %3313 = vmatpush.bf16.msra.mxu0 %v1795
    %3314 = vmatpush.bf16.msra.mxu0 %v1773
    %3315 = vmatmul.bf16.gmra.mxu0 %v562
    %v3316 = vpop.f32.mrf.mxu0
    %v3317 = vadd.f32 %v526, %v3316
    %v3318 = vpop.f32.mrf.mxu0
    %v3319 = vadd.f32 %v526, %v3318
    %3320 = vdwg.mxu0
    %3321 = vmatpush.bf16.msra.mxu0 %v2103
    %3322 = vmatpush.bf16.msra.mxu0 %v2081
    %3323 = vmatpush.bf16.msra.mxu0 %v2059
    %3324 = vmatpush.bf16.msra.mxu0 %v2037
    %3325 = vmatpush.bf16.msra.mxu0 %v2015
    %3326 = vmatpush.bf16.msra.mxu0 %v1993
    %3327 = vmatpush.bf16.msra.mxu0 %v1971
    %3328 = vmatpush.bf16.msra.mxu0 %v1949
    %3329 = vmatmul.bf16.gmra.mxu0 %v563
    %v3330 = vpop.f32.mrf.mxu0
    %v3331 = vadd.f32 %v3317, %v3330
    %v3332 = vpop.f32.mrf.mxu0
    %v3333 = vadd.f32 %v3319, %v3332
    %3334 = vdwg.mxu0
    %3335 = vmatpush.bf16.msra.mxu0 0
    %3336 = vmatpush.bf16.msra.mxu0 0
    %3337 = vmatpush.bf16.msra.mxu0 0
    %3338 = vmatpush.bf16.msra.mxu0 0
    %3339 = vmatpush.bf16.msra.mxu0 0
    %3340 = vmatpush.bf16.msra.mxu0 0
    %3341 = vmatpush.bf16.msra.mxu0 %v2147
    %3342 = vmatpush.bf16.msra.mxu0 %v2125
    %3343 = vmatmul.bf16.gmra.mxu0 %v2549
    %v3344 = vpop.f32.mrf.mxu0
    %v3345 = vadd.f32 %v3331, %v3344
    %v3346 = vpop.f32.mrf.mxu0
    %v3347 = vadd.f32 %v3333, %v3346
    %3348 = vdwg.mxu0
    %3349 = vmatpush.bf16.msra.mxu0 %v1928
    %3350 = vmatpush.bf16.msra.mxu0 %v1906
    %3351 = vmatpush.bf16.msra.mxu0 %v1884
    %3352 = vmatpush.bf16.msra.mxu0 %v1862
    %3353 = vmatpush.bf16.msra.mxu0 %v1840
    %3354 = vmatpush.bf16.msra.mxu0 %v1818
    %3355 = vmatpush.bf16.msra.mxu0 %v1796
    %3356 = vmatpush.bf16.msra.mxu0 %v1774
    %3357 = vmatmul.bf16.gmra.mxu0 %v562
    %v3358 = vpop.f32.mrf.mxu0
    %v3359 = vadd.f32 %v527, %v3358
    %v3360 = vpop.f32.mrf.mxu0
    %v3361 = vadd.f32 %v527, %v3360
    %3362 = vdwg.mxu0
    %3363 = vmatpush.bf16.msra.mxu0 %v2104
    %3364 = vmatpush.bf16.msra.mxu0 %v2082
    %3365 = vmatpush.bf16.msra.mxu0 %v2060
    %3366 = vmatpush.bf16.msra.mxu0 %v2038
    %3367 = vmatpush.bf16.msra.mxu0 %v2016
    %3368 = vmatpush.bf16.msra.mxu0 %v1994
    %3369 = vmatpush.bf16.msra.mxu0 %v1972
    %3370 = vmatpush.bf16.msra.mxu0 %v1950
    %3371 = vmatmul.bf16.gmra.mxu0 %v563
    %v3372 = vpop.f32.mrf.mxu0
    %v3373 = vadd.f32 %v3359, %v3372
    %v3374 = vpop.f32.mrf.mxu0
    %v3375 = vadd.f32 %v3361, %v3374
    %3376 = vdwg.mxu0
    %3377 = vmatpush.bf16.msra.mxu0 0
    %3378 = vmatpush.bf16.msra.mxu0 0
    %3379 = vmatpush.bf16.msra.mxu0 0
    %3380 = vmatpush.bf16.msra.mxu0 0
    %3381 = vmatpush.bf16.msra.mxu0 0
    %3382 = vmatpush.bf16.msra.mxu0 0
    %3383 = vmatpush.bf16.msra.mxu0 %v2148
    %3384 = vmatpush.bf16.msra.mxu0 %v2126
    %3385 = vmatmul.bf16.gmra.mxu0 %v2549
    %v3386 = vpop.f32.mrf.mxu0
    %v3387 = vadd.f32 %v3373, %v3386
    %v3388 = vpop.f32.mrf.mxu0
    %v3389 = vadd.f32 %v3375, %v3388
    %3390 = vdwg.mxu0
    %3391 = vmatpush.bf16.msra.mxu0 %v1929
    %3392 = vmatpush.bf16.msra.mxu0 %v1907
    %3393 = vmatpush.bf16.msra.mxu0 %v1885
    %3394 = vmatpush.bf16.msra.mxu0 %v1863
    %3395 = vmatpush.bf16.msra.mxu0 %v1841
    %3396 = vmatpush.bf16.msra.mxu0 %v1819
    %3397 = vmatpush.bf16.msra.mxu0 %v1797
    %3398 = vmatpush.bf16.msra.mxu0 %v1775
    %3399 = vmatmul.bf16.gmra.mxu0 %v562
    %v3400 = vpop.f32.mrf.mxu0
    %v3401 = vadd.f32 %v528, %v3400
    %v3402 = vpop.f32.mrf.mxu0
    %v3403 = vadd.f32 %v528, %v3402
    %3404 = vdwg.mxu0
    %3405 = vmatpush.bf16.msra.mxu0 %v2105
    %3406 = vmatpush.bf16.msra.mxu0 %v2083
    %3407 = vmatpush.bf16.msra.mxu0 %v2061
    %3408 = vmatpush.bf16.msra.mxu0 %v2039
    %3409 = vmatpush.bf16.msra.mxu0 %v2017
    %3410 = vmatpush.bf16.msra.mxu0 %v1995
    %3411 = vmatpush.bf16.msra.mxu0 %v1973
    %3412 = vmatpush.bf16.msra.mxu0 %v1951
    %3413 = vmatmul.bf16.gmra.mxu0 %v563
    %v3414 = vpop.f32.mrf.mxu0
    %v3415 = vadd.f32 %v3401, %v3414
    %v3416 = vpop.f32.mrf.mxu0
    %v3417 = vadd.f32 %v3403, %v3416
    %3418 = vdwg.mxu0
    %3419 = vmatpush.bf16.msra.mxu0 0
    %3420 = vmatpush.bf16.msra.mxu0 0
    %3421 = vmatpush.bf16.msra.mxu0 0
    %3422 = vmatpush.bf16.msra.mxu0 0
    %3423 = vmatpush.bf16.msra.mxu0 0
    %3424 = vmatpush.bf16.msra.mxu0 0
    %3425 = vmatpush.bf16.msra.mxu0 %v2149
    %3426 = vmatpush.bf16.msra.mxu0 %v2127
    %3427 = vmatmul.bf16.gmra.mxu0 %v2549
    %v3428 = vpop.f32.mrf.mxu0
    %v3429 = vadd.f32 %v3415, %v3428
    %v3430 = vpop.f32.mrf.mxu0
    %v3431 = vadd.f32 %v3417, %v3430
    %3432 = vdwg.mxu0
    %3433 = vmatpush.bf16.msra.mxu0 %v1930
    %3434 = vmatpush.bf16.msra.mxu0 %v1908
    %3435 = vmatpush.bf16.msra.mxu0 %v1886
    %3436 = vmatpush.bf16.msra.mxu0 %v1864
    %3437 = vmatpush.bf16.msra.mxu0 %v1842
    %3438 = vmatpush.bf16.msra.mxu0 %v1820
    %3439 = vmatpush.bf16.msra.mxu0 %v1798
    %3440 = vmatpush.bf16.msra.mxu0 %v1776
    %3441 = vmatmul.bf16.gmra.mxu0 %v562
    %v3442 = vpop.f32.mrf.mxu0
    %v3443 = vadd.f32 %v529, %v3442
    %v3444 = vpop.f32.mrf.mxu0
    %v3445 = vadd.f32 %v529, %v3444
    %3446 = vdwg.mxu0
    %3447 = vmatpush.bf16.msra.mxu0 %v2106
    %3448 = vmatpush.bf16.msra.mxu0 %v2084
    %3449 = vmatpush.bf16.msra.mxu0 %v2062
    %3450 = vmatpush.bf16.msra.mxu0 %v2040
    %3451 = vmatpush.bf16.msra.mxu0 %v2018
    %3452 = vmatpush.bf16.msra.mxu0 %v1996
    %3453 = vmatpush.bf16.msra.mxu0 %v1974
    %3454 = vmatpush.bf16.msra.mxu0 %v1952
    %3455 = vmatmul.bf16.gmra.mxu0 %v563
    %v3456 = vpop.f32.mrf.mxu0
    %v3457 = vadd.f32 %v3443, %v3456
    %v3458 = vpop.f32.mrf.mxu0
    %v3459 = vadd.f32 %v3445, %v3458
    %3460 = vdwg.mxu0
    %3461 = vmatpush.bf16.msra.mxu0 0
    %3462 = vmatpush.bf16.msra.mxu0 0
    %3463 = vmatpush.bf16.msra.mxu0 0
    %3464 = vmatpush.bf16.msra.mxu0 0
    %3465 = vmatpush.bf16.msra.mxu0 0
    %3466 = vmatpush.bf16.msra.mxu0 0
    %3467 = vmatpush.bf16.msra.mxu0 %v2150
    %3468 = vmatpush.bf16.msra.mxu0 %v2128
    %3469 = vmatmul.bf16.gmra.mxu0 %v2549
    %v3470 = vpop.f32.mrf.mxu0
    %v3471 = vadd.f32 %v3457, %v3470
    %v3472 = vpop.f32.mrf.mxu0
    %v3473 = vadd.f32 %v3459, %v3472
    %3474 = vdwg.mxu0
    %v3475 = vmul.f32 %v2589, 0.5
    %v3476 = vmul.f32 %v2631, 0.5
    %v3477 = vmul.f32 %v2673, 0.5
    %v3478 = vmul.f32 %v2715, 0.5
    %v3479 = vmul.f32 %v2757, 0.5
    %v3480 = vmul.f32 %v2799, 0.5
    %v3481 = vmul.f32 %v2841, 0.5
    %v3482 = vmul.f32 %v2883, 0.5
    %v3483 = vmul.f32 %v2925, 0.5
    %v3484 = vmul.f32 %v2967, 0.5
    %v3485 = vmul.f32 %v3009, 0.5
    %v3486 = vmul.f32 %v3051, 0.5
    %v3487 = vmul.f32 %v3093, 0.5
    %v3488 = vmul.f32 %v3135, 0.5
    %v3489 = vmul.f32 %v3177, 0.5
    %v3490 = vmul.f32 %v3219, 0.5
    %v3491 = vmul.f32 %v3261, 0.5
    %v3492 = vmul.f32 %v3303, 0.5
    %v3493 = vmul.f32 %v3345, 0.5
    %v3494 = vmul.f32 %v3387, 0.5
    %v3495 = vmul.f32 %v3429, 0.5
    %v3496 = vmul.f32 %v3471, 0.5
    %v3497 = vmul.f32 %v2591, 0.5
    %v3498 = vmul.f32 %v2633, 0.5
    %v3499 = vmul.f32 %v2675, 0.5
    %v3500 = vmul.f32 %v2717, 0.5
    %v3501 = vmul.f32 %v2759, 0.5
    %v3502 = vmul.f32 %v2801, 0.5
    %v3503 = vmul.f32 %v2843, 0.5
    %v3504 = vmul.f32 %v2885, 0.5
    %v3505 = vmul.f32 %v2927, 0.5
    %v3506 = vmul.f32 %v2969, 0.5
    %v3507 = vmul.f32 %v3011, 0.5
    %v3508 = vmul.f32 %v3053, 0.5
    %v3509 = vmul.f32 %v3095, 0.5
    %v3510 = vmul.f32 %v3137, 0.5
    %v3511 = vmul.f32 %v3179, 0.5
    %v3512 = vmul.f32 %v3221, 0.5
    %v3513 = vmul.f32 %v3263, 0.5
    %v3514 = vmul.f32 %v3305, 0.5
    %v3515 = vmul.f32 %v3347, 0.5
    %v3516 = vmul.f32 %v3389, 0.5
    %v3517 = vmul.f32 %v3431, 0.5
    %v3518 = vmul.f32 %v3473, 0.5
    %v3519 = vtanh.pop %v3475
    %v3520 = vtanh.pop %v3476
    %v3521 = vtanh.pop %v3477
    %v3522 = vtanh.pop %v3478
    %v3523 = vtanh.pop %v3479
    %v3524 = vtanh.pop %v3480
    %v3525 = vtanh.pop %v3481
    %v3526 = vtanh.pop %v3482
    %v3527 = vtanh.pop %v3483
    %v3528 = vtanh.pop %v3484
    %v3529 = vtanh.pop %v3485
    %v3530 = vtanh.pop %v3486
    %v3531 = vtanh.pop %v3487
    %v3532 = vtanh.pop %v3488
    %v3533 = vtanh.pop %v3489
    %v3534 = vtanh.pop %v3490
    %v3535 = vtanh.pop %v3491
    %v3536 = vtanh.pop %v3492
    %v3537 = vtanh.pop %v3493
    %v3538 = vtanh.pop %v3494
    %v3539 = vtanh.pop %v3495
    %v3540 = vtanh.pop %v3496
    %v3541 = vtanh.pop %v3497
    %v3542 = vtanh.pop %v3498
    %v3543 = vtanh.pop %v3499
    %v3544 = vtanh.pop %v3500
    %v3545 = vtanh.pop %v3501
    %v3546 = vtanh.pop %v3502
    %v3547 = vtanh.pop %v3503
    %v3548 = vtanh.pop %v3504
    %v3549 = vtanh.pop %v3505
    %v3550 = vtanh.pop %v3506
    %v3551 = vtanh.pop %v3507
    %v3552 = vtanh.pop %v3508
    %v3553 = vtanh.pop %v3509
    %v3554 = vtanh.pop %v3510
    %v3555 = vtanh.pop %v3511
    %v3556 = vtanh.pop %v3512
    %v3557 = vtanh.pop %v3513
    %v3558 = vtanh.pop %v3514
    %v3559 = vtanh.pop %v3515
    %v3560 = vtanh.pop %v3516
    %v3561 = vtanh.pop %v3517
    %v3562 = vtanh.pop %v3518
    %v3563 = vadd.f32 %v3519, 1.0
    %v3564 = vadd.f32 %v3520, 1.0
    %v3565 = vadd.f32 %v3521, 1.0
    %v3566 = vadd.f32 %v3522, 1.0
    %v3567 = vadd.f32 %v3523, 1.0
    %v3568 = vadd.f32 %v3524, 1.0
    %v3569 = vadd.f32 %v3525, 1.0
    %v3570 = vadd.f32 %v3526, 1.0
    %v3571 = vadd.f32 %v3527, 1.0
    %v3572 = vadd.f32 %v3528, 1.0
    %v3573 = vadd.f32 %v3529, 1.0
    %v3574 = vadd.f32 %v3530, 1.0
    %v3575 = vadd.f32 %v3531, 1.0
    %v3576 = vadd.f32 %v3532, 1.0
    %v3577 = vadd.f32 %v3533, 1.0
    %v3578 = vadd.f32 %v3534, 1.0
    %v3579 = vadd.f32 %v3535, 1.0
    %v3580 = vadd.f32 %v3536, 1.0
    %v3581 = vadd.f32 %v3537, 1.0
    %v3582 = vadd.f32 %v3538, 1.0
    %v3583 = vadd.f32 %v3539, 1.0
    %v3584 = vadd.f32 %v3540, 1.0
    %v3585 = vadd.f32 %v3541, 1.0
    %v3586 = vadd.f32 %v3542, 1.0
    %v3587 = vadd.f32 %v3543, 1.0
    %v3588 = vadd.f32 %v3544, 1.0
    %v3589 = vadd.f32 %v3545, 1.0
    %v3590 = vadd.f32 %v3546, 1.0
    %v3591 = vadd.f32 %v3547, 1.0
    %v3592 = vadd.f32 %v3548, 1.0
    %v3593 = vadd.f32 %v3549, 1.0
    %v3594 = vadd.f32 %v3550, 1.0
    %v3595 = vadd.f32 %v3551, 1.0
    %v3596 = vadd.f32 %v3552, 1.0
    %v3597 = vadd.f32 %v3553, 1.0
    %v3598 = vadd.f32 %v3554, 1.0
    %v3599 = vadd.f32 %v3555, 1.0
    %v3600 = vadd.f32 %v3556, 1.0
    %v3601 = vadd.f32 %v3557, 1.0
    %v3602 = vadd.f32 %v3558, 1.0
    %v3603 = vadd.f32 %v3559, 1.0
    %v3604 = vadd.f32 %v3560, 1.0
    %v3605 = vadd.f32 %v3561, 1.0
    %v3606 = vadd.f32 %v3562, 1.0
    %v3607 = vmul.f32 %v3475, %v3563
    %v3608 = vmul.f32 %v3476, %v3564
    %v3609 = vmul.f32 %v3477, %v3565
    %v3610 = vmul.f32 %v3478, %v3566
    %v3611 = vmul.f32 %v3479, %v3567
    %v3612 = vmul.f32 %v3480, %v3568
    %v3613 = vmul.f32 %v3481, %v3569
    %v3614 = vmul.f32 %v3482, %v3570
    %v3615 = vmul.f32 %v3483, %v3571
    %v3616 = vmul.f32 %v3484, %v3572
    %v3617 = vmul.f32 %v3485, %v3573
    %v3618 = vmul.f32 %v3486, %v3574
    %v3619 = vmul.f32 %v3487, %v3575
    %v3620 = vmul.f32 %v3488, %v3576
    %v3621 = vmul.f32 %v3489, %v3577
    %v3622 = vmul.f32 %v3490, %v3578
    %v3623 = vmul.f32 %v3491, %v3579
    %v3624 = vmul.f32 %v3492, %v3580
    %v3625 = vmul.f32 %v3493, %v3581
    %v3626 = vmul.f32 %v3494, %v3582
    %v3627 = vmul.f32 %v3495, %v3583
    %v3628 = vmul.f32 %v3496, %v3584
    %v3629 = vmul.f32 %v3497, %v3585
    %v3630 = vmul.f32 %v3498, %v3586
    %v3631 = vmul.f32 %v3499, %v3587
    %v3632 = vmul.f32 %v3500, %v3588
    %v3633 = vmul.f32 %v3501, %v3589
    %v3634 = vmul.f32 %v3502, %v3590
    %v3635 = vmul.f32 %v3503, %v3591
    %v3636 = vmul.f32 %v3504, %v3592
    %v3637 = vmul.f32 %v3505, %v3593
    %v3638 = vmul.f32 %v3506, %v3594
    %v3639 = vmul.f32 %v3507, %v3595
    %v3640 = vmul.f32 %v3508, %v3596
    %v3641 = vmul.f32 %v3509, %v3597
    %v3642 = vmul.f32 %v3510, %v3598
    %v3643 = vmul.f32 %v3511, %v3599
    %v3644 = vmul.f32 %v3512, %v3600
    %v3645 = vmul.f32 %v3513, %v3601
    %v3646 = vmul.f32 %v3514, %v3602
    %v3647 = vmul.f32 %v3515, %v3603
    %v3648 = vmul.f32 %v3516, %v3604
    %v3649 = vmul.f32 %v3517, %v3605
    %v3650 = vmul.f32 %v3518, %v3606
    %v3651 = vld [vmem:[#allocation2] sm:$0xff]
    %v3652 = vld [vmem:[#allocation2 + $0x8] sm:$0xff]
    %v3653 = vpack.c.bf16 %v3629, %v3607
    %v3654 = vpack.c.bf16 %v3630, %v3608
    %v3655 = vpack.c.bf16 %v3631, %v3609
    %v3656 = vpack.c.bf16 %v3632, %v3610
    %v3657 = vpack.c.bf16 %v3633, %v3611
    %v3658 = vpack.c.bf16 %v3634, %v3612
    %v3659 = vpack.c.bf16 %v3635, %v3613
    %v3660 = vpack.c.bf16 %v3636, %v3614
    %v3661 = vpack.c.bf16 %v3637, %v3615
    %v3662 = vpack.c.bf16 %v3638, %v3616
    %v3663 = vpack.c.bf16 %v3639, %v3617
    %v3664 = vpack.c.bf16 %v3640, %v3618
    %v3665 = vpack.c.bf16 %v3641, %v3619
    %v3666 = vpack.c.bf16 %v3642, %v3620
    %v3667 = vpack.c.bf16 %v3643, %v3621
    %v3668 = vpack.c.bf16 %v3644, %v3622
    %v3669 = vpack.c.bf16 %v3645, %v3623
    %v3670 = vpack.c.bf16 %v3646, %v3624
    %v3671 = vpack.c.bf16 %v3647, %v3625
    %v3672 = vpack.c.bf16 %v3648, %v3626
    %v3673 = vpack.c.bf16 %v3649, %v3627
    %v3674 = vpack.c.bf16 %v3650, %v3628
    %v3675 = vld [vmem:[#allocation9] sm:$0xf]
    %v3676 = vld [vmem:[#allocation9 + $0x4] sm:$0xf]
    %v3677 = vld [vmem:[#allocation9 + $0x8] sm:$0xf]
    %v3678 = vld [vmem:[#allocation9 + $0xc] sm:$0xf]
    %v3679 = vld [vmem:[#allocation9 + $0x10] sm:$0xf]
    %v3680 = vld [vmem:[#allocation9 + $0x14] sm:$0xf]
    %v3681 = vld [vmem:[#allocation9 + $0x18] sm:$0xf]
    %v3682 = vld [vmem:[#allocation9 + $0x1c] sm:$0xf]
    %v3683 = vld [vmem:[#allocation9 + $0x20] sm:$0xf]
    %v3684 = vld [vmem:[#allocation9 + $0x24] sm:$0xf]
    %v3685 = vld [vmem:[#allocation9 + $0x28] sm:$0xf]
    %v3686 = vld [vmem:[#allocation9 + $0x2c] sm:$0xf]
    %v3687 = vld [vmem:[#allocation9 + $0x30] sm:$0xf]
    %v3688 = vld [vmem:[#allocation9 + $0x34] sm:$0xf]
    %v3689 = vld [vmem:[#allocation9 + $0x38] sm:$0xf]
    %v3690 = vld [vmem:[#allocation9 + $0x3c] sm:$0xf]
    %v3691 = vld [vmem:[#allocation9 + $0x40] sm:$0xf]
    %v3692 = vld [vmem:[#allocation9 + $0x44] sm:$0xf]
    %v3693 = vld [vmem:[#allocation9 + $0x48] sm:$0xf]
    %v3694 = vld [vmem:[#allocation9 + $0x4c] sm:$0xf]
    %v3695 = vld [vmem:[#allocation9 + $0x50] sm:$0xf]
    %v3696 = vld [vmem:[#allocation9 + $0x54] sm:$0xf]
    %v3697 = vld [vmem:[#allocation9 + $0x58] sm:$0xf]
    %v3698 = vld [vmem:[#allocation9 + $0x5c] sm:$0xf]
    %v3699 = vld [vmem:[#allocation9 + $0x60] sm:$0xf]
    %v3700 = vld [vmem:[#allocation9 + $0x64] sm:$0xf]
    %v3701 = vld [vmem:[#allocation9 + $0x68] sm:$0xf]
    %v3702 = vld [vmem:[#allocation9 + $0x6c] sm:$0xf]
    %v3703 = vld [vmem:[#allocation9 + $0x70] sm:$0xf]
    %v3704 = vld [vmem:[#allocation9 + $0x74] sm:$0xf]
    %v3705 = vld [vmem:[#allocation9 + $0x78] sm:$0xf]
    %v3706 = vld [vmem:[#allocation9 + $0x7c] sm:$0xf]
    %v3707 = vld [vmem:[#allocation9 + $0x80] sm:$0xf]
    %v3708 = vld [vmem:[#allocation9 + $0x84] sm:$0xf]
    %v3709 = vld [vmem:[#allocation9 + $0x88] sm:$0xf]
    %v3710 = vld [vmem:[#allocation9 + $0x8c] sm:$0xf]
    %v3711 = vld [vmem:[#allocation9 + $0x90] sm:$0xf]
    %v3712 = vld [vmem:[#allocation9 + $0x94] sm:$0xf]
    %v3713 = vld [vmem:[#allocation9 + $0x98] sm:$0xf]
    %v3714 = vld [vmem:[#allocation9 + $0x9c] sm:$0xf]
    %v3715 = vld [vmem:[#allocation9 + $0xa0] sm:$0xf]
    %v3716 = vld [vmem:[#allocation9 + $0xa4] sm:$0xf]
    %v3717 = vld [vmem:[#allocation9 + $0xa8] sm:$0xf]
    %v3718 = vld [vmem:[#allocation9 + $0xac] sm:$0xf]
    %v3719 = vld [vmem:[#allocation9 + $0xb0] sm:$0xf]
    %v3720 = vld [vmem:[#allocation9 + $0xb4] sm:$0xf]
    %v3721 = vld [vmem:[#allocation9 + $0xb8] sm:$0xf]
    %v3722 = vld [vmem:[#allocation9 + $0xbc] sm:$0xf]
    %v3723 = vld [vmem:[#allocation9 + $0xc0] sm:$0xf]
    %v3724 = vld [vmem:[#allocation9 + $0xc4] sm:$0xf]
    %v3725 = vld [vmem:[#allocation9 + $0xc8] sm:$0xf]
    %v3726 = vld [vmem:[#allocation9 + $0xcc] sm:$0xf]
    %v3727 = vld [vmem:[#allocation9 + $0xd0] sm:$0xf]
    %v3728 = vld [vmem:[#allocation9 + $0xd4] sm:$0xf]
    %v3729 = vld [vmem:[#allocation9 + $0xd8] sm:$0xf]
    %v3730 = vld [vmem:[#allocation9 + $0xdc] sm:$0xf]
    %v3731 = vld [vmem:[#allocation9 + $0xe0] sm:$0xf]
    %v3732 = vld [vmem:[#allocation9 + $0xe4] sm:$0xf]
    %v3733 = vld [vmem:[#allocation9 + $0xe8] sm:$0xf]
    %v3734 = vld [vmem:[#allocation9 + $0xec] sm:$0xf]
    %v3735 = vld [vmem:[#allocation9 + $0xf0] sm:$0xf]
    %v3736 = vld [vmem:[#allocation9 + $0xf4] sm:$0xf]
    %v3737 = vld [vmem:[#allocation9 + $0xf8] sm:$0xf]
    %v3738 = vld [vmem:[#allocation9 + $0xfc] sm:$0xf]
    %v3739 = vld [vmem:[#allocation9 + $0x100] sm:$0xf]
    %v3740 = vld [vmem:[#allocation9 + $0x104] sm:$0xf]
    %v3741 = vld [vmem:[#allocation9 + $0x108] sm:$0xf]
    %v3742 = vld [vmem:[#allocation9 + $0x10c] sm:$0xf]
    %v3743 = vld [vmem:[#allocation9 + $0x110] sm:$0xf]
    %v3744 = vld [vmem:[#allocation9 + $0x114] sm:$0xf]
    %v3745 = vld [vmem:[#allocation9 + $0x118] sm:$0xf]
    %v3746 = vld [vmem:[#allocation9 + $0x11c] sm:$0xf]
    %v3747 = vld [vmem:[#allocation9 + $0x120] sm:$0xf]
    %v3748 = vld [vmem:[#allocation9 + $0x124] sm:$0xf]
    %v3749 = vld [vmem:[#allocation9 + $0x128] sm:$0xf]
    %v3750 = vld [vmem:[#allocation9 + $0x12c] sm:$0xf]
    %v3751 = vld [vmem:[#allocation9 + $0x130] sm:$0xf]
    %v3752 = vld [vmem:[#allocation9 + $0x134] sm:$0xf]
    %v3753 = vld [vmem:[#allocation9 + $0x138] sm:$0xf]
    %v3754 = vld [vmem:[#allocation9 + $0x13c] sm:$0xf]
    %v3755 = vld [vmem:[#allocation9 + $0x140] sm:$0xf]
    %v3756 = vld [vmem:[#allocation9 + $0x144] sm:$0xf]
    %v3757 = vld [vmem:[#allocation9 + $0x148] sm:$0xf]
    %v3758 = vld [vmem:[#allocation9 + $0x14c] sm:$0xf]
    %v3759 = vld [vmem:[#allocation9 + $0x150] sm:$0xf]
    %v3760 = vld [vmem:[#allocation9 + $0x154] sm:$0xf]
    %v3761 = vld [vmem:[#allocation9 + $0x158] sm:$0xf]
    %v3762 = vld [vmem:[#allocation9 + $0x15c] sm:$0xf]
    %v3763 = vld [vmem:[#allocation9 + $0x160] sm:$0xf]
    %v3764 = vld [vmem:[#allocation9 + $0x164] sm:$0xf]
    %v3765 = vld [vmem:[#allocation9 + $0x168] sm:$0xf]
    %v3766 = vld [vmem:[#allocation9 + $0x16c] sm:$0xf]
    %v3767 = vld [vmem:[#allocation9 + $0x170] sm:$0xf]
    %v3768 = vld [vmem:[#allocation9 + $0x174] sm:$0xf]
    %v3769 = vld [vmem:[#allocation9 + $0x178] sm:$0xf]
    %v3770 = vld [vmem:[#allocation9 + $0x17c] sm:$0xf]
    %v3771 = vld [vmem:[#allocation9 + $0x180] sm:$0xf]
    %v3772 = vld [vmem:[#allocation9 + $0x184] sm:$0xf]
    %v3773 = vld [vmem:[#allocation9 + $0x188] sm:$0xf]
    %v3774 = vld [vmem:[#allocation9 + $0x18c] sm:$0xf]
    %v3775 = vld [vmem:[#allocation9 + $0x190] sm:$0xf]
    %v3776 = vld [vmem:[#allocation9 + $0x194] sm:$0xf]
    %v3777 = vld [vmem:[#allocation9 + $0x198] sm:$0xf]
    %v3778 = vld [vmem:[#allocation9 + $0x19c] sm:$0xf]
    %v3779 = vld [vmem:[#allocation9 + $0x1a0] sm:$0xf]
    %v3780 = vld [vmem:[#allocation9 + $0x1a4] sm:$0xf]
    %v3781 = vld [vmem:[#allocation9 + $0x1a8] sm:$0xf]
    %v3782 = vld [vmem:[#allocation9 + $0x1ac] sm:$0xf]
    %v3783 = vld [vmem:[#allocation9 + $0x1b0] sm:$0xf]
    %v3784 = vld [vmem:[#allocation9 + $0x1b4] sm:$0xf]
    %v3785 = vld [vmem:[#allocation9 + $0x1b8] sm:$0xf]
    %v3786 = vld [vmem:[#allocation9 + $0x1bc] sm:$0xf]
    %v3787 = vld [vmem:[#allocation9 + $0x1c0] sm:$0xf]
    %v3788 = vld [vmem:[#allocation9 + $0x1c4] sm:$0xf]
    %v3789 = vld [vmem:[#allocation9 + $0x1c8] sm:$0xf]
    %v3790 = vld [vmem:[#allocation9 + $0x1cc] sm:$0xf]
    %v3791 = vld [vmem:[#allocation9 + $0x1d0] sm:$0xf]
    %v3792 = vld [vmem:[#allocation9 + $0x1d4] sm:$0xf]
    %v3793 = vld [vmem:[#allocation9 + $0x1d8] sm:$0xf]
    %v3794 = vld [vmem:[#allocation9 + $0x1dc] sm:$0xf]
    %v3795 = vld [vmem:[#allocation9 + $0x1e0] sm:$0xf]
    %v3796 = vld [vmem:[#allocation9 + $0x1e4] sm:$0xf]
    %v3797 = vld [vmem:[#allocation9 + $0x1e8] sm:$0xf]
    %v3798 = vld [vmem:[#allocation9 + $0x1ec] sm:$0xf]
    %v3799 = vld [vmem:[#allocation9 + $0x1f0] sm:$0xf]
    %v3800 = vld [vmem:[#allocation9 + $0x1f4] sm:$0xf]
    %v3801 = vld [vmem:[#allocation9 + $0x1f8] sm:$0xf]
    %v3802 = vld [vmem:[#allocation9 + $0x1fc] sm:$0xf]
    %v3803 = vld [vmem:[#allocation9 + $0x200] sm:$0xf]
    %v3804 = vld [vmem:[#allocation9 + $0x204] sm:$0xf]
    %v3805 = vld [vmem:[#allocation9 + $0x208] sm:$0xf]
    %v3806 = vld [vmem:[#allocation9 + $0x20c] sm:$0xf]
    %v3807 = vld [vmem:[#allocation9 + $0x210] sm:$0xf]
    %v3808 = vld [vmem:[#allocation9 + $0x214] sm:$0xf]
    %v3809 = vld [vmem:[#allocation9 + $0x218] sm:$0xf]
    %v3810 = vld [vmem:[#allocation9 + $0x21c] sm:$0xf]
    %v3811 = vld [vmem:[#allocation9 + $0x220] sm:$0xf]
    %v3812 = vld [vmem:[#allocation9 + $0x224] sm:$0xf]
    %v3813 = vld [vmem:[#allocation9 + $0x228] sm:$0xf]
    %v3814 = vld [vmem:[#allocation9 + $0x22c] sm:$0xf]
    %v3815 = vld [vmem:[#allocation9 + $0x230] sm:$0xf]
    %v3816 = vld [vmem:[#allocation9 + $0x234] sm:$0xf]
    %v3817 = vld [vmem:[#allocation9 + $0x238] sm:$0xf]
    %v3818 = vld [vmem:[#allocation9 + $0x23c] sm:$0xf]
    %v3819 = vld [vmem:[#allocation9 + $0x240] sm:$0xf]
    %v3820 = vld [vmem:[#allocation9 + $0x244] sm:$0xf]
    %v3821 = vld [vmem:[#allocation9 + $0x248] sm:$0xf]
    %v3822 = vld [vmem:[#allocation9 + $0x24c] sm:$0xf]
    %v3823 = vld [vmem:[#allocation9 + $0x250] sm:$0xf]
    %v3824 = vld [vmem:[#allocation9 + $0x254] sm:$0xf]
    %v3825 = vld [vmem:[#allocation9 + $0x258] sm:$0xf]
    %v3826 = vld [vmem:[#allocation9 + $0x25c] sm:$0xf]
    %v3827 = vld [vmem:[#allocation9 + $0x260] sm:$0xf]
    %v3828 = vld [vmem:[#allocation9 + $0x264] sm:$0xf]
    %v3829 = vld [vmem:[#allocation9 + $0x268] sm:$0xf]
    %v3830 = vld [vmem:[#allocation9 + $0x26c] sm:$0xf]
    %v3831 = vld [vmem:[#allocation9 + $0x270] sm:$0xf]
    %v3832 = vld [vmem:[#allocation9 + $0x274] sm:$0xf]
    %v3833 = vld [vmem:[#allocation9 + $0x278] sm:$0xf]
    %v3834 = vld [vmem:[#allocation9 + $0x27c] sm:$0xf]
    %v3835 = vld [vmem:[#allocation9 + $0x280] sm:$0xf]
    %v3836 = vld [vmem:[#allocation9 + $0x284] sm:$0xf]
    %v3837 = vld [vmem:[#allocation9 + $0x288] sm:$0xf]
    %v3838 = vld [vmem:[#allocation9 + $0x28c] sm:$0xf]
    %v3839 = vld [vmem:[#allocation9 + $0x290] sm:$0xf]
    %v3840 = vld [vmem:[#allocation9 + $0x294] sm:$0xf]
    %v3841 = vld [vmem:[#allocation9 + $0x298] sm:$0xf]
    %v3842 = vld [vmem:[#allocation9 + $0x29c] sm:$0xf]
    %v3843 = vld [vmem:[#allocation9 + $0x2a0] sm:$0xf]
    %v3844 = vld [vmem:[#allocation9 + $0x2a4] sm:$0xf]
    %v3845 = vld [vmem:[#allocation9 + $0x2a8] sm:$0xf]
    %v3846 = vld [vmem:[#allocation9 + $0x2ac] sm:$0xf]
    %v3847 = vld [vmem:[#allocation9 + $0x2b0] sm:$0xf]
    %v3848 = vld [vmem:[#allocation9 + $0x2b4] sm:$0xf]
    %v3849 = vld [vmem:[#allocation9 + $0x2b8] sm:$0xf]
    %v3850 = vld [vmem:[#allocation9 + $0x2bc] sm:$0xf]
    %v3851 = vld [vmem:[#allocation9 + $0x2c0] sm:$0xf]
    %v3852 = vld [vmem:[#allocation9 + $0x2c4] sm:$0xf]
    %v3853 = vld [vmem:[#allocation9 + $0x2c8] sm:$0xf]
    %v3854 = vld [vmem:[#allocation9 + $0x2cc] sm:$0xf]
    %v3855 = vld [vmem:[#allocation9 + $0x2d0] sm:$0xf]
    %v3856 = vld [vmem:[#allocation9 + $0x2d4] sm:$0xf]
    %v3857 = vld [vmem:[#allocation9 + $0x2d8] sm:$0xf]
    %v3858 = vld [vmem:[#allocation9 + $0x2dc] sm:$0xf]
    %v3859 = vld [vmem:[#allocation9 + $0x2e0] sm:$0xf]
    %v3860 = vld [vmem:[#allocation9 + $0x2e4] sm:$0xf]
    %v3861 = vld [vmem:[#allocation9 + $0x2e8] sm:$0xf]
    %v3862 = vld [vmem:[#allocation9 + $0x2ec] sm:$0xf]
    %v3863 = vld [vmem:[#allocation9 + $0x2f0] sm:$0xf]
    %v3864 = vld [vmem:[#allocation9 + $0x2f4] sm:$0xf]
    %v3865 = vld [vmem:[#allocation9 + $0x2f8] sm:$0xf]
    %v3866 = vld [vmem:[#allocation9 + $0x2fc] sm:$0xf]
    %v3867 = vld [vmem:[#allocation9 + $0x300] sm:$0xf]
    %v3868 = vld [vmem:[#allocation9 + $0x304] sm:$0xf]
    %v3869 = vld [vmem:[#allocation9 + $0x308] sm:$0xf]
    %v3870 = vld [vmem:[#allocation9 + $0x30c] sm:$0xf]
    %v3871 = vld [vmem:[#allocation9 + $0x310] sm:$0xf]
    %v3872 = vld [vmem:[#allocation9 + $0x314] sm:$0xf]
    %v3873 = vld [vmem:[#allocation9 + $0x318] sm:$0xf]
    %v3874 = vld [vmem:[#allocation9 + $0x31c] sm:$0xf]
    %v3875 = vld [vmem:[#allocation9 + $0x320] sm:$0xf]
    %v3876 = vld [vmem:[#allocation9 + $0x324] sm:$0xf]
    %v3877 = vld [vmem:[#allocation9 + $0x328] sm:$0xf]
    %v3878 = vld [vmem:[#allocation9 + $0x32c] sm:$0xf]
    %v3879 = vld [vmem:[#allocation9 + $0x330] sm:$0xf]
    %v3880 = vld [vmem:[#allocation9 + $0x334] sm:$0xf]
    %v3881 = vld [vmem:[#allocation9 + $0x338] sm:$0xf]
    %v3882 = vld [vmem:[#allocation9 + $0x33c] sm:$0xf]
    %v3883 = vld [vmem:[#allocation9 + $0x340] sm:$0xf]
    %v3884 = vld [vmem:[#allocation9 + $0x344] sm:$0xf]
    %v3885 = vld [vmem:[#allocation9 + $0x348] sm:$0xf]
    %v3886 = vld [vmem:[#allocation9 + $0x34c] sm:$0xf]
    %v3887 = vld [vmem:[#allocation9 + $0x350] sm:$0xf]
    %v3888 = vld [vmem:[#allocation9 + $0x354] sm:$0xf]
    %v3889 = vld [vmem:[#allocation9 + $0x358] sm:$0xf]
    %v3890 = vld [vmem:[#allocation9 + $0x35c] sm:$0xf]
    %v3891 = vld [vmem:[#allocation9 + $0x360] sm:$0xf]
    %v3892 = vld [vmem:[#allocation9 + $0x364] sm:$0xf]
    %v3893 = vld [vmem:[#allocation9 + $0x368] sm:$0xf]
    %v3894 = vld [vmem:[#allocation9 + $0x36c] sm:$0xf]
    %v3895 = vld [vmem:[#allocation9 + $0x370] sm:$0xf]
    %v3896 = vld [vmem:[#allocation9 + $0x374] sm:$0xf]
    %v3897 = vld [vmem:[#allocation9 + $0x378] sm:$0xf]
    %v3898 = vld [vmem:[#allocation9 + $0x37c] sm:$0xf]
    %v3899 = vld [vmem:[#allocation9 + $0x380] sm:$0xf]
    %v3900 = vld [vmem:[#allocation9 + $0x384] sm:$0xf]
    %v3901 = vld [vmem:[#allocation9 + $0x388] sm:$0xf]
    %v3902 = vld [vmem:[#allocation9 + $0x38c] sm:$0xf]
    %v3903 = vld [vmem:[#allocation9 + $0x390] sm:$0xf]
    %v3904 = vld [vmem:[#allocation9 + $0x394] sm:$0xf]
    %v3905 = vld [vmem:[#allocation9 + $0x398] sm:$0xf]
    %v3906 = vld [vmem:[#allocation9 + $0x39c] sm:$0xf]
    %v3907 = vld [vmem:[#allocation9 + $0x3a0] sm:$0xf]
    %v3908 = vld [vmem:[#allocation9 + $0x3a4] sm:$0xf]
    %v3909 = vld [vmem:[#allocation9 + $0x3a8] sm:$0xf]
    %v3910 = vld [vmem:[#allocation9 + $0x3ac] sm:$0xf]
    %v3911 = vld [vmem:[#allocation9 + $0x3b0] sm:$0xf]
    %v3912 = vld [vmem:[#allocation9 + $0x3b4] sm:$0xf]
    %v3913 = vld [vmem:[#allocation9 + $0x3b8] sm:$0xf]
    %v3914 = vld [vmem:[#allocation9 + $0x3bc] sm:$0xf]
    %v3915 = vld [vmem:[#allocation9 + $0x3c0] sm:$0xf]
    %v3916 = vld [vmem:[#allocation9 + $0x3c4] sm:$0xf]
    %v3917 = vld [vmem:[#allocation9 + $0x3c8] sm:$0xf]
    %v3918 = vld [vmem:[#allocation9 + $0x3cc] sm:$0xf]
    %v3919 = vld [vmem:[#allocation9 + $0x3d0] sm:$0xf]
    %v3920 = vld [vmem:[#allocation9 + $0x3d4] sm:$0xf]
    %v3921 = vld [vmem:[#allocation9 + $0x3d8] sm:$0xf]
    %v3922 = vld [vmem:[#allocation9 + $0x3dc] sm:$0xf]
    %v3923 = vld [vmem:[#allocation9 + $0x3e0] sm:$0xf]
    %v3924 = vld [vmem:[#allocation9 + $0x3e4] sm:$0xf]
    %v3925 = vld [vmem:[#allocation9 + $0x3e8] sm:$0xf]
    %v3926 = vld [vmem:[#allocation9 + $0x3ec] sm:$0xf]
    %v3927 = vld [vmem:[#allocation9 + $0x3f0] sm:$0xf]
    %v3928 = vld [vmem:[#allocation9 + $0x3f4] sm:$0xf]
    %v3929 = vld [vmem:[#allocation9 + $0x3f8] sm:$0xf]
    %v3930 = vld [vmem:[#allocation9 + $0x3fc] sm:$0xf]
    %v3931 = vld [vmem:[#allocation9 + $0x400] sm:$0xf]
    %v3932 = vld [vmem:[#allocation9 + $0x404] sm:$0xf]
    %v3933 = vld [vmem:[#allocation9 + $0x408] sm:$0xf]
    %v3934 = vld [vmem:[#allocation9 + $0x40c] sm:$0xf]
    %v3935 = vld [vmem:[#allocation9 + $0x410] sm:$0xf]
    %v3936 = vld [vmem:[#allocation9 + $0x414] sm:$0xf]
    %v3937 = vld [vmem:[#allocation9 + $0x418] sm:$0xf]
    %v3938 = vld [vmem:[#allocation9 + $0x41c] sm:$0xf]
    %v3939 = vld [vmem:[#allocation9 + $0x420] sm:$0xf]
    %v3940 = vld [vmem:[#allocation9 + $0x424] sm:$0xf]
    %v3941 = vld [vmem:[#allocation9 + $0x428] sm:$0xf]
    %v3942 = vld [vmem:[#allocation9 + $0x42c] sm:$0xf]
    %v3943 = vld [vmem:[#allocation9 + $0x430] sm:$0xf]
    %v3944 = vld [vmem:[#allocation9 + $0x434] sm:$0xf]
    %v3945 = vld [vmem:[#allocation9 + $0x438] sm:$0xf]
    %v3946 = vld [vmem:[#allocation9 + $0x43c] sm:$0xf]
    %v3947 = vld [vmem:[#allocation9 + $0x440] sm:$0xf]
    %v3948 = vld [vmem:[#allocation9 + $0x444] sm:$0xf]
    %v3949 = vld [vmem:[#allocation9 + $0x448] sm:$0xf]
    %v3950 = vld [vmem:[#allocation9 + $0x44c] sm:$0xf]
    %v3951 = vld [vmem:[#allocation9 + $0x450] sm:$0xf]
    %v3952 = vld [vmem:[#allocation9 + $0x454] sm:$0xf]
    %v3953 = vld [vmem:[#allocation9 + $0x458] sm:$0xf]
    %v3954 = vld [vmem:[#allocation9 + $0x45c] sm:$0xf]
    %v3955 = vld [vmem:[#allocation9 + $0x460] sm:$0xf]
    %v3956 = vld [vmem:[#allocation9 + $0x464] sm:$0xf]
    %v3957 = vld [vmem:[#allocation9 + $0x468] sm:$0xf]
    %v3958 = vld [vmem:[#allocation9 + $0x46c] sm:$0xf]
    %v3959 = vld [vmem:[#allocation9 + $0x470] sm:$0xf]
    %v3960 = vld [vmem:[#allocation9 + $0x474] sm:$0xf]
    %v3961 = vld [vmem:[#allocation9 + $0x478] sm:$0xf]
    %v3962 = vld [vmem:[#allocation9 + $0x47c] sm:$0xf]
    %v3963 = vld [vmem:[#allocation9 + $0x480] sm:$0xf]
    %v3964 = vld [vmem:[#allocation9 + $0x484] sm:$0xf]
    %v3965 = vld [vmem:[#allocation9 + $0x488] sm:$0xf]
    %v3966 = vld [vmem:[#allocation9 + $0x48c] sm:$0xf]
    %v3967 = vld [vmem:[#allocation9 + $0x490] sm:$0xf]
    %v3968 = vld [vmem:[#allocation9 + $0x494] sm:$0xf]
    %v3969 = vld [vmem:[#allocation9 + $0x498] sm:$0xf]
    %v3970 = vld [vmem:[#allocation9 + $0x49c] sm:$0xf]
    %v3971 = vld [vmem:[#allocation9 + $0x4a0] sm:$0xf]
    %v3972 = vld [vmem:[#allocation9 + $0x4a4] sm:$0xf]
    %v3973 = vld [vmem:[#allocation9 + $0x4a8] sm:$0xf]
    %v3974 = vld [vmem:[#allocation9 + $0x4ac] sm:$0xf]
    %v3975 = vld [vmem:[#allocation9 + $0x4b0] sm:$0xf]
    %v3976 = vld [vmem:[#allocation9 + $0x4b4] sm:$0xf]
    %v3977 = vld [vmem:[#allocation9 + $0x4b8] sm:$0xf]
    %v3978 = vld [vmem:[#allocation9 + $0x4bc] sm:$0xf]
    %v3979 = vld [vmem:[#allocation9 + $0x4c0] sm:$0xf]
    %v3980 = vld [vmem:[#allocation9 + $0x4c4] sm:$0xf]
    %v3981 = vld [vmem:[#allocation9 + $0x4c8] sm:$0xf]
    %v3982 = vld [vmem:[#allocation9 + $0x4cc] sm:$0xf]
    %v3983 = vld [vmem:[#allocation9 + $0x4d0] sm:$0xf]
    %v3984 = vld [vmem:[#allocation9 + $0x4d4] sm:$0xf]
    %v3985 = vld [vmem:[#allocation9 + $0x4d8] sm:$0xf]
    %v3986 = vld [vmem:[#allocation9 + $0x4dc] sm:$0xf]
    %v3987 = vld [vmem:[#allocation9 + $0x4e0] sm:$0xf]
    %v3988 = vld [vmem:[#allocation9 + $0x4e4] sm:$0xf]
    %v3989 = vld [vmem:[#allocation9 + $0x4e8] sm:$0xf]
    %v3990 = vld [vmem:[#allocation9 + $0x4ec] sm:$0xf]
    %v3991 = vld [vmem:[#allocation9 + $0x4f0] sm:$0xf]
    %v3992 = vld [vmem:[#allocation9 + $0x4f4] sm:$0xf]
    %v3993 = vld [vmem:[#allocation9 + $0x4f8] sm:$0xf]
    %v3994 = vld [vmem:[#allocation9 + $0x4fc] sm:$0xf]
    %v3995 = vld [vmem:[#allocation9 + $0x500] sm:$0xf]
    %v3996 = vld [vmem:[#allocation9 + $0x504] sm:$0xf]
    %v3997 = vld [vmem:[#allocation9 + $0x508] sm:$0xf]
    %v3998 = vld [vmem:[#allocation9 + $0x50c] sm:$0xf]
    %v3999 = vld [vmem:[#allocation9 + $0x510] sm:$0xf]
    %v4000 = vld [vmem:[#allocation9 + $0x514] sm:$0xf]
    %v4001 = vld [vmem:[#allocation9 + $0x518] sm:$0xf]
    %v4002 = vld [vmem:[#allocation9 + $0x51c] sm:$0xf]
    %v4003 = vld [vmem:[#allocation9 + $0x520] sm:$0xf]
    %v4004 = vld [vmem:[#allocation9 + $0x524] sm:$0xf]
    %v4005 = vld [vmem:[#allocation9 + $0x528] sm:$0xf]
    %v4006 = vld [vmem:[#allocation9 + $0x52c] sm:$0xf]
    %v4007 = vld [vmem:[#allocation9 + $0x530] sm:$0xf]
    %v4008 = vld [vmem:[#allocation9 + $0x534] sm:$0xf]
    %v4009 = vld [vmem:[#allocation9 + $0x538] sm:$0xf]
    %v4010 = vld [vmem:[#allocation9 + $0x53c] sm:$0xf]
    %v4011 = vld [vmem:[#allocation9 + $0x540] sm:$0xf]
    %v4012 = vld [vmem:[#allocation9 + $0x544] sm:$0xf]
    %v4013 = vld [vmem:[#allocation9 + $0x548] sm:$0xf]
    %v4014 = vld [vmem:[#allocation9 + $0x54c] sm:$0xf]
    %v4015 = vld [vmem:[#allocation9 + $0x550] sm:$0xf]
    %v4016 = vld [vmem:[#allocation9 + $0x554] sm:$0xf]
    %v4017 = vld [vmem:[#allocation9 + $0x558] sm:$0xf]
    %v4018 = vld [vmem:[#allocation9 + $0x55c] sm:$0xf]
    %v4019 = vld [vmem:[#allocation9 + $0x560] sm:$0xf]
    %v4020 = vld [vmem:[#allocation9 + $0x564] sm:$0xf]
    %v4021 = vld [vmem:[#allocation9 + $0x568] sm:$0xf]
    %v4022 = vld [vmem:[#allocation9 + $0x56c] sm:$0xf]
    %v4023 = vld [vmem:[#allocation9 + $0x570] sm:$0xf]
    %v4024 = vld [vmem:[#allocation9 + $0x574] sm:$0xf]
    %v4025 = vld [vmem:[#allocation9 + $0x578] sm:$0xf]
    %v4026 = vld [vmem:[#allocation9 + $0x57c] sm:$0xf]
    %v4379 = vunpack.c.l.b16 %v3675
    %v4380 = vunpack.c.l.b16 %v3676
    %v4381 = vunpack.c.l.b16 %v3677
    %v4382 = vunpack.c.l.b16 %v3678
    %v4383 = vunpack.c.l.b16 %v3679
    %v4384 = vunpack.c.l.b16 %v3680
    %v4385 = vunpack.c.l.b16 %v3681
    %v4386 = vunpack.c.l.b16 %v3682
    %v4387 = vunpack.c.l.b16 %v3683
    %v4388 = vunpack.c.l.b16 %v3684
    %v4389 = vunpack.c.l.b16 %v3685
    %v4390 = vunpack.c.l.b16 %v3686
    %v4391 = vunpack.c.l.b16 %v3687
    %v4392 = vunpack.c.l.b16 %v3688
    %v4393 = vunpack.c.l.b16 %v3689
    %v4394 = vunpack.c.l.b16 %v3690
    %v4395 = vunpack.c.l.b16 %v3691
    %v4396 = vunpack.c.l.b16 %v3692
    %v4397 = vunpack.c.l.b16 %v3693
    %v4398 = vunpack.c.l.b16 %v3694
    %v4399 = vunpack.c.l.b16 %v3695
    %v4400 = vunpack.c.l.b16 %v3696
    %v4401 = vunpack.c.l.b16 %v3697
    %v4402 = vunpack.c.l.b16 %v3698
    %v4403 = vunpack.c.l.b16 %v3699
    %v4404 = vunpack.c.l.b16 %v3700
    %v4405 = vunpack.c.l.b16 %v3701
    %v4406 = vunpack.c.l.b16 %v3702
    %v4407 = vunpack.c.l.b16 %v3703
    %v4408 = vunpack.c.l.b16 %v3704
    %v4409 = vunpack.c.l.b16 %v3705
    %v4410 = vunpack.c.l.b16 %v3706
    %v4411 = vunpack.c.l.b16 %v3707
    %v4412 = vunpack.c.l.b16 %v3708
    %v4413 = vunpack.c.l.b16 %v3709
    %v4414 = vunpack.c.l.b16 %v3710
    %v4415 = vunpack.c.l.b16 %v3711
    %v4416 = vunpack.c.l.b16 %v3712
    %v4417 = vunpack.c.l.b16 %v3713
    %v4418 = vunpack.c.l.b16 %v3714
    %v4419 = vunpack.c.l.b16 %v3715
    %v4420 = vunpack.c.l.b16 %v3716
    %v4421 = vunpack.c.l.b16 %v3717
    %v4422 = vunpack.c.l.b16 %v3718
    %v4423 = vunpack.c.l.b16 %v3719
    %v4424 = vunpack.c.l.b16 %v3720
    %v4425 = vunpack.c.l.b16 %v3721
    %v4426 = vunpack.c.l.b16 %v3722
    %v4427 = vunpack.c.l.b16 %v3723
    %v4428 = vunpack.c.l.b16 %v3724
    %v4429 = vunpack.c.l.b16 %v3725
    %v4430 = vunpack.c.l.b16 %v3726
    %v4431 = vunpack.c.l.b16 %v3727
    %v4432 = vunpack.c.l.b16 %v3728
    %v4433 = vunpack.c.l.b16 %v3729
    %v4434 = vunpack.c.l.b16 %v3730
    %v4435 = vunpack.c.l.b16 %v3731
    %v4436 = vunpack.c.l.b16 %v3732
    %v4437 = vunpack.c.l.b16 %v3733
    %v4438 = vunpack.c.l.b16 %v3734
    %v4439 = vunpack.c.l.b16 %v3735
    %v4440 = vunpack.c.l.b16 %v3736
    %v4441 = vunpack.c.l.b16 %v3737
    %v4442 = vunpack.c.l.b16 %v3738
    %v4443 = vunpack.c.l.b16 %v3739
    %v4444 = vunpack.c.l.b16 %v3740
    %v4445 = vunpack.c.l.b16 %v3741
    %v4446 = vunpack.c.l.b16 %v3742
    %v4447 = vunpack.c.l.b16 %v3743
    %v4448 = vunpack.c.l.b16 %v3744
    %v4449 = vunpack.c.l.b16 %v3745
    %v4450 = vunpack.c.l.b16 %v3746
    %v4451 = vunpack.c.l.b16 %v3747
    %v4452 = vunpack.c.l.b16 %v3748
    %v4453 = vunpack.c.l.b16 %v3749
    %v4454 = vunpack.c.l.b16 %v3750
    %v4455 = vunpack.c.l.b16 %v3751
    %v4456 = vunpack.c.l.b16 %v3752
    %v4457 = vunpack.c.l.b16 %v3753
    %v4458 = vunpack.c.l.b16 %v3754
    %v4459 = vunpack.c.l.b16 %v3755
    %v4460 = vunpack.c.l.b16 %v3756
    %v4461 = vunpack.c.l.b16 %v3757
    %v4462 = vunpack.c.l.b16 %v3758
    %v4463 = vunpack.c.l.b16 %v3759
    %v4464 = vunpack.c.l.b16 %v3760
    %v4465 = vunpack.c.l.b16 %v3761
    %v4466 = vunpack.c.l.b16 %v3762
    %v4467 = vunpack.c.l.b16 %v3763
    %v4468 = vunpack.c.l.b16 %v3764
    %v4469 = vunpack.c.l.b16 %v3765
    %v4470 = vunpack.c.l.b16 %v3766
    %v4471 = vunpack.c.l.b16 %v3767
    %v4472 = vunpack.c.l.b16 %v3768
    %v4473 = vunpack.c.l.b16 %v3769
    %v4474 = vunpack.c.l.b16 %v3770
    %v4475 = vunpack.c.l.b16 %v3771
    %v4476 = vunpack.c.l.b16 %v3772
    %v4477 = vunpack.c.l.b16 %v3773
    %v4478 = vunpack.c.l.b16 %v3774
    %v4479 = vunpack.c.l.b16 %v3775
    %v4480 = vunpack.c.l.b16 %v3776
    %v4481 = vunpack.c.l.b16 %v3777
    %v4482 = vunpack.c.l.b16 %v3778
    %v4483 = vunpack.c.l.b16 %v3779
    %v4484 = vunpack.c.l.b16 %v3780
    %v4485 = vunpack.c.l.b16 %v3781
    %v4486 = vunpack.c.l.b16 %v3782
    %v4487 = vunpack.c.l.b16 %v3783
    %v4488 = vunpack.c.l.b16 %v3784
    %v4489 = vunpack.c.l.b16 %v3785
    %v4490 = vunpack.c.l.b16 %v3786
    %v4491 = vunpack.c.l.b16 %v3787
    %v4492 = vunpack.c.l.b16 %v3788
    %v4493 = vunpack.c.l.b16 %v3789
    %v4494 = vunpack.c.l.b16 %v3790
    %v4495 = vunpack.c.l.b16 %v3791
    %v4496 = vunpack.c.l.b16 %v3792
    %v4497 = vunpack.c.l.b16 %v3793
    %v4498 = vunpack.c.l.b16 %v3794
    %v4499 = vunpack.c.l.b16 %v3795
    %v4500 = vunpack.c.l.b16 %v3796
    %v4501 = vunpack.c.l.b16 %v3797
    %v4502 = vunpack.c.l.b16 %v3798
    %v4503 = vunpack.c.l.b16 %v3799
    %v4504 = vunpack.c.l.b16 %v3800
    %v4505 = vunpack.c.l.b16 %v3801
    %v4506 = vunpack.c.l.b16 %v3802
    %v4507 = vunpack.c.l.b16 %v3803
    %v4508 = vunpack.c.l.b16 %v3804
    %v4509 = vunpack.c.l.b16 %v3805
    %v4510 = vunpack.c.l.b16 %v3806
    %v4511 = vunpack.c.l.b16 %v3807
    %v4512 = vunpack.c.l.b16 %v3808
    %v4513 = vunpack.c.l.b16 %v3809
    %v4514 = vunpack.c.l.b16 %v3810
    %v4515 = vunpack.c.l.b16 %v3811
    %v4516 = vunpack.c.l.b16 %v3812
    %v4517 = vunpack.c.l.b16 %v3813
    %v4518 = vunpack.c.l.b16 %v3814
    %v4519 = vunpack.c.l.b16 %v3815
    %v4520 = vunpack.c.l.b16 %v3816
    %v4521 = vunpack.c.l.b16 %v3817
    %v4522 = vunpack.c.l.b16 %v3818
    %v4523 = vunpack.c.l.b16 %v3819
    %v4524 = vunpack.c.l.b16 %v3820
    %v4525 = vunpack.c.l.b16 %v3821
    %v4526 = vunpack.c.l.b16 %v3822
    %v4527 = vunpack.c.l.b16 %v3823
    %v4528 = vunpack.c.l.b16 %v3824
    %v4529 = vunpack.c.l.b16 %v3825
    %v4530 = vunpack.c.l.b16 %v3826
    %v4531 = vunpack.c.l.b16 %v3827
    %v4532 = vunpack.c.l.b16 %v3828
    %v4533 = vunpack.c.l.b16 %v3829
    %v4534 = vunpack.c.l.b16 %v3830
    %v4535 = vunpack.c.l.b16 %v3831
    %v4536 = vunpack.c.l.b16 %v3832
    %v4537 = vunpack.c.l.b16 %v3833
    %v4538 = vunpack.c.l.b16 %v3834
    %v4539 = vunpack.c.l.b16 %v3835
    %v4540 = vunpack.c.l.b16 %v3836
    %v4541 = vunpack.c.l.b16 %v3837
    %v4542 = vunpack.c.l.b16 %v3838
    %v4543 = vunpack.c.l.b16 %v3839
    %v4544 = vunpack.c.l.b16 %v3840
    %v4545 = vunpack.c.l.b16 %v3841
    %v4546 = vunpack.c.l.b16 %v3842
    %v4547 = vunpack.c.l.b16 %v3843
    %v4548 = vunpack.c.l.b16 %v3844
    %v4549 = vunpack.c.l.b16 %v3845
    %v4550 = vunpack.c.l.b16 %v3846
    %v4551 = vunpack.c.l.b16 %v3847
    %v4552 = vunpack.c.l.b16 %v3848
    %v4553 = vunpack.c.l.b16 %v3849
    %v4554 = vunpack.c.l.b16 %v3850
    %v4555 = vunpack.c.l.b16 %v3851
    %v4556 = vunpack.c.l.b16 %v3852
    %v4557 = vunpack.c.l.b16 %v3853
    %v4558 = vunpack.c.l.b16 %v3854
    %v4559 = vunpack.c.l.b16 %v3855
    %v4560 = vunpack.c.l.b16 %v3856
    %v4561 = vunpack.c.l.b16 %v3857
    %v4562 = vunpack.c.l.b16 %v3858
    %v4563 = vunpack.c.l.b16 %v3859
    %v4564 = vunpack.c.l.b16 %v3860
    %v4565 = vunpack.c.l.b16 %v3861
    %v4566 = vunpack.c.l.b16 %v3862
    %v4567 = vunpack.c.l.b16 %v3863
    %v4568 = vunpack.c.l.b16 %v3864
    %v4569 = vunpack.c.l.b16 %v3865
    %v4570 = vunpack.c.l.b16 %v3866
    %v4571 = vunpack.c.l.b16 %v3867
    %v4572 = vunpack.c.l.b16 %v3868
    %v4573 = vunpack.c.l.b16 %v3869
    %v4574 = vunpack.c.l.b16 %v3870
    %v4575 = vunpack.c.l.b16 %v3871
    %v4576 = vunpack.c.l.b16 %v3872
    %v4577 = vunpack.c.l.b16 %v3873
    %v4578 = vunpack.c.l.b16 %v3874
    %v4579 = vunpack.c.l.b16 %v3875
    %v4580 = vunpack.c.l.b16 %v3876
    %v4581 = vunpack.c.l.b16 %v3877
    %v4582 = vunpack.c.l.b16 %v3878
    %v4583 = vunpack.c.l.b16 %v3879
    %v4584 = vunpack.c.l.b16 %v3880
    %v4585 = vunpack.c.l.b16 %v3881
    %v4586 = vunpack.c.l.b16 %v3882
    %v4587 = vunpack.c.l.b16 %v3883
    %v4588 = vunpack.c.l.b16 %v3884
    %v4589 = vunpack.c.l.b16 %v3885
    %v4590 = vunpack.c.l.b16 %v3886
    %v4591 = vunpack.c.l.b16 %v3887
    %v4592 = vunpack.c.l.b16 %v3888
    %v4593 = vunpack.c.l.b16 %v3889
    %v4594 = vunpack.c.l.b16 %v3890
    %v4595 = vunpack.c.l.b16 %v3891
    %v4596 = vunpack.c.l.b16 %v3892
    %v4597 = vunpack.c.l.b16 %v3893
    %v4598 = vunpack.c.l.b16 %v3894
    %v4599 = vunpack.c.l.b16 %v3895
    %v4600 = vunpack.c.l.b16 %v3896
    %v4601 = vunpack.c.l.b16 %v3897
    %v4602 = vunpack.c.l.b16 %v3898
    %v4603 = vunpack.c.l.b16 %v3899
    %v4604 = vunpack.c.l.b16 %v3900
    %v4605 = vunpack.c.l.b16 %v3901
    %v4606 = vunpack.c.l.b16 %v3902
    %v4607 = vunpack.c.l.b16 %v3903
    %v4608 = vunpack.c.l.b16 %v3904
    %v4609 = vunpack.c.l.b16 %v3905
    %v4610 = vunpack.c.l.b16 %v3906
    %v4611 = vunpack.c.l.b16 %v3907
    %v4612 = vunpack.c.l.b16 %v3908
    %v4613 = vunpack.c.l.b16 %v3909
    %v4614 = vunpack.c.l.b16 %v3910
    %v4615 = vunpack.c.l.b16 %v3911
    %v4616 = vunpack.c.l.b16 %v3912
    %v4617 = vunpack.c.l.b16 %v3913
    %v4618 = vunpack.c.l.b16 %v3914
    %v4619 = vunpack.c.l.b16 %v3915
    %v4620 = vunpack.c.l.b16 %v3916
    %v4621 = vunpack.c.l.b16 %v3917
    %v4622 = vunpack.c.l.b16 %v3918
    %v4623 = vunpack.c.l.b16 %v3919
    %v4624 = vunpack.c.l.b16 %v3920
    %v4625 = vunpack.c.l.b16 %v3921
    %v4626 = vunpack.c.l.b16 %v3922
    %v4627 = vunpack.c.l.b16 %v3923
    %v4628 = vunpack.c.l.b16 %v3924
    %v4629 = vunpack.c.l.b16 %v3925
    %v4630 = vunpack.c.l.b16 %v3926
    %v4631 = vunpack.c.l.b16 %v3927
    %v4632 = vunpack.c.l.b16 %v3928
    %v4633 = vunpack.c.l.b16 %v3929
    %v4634 = vunpack.c.l.b16 %v3930
    %v4635 = vunpack.c.l.b16 %v3931
    %v4636 = vunpack.c.l.b16 %v3932
    %v4637 = vunpack.c.l.b16 %v3933
    %v4638 = vunpack.c.l.b16 %v3934
    %v4639 = vunpack.c.l.b16 %v3935
    %v4640 = vunpack.c.l.b16 %v3936
    %v4641 = vunpack.c.l.b16 %v3937
    %v4642 = vunpack.c.l.b16 %v3938
    %v4643 = vunpack.c.l.b16 %v3939
    %v4644 = vunpack.c.l.b16 %v3940
    %v4645 = vunpack.c.l.b16 %v3941
    %v4646 = vunpack.c.l.b16 %v3942
    %v4647 = vunpack.c.l.b16 %v3943
    %v4648 = vunpack.c.l.b16 %v3944
    %v4649 = vunpack.c.l.b16 %v3945
    %v4650 = vunpack.c.l.b16 %v3946
    %v4651 = vunpack.c.l.b16 %v3947
    %v4652 = vunpack.c.l.b16 %v3948
    %v4653 = vunpack.c.l.b16 %v3949
    %v4654 = vunpack.c.l.b16 %v3950
    %v4655 = vunpack.c.l.b16 %v3951
    %v4656 = vunpack.c.l.b16 %v3952
    %v4657 = vunpack.c.l.b16 %v3953
    %v4658 = vunpack.c.l.b16 %v3954
    %v4659 = vunpack.c.l.b16 %v3955
    %v4660 = vunpack.c.l.b16 %v3956
    %v4661 = vunpack.c.l.b16 %v3957
    %v4662 = vunpack.c.l.b16 %v3958
    %v4663 = vunpack.c.l.b16 %v3959
    %v4664 = vunpack.c.l.b16 %v3960
    %v4665 = vunpack.c.l.b16 %v3961
    %v4666 = vunpack.c.l.b16 %v3962
    %v4667 = vunpack.c.l.b16 %v3963
    %v4668 = vunpack.c.l.b16 %v3964
    %v4669 = vunpack.c.l.b16 %v3965
    %v4670 = vunpack.c.l.b16 %v3966
    %v4671 = vunpack.c.l.b16 %v3967
    %v4672 = vunpack.c.l.b16 %v3968
    %v4673 = vunpack.c.l.b16 %v3969
    %v4674 = vunpack.c.l.b16 %v3970
    %v4675 = vunpack.c.l.b16 %v3971
    %v4676 = vunpack.c.l.b16 %v3972
    %v4677 = vunpack.c.l.b16 %v3973
    %v4678 = vunpack.c.l.b16 %v3974
    %v4679 = vunpack.c.l.b16 %v3975
    %v4680 = vunpack.c.l.b16 %v3976
    %v4681 = vunpack.c.l.b16 %v3977
    %v4682 = vunpack.c.l.b16 %v3978
    %v4683 = vunpack.c.l.b16 %v3979
    %v4684 = vunpack.c.l.b16 %v3980
    %v4685 = vunpack.c.l.b16 %v3981
    %v4686 = vunpack.c.l.b16 %v3982
    %v4687 = vunpack.c.l.b16 %v3983
    %v4688 = vunpack.c.l.b16 %v3984
    %v4689 = vunpack.c.l.b16 %v3985
    %v4690 = vunpack.c.l.b16 %v3986
    %v4691 = vunpack.c.l.b16 %v3987
    %v4692 = vunpack.c.l.b16 %v3988
    %v4693 = vunpack.c.l.b16 %v3989
    %v4694 = vunpack.c.l.b16 %v3990
    %v4695 = vunpack.c.l.b16 %v3991
    %v4696 = vunpack.c.l.b16 %v3992
    %v4697 = vunpack.c.l.b16 %v3993
    %v4698 = vunpack.c.l.b16 %v3994
    %v4699 = vunpack.c.l.b16 %v3995
    %v4700 = vunpack.c.l.b16 %v3996
    %v4701 = vunpack.c.l.b16 %v3997
    %v4702 = vunpack.c.l.b16 %v3998
    %v4703 = vunpack.c.l.b16 %v3999
    %v4704 = vunpack.c.l.b16 %v4000
    %v4705 = vunpack.c.l.b16 %v4001
    %v4706 = vunpack.c.l.b16 %v4002
    %v4707 = vunpack.c.l.b16 %v4003
    %v4708 = vunpack.c.l.b16 %v4004
    %v4709 = vunpack.c.l.b16 %v4005
    %v4710 = vunpack.c.l.b16 %v4006
    %v4711 = vunpack.c.l.b16 %v4007
    %v4712 = vunpack.c.l.b16 %v4008
    %v4713 = vunpack.c.l.b16 %v4009
    %v4714 = vunpack.c.l.b16 %v4010
    %v4715 = vunpack.c.l.b16 %v4011
    %v4716 = vunpack.c.l.b16 %v4012
    %v4717 = vunpack.c.l.b16 %v4013
    %v4718 = vunpack.c.l.b16 %v4014
    %v4719 = vunpack.c.l.b16 %v4015
    %v4720 = vunpack.c.l.b16 %v4016
    %v4721 = vunpack.c.l.b16 %v4017
    %v4722 = vunpack.c.l.b16 %v4018
    %v4723 = vunpack.c.l.b16 %v4019
    %v4724 = vunpack.c.l.b16 %v4020
    %v4725 = vunpack.c.l.b16 %v4021
    %v4726 = vunpack.c.l.b16 %v4022
    %v4727 = vunpack.c.l.b16 %v4023
    %v4728 = vunpack.c.l.b16 %v4024
    %v4729 = vunpack.c.l.b16 %v4025
    %v4730 = vunpack.c.l.b16 %v4026
    %v4731 = vpack.c.b16 %v4380, %v4379
    %v4732 = vpack.c.b16 %v4382, %v4381
    %v4733 = vpack.c.b16 %v4384, %v4383
    %v4734 = vpack.c.b16 %v4386, %v4385
    %v4735 = vpack.c.b16 %v4388, %v4387
    %v4736 = vpack.c.b16 %v4390, %v4389
    %v4737 = vpack.c.b16 %v4392, %v4391
    %v4738 = vpack.c.b16 %v4394, %v4393
    %v4739 = vpack.c.b16 %v4396, %v4395
    %v4740 = vpack.c.b16 %v4398, %v4397
    %v4741 = vpack.c.b16 %v4400, %v4399
    %v4742 = vpack.c.b16 %v4402, %v4401
    %v4743 = vpack.c.b16 %v4404, %v4403
    %v4744 = vpack.c.b16 %v4406, %v4405
    %v4745 = vpack.c.b16 %v4408, %v4407
    %v4746 = vpack.c.b16 %v4410, %v4409
    %v4747 = vpack.c.b16 %v4412, %v4411
    %v4748 = vpack.c.b16 %v4414, %v4413
    %v4749 = vpack.c.b16 %v4416, %v4415
    %v4750 = vpack.c.b16 %v4418, %v4417
    %v4751 = vpack.c.b16 %v4420, %v4419
    %v4752 = vpack.c.b16 %v4422, %v4421
    %v4753 = vpack.c.b16 %v4424, %v4423
    %v4754 = vpack.c.b16 %v4426, %v4425
    %v4755 = vpack.c.b16 %v4428, %v4427
    %v4756 = vpack.c.b16 %v4430, %v4429
    %v4757 = vpack.c.b16 %v4432, %v4431
    %v4758 = vpack.c.b16 %v4434, %v4433
    %v4759 = vpack.c.b16 %v4436, %v4435
    %v4760 = vpack.c.b16 %v4438, %v4437
    %v4761 = vpack.c.b16 %v4440, %v4439
    %v4762 = vpack.c.b16 %v4442, %v4441
    %v4763 = vpack.c.b16 %v4444, %v4443
    %v4764 = vpack.c.b16 %v4446, %v4445
    %v4765 = vpack.c.b16 %v4448, %v4447
    %v4766 = vpack.c.b16 %v4450, %v4449
    %v4767 = vpack.c.b16 %v4452, %v4451
    %v4768 = vpack.c.b16 %v4454, %v4453
    %v4769 = vpack.c.b16 %v4456, %v4455
    %v4770 = vpack.c.b16 %v4458, %v4457
    %v4771 = vpack.c.b16 %v4460, %v4459
    %v4772 = vpack.c.b16 %v4462, %v4461
    %v4773 = vpack.c.b16 %v4464, %v4463
    %v4774 = vpack.c.b16 %v4466, %v4465
    %v4775 = vpack.c.b16 %v4468, %v4467
    %v4776 = vpack.c.b16 %v4470, %v4469
    %v4777 = vpack.c.b16 %v4472, %v4471
    %v4778 = vpack.c.b16 %v4474, %v4473
    %v4779 = vpack.c.b16 %v4476, %v4475
    %v4780 = vpack.c.b16 %v4478, %v4477
    %v4781 = vpack.c.b16 %v4480, %v4479
    %v4782 = vpack.c.b16 %v4482, %v4481
    %v4783 = vpack.c.b16 %v4484, %v4483
    %v4784 = vpack.c.b16 %v4486, %v4485
    %v4785 = vpack.c.b16 %v4488, %v4487
    %v4786 = vpack.c.b16 %v4490, %v4489
    %v4787 = vpack.c.b16 %v4492, %v4491
    %v4788 = vpack.c.b16 %v4494, %v4493
    %v4789 = vpack.c.b16 %v4496, %v4495
    %v4790 = vpack.c.b16 %v4498, %v4497
    %v4791 = vpack.c.b16 %v4500, %v4499
    %v4792 = vpack.c.b16 %v4502, %v4501
    %v4793 = vpack.c.b16 %v4504, %v4503
    %v4794 = vpack.c.b16 %v4506, %v4505
    %v4795 = vpack.c.b16 %v4508, %v4507
    %v4796 = vpack.c.b16 %v4510, %v4509
    %v4797 = vpack.c.b16 %v4512, %v4511
    %v4798 = vpack.c.b16 %v4514, %v4513
    %v4799 = vpack.c.b16 %v4516, %v4515
    %v4800 = vpack.c.b16 %v4518, %v4517
    %v4801 = vpack.c.b16 %v4520, %v4519
    %v4802 = vpack.c.b16 %v4522, %v4521
    %v4803 = vpack.c.b16 %v4524, %v4523
    %v4804 = vpack.c.b16 %v4526, %v4525
    %v4805 = vpack.c.b16 %v4528, %v4527
    %v4806 = vpack.c.b16 %v4530, %v4529
    %v4807 = vpack.c.b16 %v4532, %v4531
    %v4808 = vpack.c.b16 %v4534, %v4533
    %v4809 = vpack.c.b16 %v4536, %v4535
    %v4810 = vpack.c.b16 %v4538, %v4537
    %v4811 = vpack.c.b16 %v4540, %v4539
    %v4812 = vpack.c.b16 %v4542, %v4541
    %v4813 = vpack.c.b16 %v4544, %v4543
    %v4814 = vpack.c.b16 %v4546, %v4545
    %v4815 = vpack.c.b16 %v4548, %v4547
    %v4816 = vpack.c.b16 %v4550, %v4549
    %v4817 = vpack.c.b16 %v4552, %v4551
    %v4818 = vpack.c.b16 %v4554, %v4553
    %v4819 = vpack.c.b16 %v4556, %v4555
    %v4820 = vpack.c.b16 %v4558, %v4557
    %v4821 = vpack.c.b16 %v4560, %v4559
    %v4822 = vpack.c.b16 %v4562, %v4561
    %v4823 = vpack.c.b16 %v4564, %v4563
    %v4824 = vpack.c.b16 %v4566, %v4565
    %v4825 = vpack.c.b16 %v4568, %v4567
    %v4826 = vpack.c.b16 %v4570, %v4569
    %v4827 = vpack.c.b16 %v4572, %v4571
    %v4828 = vpack.c.b16 %v4574, %v4573
    %v4829 = vpack.c.b16 %v4576, %v4575
    %v4830 = vpack.c.b16 %v4578, %v4577
    %v4831 = vpack.c.b16 %v4580, %v4579
    %v4832 = vpack.c.b16 %v4582, %v4581
    %v4833 = vpack.c.b16 %v4584, %v4583
    %v4834 = vpack.c.b16 %v4586, %v4585
    %v4835 = vpack.c.b16 %v4588, %v4587
    %v4836 = vpack.c.b16 %v4590, %v4589
    %v4837 = vpack.c.b16 %v4592, %v4591
    %v4838 = vpack.c.b16 %v4594, %v4593
    %v4839 = vpack.c.b16 %v4596, %v4595
    %v4840 = vpack.c.b16 %v4598, %v4597
    %v4841 = vpack.c.b16 %v4600, %v4599
    %v4842 = vpack.c.b16 %v4602, %v4601
    %v4843 = vpack.c.b16 %v4604, %v4603
    %v4844 = vpack.c.b16 %v4606, %v4605
    %v4845 = vpack.c.b16 %v4608, %v4607
    %v4846 = vpack.c.b16 %v4610, %v4609
    %v4847 = vpack.c.b16 %v4612, %v4611
    %v4848 = vpack.c.b16 %v4614, %v4613
    %v4849 = vpack.c.b16 %v4616, %v4615
    %v4850 = vpack.c.b16 %v4618, %v4617
    %v4851 = vpack.c.b16 %v4620, %v4619
    %v4852 = vpack.c.b16 %v4622, %v4621
    %v4853 = vpack.c.b16 %v4624, %v4623
    %v4854 = vpack.c.b16 %v4626, %v4625
    %v4855 = vpack.c.b16 %v4628, %v4627
    %v4856 = vpack.c.b16 %v4630, %v4629
    %v4857 = vpack.c.b16 %v4632, %v4631
    %v4858 = vpack.c.b16 %v4634, %v4633
    %v4859 = vpack.c.b16 %v4636, %v4635
    %v4860 = vpack.c.b16 %v4638, %v4637
    %v4861 = vpack.c.b16 %v4640, %v4639
    %v4862 = vpack.c.b16 %v4642, %v4641
    %v4863 = vpack.c.b16 %v4644, %v4643
    %v4864 = vpack.c.b16 %v4646, %v4645
    %v4865 = vpack.c.b16 %v4648, %v4647
    %v4866 = vpack.c.b16 %v4650, %v4649
    %v4867 = vpack.c.b16 %v4652, %v4651
    %v4868 = vpack.c.b16 %v4654, %v4653
    %v4869 = vpack.c.b16 %v4656, %v4655
    %v4870 = vpack.c.b16 %v4658, %v4657
    %v4871 = vpack.c.b16 %v4660, %v4659
    %v4872 = vpack.c.b16 %v4662, %v4661
    %v4873 = vpack.c.b16 %v4664, %v4663
    %v4874 = vpack.c.b16 %v4666, %v4665
    %v4875 = vpack.c.b16 %v4668, %v4667
    %v4876 = vpack.c.b16 %v4670, %v4669
    %v4877 = vpack.c.b16 %v4672, %v4671
    %v4878 = vpack.c.b16 %v4674, %v4673
    %v4879 = vpack.c.b16 %v4676, %v4675
    %v4880 = vpack.c.b16 %v4678, %v4677
    %v4881 = vpack.c.b16 %v4680, %v4679
    %v4882 = vpack.c.b16 %v4682, %v4681
    %v4883 = vpack.c.b16 %v4684, %v4683
    %v4884 = vpack.c.b16 %v4686, %v4685
    %v4885 = vpack.c.b16 %v4688, %v4687
    %v4886 = vpack.c.b16 %v4690, %v4689
    %v4887 = vpack.c.b16 %v4692, %v4691
    %v4888 = vpack.c.b16 %v4694, %v4693
    %v4889 = vpack.c.b16 %v4696, %v4695
    %v4890 = vpack.c.b16 %v4698, %v4697
    %v4891 = vpack.c.b16 %v4700, %v4699
    %v4892 = vpack.c.b16 %v4702, %v4701
    %v4893 = vpack.c.b16 %v4704, %v4703
    %v4894 = vpack.c.b16 %v4706, %v4705
    %v4895 = vpack.c.b16 %v4708, %v4707
    %v4896 = vpack.c.b16 %v4710, %v4709
    %v4897 = vpack.c.b16 %v4712, %v4711
    %v4898 = vpack.c.b16 %v4714, %v4713
    %v4899 = vpack.c.b16 %v4716, %v4715
    %v4900 = vpack.c.b16 %v4718, %v4717
    %v4901 = vpack.c.b16 %v4720, %v4719
    %v4902 = vpack.c.b16 %v4722, %v4721
    %v4903 = vpack.c.b16 %v4724, %v4723
    %v4904 = vpack.c.b16 %v4726, %v4725
    %v4905 = vpack.c.b16 %v4728, %v4727
    %v4906 = vpack.c.b16 %v4730, %v4729
    %5083 = vmatpush.bf16.msra.mxu0 %v4738
    %5084 = vmatpush.bf16.msra.mxu0 %v4737
    %5085 = vmatpush.bf16.msra.mxu0 %v4736
    %5086 = vmatpush.bf16.msra.mxu0 %v4735
    %5087 = vmatpush.bf16.msra.mxu0 %v4734
    %5088 = vmatpush.bf16.msra.mxu0 %v4733
    %5089 = vmatpush.bf16.msra.mxu0 %v4732
    %5090 = vmatpush.bf16.msra.mxu0 %v4731
    %5091 = vmatmul.bf16.gmra.mxu0 %v3653
    %v5092 = vpop.f32.mrf.mxu0
    %v5093 = vadd.f32 0.0, %v5092
    %v5094 = vpop.f32.mrf.mxu0
    %v5095 = vadd.f32 0.0, %v5094
    %5096 = vdwg.mxu0
    %5097 = vmatpush.bf16.msra.mxu0 %v4746
    %5098 = vmatpush.bf16.msra.mxu0 %v4745
    %5099 = vmatpush.bf16.msra.mxu0 %v4744
    %5100 = vmatpush.bf16.msra.mxu0 %v4743
    %5101 = vmatpush.bf16.msra.mxu0 %v4742
    %5102 = vmatpush.bf16.msra.mxu0 %v4741
    %5103 = vmatpush.bf16.msra.mxu0 %v4740
    %5104 = vmatpush.bf16.msra.mxu0 %v4739
    %5105 = vmatmul.bf16.gmra.mxu0 %v3654
    %v5106 = vpop.f32.mrf.mxu0
    %v5107 = vadd.f32 %v5093, %v5106
    %v5108 = vpop.f32.mrf.mxu0
    %v5109 = vadd.f32 %v5095, %v5108
    %5110 = vdwg.mxu0
    %5111 = vmatpush.bf16.msra.mxu0 %v4754
    %5112 = vmatpush.bf16.msra.mxu0 %v4753
    %5113 = vmatpush.bf16.msra.mxu0 %v4752
    %5114 = vmatpush.bf16.msra.mxu0 %v4751
    %5115 = vmatpush.bf16.msra.mxu0 %v4750
    %5116 = vmatpush.bf16.msra.mxu0 %v4749
    %5117 = vmatpush.bf16.msra.mxu0 %v4748
    %5118 = vmatpush.bf16.msra.mxu0 %v4747
    %5119 = vmatmul.bf16.gmra.mxu0 %v3655
    %v5120 = vpop.f32.mrf.mxu0
    %v5121 = vadd.f32 %v5107, %v5120
    %v5122 = vpop.f32.mrf.mxu0
    %v5123 = vadd.f32 %v5109, %v5122
    %5124 = vdwg.mxu0
    %5125 = vmatpush.bf16.msra.mxu0 %v4762
    %5126 = vmatpush.bf16.msra.mxu0 %v4761
    %5127 = vmatpush.bf16.msra.mxu0 %v4760
    %5128 = vmatpush.bf16.msra.mxu0 %v4759
    %5129 = vmatpush.bf16.msra.mxu0 %v4758
    %5130 = vmatpush.bf16.msra.mxu0 %v4757
    %5131 = vmatpush.bf16.msra.mxu0 %v4756
    %5132 = vmatpush.bf16.msra.mxu0 %v4755
    %5133 = vmatmul.bf16.gmra.mxu0 %v3656
    %v5134 = vpop.f32.mrf.mxu0
    %v5135 = vadd.f32 %v5121, %v5134
    %v5136 = vpop.f32.mrf.mxu0
    %v5137 = vadd.f32 %v5123, %v5136
    %5138 = vdwg.mxu0
    %5139 = vmatpush.bf16.msra.mxu0 %v4770
    %5140 = vmatpush.bf16.msra.mxu0 %v4769
    %5141 = vmatpush.bf16.msra.mxu0 %v4768
    %5142 = vmatpush.bf16.msra.mxu0 %v4767
    %5143 = vmatpush.bf16.msra.mxu0 %v4766
    %5144 = vmatpush.bf16.msra.mxu0 %v4765
    %5145 = vmatpush.bf16.msra.mxu0 %v4764
    %5146 = vmatpush.bf16.msra.mxu0 %v4763
    %5147 = vmatmul.bf16.gmra.mxu0 %v3657
    %v5148 = vpop.f32.mrf.mxu0
    %v5149 = vadd.f32 %v5135, %v5148
    %v5150 = vpop.f32.mrf.mxu0
    %v5151 = vadd.f32 %v5137, %v5150
    %5152 = vdwg.mxu0
    %5153 = vmatpush.bf16.msra.mxu0 %v4778
    %5154 = vmatpush.bf16.msra.mxu0 %v4777
    %5155 = vmatpush.bf16.msra.mxu0 %v4776
    %5156 = vmatpush.bf16.msra.mxu0 %v4775
    %5157 = vmatpush.bf16.msra.mxu0 %v4774
    %5158 = vmatpush.bf16.msra.mxu0 %v4773
    %5159 = vmatpush.bf16.msra.mxu0 %v4772
    %5160 = vmatpush.bf16.msra.mxu0 %v4771
    %5161 = vmatmul.bf16.gmra.mxu0 %v3658
    %v5162 = vpop.f32.mrf.mxu0
    %v5163 = vadd.f32 %v5149, %v5162
    %v5164 = vpop.f32.mrf.mxu0
    %v5165 = vadd.f32 %v5151, %v5164
    %5166 = vdwg.mxu0
    %5167 = vmatpush.bf16.msra.mxu0 %v4786
    %5168 = vmatpush.bf16.msra.mxu0 %v4785
    %5169 = vmatpush.bf16.msra.mxu0 %v4784
    %5170 = vmatpush.bf16.msra.mxu0 %v4783
    %5171 = vmatpush.bf16.msra.mxu0 %v4782
    %5172 = vmatpush.bf16.msra.mxu0 %v4781
    %5173 = vmatpush.bf16.msra.mxu0 %v4780
    %5174 = vmatpush.bf16.msra.mxu0 %v4779
    %5175 = vmatmul.bf16.gmra.mxu0 %v3659
    %v5176 = vpop.f32.mrf.mxu0
    %v5177 = vadd.f32 %v5163, %v5176
    %v5178 = vpop.f32.mrf.mxu0
    %v5179 = vadd.f32 %v5165, %v5178
    %5180 = vdwg.mxu0
    %5181 = vmatpush.bf16.msra.mxu0 %v4794
    %5182 = vmatpush.bf16.msra.mxu0 %v4793
    %5183 = vmatpush.bf16.msra.mxu0 %v4792
    %5184 = vmatpush.bf16.msra.mxu0 %v4791
    %5185 = vmatpush.bf16.msra.mxu0 %v4790
    %5186 = vmatpush.bf16.msra.mxu0 %v4789
    %5187 = vmatpush.bf16.msra.mxu0 %v4788
    %5188 = vmatpush.bf16.msra.mxu0 %v4787
    %5189 = vmatmul.bf16.gmra.mxu0 %v3660
    %v5190 = vpop.f32.mrf.mxu0
    %v5191 = vadd.f32 %v5177, %v5190
    %v5192 = vpop.f32.mrf.mxu0
    %v5193 = vadd.f32 %v5179, %v5192
    %5194 = vdwg.mxu0
    %5195 = vmatpush.bf16.msra.mxu0 %v4802
    %5196 = vmatpush.bf16.msra.mxu0 %v4801
    %5197 = vmatpush.bf16.msra.mxu0 %v4800
    %5198 = vmatpush.bf16.msra.mxu0 %v4799
    %5199 = vmatpush.bf16.msra.mxu0 %v4798
    %5200 = vmatpush.bf16.msra.mxu0 %v4797
    %5201 = vmatpush.bf16.msra.mxu0 %v4796
    %5202 = vmatpush.bf16.msra.mxu0 %v4795
    %5203 = vmatmul.bf16.gmra.mxu0 %v3661
    %v5204 = vpop.f32.mrf.mxu0
    %v5205 = vadd.f32 %v5191, %v5204
    %v5206 = vpop.f32.mrf.mxu0
    %v5207 = vadd.f32 %v5193, %v5206
    %5208 = vdwg.mxu0
    %5209 = vmatpush.bf16.msra.mxu0 %v4810
    %5210 = vmatpush.bf16.msra.mxu0 %v4809
    %5211 = vmatpush.bf16.msra.mxu0 %v4808
    %5212 = vmatpush.bf16.msra.mxu0 %v4807
    %5213 = vmatpush.bf16.msra.mxu0 %v4806
    %5214 = vmatpush.bf16.msra.mxu0 %v4805
    %5215 = vmatpush.bf16.msra.mxu0 %v4804
    %5216 = vmatpush.bf16.msra.mxu0 %v4803
    %5217 = vmatmul.bf16.gmra.mxu0 %v3662
    %v5218 = vpop.f32.mrf.mxu0
    %v5219 = vadd.f32 %v5205, %v5218
    %v5220 = vpop.f32.mrf.mxu0
    %v5221 = vadd.f32 %v5207, %v5220
    %5222 = vdwg.mxu0
    %5223 = vmatpush.bf16.msra.mxu0 %v4818
    %5224 = vmatpush.bf16.msra.mxu0 %v4817
    %5225 = vmatpush.bf16.msra.mxu0 %v4816
    %5226 = vmatpush.bf16.msra.mxu0 %v4815
    %5227 = vmatpush.bf16.msra.mxu0 %v4814
    %5228 = vmatpush.bf16.msra.mxu0 %v4813
    %5229 = vmatpush.bf16.msra.mxu0 %v4812
    %5230 = vmatpush.bf16.msra.mxu0 %v4811
    %5231 = vmatmul.bf16.gmra.mxu0 %v3663
    %v5232 = vpop.f32.mrf.mxu0
    %v5233 = vadd.f32 %v5219, %v5232
    %v5234 = vpop.f32.mrf.mxu0
    %v5235 = vadd.f32 %v5221, %v5234
    %5236 = vdwg.mxu0
    %5237 = vmatpush.bf16.msra.mxu0 %v4826
    %5238 = vmatpush.bf16.msra.mxu0 %v4825
    %5239 = vmatpush.bf16.msra.mxu0 %v4824
    %5240 = vmatpush.bf16.msra.mxu0 %v4823
    %5241 = vmatpush.bf16.msra.mxu0 %v4822
    %5242 = vmatpush.bf16.msra.mxu0 %v4821
    %5243 = vmatpush.bf16.msra.mxu0 %v4820
    %5244 = vmatpush.bf16.msra.mxu0 %v4819
    %5245 = vmatmul.bf16.gmra.mxu0 %v3664
    %v5246 = vpop.f32.mrf.mxu0
    %v5247 = vadd.f32 %v5233, %v5246
    %v5248 = vpop.f32.mrf.mxu0
    %v5249 = vadd.f32 %v5235, %v5248
    %5250 = vdwg.mxu0
    %5251 = vmatpush.bf16.msra.mxu0 %v4834
    %5252 = vmatpush.bf16.msra.mxu0 %v4833
    %5253 = vmatpush.bf16.msra.mxu0 %v4832
    %5254 = vmatpush.bf16.msra.mxu0 %v4831
    %5255 = vmatpush.bf16.msra.mxu0 %v4830
    %5256 = vmatpush.bf16.msra.mxu0 %v4829
    %5257 = vmatpush.bf16.msra.mxu0 %v4828
    %5258 = vmatpush.bf16.msra.mxu0 %v4827
    %5259 = vmatmul.bf16.gmra.mxu0 %v3665
    %v5260 = vpop.f32.mrf.mxu0
    %v5261 = vadd.f32 %v5247, %v5260
    %v5262 = vpop.f32.mrf.mxu0
    %v5263 = vadd.f32 %v5249, %v5262
    %5264 = vdwg.mxu0
    %5265 = vmatpush.bf16.msra.mxu0 %v4842
    %5266 = vmatpush.bf16.msra.mxu0 %v4841
    %5267 = vmatpush.bf16.msra.mxu0 %v4840
    %5268 = vmatpush.bf16.msra.mxu0 %v4839
    %5269 = vmatpush.bf16.msra.mxu0 %v4838
    %5270 = vmatpush.bf16.msra.mxu0 %v4837
    %5271 = vmatpush.bf16.msra.mxu0 %v4836
    %5272 = vmatpush.bf16.msra.mxu0 %v4835
    %5273 = vmatmul.bf16.gmra.mxu0 %v3666
    %v5274 = vpop.f32.mrf.mxu0
    %v5275 = vadd.f32 %v5261, %v5274
    %v5276 = vpop.f32.mrf.mxu0
    %v5277 = vadd.f32 %v5263, %v5276
    %5278 = vdwg.mxu0
    %5279 = vmatpush.bf16.msra.mxu0 %v4850
    %5280 = vmatpush.bf16.msra.mxu0 %v4849
    %5281 = vmatpush.bf16.msra.mxu0 %v4848
    %5282 = vmatpush.bf16.msra.mxu0 %v4847
    %5283 = vmatpush.bf16.msra.mxu0 %v4846
    %5284 = vmatpush.bf16.msra.mxu0 %v4845
    %5285 = vmatpush.bf16.msra.mxu0 %v4844
    %5286 = vmatpush.bf16.msra.mxu0 %v4843
    %5287 = vmatmul.bf16.gmra.mxu0 %v3667
    %v5288 = vpop.f32.mrf.mxu0
    %v5289 = vadd.f32 %v5275, %v5288
    %v5290 = vpop.f32.mrf.mxu0
    %v5291 = vadd.f32 %v5277, %v5290
    %5292 = vdwg.mxu0
    %5293 = vmatpush.bf16.msra.mxu0 %v4858
    %5294 = vmatpush.bf16.msra.mxu0 %v4857
    %5295 = vmatpush.bf16.msra.mxu0 %v4856
    %5296 = vmatpush.bf16.msra.mxu0 %v4855
    %5297 = vmatpush.bf16.msra.mxu0 %v4854
    %5298 = vmatpush.bf16.msra.mxu0 %v4853
    %5299 = vmatpush.bf16.msra.mxu0 %v4852
    %5300 = vmatpush.bf16.msra.mxu0 %v4851
    %5301 = vmatmul.bf16.gmra.mxu0 %v3668
    %v5302 = vpop.f32.mrf.mxu0
    %v5303 = vadd.f32 %v5289, %v5302
    %v5304 = vpop.f32.mrf.mxu0
    %v5305 = vadd.f32 %v5291, %v5304
    %5306 = vdwg.mxu0
    %5307 = vmatpush.bf16.msra.mxu0 %v4866
    %5308 = vmatpush.bf16.msra.mxu0 %v4865
    %5309 = vmatpush.bf16.msra.mxu0 %v4864
    %5310 = vmatpush.bf16.msra.mxu0 %v4863
    %5311 = vmatpush.bf16.msra.mxu0 %v4862
    %5312 = vmatpush.bf16.msra.mxu0 %v4861
    %5313 = vmatpush.bf16.msra.mxu0 %v4860
    %5314 = vmatpush.bf16.msra.mxu0 %v4859
    %5315 = vmatmul.bf16.gmra.mxu0 %v3669
    %v5316 = vpop.f32.mrf.mxu0
    %v5317 = vadd.f32 %v5303, %v5316
    %v5318 = vpop.f32.mrf.mxu0
    %v5319 = vadd.f32 %v5305, %v5318
    %5320 = vdwg.mxu0
    %5321 = vmatpush.bf16.msra.mxu0 %v4874
    %5322 = vmatpush.bf16.msra.mxu0 %v4873
    %5323 = vmatpush.bf16.msra.mxu0 %v4872
    %5324 = vmatpush.bf16.msra.mxu0 %v4871
    %5325 = vmatpush.bf16.msra.mxu0 %v4870
    %5326 = vmatpush.bf16.msra.mxu0 %v4869
    %5327 = vmatpush.bf16.msra.mxu0 %v4868
    %5328 = vmatpush.bf16.msra.mxu0 %v4867
    %5329 = vmatmul.bf16.gmra.mxu0 %v3670
    %v5330 = vpop.f32.mrf.mxu0
    %v5331 = vadd.f32 %v5317, %v5330
    %v5332 = vpop.f32.mrf.mxu0
    %v5333 = vadd.f32 %v5319, %v5332
    %5334 = vdwg.mxu0
    %5335 = vmatpush.bf16.msra.mxu0 %v4882
    %5336 = vmatpush.bf16.msra.mxu0 %v4881
    %5337 = vmatpush.bf16.msra.mxu0 %v4880
    %5338 = vmatpush.bf16.msra.mxu0 %v4879
    %5339 = vmatpush.bf16.msra.mxu0 %v4878
    %5340 = vmatpush.bf16.msra.mxu0 %v4877
    %5341 = vmatpush.bf16.msra.mxu0 %v4876
    %5342 = vmatpush.bf16.msra.mxu0 %v4875
    %5343 = vmatmul.bf16.gmra.mxu0 %v3671
    %v5344 = vpop.f32.mrf.mxu0
    %v5345 = vadd.f32 %v5331, %v5344
    %v5346 = vpop.f32.mrf.mxu0
    %v5347 = vadd.f32 %v5333, %v5346
    %5348 = vdwg.mxu0
    %5349 = vmatpush.bf16.msra.mxu0 %v4890
    %5350 = vmatpush.bf16.msra.mxu0 %v4889
    %5351 = vmatpush.bf16.msra.mxu0 %v4888
    %5352 = vmatpush.bf16.msra.mxu0 %v4887
    %5353 = vmatpush.bf16.msra.mxu0 %v4886
    %5354 = vmatpush.bf16.msra.mxu0 %v4885
    %5355 = vmatpush.bf16.msra.mxu0 %v4884
    %5356 = vmatpush.bf16.msra.mxu0 %v4883
    %5357 = vmatmul.bf16.gmra.mxu0 %v3672
    %v5358 = vpop.f32.mrf.mxu0
    %v5359 = vadd.f32 %v5345, %v5358
    %v5360 = vpop.f32.mrf.mxu0
    %v5361 = vadd.f32 %v5347, %v5360
    %5362 = vdwg.mxu0
    %5363 = vmatpush.bf16.msra.mxu0 %v4898
    %5364 = vmatpush.bf16.msra.mxu0 %v4897
    %5365 = vmatpush.bf16.msra.mxu0 %v4896
    %5366 = vmatpush.bf16.msra.mxu0 %v4895
    %5367 = vmatpush.bf16.msra.mxu0 %v4894
    %5368 = vmatpush.bf16.msra.mxu0 %v4893
    %5369 = vmatpush.bf16.msra.mxu0 %v4892
    %5370 = vmatpush.bf16.msra.mxu0 %v4891
    %5371 = vmatmul.bf16.gmra.mxu0 %v3673
    %v5372 = vpop.f32.mrf.mxu0
    %v5373 = vadd.f32 %v5359, %v5372
    %v5374 = vpop.f32.mrf.mxu0
    %v5375 = vadd.f32 %v5361, %v5374
    %5376 = vdwg.mxu0
    %5377 = vmatpush.bf16.msra.mxu0 %v4906
    %5378 = vmatpush.bf16.msra.mxu0 %v4905
    %5379 = vmatpush.bf16.msra.mxu0 %v4904
    %5380 = vmatpush.bf16.msra.mxu0 %v4903
    %5381 = vmatpush.bf16.msra.mxu0 %v4902
    %5382 = vmatpush.bf16.msra.mxu0 %v4901
    %5383 = vmatpush.bf16.msra.mxu0 %v4900
    %5384 = vmatpush.bf16.msra.mxu0 %v4899
    %5385 = vmatmul.bf16.gmra.mxu0 %v3674
    %v5386 = vpop.f32.mrf.mxu0
    %v5387 = vadd.f32 %v5373, %v5386
    %v5388 = vpop.f32.mrf.mxu0
    %v5389 = vadd.f32 %v5375, %v5388
    %5390 = vdwg.mxu0
    %v5391 = vadd.f32 %v3651, %v5387
    %v5392 = vadd.f32 %v3652, %v5389
    %5393 = vst [vmem:[#allocation2] sm:$0xff] %v5391
    %5394 = vst [vmem:[#allocation2 + $0x8] sm:$0xff] %v5392
    // Predicated region
    $region46: #{tpu_custom_call.1} parent=1 // pred_check
      %p5395 = pneg %p96
    $region47: #{tpu_custom_call.1} parent=1 // pred_check_branch
      %5397 = sbr.rel (%p5395) target = $region49
    $region48: #{tpu_custom_call.1} parent=1 // pred_region
      %v5398 = vld [vmem:[#allocation2] sm:$0xff]
      %v5399 = vld [vmem:[#allocation2 + $0x8] sm:$0xff]
      %v5400 = vld [vmem:[#allocation11] sm:$0x1]
      %v5402 = vperm.slane %v5400, 0
      %v5404 = vadd.f32 %v5398, %v5402
      %v5405 = vadd.f32 %v5399, %v5402
      %5406 = vst [vmem:[#allocation12] sm:$0xff] %v5404
      %5407 = vst [vmem:[#allocation12 + $0x8] sm:$0xff] %v5405
    $region49: #{tpu_custom_call.1} parent=1 // pred_fallthru
      _
    // Predicated region
    $region50: #{tpu_custom_call.1} parent=1 // pred_check
      _
    $region51: #{tpu_custom_call.1} parent=1 // pred_check_branch
      %5409 = sbr.rel (0) target = $region53
    $region52: #{tpu_custom_call.1} parent=1 // pred_region
      %5411 = vsyncadd [#allocation5], 0
      %s5412 = sshll.u32 [#allocation12], 4
      %s5413 = int_to_ptr.vmem [resolvable:$true] %s5412
      %s5414 = sshll.u32 %s5, 4
      %s5415 = int_to_ptr.hbm [resolvable:$true] %s5414
      %5420 = dma.vmem_to_hbm [thread:$0]  %s5413, 256, %s5415, [#allocation5], 128, 128, 8
    $region53: #{tpu_custom_call.1} parent=1 // pred_fallthru
      _
    // Predicated region
    $region54: #{tpu_custom_call.1} parent=1 // pred_check
      _
    $region55: #{tpu_custom_call.1} parent=1 // pred_check_branch
      %5422 = sbr.rel (0) target = $region57
    $region56: #{tpu_custom_call.1} parent=1 // pred_region
      %5424 = dma.done [#allocation5], 256
    $region57: #{tpu_custom_call.1} parent=1 // pred_fallthru
      _
    %5425 = vsyncpa [#allocation4], 1
    %5426 = vsyncpa [#allocation7], 1
    %5427 = vsyncpa [#allocation10], 1
    %5428 = vsyncpa [#allocation5], 1

</llo_original>
